<compile_context>
chip_gen: v5e
topology: v5e:2x2
jax: 0.10.0
libtpu: 0.0.40
codegen_flags: <defaults>
</compile_context>

<pallas_src>
import functools

import jax
import jax.numpy as jnp
from jax.experimental import pallas as pl
from jax.experimental.pallas import tpu as pltpu

_VMEM_LIMIT = 32 * 1024 * 1024


# ------------------------------ tiling helpers ------------------------------


def _batch_tile(n):
    """Largest batch tile <= 32 dividing n while keeping >= 2 grid steps."""
    for d in (32, 16, 8, 4, 2, 1):
        if n % d == 0 and n // d >= 2:
            return d
    return 1


# ------------------------------ Pallas kernels ------------------------------


def _conv1_relu_pool_kernel(v00_ref, v01_ref, v10_ref, v11_ref, w_ref, b_ref,
                            o_ref, *, Ho, Wo):
    """Fused conv(1->Cout, 3x3, pad1) + bias + ReLU + 2x2 maxpool (VPU path).

    v??_ref: padded input deinterleaved by (row, col) parity, (nb, Ho+1, Wo+1, 1)
    w_ref  : (9, Cout), rows ordered (di, dj)
    b_ref  : (1, 1, 1, Cout)
    o_ref  : (nb, Ho, Wo, Cout) bf16
    """
    views = ((v00_ref[...], v01_ref[...]), (v10_ref[...], v11_ref[...]))
    w = w_ref[...]
    b = b_ref[...]

    # The 16 distinct (row-parity, row-offset, col-parity, col-offset) slabs.
    slabs = {}
    for pr in (0, 1):
        for qr in (0, 1):
            for pc in (0, 1):
                for qc in (0, 1):
                    slabs[(pr, qr, pc, qc)] = (
                        views[pr][pc][:, qr:qr + Ho, qc:qc + Wo, :])

    phases = ((0, 0), (0, 1), (1, 0), (1, 1))
    accs = [None] * 4
    for di in range(3):
        for dj in range(3):
            k = di * 3 + dj
            wk = w[k:k + 1, :]                       # (1, Cout), shared by phases
            for idx, (a, c) in enumerate(phases):
                pr, qr = (a + di) % 2, (a + di) // 2
                pc, qc = (c + dj) % 2, (c + dj) // 2
                t = slabs[(pr, qr, pc, qc)] * wk     # (nb, Ho, Wo, Cout) f32
                accs[idx] = t if accs[idx] is None else accs[idx] + t
    pooled = jnp.maximum(jnp.maximum(accs[0], accs[1]),
                         jnp.maximum(accs[2], accs[3]))
    o_ref[...] = jnp.maximum(pooled + b, 0.0).astype(o_ref.dtype)


def _conv2_pool_fc_kernel(v00_ref, v01_ref, v10_ref, v11_ref, w2_ref, b2_ref,
                          wf_ref, bf_ref, o_ref, *, Ho, Wo, Cin, Cout):
    """Fused conv(Cin->Cout, 3x3, pad1) + bias + ReLU + 2x2 maxpool + FC.

    v??_ref: parity views of the padded y1, (nb, Ho+1, Wo+1, Cin) bf16
    w2_ref : (9*Cin, Cout) bf16, rows ordered (di, dj, cin)
    b2_ref : (1, Cout) f32
    wf_ref : (Ho*Wo*Cout, 10) bf16, rows in NHWC-flatten order
    bf_ref : (1, 10) f32
    o_ref  : (nb, 1, 10) f32
    """
    nb = v00_ref.shape[0]
    views = ((v00_ref[...], v01_ref[...]), (v10_ref[...], v11_ref[...]))
    w2 = w2_ref[...]
    b2 = b2_ref[...]
    wf = wf_ref[...]
    bf = bf_ref[...]

    # The 16 distinct parity-view slabs (each (nb, Ho, Wo, Cin)).
    slabs = {}
    for pr in (0, 1):
        for qr in (0, 1):
            for pc in (0, 1):
                for qc in (0, 1):
                    slabs[(pr, qr, pc, qc)] = (
                        views[pr][pc][:, qr:qr + Ho, qc:qc + Wo, :])

    # Patch matrices of all 4 pool phases, stacked along M -> ONE MXU matmul.
    m = nb * Ho * Wo
    phase_mats = []
    for a in (0, 1):
        for c in (0, 1):
            taps = []
            for di in range(3):
                for dj in range(3):
                    pr, qr = (a + di) % 2, (a + di) // 2
                    pc, qc = (c + dj) % 2, (c + dj) // 2
                    taps.append(slabs[(pr, qr, pc, qc)])
            patch = jnp.concatenate(taps, axis=-1)          # (nb,Ho,Wo,9*Cin)
            phase_mats.append(patch.reshape(m, 9 * Cin))    # bf16
    patches = jnp.concatenate(phase_mats, axis=0)           # (4*m, 9*Cin)

    y = jnp.dot(patches, w2, preferred_element_type=jnp.float32)   # (4*m, Cout)

    # Max over the 4 pool phases (static row blocks), bias, ReLU.
    z = jnp.maximum(jnp.maximum(y[0 * m:1 * m, :], y[1 * m:2 * m, :]),
                    jnp.maximum(y[2 * m:3 * m, :], y[3 * m:4 * m, :]))
    feat = jnp.maximum(z + b2, 0.0).astype(jnp.bfloat16)            # (m, Cout)
    feat = feat.reshape(nb, Ho * Wo, Cout)

    # NHWC flatten via lane concat: (nb, Ho*Wo, Cout) -> (nb, Ho*Wo*Cout).
    flat = jnp.concatenate([feat[:, p, :] for p in range(Ho * Wo)], axis=-1)

    logits = jnp.dot(flat, wf, preferred_element_type=jnp.float32) + bf
    o_ref[...] = logits[:, None, :].astype(o_ref.dtype)


# --------------------------------- wrappers ---------------------------------


def _deinterleave(xp):
    """Split a padded NHWC tensor into its 4 (row, col) parity views."""
    return [xp[:, a::2, c::2, :] for a in (0, 1) for c in (0, 1)]


def conv1_relu_pool(views, w_mat, b, *, nb, Ho, Wo, Cout):
    n = views[0].shape[0]
    view_spec = pl.BlockSpec((nb, Ho + 1, Wo + 1, 1), lambda i: (i, 0, 0, 0))
    return pl.pallas_call(
        functools.partial(_conv1_relu_pool_kernel, Ho=Ho, Wo=Wo),
        out_shape=jax.ShapeDtypeStruct((n, Ho, Wo, Cout), jnp.bfloat16),
        grid_spec=pltpu.PrefetchScalarGridSpec(
            num_scalar_prefetch=0,
            grid=(n // nb,),
            in_specs=[view_spec] * 4 + [
                pl.BlockSpec((9, Cout), lambda i: (0, 0)),
                pl.BlockSpec((1, 1, 1, Cout), lambda i: (0, 0, 0, 0)),
            ],
            out_specs=pl.BlockSpec((nb, Ho, Wo, Cout), lambda i: (i, 0, 0, 0))),
        compiler_params=pltpu.CompilerParams(
            dimension_semantics=("parallel",),
            vmem_limit_bytes=_VMEM_LIMIT),
    )(*views, w_mat, b.reshape(1, 1, 1, Cout))


def conv2_pool_fc(views, w2_mat, b2, wf_mat, bf, *, nb, Ho, Wo, Cin, Cout,
                  Nout):
    n = views[0].shape[0]
    view_spec = pl.BlockSpec((nb, Ho + 1, Wo + 1, Cin), lambda i: (i, 0, 0, 0))
    out = pl.pallas_call(
        functools.partial(_conv2_pool_fc_kernel, Ho=Ho, Wo=Wo, Cin=Cin,
                          Cout=Cout),
        out_shape=jax.ShapeDtypeStruct((n, 1, Nout), jnp.float32),
        grid_spec=pltpu.PrefetchScalarGridSpec(
            num_scalar_prefetch=0,
            grid=(n // nb,),
            in_specs=[view_spec] * 4 + [
                pl.BlockSpec((9 * Cin, Cout), lambda i: (0, 0)),
                pl.BlockSpec((1, Cout), lambda i: (0, 0)),
                pl.BlockSpec((Ho * Wo * Cout, Nout), lambda i: (0, 0)),
                pl.BlockSpec((1, Nout), lambda i: (0, 0)),
            ],
            out_specs=pl.BlockSpec((nb, 1, Nout), lambda i: (i, 0, 0))),
        compiler_params=pltpu.CompilerParams(
            dimension_semantics=("parallel",),
            vmem_limit_bytes=_VMEM_LIMIT),
    )(*views, w2_mat, b2.reshape(1, Cout), wf_mat, bf.reshape(1, Nout))
    return out.reshape(n, Nout)


# -------------------------------- full forward ------------------------------


def cnn_forward(x_nchw, params):
    w1, b1, w2, b2, wf, bf = params
    n = x_nchw.shape[0]
    nb = _batch_tile(n)

    x = jnp.transpose(x_nchw, (0, 2, 3, 1)).astype(jnp.float32)   # (N,28,28,1)

    # layer 1: conv 1->16 (3x3, pad1) + ReLU + maxpool2, one fused kernel
    xp = jnp.pad(x, ((0, 0), (1, 1), (1, 1), (0, 0)))             # (N,30,30,1)
    w1m = jnp.transpose(w1, (2, 3, 1, 0)).reshape(9, 16)          # (di,dj)xCout
    y1 = conv1_relu_pool(_deinterleave(xp), w1m.astype(jnp.float32),
                         b1.astype(jnp.float32),
                         nb=nb, Ho=14, Wo=14, Cout=16)            # (N,14,14,16) bf16

    # layer 2 + classifier: conv 16->32 + ReLU + maxpool2 + FC, one fused
    # kernel (bf16 MXU operands, f32 accumulation).
    y1p = jnp.pad(y1, ((0, 0), (1, 1), (1, 1), (0, 0)))           # (N,16,16,16)
    w2m = jnp.transpose(w2, (2, 3, 1, 0)).reshape(9 * 16, 32)     # (144,32)
    wfm = wf.reshape(32, 7, 7, 10).transpose(1, 2, 0, 3).reshape(49 * 32, 10)
    logits = conv2_pool_fc(_deinterleave(y1p),
                           w2m.astype(jnp.bfloat16),
                           b2.astype(jnp.float32),
                           wfm.astype(jnp.bfloat16),
                           bf.astype(jnp.float32),
                           nb=nb, Ho=7, Wo=7, Cin=16, Cout=32, Nout=10)
    return logits                                                  # (N,10)


# ------------------------- pure-JAX reference & init ------------------------


def reference_forward(x_nchw, params):
    """Pure-JAX reference matching the PyTorch module semantics."""
    w1, b1, w2, b2, wf, bf = params

    def conv(x, w, b):
        y = jax.lax.conv_general_dilated(
            x, w, (1, 1), ((1, 1), (1, 1)),
            dimension_numbers=("NCHW", "OIHW", "NCHW"))
        return jax.nn.relu(y + b[None, :, None, None])

    def pool(x):
        return jax.lax.reduce_window(x, -jnp.inf, jax.lax.max,
                                     (1, 1, 2, 2), (1, 1, 2, 2), "VALID")

    y = pool(conv(x_nchw, w1, b1))
    y = pool(conv(y, w2, b2))
    feat = y.reshape(y.shape[0], -1)
    return feat @ wf + bf


def init_params(key):
    ks = jax.random.split(key, 6)
    w1 = jax.random.normal(ks[0], (16, 1, 3, 3), jnp.float32) * 0.1   # OIHW
    b1 = jax.random.normal(ks[1], (16,), jnp.float32) * 0.1
    w2 = jax.random.normal(ks[2], (32, 16, 3, 3), jnp.float32) * 0.1  # OIHW
    b2 = jax.random.normal(ks[3], (32,), jnp.float32) * 0.1
    wf = jax.random.normal(ks[4], (32 * 7 * 7, 10), jnp.float32) * 0.02
    bf = jax.random.normal(ks[5], (10,), jnp.float32) * 0.02
    return w1, b1, w2, b2, wf, bf


# TODO(synk): training loop / Adam / CrossEntropyLoss of the PyTorch module
# are out of scope for this forward-pass kernel.

if __name__ == "__main__":
    key = jax.random.PRNGKey(0)
    kx, kp = jax.random.split(key)
    x = jax.random.normal(kx, (2, 1, 28, 28), jnp.float32)   # (N, C, H, W)
    params = init_params(kp)

    logits = jax.jit(cnn_forward)(x, params)
    logits = jax.block_until_ready(logits)
    assert logits.shape == (2, 10)

    ref = reference_forward(x, params)
    # bf16 MXU operands (with f32 accumulation) shift logits by O(1e-3);
    # 2e-2 keeps a comfortable margin while still catching real bugs.
    err = float(jnp.max(jnp.abs(logits - ref)))
    assert jnp.allclose(logits, ref, atol=2e-2, rtol=2e-2), err

    print("KERNEL_OK")
</pallas_src>

<mosaic_0001>
module attributes {stable_mosaic.version = 11 : i64} {
  func.func @_conv1_relu_pool_kernel(%arg0: i32, %arg1: memref<1x15x15x1xf32, #tpu.memory_space<vmem>>, %arg2: memref<1x15x15x1xf32, #tpu.memory_space<vmem>>, %arg3: memref<1x15x15x1xf32, #tpu.memory_space<vmem>>, %arg4: memref<1x15x15x1xf32, #tpu.memory_space<vmem>>, %arg5: memref<9x16xf32, #tpu.memory_space<vmem>>, %arg6: memref<1x1x1x16xf32, #tpu.memory_space<vmem>>, %arg7: memref<1x14x14x16xbf16, #tpu.memory_space<vmem>>) attributes {dimension_semantics = [#tpu.dimension_semantics<parallel>], iteration_bounds = array<i64: 2>, scalar_prefetch = 0 : i64, scratch_operands = 0 : i64, tpu.core_type = #tpu.core_type<tc>, window_params = [{transform_indices = @transform_0, window_bounds = array<i64: 1, 15, 15, 1>}, {transform_indices = @transform_1, window_bounds = array<i64: 1, 15, 15, 1>}, {transform_indices = @transform_2, window_bounds = array<i64: 1, 15, 15, 1>}, {transform_indices = @transform_3, window_bounds = array<i64: 1, 15, 15, 1>}, {pipeline_mode = #tpu.pipeline_mode<synchronous>, transform_indices = @transform_4, window_bounds = array<i64: 9, 16>}, {pipeline_mode = #tpu.pipeline_mode<synchronous>, transform_indices = @transform_5, window_bounds = array<i64: 1, 1, 1, 16>}, {transform_indices = @transform_6, window_bounds = array<i64: 1, 14, 14, 16>}]} {
    %c0 = arith.constant 0 : index
    %c0_0 = arith.constant 0 : index
    %c0_1 = arith.constant 0 : index
    %c0_2 = arith.constant 0 : index
    %0 = vector.load %arg1[%c0, %c0_0, %c0_1, %c0_2] : memref<1x15x15x1xf32, #tpu.memory_space<vmem>>, vector<1x15x15x1xf32>
    %c0_3 = arith.constant 0 : index
    %c0_4 = arith.constant 0 : index
    %c0_5 = arith.constant 0 : index
    %c0_6 = arith.constant 0 : index
    %1 = vector.load %arg2[%c0_3, %c0_4, %c0_5, %c0_6] : memref<1x15x15x1xf32, #tpu.memory_space<vmem>>, vector<1x15x15x1xf32>
    %c0_7 = arith.constant 0 : index
    %c0_8 = arith.constant 0 : index
    %c0_9 = arith.constant 0 : index
    %c0_10 = arith.constant 0 : index
    %2 = vector.load %arg3[%c0_7, %c0_8, %c0_9, %c0_10] : memref<1x15x15x1xf32, #tpu.memory_space<vmem>>, vector<1x15x15x1xf32>
    %c0_11 = arith.constant 0 : index
    %c0_12 = arith.constant 0 : index
    %c0_13 = arith.constant 0 : index
    %c0_14 = arith.constant 0 : index
    %3 = vector.load %arg4[%c0_11, %c0_12, %c0_13, %c0_14] : memref<1x15x15x1xf32, #tpu.memory_space<vmem>>, vector<1x15x15x1xf32>
    %c0_15 = arith.constant 0 : index
    %c0_16 = arith.constant 0 : index
    %4 = vector.load %arg5[%c0_15, %c0_16] : memref<9x16xf32, #tpu.memory_space<vmem>>, vector<9x16xf32>
    %c0_17 = arith.constant 0 : index
    %c0_18 = arith.constant 0 : index
    %c0_19 = arith.constant 0 : index
    %c0_20 = arith.constant 0 : index
    %5 = vector.load %arg6[%c0_17, %c0_18, %c0_19, %c0_20] : memref<1x1x1x16xf32, #tpu.memory_space<vmem>>, vector<1x1x1x16xf32>
    %6 = vector.extract_strided_slice %0 {offsets = [0, 0, 0, 0], sizes = [1, 14, 14, 1], strides = [1, 1, 1, 1]} : vector<1x15x15x1xf32> to vector<1x14x14x1xf32>
    %7 = vector.extract_strided_slice %0 {offsets = [0, 0, 1, 0], sizes = [1, 14, 14, 1], strides = [1, 1, 1, 1]} : vector<1x15x15x1xf32> to vector<1x14x14x1xf32>
    %8 = vector.extract_strided_slice %1 {offsets = [0, 0, 0, 0], sizes = [1, 14, 14, 1], strides = [1, 1, 1, 1]} : vector<1x15x15x1xf32> to vector<1x14x14x1xf32>
    %9 = vector.extract_strided_slice %1 {offsets = [0, 0, 1, 0], sizes = [1, 14, 14, 1], strides = [1, 1, 1, 1]} : vector<1x15x15x1xf32> to vector<1x14x14x1xf32>
    %10 = vector.extract_strided_slice %0 {offsets = [0, 1, 0, 0], sizes = [1, 14, 14, 1], strides = [1, 1, 1, 1]} : vector<1x15x15x1xf32> to vector<1x14x14x1xf32>
    %11 = vector.extract_strided_slice %0 {offsets = [0, 1, 1, 0], sizes = [1, 14, 14, 1], strides = [1, 1, 1, 1]} : vector<1x15x15x1xf32> to vector<1x14x14x1xf32>
    %12 = vector.extract_strided_slice %1 {offsets = [0, 1, 0, 0], sizes = [1, 14, 14, 1], strides = [1, 1, 1, 1]} : vector<1x15x15x1xf32> to vector<1x14x14x1xf32>
    %13 = vector.extract_strided_slice %1 {offsets = [0, 1, 1, 0], sizes = [1, 14, 14, 1], strides = [1, 1, 1, 1]} : vector<1x15x15x1xf32> to vector<1x14x14x1xf32>
    %14 = vector.extract_strided_slice %2 {offsets = [0, 0, 0, 0], sizes = [1, 14, 14, 1], strides = [1, 1, 1, 1]} : vector<1x15x15x1xf32> to vector<1x14x14x1xf32>
    %15 = vector.extract_strided_slice %2 {offsets = [0, 0, 1, 0], sizes = [1, 14, 14, 1], strides = [1, 1, 1, 1]} : vector<1x15x15x1xf32> to vector<1x14x14x1xf32>
    %16 = vector.extract_strided_slice %3 {offsets = [0, 0, 0, 0], sizes = [1, 14, 14, 1], strides = [1, 1, 1, 1]} : vector<1x15x15x1xf32> to vector<1x14x14x1xf32>
    %17 = vector.extract_strided_slice %3 {offsets = [0, 0, 1, 0], sizes = [1, 14, 14, 1], strides = [1, 1, 1, 1]} : vector<1x15x15x1xf32> to vector<1x14x14x1xf32>
    %18 = vector.extract_strided_slice %2 {offsets = [0, 1, 0, 0], sizes = [1, 14, 14, 1], strides = [1, 1, 1, 1]} : vector<1x15x15x1xf32> to vector<1x14x14x1xf32>
    %19 = vector.extract_strided_slice %2 {offsets = [0, 1, 1, 0], sizes = [1, 14, 14, 1], strides = [1, 1, 1, 1]} : vector<1x15x15x1xf32> to vector<1x14x14x1xf32>
    %20 = vector.extract_strided_slice %3 {offsets = [0, 1, 0, 0], sizes = [1, 14, 14, 1], strides = [1, 1, 1, 1]} : vector<1x15x15x1xf32> to vector<1x14x14x1xf32>
    %21 = vector.extract_strided_slice %3 {offsets = [0, 1, 1, 0], sizes = [1, 14, 14, 1], strides = [1, 1, 1, 1]} : vector<1x15x15x1xf32> to vector<1x14x14x1xf32>
    %22 = vector.extract_strided_slice %4 {offsets = [0, 0], sizes = [1, 16], strides = [1, 1]} : vector<9x16xf32> to vector<1x16xf32>
    %23 = vector.shape_cast %22 : vector<1x16xf32> to vector<1x1x1x16xf32>
    %24 = vector.broadcast %6 : vector<1x14x14x1xf32> to vector<1x14x14x16xf32>
    %25 = vector.broadcast %23 : vector<1x1x1x16xf32> to vector<1x14x14x16xf32>
    %26 = arith.mulf %24, %25 : vector<1x14x14x16xf32>
    %27 = vector.shape_cast %22 : vector<1x16xf32> to vector<1x1x1x16xf32>
    %28 = vector.broadcast %8 : vector<1x14x14x1xf32> to vector<1x14x14x16xf32>
    %29 = vector.broadcast %27 : vector<1x1x1x16xf32> to vector<1x14x14x16xf32>
    %30 = arith.mulf %28, %29 : vector<1x14x14x16xf32>
    %31 = vector.shape_cast %22 : vector<1x16xf32> to vector<1x1x1x16xf32>
    %32 = vector.broadcast %14 : vector<1x14x14x1xf32> to vector<1x14x14x16xf32>
    %33 = vector.broadcast %31 : vector<1x1x1x16xf32> to vector<1x14x14x16xf32>
    %34 = arith.mulf %32, %33 : vector<1x14x14x16xf32>
    %35 = vector.shape_cast %22 : vector<1x16xf32> to vector<1x1x1x16xf32>
    %36 = vector.broadcast %16 : vector<1x14x14x1xf32> to vector<1x14x14x16xf32>
    %37 = vector.broadcast %35 : vector<1x1x1x16xf32> to vector<1x14x14x16xf32>
    %38 = arith.mulf %36, %37 : vector<1x14x14x16xf32>
    %39 = vector.extract_strided_slice %4 {offsets = [1, 0], sizes = [1, 16], strides = [1, 1]} : vector<9x16xf32> to vector<1x16xf32>
    %40 = vector.shape_cast %39 : vector<1x16xf32> to vector<1x1x1x16xf32>
    %41 = vector.broadcast %8 : vector<1x14x14x1xf32> to vector<1x14x14x16xf32>
    %42 = vector.broadcast %40 : vector<1x1x1x16xf32> to vector<1x14x14x16xf32>
    %43 = arith.mulf %41, %42 : vector<1x14x14x16xf32>
    %44 = arith.addf %26, %43 : vector<1x14x14x16xf32>
    %45 = vector.shape_cast %39 : vector<1x16xf32> to vector<1x1x1x16xf32>
    %46 = vector.broadcast %7 : vector<1x14x14x1xf32> to vector<1x14x14x16xf32>
    %47 = vector.broadcast %45 : vector<1x1x1x16xf32> to vector<1x14x14x16xf32>
    %48 = arith.mulf %46, %47 : vector<1x14x14x16xf32>
    %49 = arith.addf %30, %48 : vector<1x14x14x16xf32>
    %50 = vector.shape_cast %39 : vector<1x16xf32> to vector<1x1x1x16xf32>
    %51 = vector.broadcast %16 : vector<1x14x14x1xf32> to vector<1x14x14x16xf32>
    %52 = vector.broadcast %50 : vector<1x1x1x16xf32> to vector<1x14x14x16xf32>
    %53 = arith.mulf %51, %52 : vector<1x14x14x16xf32>
    %54 = arith.addf %34, %53 : vector<1x14x14x16xf32>
    %55 = vector.shape_cast %39 : vector<1x16xf32> to vector<1x1x1x16xf32>
    %56 = vector.broadcast %15 : vector<1x14x14x1xf32> to vector<1x14x14x16xf32>
    %57 = vector.broadcast %55 : vector<1x1x1x16xf32> to vector<1x14x14x16xf32>
    %58 = arith.mulf %56, %57 : vector<1x14x14x16xf32>
    %59 = arith.addf %38, %58 : vector<1x14x14x16xf32>
    %60 = vector.extract_strided_slice %4 {offsets = [2, 0], sizes = [1, 16], strides = [1, 1]} : vector<9x16xf32> to vector<1x16xf32>
    %61 = vector.shape_cast %60 : vector<1x16xf32> to vector<1x1x1x16xf32>
    %62 = vector.broadcast %7 : vector<1x14x14x1xf32> to vector<1x14x14x16xf32>
    %63 = vector.broadcast %61 : vector<1x1x1x16xf32> to vector<1x14x14x16xf32>
    %64 = arith.mulf %62, %63 : vector<1x14x14x16xf32>
    %65 = arith.addf %44, %64 : vector<1x14x14x16xf32>
    %66 = vector.shape_cast %60 : vector<1x16xf32> to vector<1x1x1x16xf32>
    %67 = vector.broadcast %9 : vector<1x14x14x1xf32> to vector<1x14x14x16xf32>
    %68 = vector.broadcast %66 : vector<1x1x1x16xf32> to vector<1x14x14x16xf32>
    %69 = arith.mulf %67, %68 : vector<1x14x14x16xf32>
    %70 = arith.addf %49, %69 : vector<1x14x14x16xf32>
    %71 = vector.shape_cast %60 : vector<1x16xf32> to vector<1x1x1x16xf32>
    %72 = vector.broadcast %15 : vector<1x14x14x1xf32> to vector<1x14x14x16xf32>
    %73 = vector.broadcast %71 : vector<1x1x1x16xf32> to vector<1x14x14x16xf32>
    %74 = arith.mulf %72, %73 : vector<1x14x14x16xf32>
    %75 = arith.addf %54, %74 : vector<1x14x14x16xf32>
    %76 = vector.shape_cast %60 : vector<1x16xf32> to vector<1x1x1x16xf32>
    %77 = vector.broadcast %17 : vector<1x14x14x1xf32> to vector<1x14x14x16xf32>
    %78 = vector.broadcast %76 : vector<1x1x1x16xf32> to vector<1x14x14x16xf32>
    %79 = arith.mulf %77, %78 : vector<1x14x14x16xf32>
    %80 = arith.addf %59, %79 : vector<1x14x14x16xf32>
    %81 = vector.extract_strided_slice %4 {offsets = [3, 0], sizes = [1, 16], strides = [1, 1]} : vector<9x16xf32> to vector<1x16xf32>
    %82 = vector.shape_cast %81 : vector<1x16xf32> to vector<1x1x1x16xf32>
    %83 = vector.broadcast %14 : vector<1x14x14x1xf32> to vector<1x14x14x16xf32>
    %84 = vector.broadcast %82 : vector<1x1x1x16xf32> to vector<1x14x14x16xf32>
    %85 = arith.mulf %83, %84 : vector<1x14x14x16xf32>
    %86 = arith.addf %65, %85 : vector<1x14x14x16xf32>
    %87 = vector.shape_cast %81 : vector<1x16xf32> to vector<1x1x1x16xf32>
    %88 = vector.broadcast %16 : vector<1x14x14x1xf32> to vector<1x14x14x16xf32>
    %89 = vector.broadcast %87 : vector<1x1x1x16xf32> to vector<1x14x14x16xf32>
    %90 = arith.mulf %88, %89 : vector<1x14x14x16xf32>
    %91 = arith.addf %70, %90 : vector<1x14x14x16xf32>
    %92 = vector.shape_cast %81 : vector<1x16xf32> to vector<1x1x1x16xf32>
    %93 = vector.broadcast %10 : vector<1x14x14x1xf32> to vector<1x14x14x16xf32>
    %94 = vector.broadcast %92 : vector<1x1x1x16xf32> to vector<1x14x14x16xf32>
    %95 = arith.mulf %93, %94 : vector<1x14x14x16xf32>
    %96 = arith.addf %75, %95 : vector<1x14x14x16xf32>
    %97 = vector.shape_cast %81 : vector<1x16xf32> to vector<1x1x1x16xf32>
    %98 = vector.broadcast %12 : vector<1x14x14x1xf32> to vector<1x14x14x16xf32>
    %99 = vector.broadcast %97 : vector<1x1x1x16xf32> to vector<1x14x14x16xf32>
    %100 = arith.mulf %98, %99 : vector<1x14x14x16xf32>
    %101 = arith.addf %80, %100 : vector<1x14x14x16xf32>
    %102 = vector.extract_strided_slice %4 {offsets = [4, 0], sizes = [1, 16], strides = [1, 1]} : vector<9x16xf32> to vector<1x16xf32>
    %103 = vector.shape_cast %102 : vector<1x16xf32> to vector<1x1x1x16xf32>
    %104 = vector.broadcast %16 : vector<1x14x14x1xf32> to vector<1x14x14x16xf32>
    %105 = vector.broadcast %103 : vector<1x1x1x16xf32> to vector<1x14x14x16xf32>
    %106 = arith.mulf %104, %105 : vector<1x14x14x16xf32>
    %107 = arith.addf %86, %106 : vector<1x14x14x16xf32>
    %108 = vector.shape_cast %102 : vector<1x16xf32> to vector<1x1x1x16xf32>
    %109 = vector.broadcast %15 : vector<1x14x14x1xf32> to vector<1x14x14x16xf32>
    %110 = vector.broadcast %108 : vector<1x1x1x16xf32> to vector<1x14x14x16xf32>
    %111 = arith.mulf %109, %110 : vector<1x14x14x16xf32>
    %112 = arith.addf %91, %111 : vector<1x14x14x16xf32>
    %113 = vector.shape_cast %102 : vector<1x16xf32> to vector<1x1x1x16xf32>
    %114 = vector.broadcast %12 : vector<1x14x14x1xf32> to vector<1x14x14x16xf32>
    %115 = vector.broadcast %113 : vector<1x1x1x16xf32> to vector<1x14x14x16xf32>
    %116 = arith.mulf %114, %115 : vector<1x14x14x16xf32>
    %117 = arith.addf %96, %116 : vector<1x14x14x16xf32>
    %118 = vector.shape_cast %102 : vector<1x16xf32> to vector<1x1x1x16xf32>
    %119 = vector.broadcast %11 : vector<1x14x14x1xf32> to vector<1x14x14x16xf32>
    %120 = vector.broadcast %118 : vector<1x1x1x16xf32> to vector<1x14x14x16xf32>
    %121 = arith.mulf %119, %120 : vector<1x14x14x16xf32>
    %122 = arith.addf %101, %121 : vector<1x14x14x16xf32>
    %123 = vector.extract_strided_slice %4 {offsets = [5, 0], sizes = [1, 16], strides = [1, 1]} : vector<9x16xf32> to vector<1x16xf32>
    %124 = vector.shape_cast %123 : vector<1x16xf32> to vector<1x1x1x16xf32>
    %125 = vector.broadcast %15 : vector<1x14x14x1xf32> to vector<1x14x14x16xf32>
    %126 = vector.broadcast %124 : vector<1x1x1x16xf32> to vector<1x14x14x16xf32>
    %127 = arith.mulf %125, %126 : vector<1x14x14x16xf32>
    %128 = arith.addf %107, %127 : vector<1x14x14x16xf32>
    %129 = vector.shape_cast %123 : vector<1x16xf32> to vector<1x1x1x16xf32>
    %130 = vector.broadcast %17 : vector<1x14x14x1xf32> to vector<1x14x14x16xf32>
    %131 = vector.broadcast %129 : vector<1x1x1x16xf32> to vector<1x14x14x16xf32>
    %132 = arith.mulf %130, %131 : vector<1x14x14x16xf32>
    %133 = arith.addf %112, %132 : vector<1x14x14x16xf32>
    %134 = vector.shape_cast %123 : vector<1x16xf32> to vector<1x1x1x16xf32>
    %135 = vector.broadcast %11 : vector<1x14x14x1xf32> to vector<1x14x14x16xf32>
    %136 = vector.broadcast %134 : vector<1x1x1x16xf32> to vector<1x14x14x16xf32>
    %137 = arith.mulf %135, %136 : vector<1x14x14x16xf32>
    %138 = arith.addf %117, %137 : vector<1x14x14x16xf32>
    %139 = vector.shape_cast %123 : vector<1x16xf32> to vector<1x1x1x16xf32>
    %140 = vector.broadcast %13 : vector<1x14x14x1xf32> to vector<1x14x14x16xf32>
    %141 = vector.broadcast %139 : vector<1x1x1x16xf32> to vector<1x14x14x16xf32>
    %142 = arith.mulf %140, %141 : vector<1x14x14x16xf32>
    %143 = arith.addf %122, %142 : vector<1x14x14x16xf32>
    %144 = vector.extract_strided_slice %4 {offsets = [6, 0], sizes = [1, 16], strides = [1, 1]} : vector<9x16xf32> to vector<1x16xf32>
    %145 = vector.shape_cast %144 : vector<1x16xf32> to vector<1x1x1x16xf32>
    %146 = vector.broadcast %10 : vector<1x14x14x1xf32> to vector<1x14x14x16xf32>
    %147 = vector.broadcast %145 : vector<1x1x1x16xf32> to vector<1x14x14x16xf32>
    %148 = arith.mulf %146, %147 : vector<1x14x14x16xf32>
    %149 = arith.addf %128, %148 : vector<1x14x14x16xf32>
    %150 = vector.shape_cast %144 : vector<1x16xf32> to vector<1x1x1x16xf32>
    %151 = vector.broadcast %12 : vector<1x14x14x1xf32> to vector<1x14x14x16xf32>
    %152 = vector.broadcast %150 : vector<1x1x1x16xf32> to vector<1x14x14x16xf32>
    %153 = arith.mulf %151, %152 : vector<1x14x14x16xf32>
    %154 = arith.addf %133, %153 : vector<1x14x14x16xf32>
    %155 = vector.shape_cast %144 : vector<1x16xf32> to vector<1x1x1x16xf32>
    %156 = vector.broadcast %18 : vector<1x14x14x1xf32> to vector<1x14x14x16xf32>
    %157 = vector.broadcast %155 : vector<1x1x1x16xf32> to vector<1x14x14x16xf32>
    %158 = arith.mulf %156, %157 : vector<1x14x14x16xf32>
    %159 = arith.addf %138, %158 : vector<1x14x14x16xf32>
    %160 = vector.shape_cast %144 : vector<1x16xf32> to vector<1x1x1x16xf32>
    %161 = vector.broadcast %20 : vector<1x14x14x1xf32> to vector<1x14x14x16xf32>
    %162 = vector.broadcast %160 : vector<1x1x1x16xf32> to vector<1x14x14x16xf32>
    %163 = arith.mulf %161, %162 : vector<1x14x14x16xf32>
    %164 = arith.addf %143, %163 : vector<1x14x14x16xf32>
    %165 = vector.extract_strided_slice %4 {offsets = [7, 0], sizes = [1, 16], strides = [1, 1]} : vector<9x16xf32> to vector<1x16xf32>
    %166 = vector.shape_cast %165 : vector<1x16xf32> to vector<1x1x1x16xf32>
    %167 = vector.broadcast %12 : vector<1x14x14x1xf32> to vector<1x14x14x16xf32>
    %168 = vector.broadcast %166 : vector<1x1x1x16xf32> to vector<1x14x14x16xf32>
    %169 = arith.mulf %167, %168 : vector<1x14x14x16xf32>
    %170 = arith.addf %149, %169 : vector<1x14x14x16xf32>
    %171 = vector.shape_cast %165 : vector<1x16xf32> to vector<1x1x1x16xf32>
    %172 = vector.broadcast %11 : vector<1x14x14x1xf32> to vector<1x14x14x16xf32>
    %173 = vector.broadcast %171 : vector<1x1x1x16xf32> to vector<1x14x14x16xf32>
    %174 = arith.mulf %172, %173 : vector<1x14x14x16xf32>
    %175 = arith.addf %154, %174 : vector<1x14x14x16xf32>
    %176 = vector.shape_cast %165 : vector<1x16xf32> to vector<1x1x1x16xf32>
    %177 = vector.broadcast %20 : vector<1x14x14x1xf32> to vector<1x14x14x16xf32>
    %178 = vector.broadcast %176 : vector<1x1x1x16xf32> to vector<1x14x14x16xf32>
    %179 = arith.mulf %177, %178 : vector<1x14x14x16xf32>
    %180 = arith.addf %159, %179 : vector<1x14x14x16xf32>
    %181 = vector.shape_cast %165 : vector<1x16xf32> to vector<1x1x1x16xf32>
    %182 = vector.broadcast %19 : vector<1x14x14x1xf32> to vector<1x14x14x16xf32>
    %183 = vector.broadcast %181 : vector<1x1x1x16xf32> to vector<1x14x14x16xf32>
    %184 = arith.mulf %182, %183 : vector<1x14x14x16xf32>
    %185 = arith.addf %164, %184 : vector<1x14x14x16xf32>
    %186 = vector.extract_strided_slice %4 {offsets = [8, 0], sizes = [1, 16], strides = [1, 1]} : vector<9x16xf32> to vector<1x16xf32>
    %187 = vector.shape_cast %186 : vector<1x16xf32> to vector<1x1x1x16xf32>
    %188 = vector.broadcast %11 : vector<1x14x14x1xf32> to vector<1x14x14x16xf32>
    %189 = vector.broadcast %187 : vector<1x1x1x16xf32> to vector<1x14x14x16xf32>
    %190 = arith.mulf %188, %189 : vector<1x14x14x16xf32>
    %191 = arith.addf %170, %190 : vector<1x14x14x16xf32>
    %192 = vector.shape_cast %186 : vector<1x16xf32> to vector<1x1x1x16xf32>
    %193 = vector.broadcast %13 : vector<1x14x14x1xf32> to vector<1x14x14x16xf32>
    %194 = vector.broadcast %192 : vector<1x1x1x16xf32> to vector<1x14x14x16xf32>
    %195 = arith.mulf %193, %194 : vector<1x14x14x16xf32>
    %196 = arith.addf %175, %195 : vector<1x14x14x16xf32>
    %197 = vector.shape_cast %186 : vector<1x16xf32> to vector<1x1x1x16xf32>
    %198 = vector.broadcast %19 : vector<1x14x14x1xf32> to vector<1x14x14x16xf32>
    %199 = vector.broadcast %197 : vector<1x1x1x16xf32> to vector<1x14x14x16xf32>
    %200 = arith.mulf %198, %199 : vector<1x14x14x16xf32>
    %201 = arith.addf %180, %200 : vector<1x14x14x16xf32>
    %202 = vector.shape_cast %186 : vector<1x16xf32> to vector<1x1x1x16xf32>
    %203 = vector.broadcast %21 : vector<1x14x14x1xf32> to vector<1x14x14x16xf32>
    %204 = vector.broadcast %202 : vector<1x1x1x16xf32> to vector<1x14x14x16xf32>
    %205 = arith.mulf %203, %204 : vector<1x14x14x16xf32>
    %206 = arith.addf %185, %205 : vector<1x14x14x16xf32>
    %207 = arith.maximumf %191, %196 : vector<1x14x14x16xf32>
    %208 = arith.maximumf %201, %206 : vector<1x14x14x16xf32>
    %209 = arith.maximumf %207, %208 : vector<1x14x14x16xf32>
    %210 = vector.broadcast %5 : vector<1x1x1x16xf32> to vector<1x14x14x16xf32>
    %211 = arith.addf %209, %210 : vector<1x14x14x16xf32>
    %cst = arith.constant 0.000000e+00 : f32
    %212 = vector.broadcast %cst : f32 to vector<1x14x14x16xf32>
    %213 = arith.maximumf %211, %212 : vector<1x14x14x16xf32>
    %214 = arith.truncf %213 : vector<1x14x14x16xf32> to vector<1x14x14x16xbf16>
    %c0_21 = arith.constant 0 : index
    %c0_22 = arith.constant 0 : index
    %c0_23 = arith.constant 0 : index
    %c0_24 = arith.constant 0 : index
    %215 = vector.load %arg7[%c0_21, %c0_22, %c0_23, %c0_24] : memref<1x14x14x16xbf16, #tpu.memory_space<vmem>>, vector<1x14x14x16xbf16>
    tpu.vector_store %arg7[%c0_21, %c0_22, %c0_23, %c0_24], %214 {strides = array<i32>} : memref<1x14x14x16xbf16, #tpu.memory_space<vmem>>, vector<1x14x14x16xbf16>,
    return
  }
  func.func @transform_0(%arg0: i32) -> (i32, i32, i32, i32) {
    %c0_i32 = arith.constant 0 : i32
    %c0_i32_0 = arith.constant 0 : i32
    %c0_i32_1 = arith.constant 0 : i32
    %c0_i32_2 = arith.constant 0 : i32
    return %arg0, %c0_i32, %c0_i32_0, %c0_i32_1 : i32, i32, i32, i32
  }
  func.func @transform_1(%arg0: i32) -> (i32, i32, i32, i32) {
    %c0_i32 = arith.constant 0 : i32
    %c0_i32_0 = arith.constant 0 : i32
    %c0_i32_1 = arith.constant 0 : i32
    %c0_i32_2 = arith.constant 0 : i32
    return %arg0, %c0_i32, %c0_i32_0, %c0_i32_1 : i32, i32, i32, i32
  }
  func.func @transform_2(%arg0: i32) -> (i32, i32, i32, i32) {
    %c0_i32 = arith.constant 0 : i32
    %c0_i32_0 = arith.constant 0 : i32
    %c0_i32_1 = arith.constant 0 : i32
    %c0_i32_2 = arith.constant 0 : i32
    return %arg0, %c0_i32, %c0_i32_0, %c0_i32_1 : i32, i32, i32, i32
  }
  func.func @transform_3(%arg0: i32) -> (i32, i32, i32, i32) {
    %c0_i32 = arith.constant 0 : i32
    %c0_i32_0 = arith.constant 0 : i32
    %c0_i32_1 = arith.constant 0 : i32
    %c0_i32_2 = arith.constant 0 : i32
    return %arg0, %c0_i32, %c0_i32_0, %c0_i32_1 : i32, i32, i32, i32
  }
  func.func @transform_4(%arg0: i32) -> (i32, i32) {
    %c0_i32 = arith.constant 0 : i32
    %c0_i32_0 = arith.constant 0 : i32
    %c0_i32_1 = arith.constant 0 : i32
    return %c0_i32, %c0_i32_0 : i32, i32
  }
  func.func @transform_5(%arg0: i32) -> (i32, i32, i32, i32) {
    %c0_i32 = arith.constant 0 : i32
    %c0_i32_0 = arith.constant 0 : i32
    %c0_i32_1 = arith.constant 0 : i32
    %c0_i32_2 = arith.constant 0 : i32
    %c0_i32_3 = arith.constant 0 : i32
    return %c0_i32, %c0_i32_0, %c0_i32_1, %c0_i32_2 : i32, i32, i32, i32
  }
  func.func @transform_6(%arg0: i32) -> (i32, i32, i32, i32) {
    %c0_i32 = arith.constant 0 : i32
    %c0_i32_0 = arith.constant 0 : i32
    %c0_i32_1 = arith.constant 0 : i32
    %c0_i32_2 = arith.constant 0 : i32
    return %arg0, %c0_i32, %c0_i32_0, %c0_i32_1 : i32, i32, i32, i32
  }
}

module attributes {stable_mosaic.version = 11 : i64} {
  func.func @_conv2_pool_fc_kernel(%arg0: i32, %arg1: memref<1x8x8x16xbf16, #tpu.memory_space<vmem>>, %arg2: memref<1x8x8x16xbf16, #tpu.memory_space<vmem>>, %arg3: memref<1x8x8x16xbf16, #tpu.memory_space<vmem>>, %arg4: memref<1x8x8x16xbf16, #tpu.memory_space<vmem>>, %arg5: memref<144x32xbf16, #tpu.memory_space<vmem>>, %arg6: memref<1x32xf32, #tpu.memory_space<vmem>>, %arg7: memref<1568x10xbf16, #tpu.memory_space<vmem>>, %arg8: memref<1x10xf32, #tpu.memory_space<vmem>>, %arg9: memref<1x1x10xf32, #tpu.memory_space<vmem>>) attributes {dimension_semantics = [#tpu.dimension_semantics<parallel>], iteration_bounds = array<i64: 2>, scalar_prefetch = 0 : i64, scratch_operands = 0 : i64, tpu.core_type = #tpu.core_type<tc>, window_params = [{transform_indices = @transform_0, window_bounds = array<i64: 1, 8, 8, 16>}, {transform_indices = @transform_1, window_bounds = array<i64: 1, 8, 8, 16>}, {transform_indices = @transform_2, window_bounds = array<i64: 1, 8, 8, 16>}, {transform_indices = @transform_3, window_bounds = array<i64: 1, 8, 8, 16>}, {pipeline_mode = #tpu.pipeline_mode<synchronous>, transform_indices = @transform_4, window_bounds = array<i64: 144, 32>}, {pipeline_mode = #tpu.pipeline_mode<synchronous>, transform_indices = @transform_5, window_bounds = array<i64: 1, 32>}, {pipeline_mode = #tpu.pipeline_mode<synchronous>, transform_indices = @transform_6, window_bounds = array<i64: 1568, 10>}, {pipeline_mode = #tpu.pipeline_mode<synchronous>, transform_indices = @transform_7, window_bounds = array<i64: 1, 10>}, {transform_indices = @transform_8, window_bounds = array<i64: 1, 1, 10>}]} {
    %c0 = arith.constant 0 : index
    %c0_0 = arith.constant 0 : index
    %c0_1 = arith.constant 0 : index
    %c0_2 = arith.constant 0 : index
    %0 = vector.load %arg1[%c0, %c0_0, %c0_1, %c0_2] : memref<1x8x8x16xbf16, #tpu.memory_space<vmem>>, vector<1x8x8x16xbf16>
    %c0_3 = arith.constant 0 : index
    %c0_4 = arith.constant 0 : index
    %c0_5 = arith.constant 0 : index
    %c0_6 = arith.constant 0 : index
    %1 = vector.load %arg2[%c0_3, %c0_4, %c0_5, %c0_6] : memref<1x8x8x16xbf16, #tpu.memory_space<vmem>>, vector<1x8x8x16xbf16>
    %c0_7 = arith.constant 0 : index
    %c0_8 = arith.constant 0 : index
    %c0_9 = arith.constant 0 : index
    %c0_10 = arith.constant 0 : index
    %2 = vector.load %arg3[%c0_7, %c0_8, %c0_9, %c0_10] : memref<1x8x8x16xbf16, #tpu.memory_space<vmem>>, vector<1x8x8x16xbf16>
    %c0_11 = arith.constant 0 : index
    %c0_12 = arith.constant 0 : index
    %c0_13 = arith.constant 0 : index
    %c0_14 = arith.constant 0 : index
    %3 = vector.load %arg4[%c0_11, %c0_12, %c0_13, %c0_14] : memref<1x8x8x16xbf16, #tpu.memory_space<vmem>>, vector<1x8x8x16xbf16>
    %c0_15 = arith.constant 0 : index
    %c0_16 = arith.constant 0 : index
    %4 = vector.load %arg5[%c0_15, %c0_16] : memref<144x32xbf16, #tpu.memory_space<vmem>>, vector<144x32xbf16>
    %c0_17 = arith.constant 0 : index
    %c0_18 = arith.constant 0 : index
    %5 = vector.load %arg6[%c0_17, %c0_18] : memref<1x32xf32, #tpu.memory_space<vmem>>, vector<1x32xf32>
    %c0_19 = arith.constant 0 : index
    %c0_20 = arith.constant 0 : index
    %6 = vector.load %arg7[%c0_19, %c0_20] : memref<1568x10xbf16, #tpu.memory_space<vmem>>, vector<1568x10xbf16>
    %c0_21 = arith.constant 0 : index
    %c0_22 = arith.constant 0 : index
    %7 = vector.load %arg8[%c0_21, %c0_22] : memref<1x10xf32, #tpu.memory_space<vmem>>, vector<1x10xf32>
    %8 = vector.extract_strided_slice %0 {offsets = [0, 0, 0, 0], sizes = [1, 7, 7, 16], strides = [1, 1, 1, 1]} : vector<1x8x8x16xbf16> to vector<1x7x7x16xbf16>
    %9 = vector.extract_strided_slice %0 {offsets = [0, 0, 1, 0], sizes = [1, 7, 7, 16], strides = [1, 1, 1, 1]} : vector<1x8x8x16xbf16> to vector<1x7x7x16xbf16>
    %10 = vector.extract_strided_slice %1 {offsets = [0, 0, 0, 0], sizes = [1, 7, 7, 16], strides = [1, 1, 1, 1]} : vector<1x8x8x16xbf16> to vector<1x7x7x16xbf16>
    %11 = vector.extract_strided_slice %1 {offsets = [0, 0, 1, 0], sizes = [1, 7, 7, 16], strides = [1, 1, 1, 1]} : vector<1x8x8x16xbf16> to vector<1x7x7x16xbf16>
    %12 = vector.extract_strided_slice %0 {offsets = [0, 1, 0, 0], sizes = [1, 7, 7, 16], strides = [1, 1, 1, 1]} : vector<1x8x8x16xbf16> to vector<1x7x7x16xbf16>
    %13 = vector.extract_strided_slice %0 {offsets = [0, 1, 1, 0], sizes = [1, 7, 7, 16], strides = [1, 1, 1, 1]} : vector<1x8x8x16xbf16> to vector<1x7x7x16xbf16>
    %14 = vector.extract_strided_slice %1 {offsets = [0, 1, 0, 0], sizes = [1, 7, 7, 16], strides = [1, 1, 1, 1]} : vector<1x8x8x16xbf16> to vector<1x7x7x16xbf16>
    %15 = vector.extract_strided_slice %1 {offsets = [0, 1, 1, 0], sizes = [1, 7, 7, 16], strides = [1, 1, 1, 1]} : vector<1x8x8x16xbf16> to vector<1x7x7x16xbf16>
    %16 = vector.extract_strided_slice %2 {offsets = [0, 0, 0, 0], sizes = [1, 7, 7, 16], strides = [1, 1, 1, 1]} : vector<1x8x8x16xbf16> to vector<1x7x7x16xbf16>
    %17 = vector.extract_strided_slice %2 {offsets = [0, 0, 1, 0], sizes = [1, 7, 7, 16], strides = [1, 1, 1, 1]} : vector<1x8x8x16xbf16> to vector<1x7x7x16xbf16>
    %18 = vector.extract_strided_slice %3 {offsets = [0, 0, 0, 0], sizes = [1, 7, 7, 16], strides = [1, 1, 1, 1]} : vector<1x8x8x16xbf16> to vector<1x7x7x16xbf16>
    %19 = vector.extract_strided_slice %3 {offsets = [0, 0, 1, 0], sizes = [1, 7, 7, 16], strides = [1, 1, 1, 1]} : vector<1x8x8x16xbf16> to vector<1x7x7x16xbf16>
    %20 = vector.extract_strided_slice %2 {offsets = [0, 1, 0, 0], sizes = [1, 7, 7, 16], strides = [1, 1, 1, 1]} : vector<1x8x8x16xbf16> to vector<1x7x7x16xbf16>
    %21 = vector.extract_strided_slice %2 {offsets = [0, 1, 1, 0], sizes = [1, 7, 7, 16], strides = [1, 1, 1, 1]} : vector<1x8x8x16xbf16> to vector<1x7x7x16xbf16>
    %22 = vector.extract_strided_slice %3 {offsets = [0, 1, 0, 0], sizes = [1, 7, 7, 16], strides = [1, 1, 1, 1]} : vector<1x8x8x16xbf16> to vector<1x7x7x16xbf16>
    %23 = vector.extract_strided_slice %3 {offsets = [0, 1, 1, 0], sizes = [1, 7, 7, 16], strides = [1, 1, 1, 1]} : vector<1x8x8x16xbf16> to vector<1x7x7x16xbf16>
    %24 = tpu.concatenate %8, %10, %9, %16, %18, %17, %12, %14, %13 in 3 : vector<1x7x7x16xbf16>, vector<1x7x7x16xbf16>, vector<1x7x7x16xbf16>, vector<1x7x7x16xbf16>, vector<1x7x7x16xbf16>, vector<1x7x7x16xbf16>, vector<1x7x7x16xbf16>, vector<1x7x7x16xbf16>, vector<1x7x7x16xbf16> -> vector<1x7x7x144xbf16>
    %25 = vector.shape_cast %24 : vector<1x7x7x144xbf16> to vector<49x144xbf16>
    %26 = tpu.concatenate %10, %9, %11, %18, %17, %19, %14, %13, %15 in 3 : vector<1x7x7x16xbf16>, vector<1x7x7x16xbf16>, vector<1x7x7x16xbf16>, vector<1x7x7x16xbf16>, vector<1x7x7x16xbf16>, vector<1x7x7x16xbf16>, vector<1x7x7x16xbf16>, vector<1x7x7x16xbf16>, vector<1x7x7x16xbf16> -> vector<1x7x7x144xbf16>
    %27 = vector.shape_cast %26 : vector<1x7x7x144xbf16> to vector<49x144xbf16>
    %28 = tpu.concatenate %16, %18, %17, %12, %14, %13, %20, %22, %21 in 3 : vector<1x7x7x16xbf16>, vector<1x7x7x16xbf16>, vector<1x7x7x16xbf16>, vector<1x7x7x16xbf16>, vector<1x7x7x16xbf16>, vector<1x7x7x16xbf16>, vector<1x7x7x16xbf16>, vector<1x7x7x16xbf16>, vector<1x7x7x16xbf16> -> vector<1x7x7x144xbf16>
    %29 = vector.shape_cast %28 : vector<1x7x7x144xbf16> to vector<49x144xbf16>
    %30 = tpu.concatenate %18, %17, %19, %14, %13, %15, %22, %21, %23 in 3 : vector<1x7x7x16xbf16>, vector<1x7x7x16xbf16>, vector<1x7x7x16xbf16>, vector<1x7x7x16xbf16>, vector<1x7x7x16xbf16>, vector<1x7x7x16xbf16>, vector<1x7x7x16xbf16>, vector<1x7x7x16xbf16>, vector<1x7x7x16xbf16> -> vector<1x7x7x144xbf16>
    %31 = vector.shape_cast %30 : vector<1x7x7x144xbf16> to vector<49x144xbf16>
    %32 = tpu.concatenate %25, %27, %29, %31 in 0 : vector<49x144xbf16>, vector<49x144xbf16>, vector<49x144xbf16>, vector<49x144xbf16> -> vector<196x144xbf16>
    %cst = arith.constant dense<0.000000e+00> : vector<196x32xf32>
    %33 = tpu.matmul %32, %4, %cst {dimension_numbers = #tpu.dot_dimension_numbers<[1], [0], [0], [1], [0, 0, 1, 1], [], []>} : vector<196x144xbf16>, vector<144x32xbf16>, vector<196x32xf32> -> vector<196x32xf32>
    %34 = vector.extract_strided_slice %33 {offsets = [0, 0], sizes = [49, 32], strides = [1, 1]} : vector<196x32xf32> to vector<49x32xf32>
    %35 = vector.extract_strided_slice %33 {offsets = [49, 0], sizes = [49, 32], strides = [1, 1]} : vector<196x32xf32> to vector<49x32xf32>
    %36 = arith.maximumf %34, %35 : vector<49x32xf32>
    %37 = vector.extract_strided_slice %33 {offsets = [98, 0], sizes = [49, 32], strides = [1, 1]} : vector<196x32xf32> to vector<49x32xf32>
    %38 = vector.extract_strided_slice %33 {offsets = [147, 0], sizes = [49, 32], strides = [1, 1]} : vector<196x32xf32> to vector<49x32xf32>
    %39 = arith.maximumf %37, %38 : vector<49x32xf32>
    %40 = arith.maximumf %36, %39 : vector<49x32xf32>
    %41 = vector.broadcast %5 : vector<1x32xf32> to vector<49x32xf32>
    %42 = arith.addf %40, %41 : vector<49x32xf32>
    %cst_23 = arith.constant 0.000000e+00 : f32
    %43 = vector.broadcast %cst_23 : f32 to vector<49x32xf32>
    %44 = arith.maximumf %42, %43 : vector<49x32xf32>
    %45 = arith.truncf %44 : vector<49x32xf32> to vector<49x32xbf16>
    %46 = vector.shape_cast %45 : vector<49x32xbf16> to vector<1x49x32xbf16>
    %47 = vector.extract_strided_slice %46 {offsets = [0, 0, 0], sizes = [1, 1, 32], strides = [1, 1, 1]} : vector<1x49x32xbf16> to vector<1x1x32xbf16>
    %48 = vector.shape_cast %47 : vector<1x1x32xbf16> to vector<1x32xbf16>
    %49 = vector.extract_strided_slice %46 {offsets = [0, 1, 0], sizes = [1, 1, 32], strides = [1, 1, 1]} : vector<1x49x32xbf16> to vector<1x1x32xbf16>
    %50 = vector.shape_cast %49 : vector<1x1x32xbf16> to vector<1x32xbf16>
    %51 = vector.extract_strided_slice %46 {offsets = [0, 2, 0], sizes = [1, 1, 32], strides = [1, 1, 1]} : vector<1x49x32xbf16> to vector<1x1x32xbf16>
    %52 = vector.shape_cast %51 : vector<1x1x32xbf16> to vector<1x32xbf16>
    %53 = vector.extract_strided_slice %46 {offsets = [0, 3, 0], sizes = [1, 1, 32], strides = [1, 1, 1]} : vector<1x49x32xbf16> to vector<1x1x32xbf16>
    %54 = vector.shape_cast %53 : vector<1x1x32xbf16> to vector<1x32xbf16>
    %55 = vector.extract_strided_slice %46 {offsets = [0, 4, 0], sizes = [1, 1, 32], strides = [1, 1, 1]} : vector<1x49x32xbf16> to vector<1x1x32xbf16>
    %56 = vector.shape_cast %55 : vector<1x1x32xbf16> to vector<1x32xbf16>
    %57 = vector.extract_strided_slice %46 {offsets = [0, 5, 0], sizes = [1, 1, 32], strides = [1, 1, 1]} : vector<1x49x32xbf16> to vector<1x1x32xbf16>
    %58 = vector.shape_cast %57 : vector<1x1x32xbf16> to vector<1x32xbf16>
    %59 = vector.extract_strided_slice %46 {offsets = [0, 6, 0], sizes = [1, 1, 32], strides = [1, 1, 1]} : vector<1x49x32xbf16> to vector<1x1x32xbf16>
    %60 = vector.shape_cast %59 : vector<1x1x32xbf16> to vector<1x32xbf16>
    %61 = vector.extract_strided_slice %46 {offsets = [0, 7, 0], sizes = [1, 1, 32], strides = [1, 1, 1]} : vector<1x49x32xbf16> to vector<1x1x32xbf16>
    %62 = vector.shape_cast %61 : vector<1x1x32xbf16> to vector<1x32xbf16>
    %63 = vector.extract_strided_slice %46 {offsets = [0, 8, 0], sizes = [1, 1, 32], strides = [1, 1, 1]} : vector<1x49x32xbf16> to vector<1x1x32xbf16>
    %64 = vector.shape_cast %63 : vector<1x1x32xbf16> to vector<1x32xbf16>
    %65 = vector.extract_strided_slice %46 {offsets = [0, 9, 0], sizes = [1, 1, 32], strides = [1, 1, 1]} : vector<1x49x32xbf16> to vector<1x1x32xbf16>
    %66 = vector.shape_cast %65 : vector<1x1x32xbf16> to vector<1x32xbf16>
    %67 = vector.extract_strided_slice %46 {offsets = [0, 10, 0], sizes = [1, 1, 32], strides = [1, 1, 1]} : vector<1x49x32xbf16> to vector<1x1x32xbf16>
    %68 = vector.shape_cast %67 : vector<1x1x32xbf16> to vector<1x32xbf16>
    %69 = vector.extract_strided_slice %46 {offsets = [0, 11, 0], sizes = [1, 1, 32], strides = [1, 1, 1]} : vector<1x49x32xbf16> to vector<1x1x32xbf16>
    %70 = vector.shape_cast %69 : vector<1x1x32xbf16> to vector<1x32xbf16>
    %71 = vector.extract_strided_slice %46 {offsets = [0, 12, 0], sizes = [1, 1, 32], strides = [1, 1, 1]} : vector<1x49x32xbf16> to vector<1x1x32xbf16>
    %72 = vector.shape_cast %71 : vector<1x1x32xbf16> to vector<1x32xbf16>
    %73 = vector.extract_strided_slice %46 {offsets = [0, 13, 0], sizes = [1, 1, 32], strides = [1, 1, 1]} : vector<1x49x32xbf16> to vector<1x1x32xbf16>
    %74 = vector.shape_cast %73 : vector<1x1x32xbf16> to vector<1x32xbf16>
    %75 = vector.extract_strided_slice %46 {offsets = [0, 14, 0], sizes = [1, 1, 32], strides = [1, 1, 1]} : vector<1x49x32xbf16> to vector<1x1x32xbf16>
    %76 = vector.shape_cast %75 : vector<1x1x32xbf16> to vector<1x32xbf16>
    %77 = vector.extract_strided_slice %46 {offsets = [0, 15, 0], sizes = [1, 1, 32], strides = [1, 1, 1]} : vector<1x49x32xbf16> to vector<1x1x32xbf16>
    %78 = vector.shape_cast %77 : vector<1x1x32xbf16> to vector<1x32xbf16>
    %79 = vector.extract_strided_slice %46 {offsets = [0, 16, 0], sizes = [1, 1, 32], strides = [1, 1, 1]} : vector<1x49x32xbf16> to vector<1x1x32xbf16>
    %80 = vector.shape_cast %79 : vector<1x1x32xbf16> to vector<1x32xbf16>
    %81 = vector.extract_strided_slice %46 {offsets = [0, 17, 0], sizes = [1, 1, 32], strides = [1, 1, 1]} : vector<1x49x32xbf16> to vector<1x1x32xbf16>
    %82 = vector.shape_cast %81 : vector<1x1x32xbf16> to vector<1x32xbf16>
    %83 = vector.extract_strided_slice %46 {offsets = [0, 18, 0], sizes = [1, 1, 32], strides = [1, 1, 1]} : vector<1x49x32xbf16> to vector<1x1x32xbf16>
    %84 = vector.shape_cast %83 : vector<1x1x32xbf16> to vector<1x32xbf16>
    %85 = vector.extract_strided_slice %46 {offsets = [0, 19, 0], sizes = [1, 1, 32], strides = [1, 1, 1]} : vector<1x49x32xbf16> to vector<1x1x32xbf16>
    %86 = vector.shape_cast %85 : vector<1x1x32xbf16> to vector<1x32xbf16>
    %87 = vector.extract_strided_slice %46 {offsets = [0, 20, 0], sizes = [1, 1, 32], strides = [1, 1, 1]} : vector<1x49x32xbf16> to vector<1x1x32xbf16>
    %88 = vector.shape_cast %87 : vector<1x1x32xbf16> to vector<1x32xbf16>
    %89 = vector.extract_strided_slice %46 {offsets = [0, 21, 0], sizes = [1, 1, 32], strides = [1, 1, 1]} : vector<1x49x32xbf16> to vector<1x1x32xbf16>
    %90 = vector.shape_cast %89 : vector<1x1x32xbf16> to vector<1x32xbf16>
    %91 = vector.extract_strided_slice %46 {offsets = [0, 22, 0], sizes = [1, 1, 32], strides = [1, 1, 1]} : vector<1x49x32xbf16> to vector<1x1x32xbf16>
    %92 = vector.shape_cast %91 : vector<1x1x32xbf16> to vector<1x32xbf16>
    %93 = vector.extract_strided_slice %46 {offsets = [0, 23, 0], sizes = [1, 1, 32], strides = [1, 1, 1]} : vector<1x49x32xbf16> to vector<1x1x32xbf16>
    %94 = vector.shape_cast %93 : vector<1x1x32xbf16> to vector<1x32xbf16>
    %95 = vector.extract_strided_slice %46 {offsets = [0, 24, 0], sizes = [1, 1, 32], strides = [1, 1, 1]} : vector<1x49x32xbf16> to vector<1x1x32xbf16>
    %96 = vector.shape_cast %95 : vector<1x1x32xbf16> to vector<1x32xbf16>
    %97 = vector.extract_strided_slice %46 {offsets = [0, 25, 0], sizes = [1, 1, 32], strides = [1, 1, 1]} : vector<1x49x32xbf16> to vector<1x1x32xbf16>
    %98 = vector.shape_cast %97 : vector<1x1x32xbf16> to vector<1x32xbf16>
    %99 = vector.extract_strided_slice %46 {offsets = [0, 26, 0], sizes = [1, 1, 32], strides = [1, 1, 1]} : vector<1x49x32xbf16> to vector<1x1x32xbf16>
    %100 = vector.shape_cast %99 : vector<1x1x32xbf16> to vector<1x32xbf16>
    %101 = vector.extract_strided_slice %46 {offsets = [0, 27, 0], sizes = [1, 1, 32], strides = [1, 1, 1]} : vector<1x49x32xbf16> to vector<1x1x32xbf16>
    %102 = vector.shape_cast %101 : vector<1x1x32xbf16> to vector<1x32xbf16>
    %103 = vector.extract_strided_slice %46 {offsets = [0, 28, 0], sizes = [1, 1, 32], strides = [1, 1, 1]} : vector<1x49x32xbf16> to vector<1x1x32xbf16>
    %104 = vector.shape_cast %103 : vector<1x1x32xbf16> to vector<1x32xbf16>
    %105 = vector.extract_strided_slice %46 {offsets = [0, 29, 0], sizes = [1, 1, 32], strides = [1, 1, 1]} : vector<1x49x32xbf16> to vector<1x1x32xbf16>
    %106 = vector.shape_cast %105 : vector<1x1x32xbf16> to vector<1x32xbf16>
    %107 = vector.extract_strided_slice %46 {offsets = [0, 30, 0], sizes = [1, 1, 32], strides = [1, 1, 1]} : vector<1x49x32xbf16> to vector<1x1x32xbf16>
    %108 = vector.shape_cast %107 : vector<1x1x32xbf16> to vector<1x32xbf16>
    %109 = vector.extract_strided_slice %46 {offsets = [0, 31, 0], sizes = [1, 1, 32], strides = [1, 1, 1]} : vector<1x49x32xbf16> to vector<1x1x32xbf16>
    %110 = vector.shape_cast %109 : vector<1x1x32xbf16> to vector<1x32xbf16>
    %111 = vector.extract_strided_slice %46 {offsets = [0, 32, 0], sizes = [1, 1, 32], strides = [1, 1, 1]} : vector<1x49x32xbf16> to vector<1x1x32xbf16>
    %112 = vector.shape_cast %111 : vector<1x1x32xbf16> to vector<1x32xbf16>
    %113 = vector.extract_strided_slice %46 {offsets = [0, 33, 0], sizes = [1, 1, 32], strides = [1, 1, 1]} : vector<1x49x32xbf16> to vector<1x1x32xbf16>
    %114 = vector.shape_cast %113 : vector<1x1x32xbf16> to vector<1x32xbf16>
    %115 = vector.extract_strided_slice %46 {offsets = [0, 34, 0], sizes = [1, 1, 32], strides = [1, 1, 1]} : vector<1x49x32xbf16> to vector<1x1x32xbf16>
    %116 = vector.shape_cast %115 : vector<1x1x32xbf16> to vector<1x32xbf16>
    %117 = vector.extract_strided_slice %46 {offsets = [0, 35, 0], sizes = [1, 1, 32], strides = [1, 1, 1]} : vector<1x49x32xbf16> to vector<1x1x32xbf16>
    %118 = vector.shape_cast %117 : vector<1x1x32xbf16> to vector<1x32xbf16>
    %119 = vector.extract_strided_slice %46 {offsets = [0, 36, 0], sizes = [1, 1, 32], strides = [1, 1, 1]} : vector<1x49x32xbf16> to vector<1x1x32xbf16>
    %120 = vector.shape_cast %119 : vector<1x1x32xbf16> to vector<1x32xbf16>
    %121 = vector.extract_strided_slice %46 {offsets = [0, 37, 0], sizes = [1, 1, 32], strides = [1, 1, 1]} : vector<1x49x32xbf16> to vector<1x1x32xbf16>
    %122 = vector.shape_cast %121 : vector<1x1x32xbf16> to vector<1x32xbf16>
    %123 = vector.extract_strided_slice %46 {offsets = [0, 38, 0], sizes = [1, 1, 32], strides = [1, 1, 1]} : vector<1x49x32xbf16> to vector<1x1x32xbf16>
    %124 = vector.shape_cast %123 : vector<1x1x32xbf16> to vector<1x32xbf16>
    %125 = vector.extract_strided_slice %46 {offsets = [0, 39, 0], sizes = [1, 1, 32], strides = [1, 1, 1]} : vector<1x49x32xbf16> to vector<1x1x32xbf16>
    %126 = vector.shape_cast %125 : vector<1x1x32xbf16> to vector<1x32xbf16>
    %127 = vector.extract_strided_slice %46 {offsets = [0, 40, 0], sizes = [1, 1, 32], strides = [1, 1, 1]} : vector<1x49x32xbf16> to vector<1x1x32xbf16>
    %128 = vector.shape_cast %127 : vector<1x1x32xbf16> to vector<1x32xbf16>
    %129 = vector.extract_strided_slice %46 {offsets = [0, 41, 0], sizes = [1, 1, 32], strides = [1, 1, 1]} : vector<1x49x32xbf16> to vector<1x1x32xbf16>
    %130 = vector.shape_cast %129 : vector<1x1x32xbf16> to vector<1x32xbf16>
    %131 = vector.extract_strided_slice %46 {offsets = [0, 42, 0], sizes = [1, 1, 32], strides = [1, 1, 1]} : vector<1x49x32xbf16> to vector<1x1x32xbf16>
    %132 = vector.shape_cast %131 : vector<1x1x32xbf16> to vector<1x32xbf16>
    %133 = vector.extract_strided_slice %46 {offsets = [0, 43, 0], sizes = [1, 1, 32], strides = [1, 1, 1]} : vector<1x49x32xbf16> to vector<1x1x32xbf16>
    %134 = vector.shape_cast %133 : vector<1x1x32xbf16> to vector<1x32xbf16>
    %135 = vector.extract_strided_slice %46 {offsets = [0, 44, 0], sizes = [1, 1, 32], strides = [1, 1, 1]} : vector<1x49x32xbf16> to vector<1x1x32xbf16>
    %136 = vector.shape_cast %135 : vector<1x1x32xbf16> to vector<1x32xbf16>
    %137 = vector.extract_strided_slice %46 {offsets = [0, 45, 0], sizes = [1, 1, 32], strides = [1, 1, 1]} : vector<1x49x32xbf16> to vector<1x1x32xbf16>
    %138 = vector.shape_cast %137 : vector<1x1x32xbf16> to vector<1x32xbf16>
    %139 = vector.extract_strided_slice %46 {offsets = [0, 46, 0], sizes = [1, 1, 32], strides = [1, 1, 1]} : vector<1x49x32xbf16> to vector<1x1x32xbf16>
    %140 = vector.shape_cast %139 : vector<1x1x32xbf16> to vector<1x32xbf16>
    %141 = vector.extract_strided_slice %46 {offsets = [0, 47, 0], sizes = [1, 1, 32], strides = [1, 1, 1]} : vector<1x49x32xbf16> to vector<1x1x32xbf16>
    %142 = vector.shape_cast %141 : vector<1x1x32xbf16> to vector<1x32xbf16>
    %143 = vector.extract_strided_slice %46 {offsets = [0, 48, 0], sizes = [1, 1, 32], strides = [1, 1, 1]} : vector<1x49x32xbf16> to vector<1x1x32xbf16>
    %144 = vector.shape_cast %143 : vector<1x1x32xbf16> to vector<1x32xbf16>
    %145 = tpu.concatenate %48, %50, %52, %54, %56, %58, %60, %62, %64, %66, %68, %70, %72, %74, %76, %78 in 1 : vector<1x32xbf16>, vector<1x32xbf16>, vector<1x32xbf16>, vector<1x32xbf16>, vector<1x32xbf16>, vector<1x32xbf16>, vector<1x32xbf16>, vector<1x32xbf16>, vector<1x32xbf16>, vector<1x32xbf16>, vector<1x32xbf16>, vector<1x32xbf16>, vector<1x32xbf16>, vector<1x32xbf16>, vector<1x32xbf16>, vector<1x32xbf16> -> vector<1x512xbf16>
    %146 = tpu.concatenate %80, %82, %84, %86, %88, %90, %92, %94, %96, %98, %100, %102, %104, %106, %108, %110 in 1 : vector<1x32xbf16>, vector<1x32xbf16>, vector<1x32xbf16>, vector<1x32xbf16>, vector<1x32xbf16>, vector<1x32xbf16>, vector<1x32xbf16>, vector<1x32xbf16>, vector<1x32xbf16>, vector<1x32xbf16>, vector<1x32xbf16>, vector<1x32xbf16>, vector<1x32xbf16>, vector<1x32xbf16>, vector<1x32xbf16>, vector<1x32xbf16> -> vector<1x512xbf16>
    %147 = tpu.concatenate %112, %114, %116, %118, %120, %122, %124, %126, %128, %130, %132, %134, %136, %138, %140, %142 in 1 : vector<1x32xbf16>, vector<1x32xbf16>, vector<1x32xbf16>, vector<1x32xbf16>, vector<1x32xbf16>, vector<1x32xbf16>, vector<1x32xbf16>, vector<1x32xbf16>, vector<1x32xbf16>, vector<1x32xbf16>, vector<1x32xbf16>, vector<1x32xbf16>, vector<1x32xbf16>, vector<1x32xbf16>, vector<1x32xbf16>, vector<1x32xbf16> -> vector<1x512xbf16>
    %148 = tpu.concatenate %145, %146, %147, %144 in 1 : vector<1x512xbf16>, vector<1x512xbf16>, vector<1x512xbf16>, vector<1x32xbf16> -> vector<1x1568xbf16>
    %cst_24 = arith.constant dense<0.000000e+00> : vector<1x10xf32>
    %149 = tpu.matmul %148, %6, %cst_24 {dimension_numbers = #tpu.dot_dimension_numbers<[1], [0], [0], [1], [0, 0, 1, 1], [], []>} : vector<1x1568xbf16>, vector<1568x10xbf16>, vector<1x10xf32> -> vector<1x10xf32>
    %150 = arith.addf %149, %7 : vector<1x10xf32>
    %151 = vector.shape_cast %150 : vector<1x10xf32> to vector<1x1x10xf32>
    %c0_25 = arith.constant 0 : index
    %c0_26 = arith.constant 0 : index
    %c0_27 = arith.constant 0 : index
    %152 = vector.load %arg9[%c0_25, %c0_26, %c0_27] : memref<1x1x10xf32, #tpu.memory_space<vmem>>, vector<1x1x10xf32>
    tpu.vector_store %arg9[%c0_25, %c0_26, %c0_27], %151 {strides = array<i32>} : memref<1x1x10xf32, #tpu.memory_space<vmem>>, vector<1x1x10xf32>,
    return
  }
  func.func @transform_0(%arg0: i32) -> (i32, i32, i32, i32) {
    %c0_i32 = arith.constant 0 : i32
    %c0_i32_0 = arith.constant 0 : i32
    %c0_i32_1 = arith.constant 0 : i32
    %c0_i32_2 = arith.constant 0 : i32
    return %arg0, %c0_i32, %c0_i32_0, %c0_i32_1 : i32, i32, i32, i32
  }
  func.func @transform_1(%arg0: i32) -> (i32, i32, i32, i32) {
    %c0_i32 = arith.constant 0 : i32
    %c0_i32_0 = arith.constant 0 : i32
    %c0_i32_1 = arith.constant 0 : i32
    %c0_i32_2 = arith.constant 0 : i32
    return %arg0, %c0_i32, %c0_i32_0, %c0_i32_1 : i32, i32, i32, i32
  }
  func.func @transform_2(%arg0: i32) -> (i32, i32, i32, i32) {
    %c0_i32 = arith.constant 0 : i32
    %c0_i32_0 = arith.constant 0 : i32
    %c0_i32_1 = arith.constant 0 : i32
    %c0_i32_2 = arith.constant 0 : i32
    return %arg0, %c0_i32, %c0_i32_0, %c0_i32_1 : i32, i32, i32, i32
  }
  func.func @transform_3(%arg0: i32) -> (i32, i32, i32, i32) {
    %c0_i32 = arith.constant 0 : i32
    %c0_i32_0 = arith.constant 0 : i32
    %c0_i32_1 = arith.constant 0 : i32
    %c0_i32_2 = arith.constant 0 : i32
    return %arg0, %c0_i32, %c0_i32_0, %c0_i32_1 : i32, i32, i32, i32
  }
  func.func @transform_4(%arg0: i32) -> (i32, i32) {
    %c0_i32 = arith.constant 0 : i32
    %c0_i32_0 = arith.constant 0 : i32
    %c0_i32_1 = arith.constant 0 : i32
    return %c0_i32, %c0_i32_0 : i32, i32
  }
  func.func @transform_5(%arg0: i32) -> (i32, i32) {
    %c0_i32 = arith.constant 0 : i32
    %c0_i32_0 = arith.constant 0 : i32
    %c0_i32_1 = arith.constant 0 : i32
    return %c0_i32, %c0_i32_0 : i32, i32
  }
  func.func @transform_6(%arg0: i32) -> (i32, i32) {
    %c0_i32 = arith.constant 0 : i32
    %c0_i32_0 = arith.constant 0 : i32
    %c0_i32_1 = arith.constant 0 : i32
    return %c0_i32, %c0_i32_0 : i32, i32
  }
  func.func @transform_7(%arg0: i32) -> (i32, i32) {
    %c0_i32 = arith.constant 0 : i32
    %c0_i32_0 = arith.constant 0 : i32
    %c0_i32_1 = arith.constant 0 : i32
    return %c0_i32, %c0_i32_0 : i32, i32
  }
  func.func @transform_8(%arg0: i32) -> (i32, i32, i32) {
    %c0_i32 = arith.constant 0 : i32
    %c0_i32_0 = arith.constant 0 : i32
    %c0_i32_1 = arith.constant 0 : i32
    return %arg0, %c0_i32, %c0_i32_0 : i32, i32, i32
  }
}

</mosaic_0001>

<llo_original>
// kernel: cnn_forward.2
$region0: #{cnn_forward.2}
  #allocation0 [shape = 'u32[]', space=smem, size = 0x4, offset = 0x4, fixed_abs, tag = 'smem constant byte address 0x4 - core index']
  #allocation1 [shape = 'u32[72,128]{1,0:T(1,128)}', space=vmem, size = 0x9000, scoped, tag = 'internal scratch']
  %s0 = inlined_call_operand.vmem [shape: f32[2,15,15,1], index: 0, kind: input, shape index: {}]
  %s1 = inlined_call_operand.vmem [shape: f32[2,15,15,1], index: 1, kind: input, shape index: {}]
  %s2 = inlined_call_operand.vmem [shape: f32[2,15,15,1], index: 2, kind: input, shape index: {}]
  %s3 = inlined_call_operand.vmem [shape: f32[2,15,15,1], index: 3, kind: input, shape index: {}]
  %s4 = inlined_call_operand.vmem [shape: f32[9,16], index: 4, kind: input, shape index: {}]
  %s5 = inlined_call_operand.vmem [shape: f32[1,1,1,16], index: 5, kind: input, shape index: {}]
  %s6 = inlined_call_operand.vmem [shape: bf16[2,14,14,16], index: 6, kind: output, shape index: {}]
  %s7 = sld [smem:[#allocation0]]
  $region57: #{cnn_forward.2} parent=0
    _
  %s9 = ssub.s32 1, %s7
  %s10 = scalar_select 0, %s9, %s7
  loop: start=0, step=1, limit=4
  $region2: #{cnn_forward.2} parent=0 // loop_pre_header
    _
  $region3: #{cnn_forward.2} parent=0 // loop_header
    %s12 = sphi 0, %s16
    %p13 = scmp.ge.s32.totalorder %s12, 4
    %s22 = sphi 0, %s24
    %s25 = sphi 0, %s22
    %s26 = sphi 0, %s25
    %s42 = sphi 0, %s26
    %s48 = sphi 0, %s50
    %s51 = sphi 0, %s48
    %s52 = sphi 0, %s51
    %s68 = sphi 0, %s52
    %s74 = sphi 0, %s76
    %s77 = sphi 0, %s74
    %s78 = sphi 0, %s77
    %s94 = sphi 0, %s78
    %s100 = sphi 0, %s102
    %s103 = sphi 0, %s100
    %s104 = sphi 0, %s103
    %s120 = sphi 0, %s104
    %s124 = sphi 0, %s124
    %s126 = sphi 0, %s124
    %s127 = sphi 0, %s126
    %s141 = sphi 0, %s127
    %s145 = sphi 0, %s145
    %s147 = sphi 0, %s145
    %s148 = sphi 0, %s147
    %s162 = sphi 0, %s148
    %s168 = sphi 0, %s170
    %s171 = sphi 0, %s168
    %s172 = sphi 0, %s171
    %s188 = sphi 0, %s172
  $region4: #{cnn_forward.2} parent=0 // loop_header_branch
    %15 = sbr.rel (%p13) target = $region8
  $region5: #{cnn_forward.2} parent=0 // loop_body
    %s17 = ssub.s32 %s12, 1
    %s18 = ssub.s32 %s12, 2
    %s19 = sadd.s32 %s12, 1
    %s20 = ssub.s32 %s12, %s19
    %p21 = scmp.eq.s32.totalorder %s20, 0
    %s23 = sadd.s32 %s22, 1
    %s24 = scalar_select %p21, %s22, %s23
    %p27 = pneg %p21
    %p28 = scmp.eq.s32.totalorder %s12, 1
    %p29 = por %p27, %p28
    %p30 = scmp.ne.s32.totalorder %s22, %s25
    %p31 = scmp.eq.s32.totalorder %s12, 0
    %p32 = por %p30, %p31
    %p33 = scmp.ne.s32.totalorder %s22, %s25
    %p34 = scmp.eq.s32.totalorder %s17, 1
    %p35 = por %p33, %p34
    %p36 = scmp.ne.s32.totalorder %s25, %s26
    %p37 = scmp.eq.s32.totalorder %s17, 0
    %p38 = por %p36, %p37
    %p39 = scmp.ne.s32.totalorder %s25, %s26
    %p40 = scmp.eq.s32.totalorder %s18, 1
    %p41 = por %p39, %p40
    %p43 = scmp.ne.s32.totalorder %s26, %s42
    %p44 = scmp.eq.s32.totalorder %s18, 0
    %p45 = por %p43, %p44
    %s46 = ssub.s32 %s12, %s19
    %p47 = scmp.eq.s32.totalorder %s46, 0
    %s49 = sadd.s32 %s48, 1
    %s50 = scalar_select %p47, %s48, %s49
    %p53 = pneg %p47
    %p54 = scmp.eq.s32.totalorder %s12, 1
    %p55 = por %p53, %p54
    %p56 = scmp.ne.s32.totalorder %s48, %s51
    %p57 = scmp.eq.s32.totalorder %s12, 0
    %p58 = por %p56, %p57
    %p59 = scmp.ne.s32.totalorder %s48, %s51
    %p60 = scmp.eq.s32.totalorder %s17, 1
    %p61 = por %p59, %p60
    %p62 = scmp.ne.s32.totalorder %s51, %s52
    %p63 = scmp.eq.s32.totalorder %s17, 0
    %p64 = por %p62, %p63
    %p65 = scmp.ne.s32.totalorder %s51, %s52
    %p66 = scmp.eq.s32.totalorder %s18, 1
    %p67 = por %p65, %p66
    %p69 = scmp.ne.s32.totalorder %s52, %s68
    %p70 = scmp.eq.s32.totalorder %s18, 0
    %p71 = por %p69, %p70
    %s72 = ssub.s32 %s12, %s19
    %p73 = scmp.eq.s32.totalorder %s72, 0
    %s75 = sadd.s32 %s74, 1
    %s76 = scalar_select %p73, %s74, %s75
    %p79 = pneg %p73
    %p80 = scmp.eq.s32.totalorder %s12, 1
    %p81 = por %p79, %p80
    %p82 = scmp.ne.s32.totalorder %s74, %s77
    %p83 = scmp.eq.s32.totalorder %s12, 0
    %p84 = por %p82, %p83
    %p85 = scmp.ne.s32.totalorder %s74, %s77
    %p86 = scmp.eq.s32.totalorder %s17, 1
    %p87 = por %p85, %p86
    %p88 = scmp.ne.s32.totalorder %s77, %s78
    %p89 = scmp.eq.s32.totalorder %s17, 0
    %p90 = por %p88, %p89
    %p91 = scmp.ne.s32.totalorder %s77, %s78
    %p92 = scmp.eq.s32.totalorder %s18, 1
    %p93 = por %p91, %p92
    %p95 = scmp.ne.s32.totalorder %s78, %s94
    %p96 = scmp.eq.s32.totalorder %s18, 0
    %p97 = por %p95, %p96
    %s98 = ssub.s32 %s12, %s19
    %p99 = scmp.eq.s32.totalorder %s98, 0
    %s101 = sadd.s32 %s100, 1
    %s102 = scalar_select %p99, %s100, %s101
    %p105 = pneg %p99
    %p106 = scmp.eq.s32.totalorder %s12, 1
    %p107 = por %p105, %p106
    %p108 = scmp.ne.s32.totalorder %s100, %s103
    %p109 = scmp.eq.s32.totalorder %s12, 0
    %p110 = por %p108, %p109
    %p111 = scmp.ne.s32.totalorder %s100, %s103
    %p112 = scmp.eq.s32.totalorder %s17, 1
    %p113 = por %p111, %p112
    %p114 = scmp.ne.s32.totalorder %s103, %s104
    %p115 = scmp.eq.s32.totalorder %s17, 0
    %p116 = por %p114, %p115
    %p117 = scmp.ne.s32.totalorder %s103, %s104
    %p118 = scmp.eq.s32.totalorder %s18, 1
    %p119 = por %p117, %p118
    %p121 = scmp.ne.s32.totalorder %s104, %s120
    %p122 = scmp.eq.s32.totalorder %s18, 0
    %p123 = por %p121, %p122
    %s125 = sadd.s32 %s124, 1
    %p128 = scmp.eq.s32.totalorder %s12, 1
    %p129 = scmp.ne.s32.totalorder %s124, %s126
    %p130 = scmp.eq.s32.totalorder %s12, 0
    %p131 = por %p129, %p130
    %p132 = scmp.ne.s32.totalorder %s124, %s126
    %p133 = scmp.eq.s32.totalorder %s17, 1
    %p134 = por %p132, %p133
    %p135 = scmp.ne.s32.totalorder %s126, %s127
    %p136 = scmp.eq.s32.totalorder %s17, 0
    %p137 = por %p135, %p136
    %p138 = scmp.ne.s32.totalorder %s126, %s127
    %p139 = scmp.eq.s32.totalorder %s18, 1
    %p140 = por %p138, %p139
    %p142 = scmp.ne.s32.totalorder %s127, %s141
    %p143 = scmp.eq.s32.totalorder %s18, 0
    %p144 = por %p142, %p143
    %s146 = sadd.s32 %s145, 1
    %p149 = scmp.eq.s32.totalorder %s12, 1
    %p150 = scmp.ne.s32.totalorder %s145, %s147
    %p151 = scmp.eq.s32.totalorder %s12, 0
    %p152 = por %p150, %p151
    %p153 = scmp.ne.s32.totalorder %s145, %s147
    %p154 = scmp.eq.s32.totalorder %s17, 1
    %p155 = por %p153, %p154
    %p156 = scmp.ne.s32.totalorder %s147, %s148
    %p157 = scmp.eq.s32.totalorder %s17, 0
    %p158 = por %p156, %p157
    %p159 = scmp.ne.s32.totalorder %s147, %s148
    %p160 = scmp.eq.s32.totalorder %s18, 1
    %p161 = por %p159, %p160
    %p163 = scmp.ne.s32.totalorder %s148, %s162
    %p164 = scmp.eq.s32.totalorder %s18, 0
    %p165 = por %p163, %p164
    %s166 = ssub.s32 %s12, %s19
    %p167 = scmp.eq.s32.totalorder %s166, 0
    %s169 = sadd.s32 %s168, 1
    %s170 = scalar_select %p167, %s168, %s169
    %p173 = pneg %p167
    %p174 = scmp.eq.s32.totalorder %s12, 1
    %p175 = por %p173, %p174
    %p176 = scmp.ne.s32.totalorder %s168, %s171
    %p177 = scmp.eq.s32.totalorder %s12, 0
    %p178 = por %p176, %p177
    %p179 = scmp.ne.s32.totalorder %s168, %s171
    %p180 = scmp.eq.s32.totalorder %s17, 1
    %p181 = por %p179, %p180
    %p182 = scmp.ne.s32.totalorder %s171, %s172
    %p183 = scmp.eq.s32.totalorder %s17, 0
    %p184 = por %p182, %p183
    %p185 = scmp.ne.s32.totalorder %s171, %s172
    %p186 = scmp.eq.s32.totalorder %s18, 1
    %p187 = por %p185, %p186
    %p189 = scmp.ne.s32.totalorder %s172, %s188
    %p190 = scmp.eq.s32.totalorder %s18, 0
    %p191 = por %p189, %p190
    %p192 = scmp.le.s32.totalorder 1, %s12
    %p193 = scmp.lt.s32.totalorder %s12, 3
    %p194 = pnand %p192, %p193
    %p195 = pneg %p194
    // Predicated region
    $region9: #{cnn_forward.2} parent=5 // pred_check
      _
    $region10: #{cnn_forward.2} parent=5 // pred_check_branch
      %197 = sbr.rel (%p194) target = $region12
    $region11: #{cnn_forward.2} parent=5 // pred_region
      %s198 = ssub.s32 %s12, 1
      // Predicated region
      $region13: #{cnn_forward.2} parent=11 // pred_check
        %p199 = pneg %p137
      $region14: #{cnn_forward.2} parent=11 // pred_check_branch
        %201 = sbr.rel (%p199) target = $region16
      $region15: #{cnn_forward.2} parent=11 // pred_region
        _
      $region16: #{cnn_forward.2} parent=11 // pred_fallthru
        _
      // Predicated region
      $region17: #{cnn_forward.2} parent=11 // pred_check
        %p202 = pneg %p158
      $region18: #{cnn_forward.2} parent=11 // pred_check_branch
        %204 = sbr.rel (%p202) target = $region20
      $region19: #{cnn_forward.2} parent=11 // pred_region
        _
      $region20: #{cnn_forward.2} parent=11 // pred_fallthru
        _
    $region12: #{cnn_forward.2} parent=5 // pred_fallthru
      _
    %p205 = scmp.lt.s32.totalorder %s12, 2
    // Predicated region
    $region21: #{cnn_forward.2} parent=5 // pred_check
      %p206 = pneg %p205
    $region22: #{cnn_forward.2} parent=5 // pred_check_branch
      %208 = sbr.rel (%p206) target = $region24
    $region23: #{cnn_forward.2} parent=5 // pred_region
      // Predicated region
      $region25: #{cnn_forward.2} parent=23 // pred_check
        %p209 = pneg %p32
      $region26: #{cnn_forward.2} parent=23 // pred_check_branch
        %211 = sbr.rel (%p209) target = $region28
      $region27: #{cnn_forward.2} parent=23 // pred_region
        %p212 = scmp.lt.s32.totalorder %s12, 1
        %s213 = scalar_select %p212, %s12, 1
        %s214 = smul.addr %s213, 30
        %s215 = smul.addr %s214, 8
        %s216 = scalar_lea.vmem %s0, %s215
      $region28: #{cnn_forward.2} parent=23 // pred_fallthru
        _
      // Predicated region
      $region29: #{cnn_forward.2} parent=23 // pred_check
        %p217 = pneg %p58
      $region30: #{cnn_forward.2} parent=23 // pred_check_branch
        %219 = sbr.rel (%p217) target = $region32
      $region31: #{cnn_forward.2} parent=23 // pred_region
        %p220 = scmp.lt.s32.totalorder %s12, 1
        %s221 = scalar_select %p220, %s12, 1
        %s222 = smul.addr %s221, 30
        %s223 = smul.addr %s222, 8
        %s224 = scalar_lea.vmem %s1, %s223
      $region32: #{cnn_forward.2} parent=23 // pred_fallthru
        _
      // Predicated region
      $region33: #{cnn_forward.2} parent=23 // pred_check
        %p225 = pneg %p84
      $region34: #{cnn_forward.2} parent=23 // pred_check_branch
        %227 = sbr.rel (%p225) target = $region36
      $region35: #{cnn_forward.2} parent=23 // pred_region
        %p228 = scmp.lt.s32.totalorder %s12, 1
        %s229 = scalar_select %p228, %s12, 1
        %s230 = smul.addr %s229, 30
        %s231 = smul.addr %s230, 8
        %s232 = scalar_lea.vmem %s2, %s231
      $region36: #{cnn_forward.2} parent=23 // pred_fallthru
        _
      // Predicated region
      $region37: #{cnn_forward.2} parent=23 // pred_check
        %p233 = pneg %p110
      $region38: #{cnn_forward.2} parent=23 // pred_check_branch
        %235 = sbr.rel (%p233) target = $region40
      $region39: #{cnn_forward.2} parent=23 // pred_region
        %p236 = scmp.lt.s32.totalorder %s12, 1
        %s237 = scalar_select %p236, %s12, 1
        %s238 = smul.addr %s237, 30
        %s239 = smul.addr %s238, 8
        %s240 = scalar_lea.vmem %s3, %s239
      $region40: #{cnn_forward.2} parent=23 // pred_fallthru
        _
    $region24: #{cnn_forward.2} parent=5 // pred_fallthru
      _
    %p241 = scmp.le.s32.totalorder 1, %s12
    %p242 = scmp.lt.s32.totalorder %s12, 3
    %p243 = pnand %p241, %p242
    %p244 = pneg %p243
    // Predicated region
    $region41: #{cnn_forward.2} parent=5 // pred_check
      _
    $region42: #{cnn_forward.2} parent=5 // pred_check_branch
      %246 = sbr.rel (%p243) target = $region44
    $region43: #{cnn_forward.2} parent=5 // pred_region
      %s247 = ssub.s32 %s12, 1
      %p248 = scmp.lt.s32.totalorder %s17, 1
      %s249 = scalar_select %p248, %s17, 1
      %s250 = smul.addr %s249, 30
      %s251 = smul.addr %s250, 8
      %s252 = scalar_lea.vmem %s0, %s251
      %p253 = pneg %p38
      %p254 = pneg %p35
      %p255 = scmp.lt.s32.totalorder %s17, 1
      %s256 = scalar_select %p255, %s17, 1
      %s257 = smul.addr %s256, 30
      %s258 = smul.addr %s257, 8
      %s259 = scalar_lea.vmem %s1, %s258
      %p260 = pneg %p64
      %p261 = pneg %p61
      %p262 = scmp.lt.s32.totalorder %s17, 1
      %s263 = scalar_select %p262, %s17, 1
      %s264 = smul.addr %s263, 30
      %s265 = smul.addr %s264, 8
      %s266 = scalar_lea.vmem %s2, %s265
      %p267 = pneg %p90
      %p268 = pneg %p87
      %p269 = scmp.lt.s32.totalorder %s17, 1
      %s270 = scalar_select %p269, %s17, 1
      %s271 = smul.addr %s270, 30
      %s272 = smul.addr %s271, 8
      %s273 = scalar_lea.vmem %s3, %s272
      %p274 = pneg %p116
      %p275 = pneg %p113
      %p276 = pneg %p137
      %p277 = pneg %p134
      %p278 = pneg %p158
      %p279 = pneg %p155
      %p280 = pneg %p184
      %p281 = pneg %p181
      %p282 = scmp.lt.s32.totalorder %s17, 1
      %s283 = scalar_select %p282, %s17, 1
      %s284 = smul.addr %s283, 28
      %s285 = smul.addr %s284, 4
      %s286 = scalar_lea.vmem %s6, %s285
      %p287 = scmp.lt.s32.totalorder %s17, 1
      %s288 = scalar_select %p287, %s17, 1
      %s289 = smul.addr %s288, 30
      %s290 = smul.addr %s289, 8
      %s291 = scalar_lea.vmem %s0, %s290
      %p292 = scmp.lt.s32.totalorder %s17, 1
      %s293 = scalar_select %p292, %s17, 1
      %s294 = smul.addr %s293, 30
      %s295 = smul.addr %s294, 8
      %s296 = scalar_lea.vmem %s1, %s295
      %p297 = scmp.lt.s32.totalorder %s17, 1
      %s298 = scalar_select %p297, %s17, 1
      %s299 = smul.addr %s298, 30
      %s300 = smul.addr %s299, 8
      %s301 = scalar_lea.vmem %s2, %s300
      %p302 = scmp.lt.s32.totalorder %s17, 1
      %s303 = scalar_select %p302, %s17, 1
      %s304 = smul.addr %s303, 30
      %s305 = smul.addr %s304, 8
      %s306 = scalar_lea.vmem %s3, %s305
      %p307 = scmp.lt.s32.totalorder %s17, 1
      %s308 = scalar_select %p307, %s17, 1
      %s309 = smul.addr %s308, 28
      %s310 = smul.addr %s309, 4
      %s311 = scalar_lea.vmem %s6, %s310
      %v312 = vld [vmem:[%s291] sm:$0xff]
      %v313 = vld [vmem:[%s291 + $0x8] sm:$0x7f]
      %v314 = vld [vmem:[%s291 + $0x10] sm:$0xff]
      %v315 = vld [vmem:[%s291 + $0x18] sm:$0x7f]
      %v316 = vld [vmem:[%s291 + $0x20] sm:$0xff]
      %v317 = vld [vmem:[%s291 + $0x28] sm:$0x7f]
      %v318 = vld [vmem:[%s291 + $0x30] sm:$0xff]
      %v319 = vld [vmem:[%s291 + $0x38] sm:$0x7f]
      %v320 = vld [vmem:[%s291 + $0x40] sm:$0xff]
      %v321 = vld [vmem:[%s291 + $0x48] sm:$0x7f]
      %v322 = vld [vmem:[%s291 + $0x50] sm:$0xff]
      %v323 = vld [vmem:[%s291 + $0x58] sm:$0x7f]
      %v324 = vld [vmem:[%s291 + $0x60] sm:$0xff]
      %v325 = vld [vmem:[%s291 + $0x68] sm:$0x7f]
      %v326 = vld [vmem:[%s291 + $0x70] sm:$0xff]
      %v327 = vld [vmem:[%s291 + $0x78] sm:$0x7f]
      %v328 = vld [vmem:[%s291 + $0x80] sm:$0xff]
      %v329 = vld [vmem:[%s291 + $0x88] sm:$0x7f]
      %v330 = vld [vmem:[%s291 + $0x90] sm:$0xff]
      %v331 = vld [vmem:[%s291 + $0x98] sm:$0x7f]
      %v332 = vld [vmem:[%s291 + $0xa0] sm:$0xff]
      %v333 = vld [vmem:[%s291 + $0xa8] sm:$0x7f]
      %v334 = vld [vmem:[%s291 + $0xb0] sm:$0xff]
      %v335 = vld [vmem:[%s291 + $0xb8] sm:$0x7f]
      %v336 = vld [vmem:[%s291 + $0xc0] sm:$0xff]
      %v337 = vld [vmem:[%s291 + $0xc8] sm:$0x7f]
      %v338 = vld [vmem:[%s291 + $0xd0] sm:$0xff]
      %v339 = vld [vmem:[%s291 + $0xd8] sm:$0x7f]
      %v340 = vld [vmem:[%s291 + $0xe0] sm:$0xff]
      %v341 = vld [vmem:[%s291 + $0xe8] sm:$0x7f]
      %v342 = vld [vmem:[%s296] sm:$0xff]
      %v343 = vld [vmem:[%s296 + $0x8] sm:$0x7f]
      %v344 = vld [vmem:[%s296 + $0x10] sm:$0xff]
      %v345 = vld [vmem:[%s296 + $0x18] sm:$0x7f]
      %v346 = vld [vmem:[%s296 + $0x20] sm:$0xff]
      %v347 = vld [vmem:[%s296 + $0x28] sm:$0x7f]
      %v348 = vld [vmem:[%s296 + $0x30] sm:$0xff]
      %v349 = vld [vmem:[%s296 + $0x38] sm:$0x7f]
      %v350 = vld [vmem:[%s296 + $0x40] sm:$0xff]
      %v351 = vld [vmem:[%s296 + $0x48] sm:$0x7f]
      %v352 = vld [vmem:[%s296 + $0x50] sm:$0xff]
      %v353 = vld [vmem:[%s296 + $0x58] sm:$0x7f]
      %v354 = vld [vmem:[%s296 + $0x60] sm:$0xff]
      %v355 = vld [vmem:[%s296 + $0x68] sm:$0x7f]
      %v356 = vld [vmem:[%s296 + $0x70] sm:$0xff]
      %v357 = vld [vmem:[%s296 + $0x78] sm:$0x7f]
      %v358 = vld [vmem:[%s296 + $0x80] sm:$0xff]
      %v359 = vld [vmem:[%s296 + $0x88] sm:$0x7f]
      %v360 = vld [vmem:[%s296 + $0x90] sm:$0xff]
      %v361 = vld [vmem:[%s296 + $0x98] sm:$0x7f]
      %v362 = vld [vmem:[%s296 + $0xa0] sm:$0xff]
      %v363 = vld [vmem:[%s296 + $0xa8] sm:$0x7f]
      %v364 = vld [vmem:[%s296 + $0xb0] sm:$0xff]
      %v365 = vld [vmem:[%s296 + $0xb8] sm:$0x7f]
      %v366 = vld [vmem:[%s296 + $0xc0] sm:$0xff]
      %v367 = vld [vmem:[%s296 + $0xc8] sm:$0x7f]
      %v368 = vld [vmem:[%s296 + $0xd0] sm:$0xff]
      %v369 = vld [vmem:[%s296 + $0xd8] sm:$0x7f]
      %v370 = vld [vmem:[%s296 + $0xe0] sm:$0xff]
      %v371 = vld [vmem:[%s296 + $0xe8] sm:$0x7f]
      %v372 = vld [vmem:[%s301] sm:$0xff]
      %v373 = vld [vmem:[%s301 + $0x8] sm:$0x7f]
      %v374 = vld [vmem:[%s301 + $0x10] sm:$0xff]
      %v375 = vld [vmem:[%s301 + $0x18] sm:$0x7f]
      %v376 = vld [vmem:[%s301 + $0x20] sm:$0xff]
      %v377 = vld [vmem:[%s301 + $0x28] sm:$0x7f]
      %v378 = vld [vmem:[%s301 + $0x30] sm:$0xff]
      %v379 = vld [vmem:[%s301 + $0x38] sm:$0x7f]
      %v380 = vld [vmem:[%s301 + $0x40] sm:$0xff]
      %v381 = vld [vmem:[%s301 + $0x48] sm:$0x7f]
      %v382 = vld [vmem:[%s301 + $0x50] sm:$0xff]
      %v383 = vld [vmem:[%s301 + $0x58] sm:$0x7f]
      %v384 = vld [vmem:[%s301 + $0x60] sm:$0xff]
      %v385 = vld [vmem:[%s301 + $0x68] sm:$0x7f]
      %v386 = vld [vmem:[%s301 + $0x70] sm:$0xff]
      %v387 = vld [vmem:[%s301 + $0x78] sm:$0x7f]
      %v388 = vld [vmem:[%s301 + $0x80] sm:$0xff]
      %v389 = vld [vmem:[%s301 + $0x88] sm:$0x7f]
      %v390 = vld [vmem:[%s301 + $0x90] sm:$0xff]
      %v391 = vld [vmem:[%s301 + $0x98] sm:$0x7f]
      %v392 = vld [vmem:[%s301 + $0xa0] sm:$0xff]
      %v393 = vld [vmem:[%s301 + $0xa8] sm:$0x7f]
      %v394 = vld [vmem:[%s301 + $0xb0] sm:$0xff]
      %v395 = vld [vmem:[%s301 + $0xb8] sm:$0x7f]
      %v396 = vld [vmem:[%s301 + $0xc0] sm:$0xff]
      %v397 = vld [vmem:[%s301 + $0xc8] sm:$0x7f]
      %v398 = vld [vmem:[%s301 + $0xd0] sm:$0xff]
      %v399 = vld [vmem:[%s301 + $0xd8] sm:$0x7f]
      %v400 = vld [vmem:[%s301 + $0xe0] sm:$0xff]
      %v401 = vld [vmem:[%s301 + $0xe8] sm:$0x7f]
      %v402 = vld [vmem:[%s306] sm:$0xff]
      %v403 = vld [vmem:[%s306 + $0x8] sm:$0x7f]
      %v404 = vld [vmem:[%s306 + $0x10] sm:$0xff]
      %v405 = vld [vmem:[%s306 + $0x18] sm:$0x7f]
      %v406 = vld [vmem:[%s306 + $0x20] sm:$0xff]
      %v407 = vld [vmem:[%s306 + $0x28] sm:$0x7f]
      %v408 = vld [vmem:[%s306 + $0x30] sm:$0xff]
      %v409 = vld [vmem:[%s306 + $0x38] sm:$0x7f]
      %v410 = vld [vmem:[%s306 + $0x40] sm:$0xff]
      %v411 = vld [vmem:[%s306 + $0x48] sm:$0x7f]
      %v412 = vld [vmem:[%s306 + $0x50] sm:$0xff]
      %v413 = vld [vmem:[%s306 + $0x58] sm:$0x7f]
      %v414 = vld [vmem:[%s306 + $0x60] sm:$0xff]
      %v415 = vld [vmem:[%s306 + $0x68] sm:$0x7f]
      %v416 = vld [vmem:[%s306 + $0x70] sm:$0xff]
      %v417 = vld [vmem:[%s306 + $0x78] sm:$0x7f]
      %v418 = vld [vmem:[%s306 + $0x80] sm:$0xff]
      %v419 = vld [vmem:[%s306 + $0x88] sm:$0x7f]
      %v420 = vld [vmem:[%s306 + $0x90] sm:$0xff]
      %v421 = vld [vmem:[%s306 + $0x98] sm:$0x7f]
      %v422 = vld [vmem:[%s306 + $0xa0] sm:$0xff]
      %v423 = vld [vmem:[%s306 + $0xa8] sm:$0x7f]
      %v424 = vld [vmem:[%s306 + $0xb0] sm:$0xff]
      %v425 = vld [vmem:[%s306 + $0xb8] sm:$0x7f]
      %v426 = vld [vmem:[%s306 + $0xc0] sm:$0xff]
      %v427 = vld [vmem:[%s306 + $0xc8] sm:$0x7f]
      %v428 = vld [vmem:[%s306 + $0xd0] sm:$0xff]
      %v429 = vld [vmem:[%s306 + $0xd8] sm:$0x7f]
      %v430 = vld [vmem:[%s306 + $0xe0] sm:$0xff]
      %v431 = vld [vmem:[%s306 + $0xe8] sm:$0x7f]
      %v432 = vld [vmem:[%s4] sm:$0xff]
      %v433 = vld [vmem:[%s4 + $0x8] sm:$0x1]
      %v434 = vld [vmem:[%s5] sm:$0x1]
      %436 = vset.pattern.permute.xlu0 0
      %437 = vperm.xlu0 %436, %v312
      %v438 = vpop.permute.xlu0 %437
      %441 = vset.pattern.permute.xlu0 0
      %442 = vperm.xlu0 %441, %v313
      %v443 = vpop.permute.xlu0 %442
      %446 = vset.pattern.permute.xlu0 0
      %447 = vperm.xlu0 %446, %v314
      %v448 = vpop.permute.xlu0 %447
      %451 = vset.pattern.permute.xlu0 0
      %452 = vperm.xlu0 %451, %v315
      %v453 = vpop.permute.xlu0 %452
      %456 = vset.pattern.permute.xlu0 0
      %457 = vperm.xlu0 %456, %v316
      %v458 = vpop.permute.xlu0 %457
      %461 = vset.pattern.permute.xlu0 0
      %462 = vperm.xlu0 %461, %v317
      %v463 = vpop.permute.xlu0 %462
      %466 = vset.pattern.permute.xlu0 0
      %467 = vperm.xlu0 %466, %v318
      %v468 = vpop.permute.xlu0 %467
      %471 = vset.pattern.permute.xlu0 0
      %472 = vperm.xlu0 %471, %v319
      %v473 = vpop.permute.xlu0 %472
      %476 = vset.pattern.permute.xlu0 0
      %477 = vperm.xlu0 %476, %v320
      %v478 = vpop.permute.xlu0 %477
      %481 = vset.pattern.permute.xlu0 0
      %482 = vperm.xlu0 %481, %v321
      %v483 = vpop.permute.xlu0 %482
      %486 = vset.pattern.permute.xlu0 0
      %487 = vperm.xlu0 %486, %v322
      %v488 = vpop.permute.xlu0 %487
      %491 = vset.pattern.permute.xlu0 0
      %492 = vperm.xlu0 %491, %v323
      %v493 = vpop.permute.xlu0 %492
      %496 = vset.pattern.permute.xlu0 0
      %497 = vperm.xlu0 %496, %v324
      %v498 = vpop.permute.xlu0 %497
      %501 = vset.pattern.permute.xlu0 0
      %502 = vperm.xlu0 %501, %v325
      %v503 = vpop.permute.xlu0 %502
      %506 = vset.pattern.permute.xlu0 0
      %507 = vperm.xlu0 %506, %v326
      %v508 = vpop.permute.xlu0 %507
      %511 = vset.pattern.permute.xlu0 0
      %512 = vperm.xlu0 %511, %v327
      %v513 = vpop.permute.xlu0 %512
      %516 = vset.pattern.permute.xlu0 0
      %517 = vperm.xlu0 %516, %v328
      %v518 = vpop.permute.xlu0 %517
      %521 = vset.pattern.permute.xlu0 0
      %522 = vperm.xlu0 %521, %v329
      %v523 = vpop.permute.xlu0 %522
      %526 = vset.pattern.permute.xlu0 0
      %527 = vperm.xlu0 %526, %v330
      %v528 = vpop.permute.xlu0 %527
      %531 = vset.pattern.permute.xlu0 0
      %532 = vperm.xlu0 %531, %v331
      %v533 = vpop.permute.xlu0 %532
      %536 = vset.pattern.permute.xlu0 0
      %537 = vperm.xlu0 %536, %v332
      %v538 = vpop.permute.xlu0 %537
      %541 = vset.pattern.permute.xlu0 0
      %542 = vperm.xlu0 %541, %v333
      %v543 = vpop.permute.xlu0 %542
      %546 = vset.pattern.permute.xlu0 0
      %547 = vperm.xlu0 %546, %v334
      %v548 = vpop.permute.xlu0 %547
      %551 = vset.pattern.permute.xlu0 0
      %552 = vperm.xlu0 %551, %v335
      %v553 = vpop.permute.xlu0 %552
      %556 = vset.pattern.permute.xlu0 0
      %557 = vperm.xlu0 %556, %v336
      %v558 = vpop.permute.xlu0 %557
      %561 = vset.pattern.permute.xlu0 0
      %562 = vperm.xlu0 %561, %v337
      %v563 = vpop.permute.xlu0 %562
      %566 = vset.pattern.permute.xlu0 0
      %567 = vperm.xlu0 %566, %v338
      %v568 = vpop.permute.xlu0 %567
      %571 = vset.pattern.permute.xlu0 0
      %572 = vperm.xlu0 %571, %v339
      %v573 = vpop.permute.xlu0 %572
      %v575 = vperm.slane %v432, 0
      %v576 = vmul.f32 %v438, %v575
      %v577 = vmul.f32 %v443, %v575
      %v578 = vmul.f32 %v448, %v575
      %v579 = vmul.f32 %v453, %v575
      %v580 = vmul.f32 %v458, %v575
      %v581 = vmul.f32 %v463, %v575
      %v582 = vmul.f32 %v468, %v575
      %v583 = vmul.f32 %v473, %v575
      %v584 = vmul.f32 %v478, %v575
      %v585 = vmul.f32 %v483, %v575
      %v586 = vmul.f32 %v488, %v575
      %v587 = vmul.f32 %v493, %v575
      %v588 = vmul.f32 %v498, %v575
      %v589 = vmul.f32 %v503, %v575
      %v590 = vmul.f32 %v508, %v575
      %v591 = vmul.f32 %v513, %v575
      %v592 = vmul.f32 %v518, %v575
      %v593 = vmul.f32 %v523, %v575
      %v594 = vmul.f32 %v528, %v575
      %v595 = vmul.f32 %v533, %v575
      %v596 = vmul.f32 %v538, %v575
      %v597 = vmul.f32 %v543, %v575
      %v598 = vmul.f32 %v548, %v575
      %v599 = vmul.f32 %v553, %v575
      %v600 = vmul.f32 %v558, %v575
      %v601 = vmul.f32 %v563, %v575
      %v602 = vmul.f32 %v568, %v575
      %v603 = vmul.f32 %v573, %v575
      %605 = vset.pattern.permute.xlu0 0
      %606 = vperm.xlu0 %605, %v342
      %v607 = vpop.permute.xlu0 %606
      %610 = vset.pattern.permute.xlu0 0
      %611 = vperm.xlu0 %610, %v343
      %v612 = vpop.permute.xlu0 %611
      %615 = vset.pattern.permute.xlu0 0
      %616 = vperm.xlu0 %615, %v344
      %v617 = vpop.permute.xlu0 %616
      %620 = vset.pattern.permute.xlu0 0
      %621 = vperm.xlu0 %620, %v345
      %v622 = vpop.permute.xlu0 %621
      %625 = vset.pattern.permute.xlu0 0
      %626 = vperm.xlu0 %625, %v346
      %v627 = vpop.permute.xlu0 %626
      %630 = vset.pattern.permute.xlu0 0
      %631 = vperm.xlu0 %630, %v347
      %v632 = vpop.permute.xlu0 %631
      %635 = vset.pattern.permute.xlu0 0
      %636 = vperm.xlu0 %635, %v348
      %v637 = vpop.permute.xlu0 %636
      %640 = vset.pattern.permute.xlu0 0
      %641 = vperm.xlu0 %640, %v349
      %v642 = vpop.permute.xlu0 %641
      %645 = vset.pattern.permute.xlu0 0
      %646 = vperm.xlu0 %645, %v350
      %v647 = vpop.permute.xlu0 %646
      %650 = vset.pattern.permute.xlu0 0
      %651 = vperm.xlu0 %650, %v351
      %v652 = vpop.permute.xlu0 %651
      %655 = vset.pattern.permute.xlu0 0
      %656 = vperm.xlu0 %655, %v352
      %v657 = vpop.permute.xlu0 %656
      %660 = vset.pattern.permute.xlu0 0
      %661 = vperm.xlu0 %660, %v353
      %v662 = vpop.permute.xlu0 %661
      %665 = vset.pattern.permute.xlu0 0
      %666 = vperm.xlu0 %665, %v354
      %v667 = vpop.permute.xlu0 %666
      %670 = vset.pattern.permute.xlu0 0
      %671 = vperm.xlu0 %670, %v355
      %v672 = vpop.permute.xlu0 %671
      %675 = vset.pattern.permute.xlu0 0
      %676 = vperm.xlu0 %675, %v356
      %v677 = vpop.permute.xlu0 %676
      %680 = vset.pattern.permute.xlu0 0
      %681 = vperm.xlu0 %680, %v357
      %v682 = vpop.permute.xlu0 %681
      %685 = vset.pattern.permute.xlu0 0
      %686 = vperm.xlu0 %685, %v358
      %v687 = vpop.permute.xlu0 %686
      %690 = vset.pattern.permute.xlu0 0
      %691 = vperm.xlu0 %690, %v359
      %v692 = vpop.permute.xlu0 %691
      %695 = vset.pattern.permute.xlu0 0
      %696 = vperm.xlu0 %695, %v360
      %v697 = vpop.permute.xlu0 %696
      %700 = vset.pattern.permute.xlu0 0
      %701 = vperm.xlu0 %700, %v361
      %v702 = vpop.permute.xlu0 %701
      %705 = vset.pattern.permute.xlu0 0
      %706 = vperm.xlu0 %705, %v362
      %v707 = vpop.permute.xlu0 %706
      %710 = vset.pattern.permute.xlu0 0
      %711 = vperm.xlu0 %710, %v363
      %v712 = vpop.permute.xlu0 %711
      %715 = vset.pattern.permute.xlu0 0
      %716 = vperm.xlu0 %715, %v364
      %v717 = vpop.permute.xlu0 %716
      %720 = vset.pattern.permute.xlu0 0
      %721 = vperm.xlu0 %720, %v365
      %v722 = vpop.permute.xlu0 %721
      %725 = vset.pattern.permute.xlu0 0
      %726 = vperm.xlu0 %725, %v366
      %v727 = vpop.permute.xlu0 %726
      %730 = vset.pattern.permute.xlu0 0
      %731 = vperm.xlu0 %730, %v367
      %v732 = vpop.permute.xlu0 %731
      %735 = vset.pattern.permute.xlu0 0
      %736 = vperm.xlu0 %735, %v368
      %v737 = vpop.permute.xlu0 %736
      %740 = vset.pattern.permute.xlu0 0
      %741 = vperm.xlu0 %740, %v369
      %v742 = vpop.permute.xlu0 %741
      %v744 = vmul.f32 %v607, %v575
      %v745 = vmul.f32 %v612, %v575
      %v746 = vmul.f32 %v617, %v575
      %v747 = vmul.f32 %v622, %v575
      %v748 = vmul.f32 %v627, %v575
      %v749 = vmul.f32 %v632, %v575
      %v750 = vmul.f32 %v637, %v575
      %v751 = vmul.f32 %v642, %v575
      %v752 = vmul.f32 %v647, %v575
      %v753 = vmul.f32 %v652, %v575
      %v754 = vmul.f32 %v657, %v575
      %v755 = vmul.f32 %v662, %v575
      %v756 = vmul.f32 %v667, %v575
      %v757 = vmul.f32 %v672, %v575
      %v758 = vmul.f32 %v677, %v575
      %v759 = vmul.f32 %v682, %v575
      %v760 = vmul.f32 %v687, %v575
      %v761 = vmul.f32 %v692, %v575
      %v762 = vmul.f32 %v697, %v575
      %v763 = vmul.f32 %v702, %v575
      %v764 = vmul.f32 %v707, %v575
      %v765 = vmul.f32 %v712, %v575
      %v766 = vmul.f32 %v717, %v575
      %v767 = vmul.f32 %v722, %v575
      %v768 = vmul.f32 %v727, %v575
      %v769 = vmul.f32 %v732, %v575
      %v770 = vmul.f32 %v737, %v575
      %v771 = vmul.f32 %v742, %v575
      %773 = vset.pattern.permute.xlu0 0
      %774 = vperm.xlu0 %773, %v372
      %v775 = vpop.permute.xlu0 %774
      %778 = vset.pattern.permute.xlu0 0
      %779 = vperm.xlu0 %778, %v373
      %v780 = vpop.permute.xlu0 %779
      %783 = vset.pattern.permute.xlu0 0
      %784 = vperm.xlu0 %783, %v374
      %v785 = vpop.permute.xlu0 %784
      %788 = vset.pattern.permute.xlu0 0
      %789 = vperm.xlu0 %788, %v375
      %v790 = vpop.permute.xlu0 %789
      %793 = vset.pattern.permute.xlu0 0
      %794 = vperm.xlu0 %793, %v376
      %v795 = vpop.permute.xlu0 %794
      %798 = vset.pattern.permute.xlu0 0
      %799 = vperm.xlu0 %798, %v377
      %v800 = vpop.permute.xlu0 %799
      %803 = vset.pattern.permute.xlu0 0
      %804 = vperm.xlu0 %803, %v378
      %v805 = vpop.permute.xlu0 %804
      %808 = vset.pattern.permute.xlu0 0
      %809 = vperm.xlu0 %808, %v379
      %v810 = vpop.permute.xlu0 %809
      %813 = vset.pattern.permute.xlu0 0
      %814 = vperm.xlu0 %813, %v380
      %v815 = vpop.permute.xlu0 %814
      %818 = vset.pattern.permute.xlu0 0
      %819 = vperm.xlu0 %818, %v381
      %v820 = vpop.permute.xlu0 %819
      %823 = vset.pattern.permute.xlu0 0
      %824 = vperm.xlu0 %823, %v382
      %v825 = vpop.permute.xlu0 %824
      %828 = vset.pattern.permute.xlu0 0
      %829 = vperm.xlu0 %828, %v383
      %v830 = vpop.permute.xlu0 %829
      %833 = vset.pattern.permute.xlu0 0
      %834 = vperm.xlu0 %833, %v384
      %v835 = vpop.permute.xlu0 %834
      %838 = vset.pattern.permute.xlu0 0
      %839 = vperm.xlu0 %838, %v385
      %v840 = vpop.permute.xlu0 %839
      %843 = vset.pattern.permute.xlu0 0
      %844 = vperm.xlu0 %843, %v386
      %v845 = vpop.permute.xlu0 %844
      %848 = vset.pattern.permute.xlu0 0
      %849 = vperm.xlu0 %848, %v387
      %v850 = vpop.permute.xlu0 %849
      %853 = vset.pattern.permute.xlu0 0
      %854 = vperm.xlu0 %853, %v388
      %v855 = vpop.permute.xlu0 %854
      %858 = vset.pattern.permute.xlu0 0
      %859 = vperm.xlu0 %858, %v389
      %v860 = vpop.permute.xlu0 %859
      %863 = vset.pattern.permute.xlu0 0
      %864 = vperm.xlu0 %863, %v390
      %v865 = vpop.permute.xlu0 %864
      %868 = vset.pattern.permute.xlu0 0
      %869 = vperm.xlu0 %868, %v391
      %v870 = vpop.permute.xlu0 %869
      %873 = vset.pattern.permute.xlu0 0
      %874 = vperm.xlu0 %873, %v392
      %v875 = vpop.permute.xlu0 %874
      %878 = vset.pattern.permute.xlu0 0
      %879 = vperm.xlu0 %878, %v393
      %v880 = vpop.permute.xlu0 %879
      %883 = vset.pattern.permute.xlu0 0
      %884 = vperm.xlu0 %883, %v394
      %v885 = vpop.permute.xlu0 %884
      %888 = vset.pattern.permute.xlu0 0
      %889 = vperm.xlu0 %888, %v395
      %v890 = vpop.permute.xlu0 %889
      %893 = vset.pattern.permute.xlu0 0
      %894 = vperm.xlu0 %893, %v396
      %v895 = vpop.permute.xlu0 %894
      %898 = vset.pattern.permute.xlu0 0
      %899 = vperm.xlu0 %898, %v397
      %v900 = vpop.permute.xlu0 %899
      %903 = vset.pattern.permute.xlu0 0
      %904 = vperm.xlu0 %903, %v398
      %v905 = vpop.permute.xlu0 %904
      %908 = vset.pattern.permute.xlu0 0
      %909 = vperm.xlu0 %908, %v399
      %v910 = vpop.permute.xlu0 %909
      %v912 = vmul.f32 %v775, %v575
      %v913 = vmul.f32 %v780, %v575
      %v914 = vmul.f32 %v785, %v575
      %v915 = vmul.f32 %v790, %v575
      %v916 = vmul.f32 %v795, %v575
      %v917 = vmul.f32 %v800, %v575
      %v918 = vmul.f32 %v805, %v575
      %v919 = vmul.f32 %v810, %v575
      %v920 = vmul.f32 %v815, %v575
      %v921 = vmul.f32 %v820, %v575
      %v922 = vmul.f32 %v825, %v575
      %v923 = vmul.f32 %v830, %v575
      %v924 = vmul.f32 %v835, %v575
      %v925 = vmul.f32 %v840, %v575
      %v926 = vmul.f32 %v845, %v575
      %v927 = vmul.f32 %v850, %v575
      %v928 = vmul.f32 %v855, %v575
      %v929 = vmul.f32 %v860, %v575
      %v930 = vmul.f32 %v865, %v575
      %v931 = vmul.f32 %v870, %v575
      %v932 = vmul.f32 %v875, %v575
      %v933 = vmul.f32 %v880, %v575
      %v934 = vmul.f32 %v885, %v575
      %v935 = vmul.f32 %v890, %v575
      %v936 = vmul.f32 %v895, %v575
      %v937 = vmul.f32 %v900, %v575
      %v938 = vmul.f32 %v905, %v575
      %v939 = vmul.f32 %v910, %v575
      %941 = vset.pattern.permute.xlu0 0
      %942 = vperm.xlu0 %941, %v402
      %v943 = vpop.permute.xlu0 %942
      %946 = vset.pattern.permute.xlu0 0
      %947 = vperm.xlu0 %946, %v403
      %v948 = vpop.permute.xlu0 %947
      %951 = vset.pattern.permute.xlu0 0
      %952 = vperm.xlu0 %951, %v404
      %v953 = vpop.permute.xlu0 %952
      %956 = vset.pattern.permute.xlu0 0
      %957 = vperm.xlu0 %956, %v405
      %v958 = vpop.permute.xlu0 %957
      %961 = vset.pattern.permute.xlu0 0
      %962 = vperm.xlu0 %961, %v406
      %v963 = vpop.permute.xlu0 %962
      %966 = vset.pattern.permute.xlu0 0
      %967 = vperm.xlu0 %966, %v407
      %v968 = vpop.permute.xlu0 %967
      %971 = vset.pattern.permute.xlu0 0
      %972 = vperm.xlu0 %971, %v408
      %v973 = vpop.permute.xlu0 %972
      %976 = vset.pattern.permute.xlu0 0
      %977 = vperm.xlu0 %976, %v409
      %v978 = vpop.permute.xlu0 %977
      %981 = vset.pattern.permute.xlu0 0
      %982 = vperm.xlu0 %981, %v410
      %v983 = vpop.permute.xlu0 %982
      %986 = vset.pattern.permute.xlu0 0
      %987 = vperm.xlu0 %986, %v411
      %v988 = vpop.permute.xlu0 %987
      %991 = vset.pattern.permute.xlu0 0
      %992 = vperm.xlu0 %991, %v412
      %v993 = vpop.permute.xlu0 %992
      %996 = vset.pattern.permute.xlu0 0
      %997 = vperm.xlu0 %996, %v413
      %v998 = vpop.permute.xlu0 %997
      %1001 = vset.pattern.permute.xlu0 0
      %1002 = vperm.xlu0 %1001, %v414
      %v1003 = vpop.permute.xlu0 %1002
      %1006 = vset.pattern.permute.xlu0 0
      %1007 = vperm.xlu0 %1006, %v415
      %v1008 = vpop.permute.xlu0 %1007
      %1011 = vset.pattern.permute.xlu0 0
      %1012 = vperm.xlu0 %1011, %v416
      %v1013 = vpop.permute.xlu0 %1012
      %1016 = vset.pattern.permute.xlu0 0
      %1017 = vperm.xlu0 %1016, %v417
      %v1018 = vpop.permute.xlu0 %1017
      %1021 = vset.pattern.permute.xlu0 0
      %1022 = vperm.xlu0 %1021, %v418
      %v1023 = vpop.permute.xlu0 %1022
      %1026 = vset.pattern.permute.xlu0 0
      %1027 = vperm.xlu0 %1026, %v419
      %v1028 = vpop.permute.xlu0 %1027
      %1031 = vset.pattern.permute.xlu0 0
      %1032 = vperm.xlu0 %1031, %v420
      %v1033 = vpop.permute.xlu0 %1032
      %1036 = vset.pattern.permute.xlu0 0
      %1037 = vperm.xlu0 %1036, %v421
      %v1038 = vpop.permute.xlu0 %1037
      %1041 = vset.pattern.permute.xlu0 0
      %1042 = vperm.xlu0 %1041, %v422
      %v1043 = vpop.permute.xlu0 %1042
      %1046 = vset.pattern.permute.xlu0 0
      %1047 = vperm.xlu0 %1046, %v423
      %v1048 = vpop.permute.xlu0 %1047
      %1051 = vset.pattern.permute.xlu0 0
      %1052 = vperm.xlu0 %1051, %v424
      %v1053 = vpop.permute.xlu0 %1052
      %1056 = vset.pattern.permute.xlu0 0
      %1057 = vperm.xlu0 %1056, %v425
      %v1058 = vpop.permute.xlu0 %1057
      %1061 = vset.pattern.permute.xlu0 0
      %1062 = vperm.xlu0 %1061, %v426
      %v1063 = vpop.permute.xlu0 %1062
      %1066 = vset.pattern.permute.xlu0 0
      %1067 = vperm.xlu0 %1066, %v427
      %v1068 = vpop.permute.xlu0 %1067
      %1071 = vset.pattern.permute.xlu0 0
      %1072 = vperm.xlu0 %1071, %v428
      %v1073 = vpop.permute.xlu0 %1072
      %1076 = vset.pattern.permute.xlu0 0
      %1077 = vperm.xlu0 %1076, %v429
      %v1078 = vpop.permute.xlu0 %1077
      %v1080 = vmul.f32 %v943, %v575
      %v1081 = vmul.f32 %v948, %v575
      %v1082 = vmul.f32 %v953, %v575
      %v1083 = vmul.f32 %v958, %v575
      %v1084 = vmul.f32 %v963, %v575
      %v1085 = vmul.f32 %v968, %v575
      %v1086 = vmul.f32 %v973, %v575
      %v1087 = vmul.f32 %v978, %v575
      %v1088 = vmul.f32 %v983, %v575
      %v1089 = vmul.f32 %v988, %v575
      %v1090 = vmul.f32 %v993, %v575
      %v1091 = vmul.f32 %v998, %v575
      %v1092 = vmul.f32 %v1003, %v575
      %v1093 = vmul.f32 %v1008, %v575
      %v1094 = vmul.f32 %v1013, %v575
      %v1095 = vmul.f32 %v1018, %v575
      %v1096 = vmul.f32 %v1023, %v575
      %v1097 = vmul.f32 %v1028, %v575
      %v1098 = vmul.f32 %v1033, %v575
      %v1099 = vmul.f32 %v1038, %v575
      %v1100 = vmul.f32 %v1043, %v575
      %v1101 = vmul.f32 %v1048, %v575
      %v1102 = vmul.f32 %v1053, %v575
      %v1103 = vmul.f32 %v1058, %v575
      %v1104 = vmul.f32 %v1063, %v575
      %v1105 = vmul.f32 %v1068, %v575
      %v1106 = vmul.f32 %v1073, %v575
      %v1107 = vmul.f32 %v1078, %v575
      %v1108 = vperm.slane %v432, 1
      %v1109 = vmul.f32 %v607, %v1108
      %v1110 = vmul.f32 %v612, %v1108
      %v1111 = vmul.f32 %v617, %v1108
      %v1112 = vmul.f32 %v622, %v1108
      %v1113 = vmul.f32 %v627, %v1108
      %v1114 = vmul.f32 %v632, %v1108
      %v1115 = vmul.f32 %v637, %v1108
      %v1116 = vmul.f32 %v642, %v1108
      %v1117 = vmul.f32 %v647, %v1108
      %v1118 = vmul.f32 %v652, %v1108
      %v1119 = vmul.f32 %v657, %v1108
      %v1120 = vmul.f32 %v662, %v1108
      %v1121 = vmul.f32 %v667, %v1108
      %v1122 = vmul.f32 %v672, %v1108
      %v1123 = vmul.f32 %v677, %v1108
      %v1124 = vmul.f32 %v682, %v1108
      %v1125 = vmul.f32 %v687, %v1108
      %v1126 = vmul.f32 %v692, %v1108
      %v1127 = vmul.f32 %v697, %v1108
      %v1128 = vmul.f32 %v702, %v1108
      %v1129 = vmul.f32 %v707, %v1108
      %v1130 = vmul.f32 %v712, %v1108
      %v1131 = vmul.f32 %v717, %v1108
      %v1132 = vmul.f32 %v722, %v1108
      %v1133 = vmul.f32 %v727, %v1108
      %v1134 = vmul.f32 %v732, %v1108
      %v1135 = vmul.f32 %v737, %v1108
      %v1136 = vmul.f32 %v742, %v1108
      %v1137 = vadd.f32 %v576, %v1109
      %v1138 = vadd.f32 %v577, %v1110
      %v1139 = vadd.f32 %v578, %v1111
      %v1140 = vadd.f32 %v579, %v1112
      %v1141 = vadd.f32 %v580, %v1113
      %v1142 = vadd.f32 %v581, %v1114
      %v1143 = vadd.f32 %v582, %v1115
      %v1144 = vadd.f32 %v583, %v1116
      %v1145 = vadd.f32 %v584, %v1117
      %v1146 = vadd.f32 %v585, %v1118
      %v1147 = vadd.f32 %v586, %v1119
      %v1148 = vadd.f32 %v587, %v1120
      %v1149 = vadd.f32 %v588, %v1121
      %v1150 = vadd.f32 %v589, %v1122
      %v1151 = vadd.f32 %v590, %v1123
      %v1152 = vadd.f32 %v591, %v1124
      %v1153 = vadd.f32 %v592, %v1125
      %v1154 = vadd.f32 %v593, %v1126
      %v1155 = vadd.f32 %v594, %v1127
      %v1156 = vadd.f32 %v595, %v1128
      %v1157 = vadd.f32 %v596, %v1129
      %v1158 = vadd.f32 %v597, %v1130
      %v1159 = vadd.f32 %v598, %v1131
      %v1160 = vadd.f32 %v599, %v1132
      %v1161 = vadd.f32 %v600, %v1133
      %v1162 = vadd.f32 %v601, %v1134
      %v1163 = vadd.f32 %v602, %v1135
      %v1164 = vadd.f32 %v603, %v1136
      %v1165 = vmul.f32 %v438, %v1108
      %v1166 = vmul.f32 %v443, %v1108
      %v1167 = vmul.f32 %v448, %v1108
      %v1168 = vmul.f32 %v453, %v1108
      %v1169 = vmul.f32 %v458, %v1108
      %v1170 = vmul.f32 %v463, %v1108
      %v1171 = vmul.f32 %v468, %v1108
      %v1172 = vmul.f32 %v473, %v1108
      %v1173 = vmul.f32 %v478, %v1108
      %v1174 = vmul.f32 %v483, %v1108
      %v1175 = vmul.f32 %v488, %v1108
      %v1176 = vmul.f32 %v493, %v1108
      %v1177 = vmul.f32 %v498, %v1108
      %v1178 = vmul.f32 %v503, %v1108
      %v1179 = vmul.f32 %v508, %v1108
      %v1180 = vmul.f32 %v513, %v1108
      %v1181 = vmul.f32 %v518, %v1108
      %v1182 = vmul.f32 %v523, %v1108
      %v1183 = vmul.f32 %v528, %v1108
      %v1184 = vmul.f32 %v533, %v1108
      %v1185 = vmul.f32 %v538, %v1108
      %v1186 = vmul.f32 %v543, %v1108
      %v1187 = vmul.f32 %v548, %v1108
      %v1188 = vmul.f32 %v553, %v1108
      %v1189 = vmul.f32 %v558, %v1108
      %v1190 = vmul.f32 %v563, %v1108
      %v1191 = vmul.f32 %v568, %v1108
      %v1192 = vmul.f32 %v573, %v1108
      %vm1221 = vcmask 1046528
      %v1222 = vrot.slane %v1165, 1
      %v1223 = vrot.slane %v1166, 1
      %v1224 = vsel %vm1221, %v1222, %v1223
      %v1225 = vrot.slane %v1167, 1
      %v1226 = vrot.slane %v1168, 1
      %v1227 = vsel %vm1221, %v1225, %v1226
      %v1228 = vrot.slane %v1169, 1
      %v1229 = vrot.slane %v1170, 1
      %v1230 = vsel %vm1221, %v1228, %v1229
      %v1231 = vrot.slane %v1171, 1
      %v1232 = vrot.slane %v1172, 1
      %v1233 = vsel %vm1221, %v1231, %v1232
      %v1234 = vrot.slane %v1173, 1
      %v1235 = vrot.slane %v1174, 1
      %v1236 = vsel %vm1221, %v1234, %v1235
      %v1237 = vrot.slane %v1175, 1
      %v1238 = vrot.slane %v1176, 1
      %v1239 = vsel %vm1221, %v1237, %v1238
      %v1240 = vrot.slane %v1177, 1
      %v1241 = vrot.slane %v1178, 1
      %v1242 = vsel %vm1221, %v1240, %v1241
      %v1243 = vrot.slane %v1179, 1
      %v1244 = vrot.slane %v1180, 1
      %v1245 = vsel %vm1221, %v1243, %v1244
      %v1246 = vrot.slane %v1181, 1
      %v1247 = vrot.slane %v1182, 1
      %v1248 = vsel %vm1221, %v1246, %v1247
      %v1249 = vrot.slane %v1183, 1
      %v1250 = vrot.slane %v1184, 1
      %v1251 = vsel %vm1221, %v1249, %v1250
      %v1252 = vrot.slane %v1185, 1
      %v1253 = vrot.slane %v1186, 1
      %v1254 = vsel %vm1221, %v1252, %v1253
      %v1255 = vrot.slane %v1187, 1
      %v1256 = vrot.slane %v1188, 1
      %v1257 = vsel %vm1221, %v1255, %v1256
      %v1258 = vrot.slane %v1189, 1
      %v1259 = vrot.slane %v1190, 1
      %v1260 = vsel %vm1221, %v1258, %v1259
      %v1261 = vrot.slane %v1191, 1
      %v1262 = vrot.slane %v1192, 1
      %v1263 = vsel %vm1221, %v1261, %v1262
      %v1292 = vadd.f32 %v744, %v1224
      %v1293 = vadd.f32 %v745, %v1223
      %v1294 = vadd.f32 %v746, %v1227
      %v1295 = vadd.f32 %v747, %v1226
      %v1296 = vadd.f32 %v748, %v1230
      %v1297 = vadd.f32 %v749, %v1229
      %v1298 = vadd.f32 %v750, %v1233
      %v1299 = vadd.f32 %v751, %v1232
      %v1300 = vadd.f32 %v752, %v1236
      %v1301 = vadd.f32 %v753, %v1235
      %v1302 = vadd.f32 %v754, %v1239
      %v1303 = vadd.f32 %v755, %v1238
      %v1304 = vadd.f32 %v756, %v1242
      %v1305 = vadd.f32 %v757, %v1241
      %v1306 = vadd.f32 %v758, %v1245
      %v1307 = vadd.f32 %v759, %v1244
      %v1308 = vadd.f32 %v760, %v1248
      %v1309 = vadd.f32 %v761, %v1247
      %v1310 = vadd.f32 %v762, %v1251
      %v1311 = vadd.f32 %v763, %v1250
      %v1312 = vadd.f32 %v764, %v1254
      %v1313 = vadd.f32 %v765, %v1253
      %v1314 = vadd.f32 %v766, %v1257
      %v1315 = vadd.f32 %v767, %v1256
      %v1316 = vadd.f32 %v768, %v1260
      %v1317 = vadd.f32 %v769, %v1259
      %v1318 = vadd.f32 %v770, %v1263
      %v1319 = vadd.f32 %v771, %v1262
      %v1320 = vmul.f32 %v943, %v1108
      %v1321 = vmul.f32 %v948, %v1108
      %v1322 = vmul.f32 %v953, %v1108
      %v1323 = vmul.f32 %v958, %v1108
      %v1324 = vmul.f32 %v963, %v1108
      %v1325 = vmul.f32 %v968, %v1108
      %v1326 = vmul.f32 %v973, %v1108
      %v1327 = vmul.f32 %v978, %v1108
      %v1328 = vmul.f32 %v983, %v1108
      %v1329 = vmul.f32 %v988, %v1108
      %v1330 = vmul.f32 %v993, %v1108
      %v1331 = vmul.f32 %v998, %v1108
      %v1332 = vmul.f32 %v1003, %v1108
      %v1333 = vmul.f32 %v1008, %v1108
      %v1334 = vmul.f32 %v1013, %v1108
      %v1335 = vmul.f32 %v1018, %v1108
      %v1336 = vmul.f32 %v1023, %v1108
      %v1337 = vmul.f32 %v1028, %v1108
      %v1338 = vmul.f32 %v1033, %v1108
      %v1339 = vmul.f32 %v1038, %v1108
      %v1340 = vmul.f32 %v1043, %v1108
      %v1341 = vmul.f32 %v1048, %v1108
      %v1342 = vmul.f32 %v1053, %v1108
      %v1343 = vmul.f32 %v1058, %v1108
      %v1344 = vmul.f32 %v1063, %v1108
      %v1345 = vmul.f32 %v1068, %v1108
      %v1346 = vmul.f32 %v1073, %v1108
      %v1347 = vmul.f32 %v1078, %v1108
      %v1348 = vadd.f32 %v912, %v1320
      %v1349 = vadd.f32 %v913, %v1321
      %v1350 = vadd.f32 %v914, %v1322
      %v1351 = vadd.f32 %v915, %v1323
      %v1352 = vadd.f32 %v916, %v1324
      %v1353 = vadd.f32 %v917, %v1325
      %v1354 = vadd.f32 %v918, %v1326
      %v1355 = vadd.f32 %v919, %v1327
      %v1356 = vadd.f32 %v920, %v1328
      %v1357 = vadd.f32 %v921, %v1329
      %v1358 = vadd.f32 %v922, %v1330
      %v1359 = vadd.f32 %v923, %v1331
      %v1360 = vadd.f32 %v924, %v1332
      %v1361 = vadd.f32 %v925, %v1333
      %v1362 = vadd.f32 %v926, %v1334
      %v1363 = vadd.f32 %v927, %v1335
      %v1364 = vadd.f32 %v928, %v1336
      %v1365 = vadd.f32 %v929, %v1337
      %v1366 = vadd.f32 %v930, %v1338
      %v1367 = vadd.f32 %v931, %v1339
      %v1368 = vadd.f32 %v932, %v1340
      %v1369 = vadd.f32 %v933, %v1341
      %v1370 = vadd.f32 %v934, %v1342
      %v1371 = vadd.f32 %v935, %v1343
      %v1372 = vadd.f32 %v936, %v1344
      %v1373 = vadd.f32 %v937, %v1345
      %v1374 = vadd.f32 %v938, %v1346
      %v1375 = vadd.f32 %v939, %v1347
      %v1376 = vmul.f32 %v775, %v1108
      %v1377 = vmul.f32 %v780, %v1108
      %v1378 = vmul.f32 %v785, %v1108
      %v1379 = vmul.f32 %v790, %v1108
      %v1380 = vmul.f32 %v795, %v1108
      %v1381 = vmul.f32 %v800, %v1108
      %v1382 = vmul.f32 %v805, %v1108
      %v1383 = vmul.f32 %v810, %v1108
      %v1384 = vmul.f32 %v815, %v1108
      %v1385 = vmul.f32 %v820, %v1108
      %v1386 = vmul.f32 %v825, %v1108
      %v1387 = vmul.f32 %v830, %v1108
      %v1388 = vmul.f32 %v835, %v1108
      %v1389 = vmul.f32 %v840, %v1108
      %v1390 = vmul.f32 %v845, %v1108
      %v1391 = vmul.f32 %v850, %v1108
      %v1392 = vmul.f32 %v855, %v1108
      %v1393 = vmul.f32 %v860, %v1108
      %v1394 = vmul.f32 %v865, %v1108
      %v1395 = vmul.f32 %v870, %v1108
      %v1396 = vmul.f32 %v875, %v1108
      %v1397 = vmul.f32 %v880, %v1108
      %v1398 = vmul.f32 %v885, %v1108
      %v1399 = vmul.f32 %v890, %v1108
      %v1400 = vmul.f32 %v895, %v1108
      %v1401 = vmul.f32 %v900, %v1108
      %v1402 = vmul.f32 %v905, %v1108
      %v1403 = vmul.f32 %v910, %v1108
      %v1432 = vrot.slane %v1376, 1
      %v1433 = vrot.slane %v1377, 1
      %v1434 = vsel %vm1221, %v1432, %v1433
      %v1435 = vrot.slane %v1378, 1
      %v1436 = vrot.slane %v1379, 1
      %v1437 = vsel %vm1221, %v1435, %v1436
      %v1438 = vrot.slane %v1380, 1
      %v1439 = vrot.slane %v1381, 1
      %v1440 = vsel %vm1221, %v1438, %v1439
      %v1441 = vrot.slane %v1382, 1
      %v1442 = vrot.slane %v1383, 1
      %v1443 = vsel %vm1221, %v1441, %v1442
      %v1444 = vrot.slane %v1384, 1
      %v1445 = vrot.slane %v1385, 1
      %v1446 = vsel %vm1221, %v1444, %v1445
      %v1447 = vrot.slane %v1386, 1
      %v1448 = vrot.slane %v1387, 1
      %v1449 = vsel %vm1221, %v1447, %v1448
      %v1450 = vrot.slane %v1388, 1
      %v1451 = vrot.slane %v1389, 1
      %v1452 = vsel %vm1221, %v1450, %v1451
      %v1453 = vrot.slane %v1390, 1
      %v1454 = vrot.slane %v1391, 1
      %v1455 = vsel %vm1221, %v1453, %v1454
      %v1456 = vrot.slane %v1392, 1
      %v1457 = vrot.slane %v1393, 1
      %v1458 = vsel %vm1221, %v1456, %v1457
      %v1459 = vrot.slane %v1394, 1
      %v1460 = vrot.slane %v1395, 1
      %v1461 = vsel %vm1221, %v1459, %v1460
      %v1462 = vrot.slane %v1396, 1
      %v1463 = vrot.slane %v1397, 1
      %v1464 = vsel %vm1221, %v1462, %v1463
      %v1465 = vrot.slane %v1398, 1
      %v1466 = vrot.slane %v1399, 1
      %v1467 = vsel %vm1221, %v1465, %v1466
      %v1468 = vrot.slane %v1400, 1
      %v1469 = vrot.slane %v1401, 1
      %v1470 = vsel %vm1221, %v1468, %v1469
      %v1471 = vrot.slane %v1402, 1
      %v1472 = vrot.slane %v1403, 1
      %v1473 = vsel %vm1221, %v1471, %v1472
      %v1502 = vadd.f32 %v1080, %v1434
      %v1503 = vadd.f32 %v1081, %v1433
      %v1504 = vadd.f32 %v1082, %v1437
      %v1505 = vadd.f32 %v1083, %v1436
      %v1506 = vadd.f32 %v1084, %v1440
      %v1507 = vadd.f32 %v1085, %v1439
      %v1508 = vadd.f32 %v1086, %v1443
      %v1509 = vadd.f32 %v1087, %v1442
      %v1510 = vadd.f32 %v1088, %v1446
      %v1511 = vadd.f32 %v1089, %v1445
      %v1512 = vadd.f32 %v1090, %v1449
      %v1513 = vadd.f32 %v1091, %v1448
      %v1514 = vadd.f32 %v1092, %v1452
      %v1515 = vadd.f32 %v1093, %v1451
      %v1516 = vadd.f32 %v1094, %v1455
      %v1517 = vadd.f32 %v1095, %v1454
      %v1518 = vadd.f32 %v1096, %v1458
      %v1519 = vadd.f32 %v1097, %v1457
      %v1520 = vadd.f32 %v1098, %v1461
      %v1521 = vadd.f32 %v1099, %v1460
      %v1522 = vadd.f32 %v1100, %v1464
      %v1523 = vadd.f32 %v1101, %v1463
      %v1524 = vadd.f32 %v1102, %v1467
      %v1525 = vadd.f32 %v1103, %v1466
      %v1526 = vadd.f32 %v1104, %v1470
      %v1527 = vadd.f32 %v1105, %v1469
      %v1528 = vadd.f32 %v1106, %v1473
      %v1529 = vadd.f32 %v1107, %v1472
      %v1530 = vperm.slane %v432, 2
      %v1531 = vmul.f32 %v438, %v1530
      %v1532 = vmul.f32 %v443, %v1530
      %v1533 = vmul.f32 %v448, %v1530
      %v1534 = vmul.f32 %v453, %v1530
      %v1535 = vmul.f32 %v458, %v1530
      %v1536 = vmul.f32 %v463, %v1530
      %v1537 = vmul.f32 %v468, %v1530
      %v1538 = vmul.f32 %v473, %v1530
      %v1539 = vmul.f32 %v478, %v1530
      %v1540 = vmul.f32 %v483, %v1530
      %v1541 = vmul.f32 %v488, %v1530
      %v1542 = vmul.f32 %v493, %v1530
      %v1543 = vmul.f32 %v498, %v1530
      %v1544 = vmul.f32 %v503, %v1530
      %v1545 = vmul.f32 %v508, %v1530
      %v1546 = vmul.f32 %v513, %v1530
      %v1547 = vmul.f32 %v518, %v1530
      %v1548 = vmul.f32 %v523, %v1530
      %v1549 = vmul.f32 %v528, %v1530
      %v1550 = vmul.f32 %v533, %v1530
      %v1551 = vmul.f32 %v538, %v1530
      %v1552 = vmul.f32 %v543, %v1530
      %v1553 = vmul.f32 %v548, %v1530
      %v1554 = vmul.f32 %v553, %v1530
      %v1555 = vmul.f32 %v558, %v1530
      %v1556 = vmul.f32 %v563, %v1530
      %v1557 = vmul.f32 %v568, %v1530
      %v1558 = vmul.f32 %v573, %v1530
      %v1587 = vrot.slane %v1531, 1
      %v1588 = vrot.slane %v1532, 1
      %v1589 = vsel %vm1221, %v1587, %v1588
      %v1590 = vrot.slane %v1533, 1
      %v1591 = vrot.slane %v1534, 1
      %v1592 = vsel %vm1221, %v1590, %v1591
      %v1593 = vrot.slane %v1535, 1
      %v1594 = vrot.slane %v1536, 1
      %v1595 = vsel %vm1221, %v1593, %v1594
      %v1596 = vrot.slane %v1537, 1
      %v1597 = vrot.slane %v1538, 1
      %v1598 = vsel %vm1221, %v1596, %v1597
      %v1599 = vrot.slane %v1539, 1
      %v1600 = vrot.slane %v1540, 1
      %v1601 = vsel %vm1221, %v1599, %v1600
      %v1602 = vrot.slane %v1541, 1
      %v1603 = vrot.slane %v1542, 1
      %v1604 = vsel %vm1221, %v1602, %v1603
      %v1605 = vrot.slane %v1543, 1
      %v1606 = vrot.slane %v1544, 1
      %v1607 = vsel %vm1221, %v1605, %v1606
      %v1608 = vrot.slane %v1545, 1
      %v1609 = vrot.slane %v1546, 1
      %v1610 = vsel %vm1221, %v1608, %v1609
      %v1611 = vrot.slane %v1547, 1
      %v1612 = vrot.slane %v1548, 1
      %v1613 = vsel %vm1221, %v1611, %v1612
      %v1614 = vrot.slane %v1549, 1
      %v1615 = vrot.slane %v1550, 1
      %v1616 = vsel %vm1221, %v1614, %v1615
      %v1617 = vrot.slane %v1551, 1
      %v1618 = vrot.slane %v1552, 1
      %v1619 = vsel %vm1221, %v1617, %v1618
      %v1620 = vrot.slane %v1553, 1
      %v1621 = vrot.slane %v1554, 1
      %v1622 = vsel %vm1221, %v1620, %v1621
      %v1623 = vrot.slane %v1555, 1
      %v1624 = vrot.slane %v1556, 1
      %v1625 = vsel %vm1221, %v1623, %v1624
      %v1626 = vrot.slane %v1557, 1
      %v1627 = vrot.slane %v1558, 1
      %v1628 = vsel %vm1221, %v1626, %v1627
      %v1657 = vadd.f32 %v1137, %v1589
      %v1658 = vadd.f32 %v1138, %v1588
      %v1659 = vadd.f32 %v1139, %v1592
      %v1660 = vadd.f32 %v1140, %v1591
      %v1661 = vadd.f32 %v1141, %v1595
      %v1662 = vadd.f32 %v1142, %v1594
      %v1663 = vadd.f32 %v1143, %v1598
      %v1664 = vadd.f32 %v1144, %v1597
      %v1665 = vadd.f32 %v1145, %v1601
      %v1666 = vadd.f32 %v1146, %v1600
      %v1667 = vadd.f32 %v1147, %v1604
      %v1668 = vadd.f32 %v1148, %v1603
      %v1669 = vadd.f32 %v1149, %v1607
      %v1670 = vadd.f32 %v1150, %v1606
      %v1671 = vadd.f32 %v1151, %v1610
      %v1672 = vadd.f32 %v1152, %v1609
      %v1673 = vadd.f32 %v1153, %v1613
      %v1674 = vadd.f32 %v1154, %v1612
      %v1675 = vadd.f32 %v1155, %v1616
      %v1676 = vadd.f32 %v1156, %v1615
      %v1677 = vadd.f32 %v1157, %v1619
      %v1678 = vadd.f32 %v1158, %v1618
      %v1679 = vadd.f32 %v1159, %v1622
      %v1680 = vadd.f32 %v1160, %v1621
      %v1681 = vadd.f32 %v1161, %v1625
      %v1682 = vadd.f32 %v1162, %v1624
      %v1683 = vadd.f32 %v1163, %v1628
      %v1684 = vadd.f32 %v1164, %v1627
      %v1685 = vmul.f32 %v607, %v1530
      %v1686 = vmul.f32 %v612, %v1530
      %v1687 = vmul.f32 %v617, %v1530
      %v1688 = vmul.f32 %v622, %v1530
      %v1689 = vmul.f32 %v627, %v1530
      %v1690 = vmul.f32 %v632, %v1530
      %v1691 = vmul.f32 %v637, %v1530
      %v1692 = vmul.f32 %v642, %v1530
      %v1693 = vmul.f32 %v647, %v1530
      %v1694 = vmul.f32 %v652, %v1530
      %v1695 = vmul.f32 %v657, %v1530
      %v1696 = vmul.f32 %v662, %v1530
      %v1697 = vmul.f32 %v667, %v1530
      %v1698 = vmul.f32 %v672, %v1530
      %v1699 = vmul.f32 %v677, %v1530
      %v1700 = vmul.f32 %v682, %v1530
      %v1701 = vmul.f32 %v687, %v1530
      %v1702 = vmul.f32 %v692, %v1530
      %v1703 = vmul.f32 %v697, %v1530
      %v1704 = vmul.f32 %v702, %v1530
      %v1705 = vmul.f32 %v707, %v1530
      %v1706 = vmul.f32 %v712, %v1530
      %v1707 = vmul.f32 %v717, %v1530
      %v1708 = vmul.f32 %v722, %v1530
      %v1709 = vmul.f32 %v727, %v1530
      %v1710 = vmul.f32 %v732, %v1530
      %v1711 = vmul.f32 %v737, %v1530
      %v1712 = vmul.f32 %v742, %v1530
      %v1741 = vrot.slane %v1685, 1
      %v1742 = vrot.slane %v1686, 1
      %v1743 = vsel %vm1221, %v1741, %v1742
      %v1744 = vrot.slane %v1687, 1
      %v1745 = vrot.slane %v1688, 1
      %v1746 = vsel %vm1221, %v1744, %v1745
      %v1747 = vrot.slane %v1689, 1
      %v1748 = vrot.slane %v1690, 1
      %v1749 = vsel %vm1221, %v1747, %v1748
      %v1750 = vrot.slane %v1691, 1
      %v1751 = vrot.slane %v1692, 1
      %v1752 = vsel %vm1221, %v1750, %v1751
      %v1753 = vrot.slane %v1693, 1
      %v1754 = vrot.slane %v1694, 1
      %v1755 = vsel %vm1221, %v1753, %v1754
      %v1756 = vrot.slane %v1695, 1
      %v1757 = vrot.slane %v1696, 1
      %v1758 = vsel %vm1221, %v1756, %v1757
      %v1759 = vrot.slane %v1697, 1
      %v1760 = vrot.slane %v1698, 1
      %v1761 = vsel %vm1221, %v1759, %v1760
      %v1762 = vrot.slane %v1699, 1
      %v1763 = vrot.slane %v1700, 1
      %v1764 = vsel %vm1221, %v1762, %v1763
      %v1765 = vrot.slane %v1701, 1
      %v1766 = vrot.slane %v1702, 1
      %v1767 = vsel %vm1221, %v1765, %v1766
      %v1768 = vrot.slane %v1703, 1
      %v1769 = vrot.slane %v1704, 1
      %v1770 = vsel %vm1221, %v1768, %v1769
      %v1771 = vrot.slane %v1705, 1
      %v1772 = vrot.slane %v1706, 1
      %v1773 = vsel %vm1221, %v1771, %v1772
      %v1774 = vrot.slane %v1707, 1
      %v1775 = vrot.slane %v1708, 1
      %v1776 = vsel %vm1221, %v1774, %v1775
      %v1777 = vrot.slane %v1709, 1
      %v1778 = vrot.slane %v1710, 1
      %v1779 = vsel %vm1221, %v1777, %v1778
      %v1780 = vrot.slane %v1711, 1
      %v1781 = vrot.slane %v1712, 1
      %v1782 = vsel %vm1221, %v1780, %v1781
      %v1811 = vadd.f32 %v1292, %v1743
      %v1812 = vadd.f32 %v1293, %v1742
      %v1813 = vadd.f32 %v1294, %v1746
      %v1814 = vadd.f32 %v1295, %v1745
      %v1815 = vadd.f32 %v1296, %v1749
      %v1816 = vadd.f32 %v1297, %v1748
      %v1817 = vadd.f32 %v1298, %v1752
      %v1818 = vadd.f32 %v1299, %v1751
      %v1819 = vadd.f32 %v1300, %v1755
      %v1820 = vadd.f32 %v1301, %v1754
      %v1821 = vadd.f32 %v1302, %v1758
      %v1822 = vadd.f32 %v1303, %v1757
      %v1823 = vadd.f32 %v1304, %v1761
      %v1824 = vadd.f32 %v1305, %v1760
      %v1825 = vadd.f32 %v1306, %v1764
      %v1826 = vadd.f32 %v1307, %v1763
      %v1827 = vadd.f32 %v1308, %v1767
      %v1828 = vadd.f32 %v1309, %v1766
      %v1829 = vadd.f32 %v1310, %v1770
      %v1830 = vadd.f32 %v1311, %v1769
      %v1831 = vadd.f32 %v1312, %v1773
      %v1832 = vadd.f32 %v1313, %v1772
      %v1833 = vadd.f32 %v1314, %v1776
      %v1834 = vadd.f32 %v1315, %v1775
      %v1835 = vadd.f32 %v1316, %v1779
      %v1836 = vadd.f32 %v1317, %v1778
      %v1837 = vadd.f32 %v1318, %v1782
      %v1838 = vadd.f32 %v1319, %v1781
      %v1839 = vmul.f32 %v775, %v1530
      %v1840 = vmul.f32 %v780, %v1530
      %v1841 = vmul.f32 %v785, %v1530
      %v1842 = vmul.f32 %v790, %v1530
      %v1843 = vmul.f32 %v795, %v1530
      %v1844 = vmul.f32 %v800, %v1530
      %v1845 = vmul.f32 %v805, %v1530
      %v1846 = vmul.f32 %v810, %v1530
      %v1847 = vmul.f32 %v815, %v1530
      %v1848 = vmul.f32 %v820, %v1530
      %v1849 = vmul.f32 %v825, %v1530
      %v1850 = vmul.f32 %v830, %v1530
      %v1851 = vmul.f32 %v835, %v1530
      %v1852 = vmul.f32 %v840, %v1530
      %v1853 = vmul.f32 %v845, %v1530
      %v1854 = vmul.f32 %v850, %v1530
      %v1855 = vmul.f32 %v855, %v1530
      %v1856 = vmul.f32 %v860, %v1530
      %v1857 = vmul.f32 %v865, %v1530
      %v1858 = vmul.f32 %v870, %v1530
      %v1859 = vmul.f32 %v875, %v1530
      %v1860 = vmul.f32 %v880, %v1530
      %v1861 = vmul.f32 %v885, %v1530
      %v1862 = vmul.f32 %v890, %v1530
      %v1863 = vmul.f32 %v895, %v1530
      %v1864 = vmul.f32 %v900, %v1530
      %v1865 = vmul.f32 %v905, %v1530
      %v1866 = vmul.f32 %v910, %v1530
      %v1895 = vrot.slane %v1839, 1
      %v1896 = vrot.slane %v1840, 1
      %v1897 = vsel %vm1221, %v1895, %v1896
      %v1898 = vrot.slane %v1841, 1
      %v1899 = vrot.slane %v1842, 1
      %v1900 = vsel %vm1221, %v1898, %v1899
      %v1901 = vrot.slane %v1843, 1
      %v1902 = vrot.slane %v1844, 1
      %v1903 = vsel %vm1221, %v1901, %v1902
      %v1904 = vrot.slane %v1845, 1
      %v1905 = vrot.slane %v1846, 1
      %v1906 = vsel %vm1221, %v1904, %v1905
      %v1907 = vrot.slane %v1847, 1
      %v1908 = vrot.slane %v1848, 1
      %v1909 = vsel %vm1221, %v1907, %v1908
      %v1910 = vrot.slane %v1849, 1
      %v1911 = vrot.slane %v1850, 1
      %v1912 = vsel %vm1221, %v1910, %v1911
      %v1913 = vrot.slane %v1851, 1
      %v1914 = vrot.slane %v1852, 1
      %v1915 = vsel %vm1221, %v1913, %v1914
      %v1916 = vrot.slane %v1853, 1
      %v1917 = vrot.slane %v1854, 1
      %v1918 = vsel %vm1221, %v1916, %v1917
      %v1919 = vrot.slane %v1855, 1
      %v1920 = vrot.slane %v1856, 1
      %v1921 = vsel %vm1221, %v1919, %v1920
      %v1922 = vrot.slane %v1857, 1
      %v1923 = vrot.slane %v1858, 1
      %v1924 = vsel %vm1221, %v1922, %v1923
      %v1925 = vrot.slane %v1859, 1
      %v1926 = vrot.slane %v1860, 1
      %v1927 = vsel %vm1221, %v1925, %v1926
      %v1928 = vrot.slane %v1861, 1
      %v1929 = vrot.slane %v1862, 1
      %v1930 = vsel %vm1221, %v1928, %v1929
      %v1931 = vrot.slane %v1863, 1
      %v1932 = vrot.slane %v1864, 1
      %v1933 = vsel %vm1221, %v1931, %v1932
      %v1934 = vrot.slane %v1865, 1
      %v1935 = vrot.slane %v1866, 1
      %v1936 = vsel %vm1221, %v1934, %v1935
      %v1965 = vadd.f32 %v1348, %v1897
      %v1966 = vadd.f32 %v1349, %v1896
      %v1967 = vadd.f32 %v1350, %v1900
      %v1968 = vadd.f32 %v1351, %v1899
      %v1969 = vadd.f32 %v1352, %v1903
      %v1970 = vadd.f32 %v1353, %v1902
      %v1971 = vadd.f32 %v1354, %v1906
      %v1972 = vadd.f32 %v1355, %v1905
      %v1973 = vadd.f32 %v1356, %v1909
      %v1974 = vadd.f32 %v1357, %v1908
      %v1975 = vadd.f32 %v1358, %v1912
      %v1976 = vadd.f32 %v1359, %v1911
      %v1977 = vadd.f32 %v1360, %v1915
      %v1978 = vadd.f32 %v1361, %v1914
      %v1979 = vadd.f32 %v1362, %v1918
      %v1980 = vadd.f32 %v1363, %v1917
      %v1981 = vadd.f32 %v1364, %v1921
      %v1982 = vadd.f32 %v1365, %v1920
      %v1983 = vadd.f32 %v1366, %v1924
      %v1984 = vadd.f32 %v1367, %v1923
      %v1985 = vadd.f32 %v1368, %v1927
      %v1986 = vadd.f32 %v1369, %v1926
      %v1987 = vadd.f32 %v1370, %v1930
      %v1988 = vadd.f32 %v1371, %v1929
      %v1989 = vadd.f32 %v1372, %v1933
      %v1990 = vadd.f32 %v1373, %v1932
      %v1991 = vadd.f32 %v1374, %v1936
      %v1992 = vadd.f32 %v1375, %v1935
      %v1993 = vmul.f32 %v943, %v1530
      %v1994 = vmul.f32 %v948, %v1530
      %v1995 = vmul.f32 %v953, %v1530
      %v1996 = vmul.f32 %v958, %v1530
      %v1997 = vmul.f32 %v963, %v1530
      %v1998 = vmul.f32 %v968, %v1530
      %v1999 = vmul.f32 %v973, %v1530
      %v2000 = vmul.f32 %v978, %v1530
      %v2001 = vmul.f32 %v983, %v1530
      %v2002 = vmul.f32 %v988, %v1530
      %v2003 = vmul.f32 %v993, %v1530
      %v2004 = vmul.f32 %v998, %v1530
      %v2005 = vmul.f32 %v1003, %v1530
      %v2006 = vmul.f32 %v1008, %v1530
      %v2007 = vmul.f32 %v1013, %v1530
      %v2008 = vmul.f32 %v1018, %v1530
      %v2009 = vmul.f32 %v1023, %v1530
      %v2010 = vmul.f32 %v1028, %v1530
      %v2011 = vmul.f32 %v1033, %v1530
      %v2012 = vmul.f32 %v1038, %v1530
      %v2013 = vmul.f32 %v1043, %v1530
      %v2014 = vmul.f32 %v1048, %v1530
      %v2015 = vmul.f32 %v1053, %v1530
      %v2016 = vmul.f32 %v1058, %v1530
      %v2017 = vmul.f32 %v1063, %v1530
      %v2018 = vmul.f32 %v1068, %v1530
      %v2019 = vmul.f32 %v1073, %v1530
      %v2020 = vmul.f32 %v1078, %v1530
      %v2049 = vrot.slane %v1993, 1
      %v2050 = vrot.slane %v1994, 1
      %v2051 = vsel %vm1221, %v2049, %v2050
      %v2052 = vrot.slane %v1995, 1
      %v2053 = vrot.slane %v1996, 1
      %v2054 = vsel %vm1221, %v2052, %v2053
      %v2055 = vrot.slane %v1997, 1
      %v2056 = vrot.slane %v1998, 1
      %v2057 = vsel %vm1221, %v2055, %v2056
      %v2058 = vrot.slane %v1999, 1
      %v2059 = vrot.slane %v2000, 1
      %v2060 = vsel %vm1221, %v2058, %v2059
      %v2061 = vrot.slane %v2001, 1
      %v2062 = vrot.slane %v2002, 1
      %v2063 = vsel %vm1221, %v2061, %v2062
      %v2064 = vrot.slane %v2003, 1
      %v2065 = vrot.slane %v2004, 1
      %v2066 = vsel %vm1221, %v2064, %v2065
      %v2067 = vrot.slane %v2005, 1
      %v2068 = vrot.slane %v2006, 1
      %v2069 = vsel %vm1221, %v2067, %v2068
      %v2070 = vrot.slane %v2007, 1
      %v2071 = vrot.slane %v2008, 1
      %v2072 = vsel %vm1221, %v2070, %v2071
      %v2073 = vrot.slane %v2009, 1
      %v2074 = vrot.slane %v2010, 1
      %v2075 = vsel %vm1221, %v2073, %v2074
      %v2076 = vrot.slane %v2011, 1
      %v2077 = vrot.slane %v2012, 1
      %v2078 = vsel %vm1221, %v2076, %v2077
      %v2079 = vrot.slane %v2013, 1
      %v2080 = vrot.slane %v2014, 1
      %v2081 = vsel %vm1221, %v2079, %v2080
      %v2082 = vrot.slane %v2015, 1
      %v2083 = vrot.slane %v2016, 1
      %v2084 = vsel %vm1221, %v2082, %v2083
      %v2085 = vrot.slane %v2017, 1
      %v2086 = vrot.slane %v2018, 1
      %v2087 = vsel %vm1221, %v2085, %v2086
      %v2088 = vrot.slane %v2019, 1
      %v2089 = vrot.slane %v2020, 1
      %v2090 = vsel %vm1221, %v2088, %v2089
      %v2119 = vadd.f32 %v1502, %v2051
      %v2120 = vadd.f32 %v1503, %v2050
      %v2121 = vadd.f32 %v1504, %v2054
      %v2122 = vadd.f32 %v1505, %v2053
      %v2123 = vadd.f32 %v1506, %v2057
      %v2124 = vadd.f32 %v1507, %v2056
      %v2125 = vadd.f32 %v1508, %v2060
      %v2126 = vadd.f32 %v1509, %v2059
      %v2127 = vadd.f32 %v1510, %v2063
      %v2128 = vadd.f32 %v1511, %v2062
      %v2129 = vadd.f32 %v1512, %v2066
      %v2130 = vadd.f32 %v1513, %v2065
      %v2131 = vadd.f32 %v1514, %v2069
      %v2132 = vadd.f32 %v1515, %v2068
      %v2133 = vadd.f32 %v1516, %v2072
      %v2134 = vadd.f32 %v1517, %v2071
      %v2135 = vadd.f32 %v1518, %v2075
      %v2136 = vadd.f32 %v1519, %v2074
      %v2137 = vadd.f32 %v1520, %v2078
      %v2138 = vadd.f32 %v1521, %v2077
      %v2139 = vadd.f32 %v1522, %v2081
      %v2140 = vadd.f32 %v1523, %v2080
      %v2141 = vadd.f32 %v1524, %v2084
      %v2142 = vadd.f32 %v1525, %v2083
      %v2143 = vadd.f32 %v1526, %v2087
      %v2144 = vadd.f32 %v1527, %v2086
      %v2145 = vadd.f32 %v1528, %v2090
      %v2146 = vadd.f32 %v1529, %v2089
      %v2147 = vperm.slane %v432, 3
      %v2148 = vmul.f32 %v775, %v2147
      %v2149 = vmul.f32 %v780, %v2147
      %v2150 = vmul.f32 %v785, %v2147
      %v2151 = vmul.f32 %v790, %v2147
      %v2152 = vmul.f32 %v795, %v2147
      %v2153 = vmul.f32 %v800, %v2147
      %v2154 = vmul.f32 %v805, %v2147
      %v2155 = vmul.f32 %v810, %v2147
      %v2156 = vmul.f32 %v815, %v2147
      %v2157 = vmul.f32 %v820, %v2147
      %v2158 = vmul.f32 %v825, %v2147
      %v2159 = vmul.f32 %v830, %v2147
      %v2160 = vmul.f32 %v835, %v2147
      %v2161 = vmul.f32 %v840, %v2147
      %v2162 = vmul.f32 %v845, %v2147
      %v2163 = vmul.f32 %v850, %v2147
      %v2164 = vmul.f32 %v855, %v2147
      %v2165 = vmul.f32 %v860, %v2147
      %v2166 = vmul.f32 %v865, %v2147
      %v2167 = vmul.f32 %v870, %v2147
      %v2168 = vmul.f32 %v875, %v2147
      %v2169 = vmul.f32 %v880, %v2147
      %v2170 = vmul.f32 %v885, %v2147
      %v2171 = vmul.f32 %v890, %v2147
      %v2172 = vmul.f32 %v895, %v2147
      %v2173 = vmul.f32 %v900, %v2147
      %v2174 = vmul.f32 %v905, %v2147
      %v2175 = vmul.f32 %v910, %v2147
      %v2176 = vadd.f32 %v1657, %v2148
      %v2177 = vadd.f32 %v1658, %v2149
      %v2178 = vadd.f32 %v1659, %v2150
      %v2179 = vadd.f32 %v1660, %v2151
      %v2180 = vadd.f32 %v1661, %v2152
      %v2181 = vadd.f32 %v1662, %v2153
      %v2182 = vadd.f32 %v1663, %v2154
      %v2183 = vadd.f32 %v1664, %v2155
      %v2184 = vadd.f32 %v1665, %v2156
      %v2185 = vadd.f32 %v1666, %v2157
      %v2186 = vadd.f32 %v1667, %v2158
      %v2187 = vadd.f32 %v1668, %v2159
      %v2188 = vadd.f32 %v1669, %v2160
      %v2189 = vadd.f32 %v1670, %v2161
      %v2190 = vadd.f32 %v1671, %v2162
      %v2191 = vadd.f32 %v1672, %v2163
      %v2192 = vadd.f32 %v1673, %v2164
      %v2193 = vadd.f32 %v1674, %v2165
      %v2194 = vadd.f32 %v1675, %v2166
      %v2195 = vadd.f32 %v1676, %v2167
      %v2196 = vadd.f32 %v1677, %v2168
      %v2197 = vadd.f32 %v1678, %v2169
      %v2198 = vadd.f32 %v1679, %v2170
      %v2199 = vadd.f32 %v1680, %v2171
      %v2200 = vadd.f32 %v1681, %v2172
      %v2201 = vadd.f32 %v1682, %v2173
      %v2202 = vadd.f32 %v1683, %v2174
      %v2203 = vadd.f32 %v1684, %v2175
      %v2204 = vmul.f32 %v943, %v2147
      %v2205 = vmul.f32 %v948, %v2147
      %v2206 = vmul.f32 %v953, %v2147
      %v2207 = vmul.f32 %v958, %v2147
      %v2208 = vmul.f32 %v963, %v2147
      %v2209 = vmul.f32 %v968, %v2147
      %v2210 = vmul.f32 %v973, %v2147
      %v2211 = vmul.f32 %v978, %v2147
      %v2212 = vmul.f32 %v983, %v2147
      %v2213 = vmul.f32 %v988, %v2147
      %v2214 = vmul.f32 %v993, %v2147
      %v2215 = vmul.f32 %v998, %v2147
      %v2216 = vmul.f32 %v1003, %v2147
      %v2217 = vmul.f32 %v1008, %v2147
      %v2218 = vmul.f32 %v1013, %v2147
      %v2219 = vmul.f32 %v1018, %v2147
      %v2220 = vmul.f32 %v1023, %v2147
      %v2221 = vmul.f32 %v1028, %v2147
      %v2222 = vmul.f32 %v1033, %v2147
      %v2223 = vmul.f32 %v1038, %v2147
      %v2224 = vmul.f32 %v1043, %v2147
      %v2225 = vmul.f32 %v1048, %v2147
      %v2226 = vmul.f32 %v1053, %v2147
      %v2227 = vmul.f32 %v1058, %v2147
      %v2228 = vmul.f32 %v1063, %v2147
      %v2229 = vmul.f32 %v1068, %v2147
      %v2230 = vmul.f32 %v1073, %v2147
      %v2231 = vmul.f32 %v1078, %v2147
      %v2232 = vadd.f32 %v1811, %v2204
      %v2233 = vadd.f32 %v1812, %v2205
      %v2234 = vadd.f32 %v1813, %v2206
      %v2235 = vadd.f32 %v1814, %v2207
      %v2236 = vadd.f32 %v1815, %v2208
      %v2237 = vadd.f32 %v1816, %v2209
      %v2238 = vadd.f32 %v1817, %v2210
      %v2239 = vadd.f32 %v1818, %v2211
      %v2240 = vadd.f32 %v1819, %v2212
      %v2241 = vadd.f32 %v1820, %v2213
      %v2242 = vadd.f32 %v1821, %v2214
      %v2243 = vadd.f32 %v1822, %v2215
      %v2244 = vadd.f32 %v1823, %v2216
      %v2245 = vadd.f32 %v1824, %v2217
      %v2246 = vadd.f32 %v1825, %v2218
      %v2247 = vadd.f32 %v1826, %v2219
      %v2248 = vadd.f32 %v1827, %v2220
      %v2249 = vadd.f32 %v1828, %v2221
      %v2250 = vadd.f32 %v1829, %v2222
      %v2251 = vadd.f32 %v1830, %v2223
      %v2252 = vadd.f32 %v1831, %v2224
      %v2253 = vadd.f32 %v1832, %v2225
      %v2254 = vadd.f32 %v1833, %v2226
      %v2255 = vadd.f32 %v1834, %v2227
      %v2256 = vadd.f32 %v1835, %v2228
      %v2257 = vadd.f32 %v1836, %v2229
      %v2258 = vadd.f32 %v1837, %v2230
      %v2259 = vadd.f32 %v1838, %v2231
      %2261 = vset.pattern.permute.xlu0 0
      %2262 = vperm.xlu0 %2261, %v340
      %v2263 = vpop.permute.xlu0 %2262
      %2266 = vset.pattern.permute.xlu0 0
      %2267 = vperm.xlu0 %2266, %v341
      %v2268 = vpop.permute.xlu0 %2267
      %v2270 = vmul.f32 %v448, %v2147
      %v2271 = vmul.f32 %v453, %v2147
      %v2272 = vmul.f32 %v458, %v2147
      %v2273 = vmul.f32 %v463, %v2147
      %v2274 = vmul.f32 %v468, %v2147
      %v2275 = vmul.f32 %v473, %v2147
      %v2276 = vmul.f32 %v478, %v2147
      %v2277 = vmul.f32 %v483, %v2147
      %v2278 = vmul.f32 %v488, %v2147
      %v2279 = vmul.f32 %v493, %v2147
      %v2280 = vmul.f32 %v498, %v2147
      %v2281 = vmul.f32 %v503, %v2147
      %v2282 = vmul.f32 %v508, %v2147
      %v2283 = vmul.f32 %v513, %v2147
      %v2284 = vmul.f32 %v518, %v2147
      %v2285 = vmul.f32 %v523, %v2147
      %v2286 = vmul.f32 %v528, %v2147
      %v2287 = vmul.f32 %v533, %v2147
      %v2288 = vmul.f32 %v538, %v2147
      %v2289 = vmul.f32 %v543, %v2147
      %v2290 = vmul.f32 %v548, %v2147
      %v2291 = vmul.f32 %v553, %v2147
      %v2292 = vmul.f32 %v558, %v2147
      %v2293 = vmul.f32 %v563, %v2147
      %v2294 = vmul.f32 %v568, %v2147
      %v2295 = vmul.f32 %v573, %v2147
      %v2296 = vmul.f32 %v2263, %v2147
      %v2297 = vmul.f32 %v2268, %v2147
      %v2298 = vadd.f32 %v1965, %v2270
      %v2299 = vadd.f32 %v1966, %v2271
      %v2300 = vadd.f32 %v1967, %v2272
      %v2301 = vadd.f32 %v1968, %v2273
      %v2302 = vadd.f32 %v1969, %v2274
      %v2303 = vadd.f32 %v1970, %v2275
      %v2304 = vadd.f32 %v1971, %v2276
      %v2305 = vadd.f32 %v1972, %v2277
      %v2306 = vadd.f32 %v1973, %v2278
      %v2307 = vadd.f32 %v1974, %v2279
      %v2308 = vadd.f32 %v1975, %v2280
      %v2309 = vadd.f32 %v1976, %v2281
      %v2310 = vadd.f32 %v1977, %v2282
      %v2311 = vadd.f32 %v1978, %v2283
      %v2312 = vadd.f32 %v1979, %v2284
      %v2313 = vadd.f32 %v1980, %v2285
      %v2314 = vadd.f32 %v1981, %v2286
      %v2315 = vadd.f32 %v1982, %v2287
      %v2316 = vadd.f32 %v1983, %v2288
      %v2317 = vadd.f32 %v1984, %v2289
      %v2318 = vadd.f32 %v1985, %v2290
      %v2319 = vadd.f32 %v1986, %v2291
      %v2320 = vadd.f32 %v1987, %v2292
      %v2321 = vadd.f32 %v1988, %v2293
      %v2322 = vadd.f32 %v1989, %v2294
      %v2323 = vadd.f32 %v1990, %v2295
      %v2324 = vadd.f32 %v1991, %v2296
      %v2325 = vadd.f32 %v1992, %v2297
      %2327 = vset.pattern.permute.xlu0 0
      %2328 = vperm.xlu0 %2327, %v370
      %v2329 = vpop.permute.xlu0 %2328
      %2332 = vset.pattern.permute.xlu0 0
      %2333 = vperm.xlu0 %2332, %v371
      %v2334 = vpop.permute.xlu0 %2333
      %v2336 = vmul.f32 %v617, %v2147
      %v2337 = vmul.f32 %v622, %v2147
      %v2338 = vmul.f32 %v627, %v2147
      %v2339 = vmul.f32 %v632, %v2147
      %v2340 = vmul.f32 %v637, %v2147
      %v2341 = vmul.f32 %v642, %v2147
      %v2342 = vmul.f32 %v647, %v2147
      %v2343 = vmul.f32 %v652, %v2147
      %v2344 = vmul.f32 %v657, %v2147
      %v2345 = vmul.f32 %v662, %v2147
      %v2346 = vmul.f32 %v667, %v2147
      %v2347 = vmul.f32 %v672, %v2147
      %v2348 = vmul.f32 %v677, %v2147
      %v2349 = vmul.f32 %v682, %v2147
      %v2350 = vmul.f32 %v687, %v2147
      %v2351 = vmul.f32 %v692, %v2147
      %v2352 = vmul.f32 %v697, %v2147
      %v2353 = vmul.f32 %v702, %v2147
      %v2354 = vmul.f32 %v707, %v2147
      %v2355 = vmul.f32 %v712, %v2147
      %v2356 = vmul.f32 %v717, %v2147
      %v2357 = vmul.f32 %v722, %v2147
      %v2358 = vmul.f32 %v727, %v2147
      %v2359 = vmul.f32 %v732, %v2147
      %v2360 = vmul.f32 %v737, %v2147
      %v2361 = vmul.f32 %v742, %v2147
      %v2362 = vmul.f32 %v2329, %v2147
      %v2363 = vmul.f32 %v2334, %v2147
      %v2364 = vadd.f32 %v2119, %v2336
      %v2365 = vadd.f32 %v2120, %v2337
      %v2366 = vadd.f32 %v2121, %v2338
      %v2367 = vadd.f32 %v2122, %v2339
      %v2368 = vadd.f32 %v2123, %v2340
      %v2369 = vadd.f32 %v2124, %v2341
      %v2370 = vadd.f32 %v2125, %v2342
      %v2371 = vadd.f32 %v2126, %v2343
      %v2372 = vadd.f32 %v2127, %v2344
      %v2373 = vadd.f32 %v2128, %v2345
      %v2374 = vadd.f32 %v2129, %v2346
      %v2375 = vadd.f32 %v2130, %v2347
      %v2376 = vadd.f32 %v2131, %v2348
      %v2377 = vadd.f32 %v2132, %v2349
      %v2378 = vadd.f32 %v2133, %v2350
      %v2379 = vadd.f32 %v2134, %v2351
      %v2380 = vadd.f32 %v2135, %v2352
      %v2381 = vadd.f32 %v2136, %v2353
      %v2382 = vadd.f32 %v2137, %v2354
      %v2383 = vadd.f32 %v2138, %v2355
      %v2384 = vadd.f32 %v2139, %v2356
      %v2385 = vadd.f32 %v2140, %v2357
      %v2386 = vadd.f32 %v2141, %v2358
      %v2387 = vadd.f32 %v2142, %v2359
      %v2388 = vadd.f32 %v2143, %v2360
      %v2389 = vadd.f32 %v2144, %v2361
      %v2390 = vadd.f32 %v2145, %v2362
      %v2391 = vadd.f32 %v2146, %v2363
      %v2392 = vperm.slane %v432, 4
      %v2393 = vmul.f32 %v943, %v2392
      %v2394 = vmul.f32 %v948, %v2392
      %v2395 = vmul.f32 %v953, %v2392
      %v2396 = vmul.f32 %v958, %v2392
      %v2397 = vmul.f32 %v963, %v2392
      %v2398 = vmul.f32 %v968, %v2392
      %v2399 = vmul.f32 %v973, %v2392
      %v2400 = vmul.f32 %v978, %v2392
      %v2401 = vmul.f32 %v983, %v2392
      %v2402 = vmul.f32 %v988, %v2392
      %v2403 = vmul.f32 %v993, %v2392
      %v2404 = vmul.f32 %v998, %v2392
      %v2405 = vmul.f32 %v1003, %v2392
      %v2406 = vmul.f32 %v1008, %v2392
      %v2407 = vmul.f32 %v1013, %v2392
      %v2408 = vmul.f32 %v1018, %v2392
      %v2409 = vmul.f32 %v1023, %v2392
      %v2410 = vmul.f32 %v1028, %v2392
      %v2411 = vmul.f32 %v1033, %v2392
      %v2412 = vmul.f32 %v1038, %v2392
      %v2413 = vmul.f32 %v1043, %v2392
      %v2414 = vmul.f32 %v1048, %v2392
      %v2415 = vmul.f32 %v1053, %v2392
      %v2416 = vmul.f32 %v1058, %v2392
      %v2417 = vmul.f32 %v1063, %v2392
      %v2418 = vmul.f32 %v1068, %v2392
      %v2419 = vmul.f32 %v1073, %v2392
      %v2420 = vmul.f32 %v1078, %v2392
      %v2421 = vadd.f32 %v2176, %v2393
      %v2422 = vadd.f32 %v2177, %v2394
      %v2423 = vadd.f32 %v2178, %v2395
      %v2424 = vadd.f32 %v2179, %v2396
      %v2425 = vadd.f32 %v2180, %v2397
      %v2426 = vadd.f32 %v2181, %v2398
      %v2427 = vadd.f32 %v2182, %v2399
      %v2428 = vadd.f32 %v2183, %v2400
      %v2429 = vadd.f32 %v2184, %v2401
      %v2430 = vadd.f32 %v2185, %v2402
      %v2431 = vadd.f32 %v2186, %v2403
      %v2432 = vadd.f32 %v2187, %v2404
      %v2433 = vadd.f32 %v2188, %v2405
      %v2434 = vadd.f32 %v2189, %v2406
      %v2435 = vadd.f32 %v2190, %v2407
      %v2436 = vadd.f32 %v2191, %v2408
      %v2437 = vadd.f32 %v2192, %v2409
      %v2438 = vadd.f32 %v2193, %v2410
      %v2439 = vadd.f32 %v2194, %v2411
      %v2440 = vadd.f32 %v2195, %v2412
      %v2441 = vadd.f32 %v2196, %v2413
      %v2442 = vadd.f32 %v2197, %v2414
      %v2443 = vadd.f32 %v2198, %v2415
      %v2444 = vadd.f32 %v2199, %v2416
      %v2445 = vadd.f32 %v2200, %v2417
      %v2446 = vadd.f32 %v2201, %v2418
      %v2447 = vadd.f32 %v2202, %v2419
      %v2448 = vadd.f32 %v2203, %v2420
      %v2449 = vmul.f32 %v775, %v2392
      %v2450 = vmul.f32 %v780, %v2392
      %v2451 = vmul.f32 %v785, %v2392
      %v2452 = vmul.f32 %v790, %v2392
      %v2453 = vmul.f32 %v795, %v2392
      %v2454 = vmul.f32 %v800, %v2392
      %v2455 = vmul.f32 %v805, %v2392
      %v2456 = vmul.f32 %v810, %v2392
      %v2457 = vmul.f32 %v815, %v2392
      %v2458 = vmul.f32 %v820, %v2392
      %v2459 = vmul.f32 %v825, %v2392
      %v2460 = vmul.f32 %v830, %v2392
      %v2461 = vmul.f32 %v835, %v2392
      %v2462 = vmul.f32 %v840, %v2392
      %v2463 = vmul.f32 %v845, %v2392
      %v2464 = vmul.f32 %v850, %v2392
      %v2465 = vmul.f32 %v855, %v2392
      %v2466 = vmul.f32 %v860, %v2392
      %v2467 = vmul.f32 %v865, %v2392
      %v2468 = vmul.f32 %v870, %v2392
      %v2469 = vmul.f32 %v875, %v2392
      %v2470 = vmul.f32 %v880, %v2392
      %v2471 = vmul.f32 %v885, %v2392
      %v2472 = vmul.f32 %v890, %v2392
      %v2473 = vmul.f32 %v895, %v2392
      %v2474 = vmul.f32 %v900, %v2392
      %v2475 = vmul.f32 %v905, %v2392
      %v2476 = vmul.f32 %v910, %v2392
      %v2505 = vrot.slane %v2449, 1
      %v2506 = vrot.slane %v2450, 1
      %v2507 = vsel %vm1221, %v2505, %v2506
      %v2508 = vrot.slane %v2451, 1
      %v2509 = vrot.slane %v2452, 1
      %v2510 = vsel %vm1221, %v2508, %v2509
      %v2511 = vrot.slane %v2453, 1
      %v2512 = vrot.slane %v2454, 1
      %v2513 = vsel %vm1221, %v2511, %v2512
      %v2514 = vrot.slane %v2455, 1
      %v2515 = vrot.slane %v2456, 1
      %v2516 = vsel %vm1221, %v2514, %v2515
      %v2517 = vrot.slane %v2457, 1
      %v2518 = vrot.slane %v2458, 1
      %v2519 = vsel %vm1221, %v2517, %v2518
      %v2520 = vrot.slane %v2459, 1
      %v2521 = vrot.slane %v2460, 1
      %v2522 = vsel %vm1221, %v2520, %v2521
      %v2523 = vrot.slane %v2461, 1
      %v2524 = vrot.slane %v2462, 1
      %v2525 = vsel %vm1221, %v2523, %v2524
      %v2526 = vrot.slane %v2463, 1
      %v2527 = vrot.slane %v2464, 1
      %v2528 = vsel %vm1221, %v2526, %v2527
      %v2529 = vrot.slane %v2465, 1
      %v2530 = vrot.slane %v2466, 1
      %v2531 = vsel %vm1221, %v2529, %v2530
      %v2532 = vrot.slane %v2467, 1
      %v2533 = vrot.slane %v2468, 1
      %v2534 = vsel %vm1221, %v2532, %v2533
      %v2535 = vrot.slane %v2469, 1
      %v2536 = vrot.slane %v2470, 1
      %v2537 = vsel %vm1221, %v2535, %v2536
      %v2538 = vrot.slane %v2471, 1
      %v2539 = vrot.slane %v2472, 1
      %v2540 = vsel %vm1221, %v2538, %v2539
      %v2541 = vrot.slane %v2473, 1
      %v2542 = vrot.slane %v2474, 1
      %v2543 = vsel %vm1221, %v2541, %v2542
      %v2544 = vrot.slane %v2475, 1
      %v2545 = vrot.slane %v2476, 1
      %v2546 = vsel %vm1221, %v2544, %v2545
      %v2575 = vadd.f32 %v2232, %v2507
      %v2576 = vadd.f32 %v2233, %v2506
      %v2577 = vadd.f32 %v2234, %v2510
      %v2578 = vadd.f32 %v2235, %v2509
      %v2579 = vadd.f32 %v2236, %v2513
      %v2580 = vadd.f32 %v2237, %v2512
      %v2581 = vadd.f32 %v2238, %v2516
      %v2582 = vadd.f32 %v2239, %v2515
      %v2583 = vadd.f32 %v2240, %v2519
      %v2584 = vadd.f32 %v2241, %v2518
      %v2585 = vadd.f32 %v2242, %v2522
      %v2586 = vadd.f32 %v2243, %v2521
      %v2587 = vadd.f32 %v2244, %v2525
      %v2588 = vadd.f32 %v2245, %v2524
      %v2589 = vadd.f32 %v2246, %v2528
      %v2590 = vadd.f32 %v2247, %v2527
      %v2591 = vadd.f32 %v2248, %v2531
      %v2592 = vadd.f32 %v2249, %v2530
      %v2593 = vadd.f32 %v2250, %v2534
      %v2594 = vadd.f32 %v2251, %v2533
      %v2595 = vadd.f32 %v2252, %v2537
      %v2596 = vadd.f32 %v2253, %v2536
      %v2597 = vadd.f32 %v2254, %v2540
      %v2598 = vadd.f32 %v2255, %v2539
      %v2599 = vadd.f32 %v2256, %v2543
      %v2600 = vadd.f32 %v2257, %v2542
      %v2601 = vadd.f32 %v2258, %v2546
      %v2602 = vadd.f32 %v2259, %v2545
      %v2603 = vmul.f32 %v617, %v2392
      %v2604 = vmul.f32 %v622, %v2392
      %v2605 = vmul.f32 %v627, %v2392
      %v2606 = vmul.f32 %v632, %v2392
      %v2607 = vmul.f32 %v637, %v2392
      %v2608 = vmul.f32 %v642, %v2392
      %v2609 = vmul.f32 %v647, %v2392
      %v2610 = vmul.f32 %v652, %v2392
      %v2611 = vmul.f32 %v657, %v2392
      %v2612 = vmul.f32 %v662, %v2392
      %v2613 = vmul.f32 %v667, %v2392
      %v2614 = vmul.f32 %v672, %v2392
      %v2615 = vmul.f32 %v677, %v2392
      %v2616 = vmul.f32 %v682, %v2392
      %v2617 = vmul.f32 %v687, %v2392
      %v2618 = vmul.f32 %v692, %v2392
      %v2619 = vmul.f32 %v697, %v2392
      %v2620 = vmul.f32 %v702, %v2392
      %v2621 = vmul.f32 %v707, %v2392
      %v2622 = vmul.f32 %v712, %v2392
      %v2623 = vmul.f32 %v717, %v2392
      %v2624 = vmul.f32 %v722, %v2392
      %v2625 = vmul.f32 %v727, %v2392
      %v2626 = vmul.f32 %v732, %v2392
      %v2627 = vmul.f32 %v737, %v2392
      %v2628 = vmul.f32 %v742, %v2392
      %v2629 = vmul.f32 %v2329, %v2392
      %v2630 = vmul.f32 %v2334, %v2392
      %v2631 = vadd.f32 %v2298, %v2603
      %v2632 = vadd.f32 %v2299, %v2604
      %v2633 = vadd.f32 %v2300, %v2605
      %v2634 = vadd.f32 %v2301, %v2606
      %v2635 = vadd.f32 %v2302, %v2607
      %v2636 = vadd.f32 %v2303, %v2608
      %v2637 = vadd.f32 %v2304, %v2609
      %v2638 = vadd.f32 %v2305, %v2610
      %v2639 = vadd.f32 %v2306, %v2611
      %v2640 = vadd.f32 %v2307, %v2612
      %v2641 = vadd.f32 %v2308, %v2613
      %v2642 = vadd.f32 %v2309, %v2614
      %v2643 = vadd.f32 %v2310, %v2615
      %v2644 = vadd.f32 %v2311, %v2616
      %v2645 = vadd.f32 %v2312, %v2617
      %v2646 = vadd.f32 %v2313, %v2618
      %v2647 = vadd.f32 %v2314, %v2619
      %v2648 = vadd.f32 %v2315, %v2620
      %v2649 = vadd.f32 %v2316, %v2621
      %v2650 = vadd.f32 %v2317, %v2622
      %v2651 = vadd.f32 %v2318, %v2623
      %v2652 = vadd.f32 %v2319, %v2624
      %v2653 = vadd.f32 %v2320, %v2625
      %v2654 = vadd.f32 %v2321, %v2626
      %v2655 = vadd.f32 %v2322, %v2627
      %v2656 = vadd.f32 %v2323, %v2628
      %v2657 = vadd.f32 %v2324, %v2629
      %v2658 = vadd.f32 %v2325, %v2630
      %v2659 = vmul.f32 %v448, %v2392
      %v2660 = vmul.f32 %v453, %v2392
      %v2661 = vmul.f32 %v458, %v2392
      %v2662 = vmul.f32 %v463, %v2392
      %v2663 = vmul.f32 %v468, %v2392
      %v2664 = vmul.f32 %v473, %v2392
      %v2665 = vmul.f32 %v478, %v2392
      %v2666 = vmul.f32 %v483, %v2392
      %v2667 = vmul.f32 %v488, %v2392
      %v2668 = vmul.f32 %v493, %v2392
      %v2669 = vmul.f32 %v498, %v2392
      %v2670 = vmul.f32 %v503, %v2392
      %v2671 = vmul.f32 %v508, %v2392
      %v2672 = vmul.f32 %v513, %v2392
      %v2673 = vmul.f32 %v518, %v2392
      %v2674 = vmul.f32 %v523, %v2392
      %v2675 = vmul.f32 %v528, %v2392
      %v2676 = vmul.f32 %v533, %v2392
      %v2677 = vmul.f32 %v538, %v2392
      %v2678 = vmul.f32 %v543, %v2392
      %v2679 = vmul.f32 %v548, %v2392
      %v2680 = vmul.f32 %v553, %v2392
      %v2681 = vmul.f32 %v558, %v2392
      %v2682 = vmul.f32 %v563, %v2392
      %v2683 = vmul.f32 %v568, %v2392
      %v2684 = vmul.f32 %v573, %v2392
      %v2685 = vmul.f32 %v2263, %v2392
      %v2686 = vmul.f32 %v2268, %v2392
      %v2715 = vrot.slane %v2659, 1
      %v2716 = vrot.slane %v2660, 1
      %v2717 = vsel %vm1221, %v2715, %v2716
      %v2718 = vrot.slane %v2661, 1
      %v2719 = vrot.slane %v2662, 1
      %v2720 = vsel %vm1221, %v2718, %v2719
      %v2721 = vrot.slane %v2663, 1
      %v2722 = vrot.slane %v2664, 1
      %v2723 = vsel %vm1221, %v2721, %v2722
      %v2724 = vrot.slane %v2665, 1
      %v2725 = vrot.slane %v2666, 1
      %v2726 = vsel %vm1221, %v2724, %v2725
      %v2727 = vrot.slane %v2667, 1
      %v2728 = vrot.slane %v2668, 1
      %v2729 = vsel %vm1221, %v2727, %v2728
      %v2730 = vrot.slane %v2669, 1
      %v2731 = vrot.slane %v2670, 1
      %v2732 = vsel %vm1221, %v2730, %v2731
      %v2733 = vrot.slane %v2671, 1
      %v2734 = vrot.slane %v2672, 1
      %v2735 = vsel %vm1221, %v2733, %v2734
      %v2736 = vrot.slane %v2673, 1
      %v2737 = vrot.slane %v2674, 1
      %v2738 = vsel %vm1221, %v2736, %v2737
      %v2739 = vrot.slane %v2675, 1
      %v2740 = vrot.slane %v2676, 1
      %v2741 = vsel %vm1221, %v2739, %v2740
      %v2742 = vrot.slane %v2677, 1
      %v2743 = vrot.slane %v2678, 1
      %v2744 = vsel %vm1221, %v2742, %v2743
      %v2745 = vrot.slane %v2679, 1
      %v2746 = vrot.slane %v2680, 1
      %v2747 = vsel %vm1221, %v2745, %v2746
      %v2748 = vrot.slane %v2681, 1
      %v2749 = vrot.slane %v2682, 1
      %v2750 = vsel %vm1221, %v2748, %v2749
      %v2751 = vrot.slane %v2683, 1
      %v2752 = vrot.slane %v2684, 1
      %v2753 = vsel %vm1221, %v2751, %v2752
      %v2754 = vrot.slane %v2685, 1
      %v2755 = vrot.slane %v2686, 1
      %v2756 = vsel %vm1221, %v2754, %v2755
      %v2785 = vadd.f32 %v2364, %v2717
      %v2786 = vadd.f32 %v2365, %v2716
      %v2787 = vadd.f32 %v2366, %v2720
      %v2788 = vadd.f32 %v2367, %v2719
      %v2789 = vadd.f32 %v2368, %v2723
      %v2790 = vadd.f32 %v2369, %v2722
      %v2791 = vadd.f32 %v2370, %v2726
      %v2792 = vadd.f32 %v2371, %v2725
      %v2793 = vadd.f32 %v2372, %v2729
      %v2794 = vadd.f32 %v2373, %v2728
      %v2795 = vadd.f32 %v2374, %v2732
      %v2796 = vadd.f32 %v2375, %v2731
      %v2797 = vadd.f32 %v2376, %v2735
      %v2798 = vadd.f32 %v2377, %v2734
      %v2799 = vadd.f32 %v2378, %v2738
      %v2800 = vadd.f32 %v2379, %v2737
      %v2801 = vadd.f32 %v2380, %v2741
      %v2802 = vadd.f32 %v2381, %v2740
      %v2803 = vadd.f32 %v2382, %v2744
      %v2804 = vadd.f32 %v2383, %v2743
      %v2805 = vadd.f32 %v2384, %v2747
      %v2806 = vadd.f32 %v2385, %v2746
      %v2807 = vadd.f32 %v2386, %v2750
      %v2808 = vadd.f32 %v2387, %v2749
      %v2809 = vadd.f32 %v2388, %v2753
      %v2810 = vadd.f32 %v2389, %v2752
      %v2811 = vadd.f32 %v2390, %v2756
      %v2812 = vadd.f32 %v2391, %v2755
      %v2813 = vperm.slane %v432, 5
      %v2814 = vmul.f32 %v775, %v2813
      %v2815 = vmul.f32 %v780, %v2813
      %v2816 = vmul.f32 %v785, %v2813
      %v2817 = vmul.f32 %v790, %v2813
      %v2818 = vmul.f32 %v795, %v2813
      %v2819 = vmul.f32 %v800, %v2813
      %v2820 = vmul.f32 %v805, %v2813
      %v2821 = vmul.f32 %v810, %v2813
      %v2822 = vmul.f32 %v815, %v2813
      %v2823 = vmul.f32 %v820, %v2813
      %v2824 = vmul.f32 %v825, %v2813
      %v2825 = vmul.f32 %v830, %v2813
      %v2826 = vmul.f32 %v835, %v2813
      %v2827 = vmul.f32 %v840, %v2813
      %v2828 = vmul.f32 %v845, %v2813
      %v2829 = vmul.f32 %v850, %v2813
      %v2830 = vmul.f32 %v855, %v2813
      %v2831 = vmul.f32 %v860, %v2813
      %v2832 = vmul.f32 %v865, %v2813
      %v2833 = vmul.f32 %v870, %v2813
      %v2834 = vmul.f32 %v875, %v2813
      %v2835 = vmul.f32 %v880, %v2813
      %v2836 = vmul.f32 %v885, %v2813
      %v2837 = vmul.f32 %v890, %v2813
      %v2838 = vmul.f32 %v895, %v2813
      %v2839 = vmul.f32 %v900, %v2813
      %v2840 = vmul.f32 %v905, %v2813
      %v2841 = vmul.f32 %v910, %v2813
      %v2870 = vrot.slane %v2814, 1
      %v2871 = vrot.slane %v2815, 1
      %v2872 = vsel %vm1221, %v2870, %v2871
      %v2873 = vrot.slane %v2816, 1
      %v2874 = vrot.slane %v2817, 1
      %v2875 = vsel %vm1221, %v2873, %v2874
      %v2876 = vrot.slane %v2818, 1
      %v2877 = vrot.slane %v2819, 1
      %v2878 = vsel %vm1221, %v2876, %v2877
      %v2879 = vrot.slane %v2820, 1
      %v2880 = vrot.slane %v2821, 1
      %v2881 = vsel %vm1221, %v2879, %v2880
      %v2882 = vrot.slane %v2822, 1
      %v2883 = vrot.slane %v2823, 1
      %v2884 = vsel %vm1221, %v2882, %v2883
      %v2885 = vrot.slane %v2824, 1
      %v2886 = vrot.slane %v2825, 1
      %v2887 = vsel %vm1221, %v2885, %v2886
      %v2888 = vrot.slane %v2826, 1
      %v2889 = vrot.slane %v2827, 1
      %v2890 = vsel %vm1221, %v2888, %v2889
      %v2891 = vrot.slane %v2828, 1
      %v2892 = vrot.slane %v2829, 1
      %v2893 = vsel %vm1221, %v2891, %v2892
      %v2894 = vrot.slane %v2830, 1
      %v2895 = vrot.slane %v2831, 1
      %v2896 = vsel %vm1221, %v2894, %v2895
      %v2897 = vrot.slane %v2832, 1
      %v2898 = vrot.slane %v2833, 1
      %v2899 = vsel %vm1221, %v2897, %v2898
      %v2900 = vrot.slane %v2834, 1
      %v2901 = vrot.slane %v2835, 1
      %v2902 = vsel %vm1221, %v2900, %v2901
      %v2903 = vrot.slane %v2836, 1
      %v2904 = vrot.slane %v2837, 1
      %v2905 = vsel %vm1221, %v2903, %v2904
      %v2906 = vrot.slane %v2838, 1
      %v2907 = vrot.slane %v2839, 1
      %v2908 = vsel %vm1221, %v2906, %v2907
      %v2909 = vrot.slane %v2840, 1
      %v2910 = vrot.slane %v2841, 1
      %v2911 = vsel %vm1221, %v2909, %v2910
      %v2940 = vadd.f32 %v2421, %v2872
      %v2941 = vadd.f32 %v2422, %v2871
      %v2942 = vadd.f32 %v2423, %v2875
      %v2943 = vadd.f32 %v2424, %v2874
      %v2944 = vadd.f32 %v2425, %v2878
      %v2945 = vadd.f32 %v2426, %v2877
      %v2946 = vadd.f32 %v2427, %v2881
      %v2947 = vadd.f32 %v2428, %v2880
      %v2948 = vadd.f32 %v2429, %v2884
      %v2949 = vadd.f32 %v2430, %v2883
      %v2950 = vadd.f32 %v2431, %v2887
      %v2951 = vadd.f32 %v2432, %v2886
      %v2952 = vadd.f32 %v2433, %v2890
      %v2953 = vadd.f32 %v2434, %v2889
      %v2954 = vadd.f32 %v2435, %v2893
      %v2955 = vadd.f32 %v2436, %v2892
      %v2956 = vadd.f32 %v2437, %v2896
      %v2957 = vadd.f32 %v2438, %v2895
      %v2958 = vadd.f32 %v2439, %v2899
      %v2959 = vadd.f32 %v2440, %v2898
      %v2960 = vadd.f32 %v2441, %v2902
      %v2961 = vadd.f32 %v2442, %v2901
      %v2962 = vadd.f32 %v2443, %v2905
      %v2963 = vadd.f32 %v2444, %v2904
      %v2964 = vadd.f32 %v2445, %v2908
      %v2965 = vadd.f32 %v2446, %v2907
      %v2966 = vadd.f32 %v2447, %v2911
      %v2967 = vadd.f32 %v2448, %v2910
      %v2968 = vmul.f32 %v943, %v2813
      %v2969 = vmul.f32 %v948, %v2813
      %v2970 = vmul.f32 %v953, %v2813
      %v2971 = vmul.f32 %v958, %v2813
      %v2972 = vmul.f32 %v963, %v2813
      %v2973 = vmul.f32 %v968, %v2813
      %v2974 = vmul.f32 %v973, %v2813
      %v2975 = vmul.f32 %v978, %v2813
      %v2976 = vmul.f32 %v983, %v2813
      %v2977 = vmul.f32 %v988, %v2813
      %v2978 = vmul.f32 %v993, %v2813
      %v2979 = vmul.f32 %v998, %v2813
      %v2980 = vmul.f32 %v1003, %v2813
      %v2981 = vmul.f32 %v1008, %v2813
      %v2982 = vmul.f32 %v1013, %v2813
      %v2983 = vmul.f32 %v1018, %v2813
      %v2984 = vmul.f32 %v1023, %v2813
      %v2985 = vmul.f32 %v1028, %v2813
      %v2986 = vmul.f32 %v1033, %v2813
      %v2987 = vmul.f32 %v1038, %v2813
      %v2988 = vmul.f32 %v1043, %v2813
      %v2989 = vmul.f32 %v1048, %v2813
      %v2990 = vmul.f32 %v1053, %v2813
      %v2991 = vmul.f32 %v1058, %v2813
      %v2992 = vmul.f32 %v1063, %v2813
      %v2993 = vmul.f32 %v1068, %v2813
      %v2994 = vmul.f32 %v1073, %v2813
      %v2995 = vmul.f32 %v1078, %v2813
      %v3024 = vrot.slane %v2968, 1
      %v3025 = vrot.slane %v2969, 1
      %v3026 = vsel %vm1221, %v3024, %v3025
      %v3027 = vrot.slane %v2970, 1
      %v3028 = vrot.slane %v2971, 1
      %v3029 = vsel %vm1221, %v3027, %v3028
      %v3030 = vrot.slane %v2972, 1
      %v3031 = vrot.slane %v2973, 1
      %v3032 = vsel %vm1221, %v3030, %v3031
      %v3033 = vrot.slane %v2974, 1
      %v3034 = vrot.slane %v2975, 1
      %v3035 = vsel %vm1221, %v3033, %v3034
      %v3036 = vrot.slane %v2976, 1
      %v3037 = vrot.slane %v2977, 1
      %v3038 = vsel %vm1221, %v3036, %v3037
      %v3039 = vrot.slane %v2978, 1
      %v3040 = vrot.slane %v2979, 1
      %v3041 = vsel %vm1221, %v3039, %v3040
      %v3042 = vrot.slane %v2980, 1
      %v3043 = vrot.slane %v2981, 1
      %v3044 = vsel %vm1221, %v3042, %v3043
      %v3045 = vrot.slane %v2982, 1
      %v3046 = vrot.slane %v2983, 1
      %v3047 = vsel %vm1221, %v3045, %v3046
      %v3048 = vrot.slane %v2984, 1
      %v3049 = vrot.slane %v2985, 1
      %v3050 = vsel %vm1221, %v3048, %v3049
      %v3051 = vrot.slane %v2986, 1
      %v3052 = vrot.slane %v2987, 1
      %v3053 = vsel %vm1221, %v3051, %v3052
      %v3054 = vrot.slane %v2988, 1
      %v3055 = vrot.slane %v2989, 1
      %v3056 = vsel %vm1221, %v3054, %v3055
      %v3057 = vrot.slane %v2990, 1
      %v3058 = vrot.slane %v2991, 1
      %v3059 = vsel %vm1221, %v3057, %v3058
      %v3060 = vrot.slane %v2992, 1
      %v3061 = vrot.slane %v2993, 1
      %v3062 = vsel %vm1221, %v3060, %v3061
      %v3063 = vrot.slane %v2994, 1
      %v3064 = vrot.slane %v2995, 1
      %v3065 = vsel %vm1221, %v3063, %v3064
      %v3094 = vadd.f32 %v2575, %v3026
      %v3095 = vadd.f32 %v2576, %v3025
      %v3096 = vadd.f32 %v2577, %v3029
      %v3097 = vadd.f32 %v2578, %v3028
      %v3098 = vadd.f32 %v2579, %v3032
      %v3099 = vadd.f32 %v2580, %v3031
      %v3100 = vadd.f32 %v2581, %v3035
      %v3101 = vadd.f32 %v2582, %v3034
      %v3102 = vadd.f32 %v2583, %v3038
      %v3103 = vadd.f32 %v2584, %v3037
      %v3104 = vadd.f32 %v2585, %v3041
      %v3105 = vadd.f32 %v2586, %v3040
      %v3106 = vadd.f32 %v2587, %v3044
      %v3107 = vadd.f32 %v2588, %v3043
      %v3108 = vadd.f32 %v2589, %v3047
      %v3109 = vadd.f32 %v2590, %v3046
      %v3110 = vadd.f32 %v2591, %v3050
      %v3111 = vadd.f32 %v2592, %v3049
      %v3112 = vadd.f32 %v2593, %v3053
      %v3113 = vadd.f32 %v2594, %v3052
      %v3114 = vadd.f32 %v2595, %v3056
      %v3115 = vadd.f32 %v2596, %v3055
      %v3116 = vadd.f32 %v2597, %v3059
      %v3117 = vadd.f32 %v2598, %v3058
      %v3118 = vadd.f32 %v2599, %v3062
      %v3119 = vadd.f32 %v2600, %v3061
      %v3120 = vadd.f32 %v2601, %v3065
      %v3121 = vadd.f32 %v2602, %v3064
      %v3122 = vmul.f32 %v448, %v2813
      %v3123 = vmul.f32 %v453, %v2813
      %v3124 = vmul.f32 %v458, %v2813
      %v3125 = vmul.f32 %v463, %v2813
      %v3126 = vmul.f32 %v468, %v2813
      %v3127 = vmul.f32 %v473, %v2813
      %v3128 = vmul.f32 %v478, %v2813
      %v3129 = vmul.f32 %v483, %v2813
      %v3130 = vmul.f32 %v488, %v2813
      %v3131 = vmul.f32 %v493, %v2813
      %v3132 = vmul.f32 %v498, %v2813
      %v3133 = vmul.f32 %v503, %v2813
      %v3134 = vmul.f32 %v508, %v2813
      %v3135 = vmul.f32 %v513, %v2813
      %v3136 = vmul.f32 %v518, %v2813
      %v3137 = vmul.f32 %v523, %v2813
      %v3138 = vmul.f32 %v528, %v2813
      %v3139 = vmul.f32 %v533, %v2813
      %v3140 = vmul.f32 %v538, %v2813
      %v3141 = vmul.f32 %v543, %v2813
      %v3142 = vmul.f32 %v548, %v2813
      %v3143 = vmul.f32 %v553, %v2813
      %v3144 = vmul.f32 %v558, %v2813
      %v3145 = vmul.f32 %v563, %v2813
      %v3146 = vmul.f32 %v568, %v2813
      %v3147 = vmul.f32 %v573, %v2813
      %v3148 = vmul.f32 %v2263, %v2813
      %v3149 = vmul.f32 %v2268, %v2813
      %v3178 = vrot.slane %v3122, 1
      %v3179 = vrot.slane %v3123, 1
      %v3180 = vsel %vm1221, %v3178, %v3179
      %v3181 = vrot.slane %v3124, 1
      %v3182 = vrot.slane %v3125, 1
      %v3183 = vsel %vm1221, %v3181, %v3182
      %v3184 = vrot.slane %v3126, 1
      %v3185 = vrot.slane %v3127, 1
      %v3186 = vsel %vm1221, %v3184, %v3185
      %v3187 = vrot.slane %v3128, 1
      %v3188 = vrot.slane %v3129, 1
      %v3189 = vsel %vm1221, %v3187, %v3188
      %v3190 = vrot.slane %v3130, 1
      %v3191 = vrot.slane %v3131, 1
      %v3192 = vsel %vm1221, %v3190, %v3191
      %v3193 = vrot.slane %v3132, 1
      %v3194 = vrot.slane %v3133, 1
      %v3195 = vsel %vm1221, %v3193, %v3194
      %v3196 = vrot.slane %v3134, 1
      %v3197 = vrot.slane %v3135, 1
      %v3198 = vsel %vm1221, %v3196, %v3197
      %v3199 = vrot.slane %v3136, 1
      %v3200 = vrot.slane %v3137, 1
      %v3201 = vsel %vm1221, %v3199, %v3200
      %v3202 = vrot.slane %v3138, 1
      %v3203 = vrot.slane %v3139, 1
      %v3204 = vsel %vm1221, %v3202, %v3203
      %v3205 = vrot.slane %v3140, 1
      %v3206 = vrot.slane %v3141, 1
      %v3207 = vsel %vm1221, %v3205, %v3206
      %v3208 = vrot.slane %v3142, 1
      %v3209 = vrot.slane %v3143, 1
      %v3210 = vsel %vm1221, %v3208, %v3209
      %v3211 = vrot.slane %v3144, 1
      %v3212 = vrot.slane %v3145, 1
      %v3213 = vsel %vm1221, %v3211, %v3212
      %v3214 = vrot.slane %v3146, 1
      %v3215 = vrot.slane %v3147, 1
      %v3216 = vsel %vm1221, %v3214, %v3215
      %v3217 = vrot.slane %v3148, 1
      %v3218 = vrot.slane %v3149, 1
      %v3219 = vsel %vm1221, %v3217, %v3218
      %v3248 = vadd.f32 %v2631, %v3180
      %v3249 = vadd.f32 %v2632, %v3179
      %v3250 = vadd.f32 %v2633, %v3183
      %v3251 = vadd.f32 %v2634, %v3182
      %v3252 = vadd.f32 %v2635, %v3186
      %v3253 = vadd.f32 %v2636, %v3185
      %v3254 = vadd.f32 %v2637, %v3189
      %v3255 = vadd.f32 %v2638, %v3188
      %v3256 = vadd.f32 %v2639, %v3192
      %v3257 = vadd.f32 %v2640, %v3191
      %v3258 = vadd.f32 %v2641, %v3195
      %v3259 = vadd.f32 %v2642, %v3194
      %v3260 = vadd.f32 %v2643, %v3198
      %v3261 = vadd.f32 %v2644, %v3197
      %v3262 = vadd.f32 %v2645, %v3201
      %v3263 = vadd.f32 %v2646, %v3200
      %v3264 = vadd.f32 %v2647, %v3204
      %v3265 = vadd.f32 %v2648, %v3203
      %v3266 = vadd.f32 %v2649, %v3207
      %v3267 = vadd.f32 %v2650, %v3206
      %v3268 = vadd.f32 %v2651, %v3210
      %v3269 = vadd.f32 %v2652, %v3209
      %v3270 = vadd.f32 %v2653, %v3213
      %v3271 = vadd.f32 %v2654, %v3212
      %v3272 = vadd.f32 %v2655, %v3216
      %v3273 = vadd.f32 %v2656, %v3215
      %v3274 = vadd.f32 %v2657, %v3219
      %v3275 = vadd.f32 %v2658, %v3218
      %v3276 = vmul.f32 %v617, %v2813
      %v3277 = vmul.f32 %v622, %v2813
      %v3278 = vmul.f32 %v627, %v2813
      %v3279 = vmul.f32 %v632, %v2813
      %v3280 = vmul.f32 %v637, %v2813
      %v3281 = vmul.f32 %v642, %v2813
      %v3282 = vmul.f32 %v647, %v2813
      %v3283 = vmul.f32 %v652, %v2813
      %v3284 = vmul.f32 %v657, %v2813
      %v3285 = vmul.f32 %v662, %v2813
      %v3286 = vmul.f32 %v667, %v2813
      %v3287 = vmul.f32 %v672, %v2813
      %v3288 = vmul.f32 %v677, %v2813
      %v3289 = vmul.f32 %v682, %v2813
      %v3290 = vmul.f32 %v687, %v2813
      %v3291 = vmul.f32 %v692, %v2813
      %v3292 = vmul.f32 %v697, %v2813
      %v3293 = vmul.f32 %v702, %v2813
      %v3294 = vmul.f32 %v707, %v2813
      %v3295 = vmul.f32 %v712, %v2813
      %v3296 = vmul.f32 %v717, %v2813
      %v3297 = vmul.f32 %v722, %v2813
      %v3298 = vmul.f32 %v727, %v2813
      %v3299 = vmul.f32 %v732, %v2813
      %v3300 = vmul.f32 %v737, %v2813
      %v3301 = vmul.f32 %v742, %v2813
      %v3302 = vmul.f32 %v2329, %v2813
      %v3303 = vmul.f32 %v2334, %v2813
      %v3332 = vrot.slane %v3276, 1
      %v3333 = vrot.slane %v3277, 1
      %v3334 = vsel %vm1221, %v3332, %v3333
      %v3335 = vrot.slane %v3278, 1
      %v3336 = vrot.slane %v3279, 1
      %v3337 = vsel %vm1221, %v3335, %v3336
      %v3338 = vrot.slane %v3280, 1
      %v3339 = vrot.slane %v3281, 1
      %v3340 = vsel %vm1221, %v3338, %v3339
      %v3341 = vrot.slane %v3282, 1
      %v3342 = vrot.slane %v3283, 1
      %v3343 = vsel %vm1221, %v3341, %v3342
      %v3344 = vrot.slane %v3284, 1
      %v3345 = vrot.slane %v3285, 1
      %v3346 = vsel %vm1221, %v3344, %v3345
      %v3347 = vrot.slane %v3286, 1
      %v3348 = vrot.slane %v3287, 1
      %v3349 = vsel %vm1221, %v3347, %v3348
      %v3350 = vrot.slane %v3288, 1
      %v3351 = vrot.slane %v3289, 1
      %v3352 = vsel %vm1221, %v3350, %v3351
      %v3353 = vrot.slane %v3290, 1
      %v3354 = vrot.slane %v3291, 1
      %v3355 = vsel %vm1221, %v3353, %v3354
      %v3356 = vrot.slane %v3292, 1
      %v3357 = vrot.slane %v3293, 1
      %v3358 = vsel %vm1221, %v3356, %v3357
      %v3359 = vrot.slane %v3294, 1
      %v3360 = vrot.slane %v3295, 1
      %v3361 = vsel %vm1221, %v3359, %v3360
      %v3362 = vrot.slane %v3296, 1
      %v3363 = vrot.slane %v3297, 1
      %v3364 = vsel %vm1221, %v3362, %v3363
      %v3365 = vrot.slane %v3298, 1
      %v3366 = vrot.slane %v3299, 1
      %v3367 = vsel %vm1221, %v3365, %v3366
      %v3368 = vrot.slane %v3300, 1
      %v3369 = vrot.slane %v3301, 1
      %v3370 = vsel %vm1221, %v3368, %v3369
      %v3371 = vrot.slane %v3302, 1
      %v3372 = vrot.slane %v3303, 1
      %v3373 = vsel %vm1221, %v3371, %v3372
      %v3402 = vadd.f32 %v2785, %v3334
      %v3403 = vadd.f32 %v2786, %v3333
      %v3404 = vadd.f32 %v2787, %v3337
      %v3405 = vadd.f32 %v2788, %v3336
      %v3406 = vadd.f32 %v2789, %v3340
      %v3407 = vadd.f32 %v2790, %v3339
      %v3408 = vadd.f32 %v2791, %v3343
      %v3409 = vadd.f32 %v2792, %v3342
      %v3410 = vadd.f32 %v2793, %v3346
      %v3411 = vadd.f32 %v2794, %v3345
      %v3412 = vadd.f32 %v2795, %v3349
      %v3413 = vadd.f32 %v2796, %v3348
      %v3414 = vadd.f32 %v2797, %v3352
      %v3415 = vadd.f32 %v2798, %v3351
      %v3416 = vadd.f32 %v2799, %v3355
      %v3417 = vadd.f32 %v2800, %v3354
      %v3418 = vadd.f32 %v2801, %v3358
      %v3419 = vadd.f32 %v2802, %v3357
      %v3420 = vadd.f32 %v2803, %v3361
      %v3421 = vadd.f32 %v2804, %v3360
      %v3422 = vadd.f32 %v2805, %v3364
      %v3423 = vadd.f32 %v2806, %v3363
      %v3424 = vadd.f32 %v2807, %v3367
      %v3425 = vadd.f32 %v2808, %v3366
      %v3426 = vadd.f32 %v2809, %v3370
      %v3427 = vadd.f32 %v2810, %v3369
      %v3428 = vadd.f32 %v2811, %v3373
      %v3429 = vadd.f32 %v2812, %v3372
      %v3430 = vperm.slane %v432, 6
      %v3431 = vmul.f32 %v448, %v3430
      %v3432 = vmul.f32 %v453, %v3430
      %v3433 = vmul.f32 %v458, %v3430
      %v3434 = vmul.f32 %v463, %v3430
      %v3435 = vmul.f32 %v468, %v3430
      %v3436 = vmul.f32 %v473, %v3430
      %v3437 = vmul.f32 %v478, %v3430
      %v3438 = vmul.f32 %v483, %v3430
      %v3439 = vmul.f32 %v488, %v3430
      %v3440 = vmul.f32 %v493, %v3430
      %v3441 = vmul.f32 %v498, %v3430
      %v3442 = vmul.f32 %v503, %v3430
      %v3443 = vmul.f32 %v508, %v3430
      %v3444 = vmul.f32 %v513, %v3430
      %v3445 = vmul.f32 %v518, %v3430
      %v3446 = vmul.f32 %v523, %v3430
      %v3447 = vmul.f32 %v528, %v3430
      %v3448 = vmul.f32 %v533, %v3430
      %v3449 = vmul.f32 %v538, %v3430
      %v3450 = vmul.f32 %v543, %v3430
      %v3451 = vmul.f32 %v548, %v3430
      %v3452 = vmul.f32 %v553, %v3430
      %v3453 = vmul.f32 %v558, %v3430
      %v3454 = vmul.f32 %v563, %v3430
      %v3455 = vmul.f32 %v568, %v3430
      %v3456 = vmul.f32 %v573, %v3430
      %v3457 = vmul.f32 %v2263, %v3430
      %v3458 = vmul.f32 %v2268, %v3430
      %v3459 = vadd.f32 %v2940, %v3431
      %v3460 = vadd.f32 %v2941, %v3432
      %v3461 = vadd.f32 %v2942, %v3433
      %v3462 = vadd.f32 %v2943, %v3434
      %v3463 = vadd.f32 %v2944, %v3435
      %v3464 = vadd.f32 %v2945, %v3436
      %v3465 = vadd.f32 %v2946, %v3437
      %v3466 = vadd.f32 %v2947, %v3438
      %v3467 = vadd.f32 %v2948, %v3439
      %v3468 = vadd.f32 %v2949, %v3440
      %v3469 = vadd.f32 %v2950, %v3441
      %v3470 = vadd.f32 %v2951, %v3442
      %v3471 = vadd.f32 %v2952, %v3443
      %v3472 = vadd.f32 %v2953, %v3444
      %v3473 = vadd.f32 %v2954, %v3445
      %v3474 = vadd.f32 %v2955, %v3446
      %v3475 = vadd.f32 %v2956, %v3447
      %v3476 = vadd.f32 %v2957, %v3448
      %v3477 = vadd.f32 %v2958, %v3449
      %v3478 = vadd.f32 %v2959, %v3450
      %v3479 = vadd.f32 %v2960, %v3451
      %v3480 = vadd.f32 %v2961, %v3452
      %v3481 = vadd.f32 %v2962, %v3453
      %v3482 = vadd.f32 %v2963, %v3454
      %v3483 = vadd.f32 %v2964, %v3455
      %v3484 = vadd.f32 %v2965, %v3456
      %v3485 = vadd.f32 %v2966, %v3457
      %v3486 = vadd.f32 %v2967, %v3458
      %v3487 = vmul.f32 %v617, %v3430
      %v3488 = vmul.f32 %v622, %v3430
      %v3489 = vmul.f32 %v627, %v3430
      %v3490 = vmul.f32 %v632, %v3430
      %v3491 = vmul.f32 %v637, %v3430
      %v3492 = vmul.f32 %v642, %v3430
      %v3493 = vmul.f32 %v647, %v3430
      %v3494 = vmul.f32 %v652, %v3430
      %v3495 = vmul.f32 %v657, %v3430
      %v3496 = vmul.f32 %v662, %v3430
      %v3497 = vmul.f32 %v667, %v3430
      %v3498 = vmul.f32 %v672, %v3430
      %v3499 = vmul.f32 %v677, %v3430
      %v3500 = vmul.f32 %v682, %v3430
      %v3501 = vmul.f32 %v687, %v3430
      %v3502 = vmul.f32 %v692, %v3430
      %v3503 = vmul.f32 %v697, %v3430
      %v3504 = vmul.f32 %v702, %v3430
      %v3505 = vmul.f32 %v707, %v3430
      %v3506 = vmul.f32 %v712, %v3430
      %v3507 = vmul.f32 %v717, %v3430
      %v3508 = vmul.f32 %v722, %v3430
      %v3509 = vmul.f32 %v727, %v3430
      %v3510 = vmul.f32 %v732, %v3430
      %v3511 = vmul.f32 %v737, %v3430
      %v3512 = vmul.f32 %v742, %v3430
      %v3513 = vmul.f32 %v2329, %v3430
      %v3514 = vmul.f32 %v2334, %v3430
      %v3515 = vadd.f32 %v3094, %v3487
      %v3516 = vadd.f32 %v3095, %v3488
      %v3517 = vadd.f32 %v3096, %v3489
      %v3518 = vadd.f32 %v3097, %v3490
      %v3519 = vadd.f32 %v3098, %v3491
      %v3520 = vadd.f32 %v3099, %v3492
      %v3521 = vadd.f32 %v3100, %v3493
      %v3522 = vadd.f32 %v3101, %v3494
      %v3523 = vadd.f32 %v3102, %v3495
      %v3524 = vadd.f32 %v3103, %v3496
      %v3525 = vadd.f32 %v3104, %v3497
      %v3526 = vadd.f32 %v3105, %v3498
      %v3527 = vadd.f32 %v3106, %v3499
      %v3528 = vadd.f32 %v3107, %v3500
      %v3529 = vadd.f32 %v3108, %v3501
      %v3530 = vadd.f32 %v3109, %v3502
      %v3531 = vadd.f32 %v3110, %v3503
      %v3532 = vadd.f32 %v3111, %v3504
      %v3533 = vadd.f32 %v3112, %v3505
      %v3534 = vadd.f32 %v3113, %v3506
      %v3535 = vadd.f32 %v3114, %v3507
      %v3536 = vadd.f32 %v3115, %v3508
      %v3537 = vadd.f32 %v3116, %v3509
      %v3538 = vadd.f32 %v3117, %v3510
      %v3539 = vadd.f32 %v3118, %v3511
      %v3540 = vadd.f32 %v3119, %v3512
      %v3541 = vadd.f32 %v3120, %v3513
      %v3542 = vadd.f32 %v3121, %v3514
      %3544 = vset.pattern.permute.xlu0 0
      %3545 = vperm.xlu0 %3544, %v400
      %v3546 = vpop.permute.xlu0 %3545
      %3549 = vset.pattern.permute.xlu0 0
      %3550 = vperm.xlu0 %3549, %v401
      %v3551 = vpop.permute.xlu0 %3550
      %v3553 = vmul.f32 %v785, %v3430
      %v3554 = vmul.f32 %v790, %v3430
      %v3555 = vmul.f32 %v795, %v3430
      %v3556 = vmul.f32 %v800, %v3430
      %v3557 = vmul.f32 %v805, %v3430
      %v3558 = vmul.f32 %v810, %v3430
      %v3559 = vmul.f32 %v815, %v3430
      %v3560 = vmul.f32 %v820, %v3430
      %v3561 = vmul.f32 %v825, %v3430
      %v3562 = vmul.f32 %v830, %v3430
      %v3563 = vmul.f32 %v835, %v3430
      %v3564 = vmul.f32 %v840, %v3430
      %v3565 = vmul.f32 %v845, %v3430
      %v3566 = vmul.f32 %v850, %v3430
      %v3567 = vmul.f32 %v855, %v3430
      %v3568 = vmul.f32 %v860, %v3430
      %v3569 = vmul.f32 %v865, %v3430
      %v3570 = vmul.f32 %v870, %v3430
      %v3571 = vmul.f32 %v875, %v3430
      %v3572 = vmul.f32 %v880, %v3430
      %v3573 = vmul.f32 %v885, %v3430
      %v3574 = vmul.f32 %v890, %v3430
      %v3575 = vmul.f32 %v895, %v3430
      %v3576 = vmul.f32 %v900, %v3430
      %v3577 = vmul.f32 %v905, %v3430
      %v3578 = vmul.f32 %v910, %v3430
      %v3579 = vmul.f32 %v3546, %v3430
      %v3580 = vmul.f32 %v3551, %v3430
      %v3581 = vadd.f32 %v3248, %v3553
      %v3582 = vadd.f32 %v3249, %v3554
      %v3583 = vadd.f32 %v3250, %v3555
      %v3584 = vadd.f32 %v3251, %v3556
      %v3585 = vadd.f32 %v3252, %v3557
      %v3586 = vadd.f32 %v3253, %v3558
      %v3587 = vadd.f32 %v3254, %v3559
      %v3588 = vadd.f32 %v3255, %v3560
      %v3589 = vadd.f32 %v3256, %v3561
      %v3590 = vadd.f32 %v3257, %v3562
      %v3591 = vadd.f32 %v3258, %v3563
      %v3592 = vadd.f32 %v3259, %v3564
      %v3593 = vadd.f32 %v3260, %v3565
      %v3594 = vadd.f32 %v3261, %v3566
      %v3595 = vadd.f32 %v3262, %v3567
      %v3596 = vadd.f32 %v3263, %v3568
      %v3597 = vadd.f32 %v3264, %v3569
      %v3598 = vadd.f32 %v3265, %v3570
      %v3599 = vadd.f32 %v3266, %v3571
      %v3600 = vadd.f32 %v3267, %v3572
      %v3601 = vadd.f32 %v3268, %v3573
      %v3602 = vadd.f32 %v3269, %v3574
      %v3603 = vadd.f32 %v3270, %v3575
      %v3604 = vadd.f32 %v3271, %v3576
      %v3605 = vadd.f32 %v3272, %v3577
      %v3606 = vadd.f32 %v3273, %v3578
      %v3607 = vadd.f32 %v3274, %v3579
      %v3608 = vadd.f32 %v3275, %v3580
      %3610 = vset.pattern.permute.xlu0 0
      %3611 = vperm.xlu0 %3610, %v430
      %v3612 = vpop.permute.xlu0 %3611
      %3615 = vset.pattern.permute.xlu0 0
      %3616 = vperm.xlu0 %3615, %v431
      %v3617 = vpop.permute.xlu0 %3616
      %v3619 = vmul.f32 %v953, %v3430
      %v3620 = vmul.f32 %v958, %v3430
      %v3621 = vmul.f32 %v963, %v3430
      %v3622 = vmul.f32 %v968, %v3430
      %v3623 = vmul.f32 %v973, %v3430
      %v3624 = vmul.f32 %v978, %v3430
      %v3625 = vmul.f32 %v983, %v3430
      %v3626 = vmul.f32 %v988, %v3430
      %v3627 = vmul.f32 %v993, %v3430
      %v3628 = vmul.f32 %v998, %v3430
      %v3629 = vmul.f32 %v1003, %v3430
      %v3630 = vmul.f32 %v1008, %v3430
      %v3631 = vmul.f32 %v1013, %v3430
      %v3632 = vmul.f32 %v1018, %v3430
      %v3633 = vmul.f32 %v1023, %v3430
      %v3634 = vmul.f32 %v1028, %v3430
      %v3635 = vmul.f32 %v1033, %v3430
      %v3636 = vmul.f32 %v1038, %v3430
      %v3637 = vmul.f32 %v1043, %v3430
      %v3638 = vmul.f32 %v1048, %v3430
      %v3639 = vmul.f32 %v1053, %v3430
      %v3640 = vmul.f32 %v1058, %v3430
      %v3641 = vmul.f32 %v1063, %v3430
      %v3642 = vmul.f32 %v1068, %v3430
      %v3643 = vmul.f32 %v1073, %v3430
      %v3644 = vmul.f32 %v1078, %v3430
      %v3645 = vmul.f32 %v3612, %v3430
      %v3646 = vmul.f32 %v3617, %v3430
      %v3647 = vadd.f32 %v3402, %v3619
      %v3648 = vadd.f32 %v3403, %v3620
      %v3649 = vadd.f32 %v3404, %v3621
      %v3650 = vadd.f32 %v3405, %v3622
      %v3651 = vadd.f32 %v3406, %v3623
      %v3652 = vadd.f32 %v3407, %v3624
      %v3653 = vadd.f32 %v3408, %v3625
      %v3654 = vadd.f32 %v3409, %v3626
      %v3655 = vadd.f32 %v3410, %v3627
      %v3656 = vadd.f32 %v3411, %v3628
      %v3657 = vadd.f32 %v3412, %v3629
      %v3658 = vadd.f32 %v3413, %v3630
      %v3659 = vadd.f32 %v3414, %v3631
      %v3660 = vadd.f32 %v3415, %v3632
      %v3661 = vadd.f32 %v3416, %v3633
      %v3662 = vadd.f32 %v3417, %v3634
      %v3663 = vadd.f32 %v3418, %v3635
      %v3664 = vadd.f32 %v3419, %v3636
      %v3665 = vadd.f32 %v3420, %v3637
      %v3666 = vadd.f32 %v3421, %v3638
      %v3667 = vadd.f32 %v3422, %v3639
      %v3668 = vadd.f32 %v3423, %v3640
      %v3669 = vadd.f32 %v3424, %v3641
      %v3670 = vadd.f32 %v3425, %v3642
      %v3671 = vadd.f32 %v3426, %v3643
      %v3672 = vadd.f32 %v3427, %v3644
      %v3673 = vadd.f32 %v3428, %v3645
      %v3674 = vadd.f32 %v3429, %v3646
      %v3675 = vperm.slane %v432, 7
      %v3676 = vmul.f32 %v617, %v3675
      %v3677 = vmul.f32 %v622, %v3675
      %v3678 = vmul.f32 %v627, %v3675
      %v3679 = vmul.f32 %v632, %v3675
      %v3680 = vmul.f32 %v637, %v3675
      %v3681 = vmul.f32 %v642, %v3675
      %v3682 = vmul.f32 %v647, %v3675
      %v3683 = vmul.f32 %v652, %v3675
      %v3684 = vmul.f32 %v657, %v3675
      %v3685 = vmul.f32 %v662, %v3675
      %v3686 = vmul.f32 %v667, %v3675
      %v3687 = vmul.f32 %v672, %v3675
      %v3688 = vmul.f32 %v677, %v3675
      %v3689 = vmul.f32 %v682, %v3675
      %v3690 = vmul.f32 %v687, %v3675
      %v3691 = vmul.f32 %v692, %v3675
      %v3692 = vmul.f32 %v697, %v3675
      %v3693 = vmul.f32 %v702, %v3675
      %v3694 = vmul.f32 %v707, %v3675
      %v3695 = vmul.f32 %v712, %v3675
      %v3696 = vmul.f32 %v717, %v3675
      %v3697 = vmul.f32 %v722, %v3675
      %v3698 = vmul.f32 %v727, %v3675
      %v3699 = vmul.f32 %v732, %v3675
      %v3700 = vmul.f32 %v737, %v3675
      %v3701 = vmul.f32 %v742, %v3675
      %v3702 = vmul.f32 %v2329, %v3675
      %v3703 = vmul.f32 %v2334, %v3675
      %v3704 = vadd.f32 %v3459, %v3676
      %v3705 = vadd.f32 %v3460, %v3677
      %v3706 = vadd.f32 %v3461, %v3678
      %v3707 = vadd.f32 %v3462, %v3679
      %v3708 = vadd.f32 %v3463, %v3680
      %v3709 = vadd.f32 %v3464, %v3681
      %v3710 = vadd.f32 %v3465, %v3682
      %v3711 = vadd.f32 %v3466, %v3683
      %v3712 = vadd.f32 %v3467, %v3684
      %v3713 = vadd.f32 %v3468, %v3685
      %v3714 = vadd.f32 %v3469, %v3686
      %v3715 = vadd.f32 %v3470, %v3687
      %v3716 = vadd.f32 %v3471, %v3688
      %v3717 = vadd.f32 %v3472, %v3689
      %v3718 = vadd.f32 %v3473, %v3690
      %v3719 = vadd.f32 %v3474, %v3691
      %v3720 = vadd.f32 %v3475, %v3692
      %v3721 = vadd.f32 %v3476, %v3693
      %v3722 = vadd.f32 %v3477, %v3694
      %v3723 = vadd.f32 %v3478, %v3695
      %v3724 = vadd.f32 %v3479, %v3696
      %v3725 = vadd.f32 %v3480, %v3697
      %v3726 = vadd.f32 %v3481, %v3698
      %v3727 = vadd.f32 %v3482, %v3699
      %v3728 = vadd.f32 %v3483, %v3700
      %v3729 = vadd.f32 %v3484, %v3701
      %v3730 = vadd.f32 %v3485, %v3702
      %v3731 = vadd.f32 %v3486, %v3703
      %v3732 = vmul.f32 %v448, %v3675
      %v3733 = vmul.f32 %v453, %v3675
      %v3734 = vmul.f32 %v458, %v3675
      %v3735 = vmul.f32 %v463, %v3675
      %v3736 = vmul.f32 %v468, %v3675
      %v3737 = vmul.f32 %v473, %v3675
      %v3738 = vmul.f32 %v478, %v3675
      %v3739 = vmul.f32 %v483, %v3675
      %v3740 = vmul.f32 %v488, %v3675
      %v3741 = vmul.f32 %v493, %v3675
      %v3742 = vmul.f32 %v498, %v3675
      %v3743 = vmul.f32 %v503, %v3675
      %v3744 = vmul.f32 %v508, %v3675
      %v3745 = vmul.f32 %v513, %v3675
      %v3746 = vmul.f32 %v518, %v3675
      %v3747 = vmul.f32 %v523, %v3675
      %v3748 = vmul.f32 %v528, %v3675
      %v3749 = vmul.f32 %v533, %v3675
      %v3750 = vmul.f32 %v538, %v3675
      %v3751 = vmul.f32 %v543, %v3675
      %v3752 = vmul.f32 %v548, %v3675
      %v3753 = vmul.f32 %v553, %v3675
      %v3754 = vmul.f32 %v558, %v3675
      %v3755 = vmul.f32 %v563, %v3675
      %v3756 = vmul.f32 %v568, %v3675
      %v3757 = vmul.f32 %v573, %v3675
      %v3758 = vmul.f32 %v2263, %v3675
      %v3759 = vmul.f32 %v2268, %v3675
      %v3788 = vrot.slane %v3732, 1
      %v3789 = vrot.slane %v3733, 1
      %v3790 = vsel %vm1221, %v3788, %v3789
      %v3791 = vrot.slane %v3734, 1
      %v3792 = vrot.slane %v3735, 1
      %v3793 = vsel %vm1221, %v3791, %v3792
      %v3794 = vrot.slane %v3736, 1
      %v3795 = vrot.slane %v3737, 1
      %v3796 = vsel %vm1221, %v3794, %v3795
      %v3797 = vrot.slane %v3738, 1
      %v3798 = vrot.slane %v3739, 1
      %v3799 = vsel %vm1221, %v3797, %v3798
      %v3800 = vrot.slane %v3740, 1
      %v3801 = vrot.slane %v3741, 1
      %v3802 = vsel %vm1221, %v3800, %v3801
      %v3803 = vrot.slane %v3742, 1
      %v3804 = vrot.slane %v3743, 1
      %v3805 = vsel %vm1221, %v3803, %v3804
      %v3806 = vrot.slane %v3744, 1
      %v3807 = vrot.slane %v3745, 1
      %v3808 = vsel %vm1221, %v3806, %v3807
      %v3809 = vrot.slane %v3746, 1
      %v3810 = vrot.slane %v3747, 1
      %v3811 = vsel %vm1221, %v3809, %v3810
      %v3812 = vrot.slane %v3748, 1
      %v3813 = vrot.slane %v3749, 1
      %v3814 = vsel %vm1221, %v3812, %v3813
      %v3815 = vrot.slane %v3750, 1
      %v3816 = vrot.slane %v3751, 1
      %v3817 = vsel %vm1221, %v3815, %v3816
      %v3818 = vrot.slane %v3752, 1
      %v3819 = vrot.slane %v3753, 1
      %v3820 = vsel %vm1221, %v3818, %v3819
      %v3821 = vrot.slane %v3754, 1
      %v3822 = vrot.slane %v3755, 1
      %v3823 = vsel %vm1221, %v3821, %v3822
      %v3824 = vrot.slane %v3756, 1
      %v3825 = vrot.slane %v3757, 1
      %v3826 = vsel %vm1221, %v3824, %v3825
      %v3827 = vrot.slane %v3758, 1
      %v3828 = vrot.slane %v3759, 1
      %v3829 = vsel %vm1221, %v3827, %v3828
      %v3858 = vadd.f32 %v3515, %v3790
      %v3859 = vadd.f32 %v3516, %v3789
      %v3860 = vadd.f32 %v3517, %v3793
      %v3861 = vadd.f32 %v3518, %v3792
      %v3862 = vadd.f32 %v3519, %v3796
      %v3863 = vadd.f32 %v3520, %v3795
      %v3864 = vadd.f32 %v3521, %v3799
      %v3865 = vadd.f32 %v3522, %v3798
      %v3866 = vadd.f32 %v3523, %v3802
      %v3867 = vadd.f32 %v3524, %v3801
      %v3868 = vadd.f32 %v3525, %v3805
      %v3869 = vadd.f32 %v3526, %v3804
      %v3870 = vadd.f32 %v3527, %v3808
      %v3871 = vadd.f32 %v3528, %v3807
      %v3872 = vadd.f32 %v3529, %v3811
      %v3873 = vadd.f32 %v3530, %v3810
      %v3874 = vadd.f32 %v3531, %v3814
      %v3875 = vadd.f32 %v3532, %v3813
      %v3876 = vadd.f32 %v3533, %v3817
      %v3877 = vadd.f32 %v3534, %v3816
      %v3878 = vadd.f32 %v3535, %v3820
      %v3879 = vadd.f32 %v3536, %v3819
      %v3880 = vadd.f32 %v3537, %v3823
      %v3881 = vadd.f32 %v3538, %v3822
      %v3882 = vadd.f32 %v3539, %v3826
      %v3883 = vadd.f32 %v3540, %v3825
      %v3884 = vadd.f32 %v3541, %v3829
      %v3885 = vadd.f32 %v3542, %v3828
      %v3886 = vmul.f32 %v953, %v3675
      %v3887 = vmul.f32 %v958, %v3675
      %v3888 = vmul.f32 %v963, %v3675
      %v3889 = vmul.f32 %v968, %v3675
      %v3890 = vmul.f32 %v973, %v3675
      %v3891 = vmul.f32 %v978, %v3675
      %v3892 = vmul.f32 %v983, %v3675
      %v3893 = vmul.f32 %v988, %v3675
      %v3894 = vmul.f32 %v993, %v3675
      %v3895 = vmul.f32 %v998, %v3675
      %v3896 = vmul.f32 %v1003, %v3675
      %v3897 = vmul.f32 %v1008, %v3675
      %v3898 = vmul.f32 %v1013, %v3675
      %v3899 = vmul.f32 %v1018, %v3675
      %v3900 = vmul.f32 %v1023, %v3675
      %v3901 = vmul.f32 %v1028, %v3675
      %v3902 = vmul.f32 %v1033, %v3675
      %v3903 = vmul.f32 %v1038, %v3675
      %v3904 = vmul.f32 %v1043, %v3675
      %v3905 = vmul.f32 %v1048, %v3675
      %v3906 = vmul.f32 %v1053, %v3675
      %v3907 = vmul.f32 %v1058, %v3675
      %v3908 = vmul.f32 %v1063, %v3675
      %v3909 = vmul.f32 %v1068, %v3675
      %v3910 = vmul.f32 %v1073, %v3675
      %v3911 = vmul.f32 %v1078, %v3675
      %v3912 = vmul.f32 %v3612, %v3675
      %v3913 = vmul.f32 %v3617, %v3675
      %v3914 = vadd.f32 %v3581, %v3886
      %v3915 = vadd.f32 %v3582, %v3887
      %v3916 = vadd.f32 %v3583, %v3888
      %v3917 = vadd.f32 %v3584, %v3889
      %v3918 = vadd.f32 %v3585, %v3890
      %v3919 = vadd.f32 %v3586, %v3891
      %v3920 = vadd.f32 %v3587, %v3892
      %v3921 = vadd.f32 %v3588, %v3893
      %v3922 = vadd.f32 %v3589, %v3894
      %v3923 = vadd.f32 %v3590, %v3895
      %v3924 = vadd.f32 %v3591, %v3896
      %v3925 = vadd.f32 %v3592, %v3897
      %v3926 = vadd.f32 %v3593, %v3898
      %v3927 = vadd.f32 %v3594, %v3899
      %v3928 = vadd.f32 %v3595, %v3900
      %v3929 = vadd.f32 %v3596, %v3901
      %v3930 = vadd.f32 %v3597, %v3902
      %v3931 = vadd.f32 %v3598, %v3903
      %v3932 = vadd.f32 %v3599, %v3904
      %v3933 = vadd.f32 %v3600, %v3905
      %v3934 = vadd.f32 %v3601, %v3906
      %v3935 = vadd.f32 %v3602, %v3907
      %v3936 = vadd.f32 %v3603, %v3908
      %v3937 = vadd.f32 %v3604, %v3909
      %v3938 = vadd.f32 %v3605, %v3910
      %v3939 = vadd.f32 %v3606, %v3911
      %v3940 = vadd.f32 %v3607, %v3912
      %v3941 = vadd.f32 %v3608, %v3913
      %v3942 = vmul.f32 %v785, %v3675
      %v3943 = vmul.f32 %v790, %v3675
      %v3944 = vmul.f32 %v795, %v3675
      %v3945 = vmul.f32 %v800, %v3675
      %v3946 = vmul.f32 %v805, %v3675
      %v3947 = vmul.f32 %v810, %v3675
      %v3948 = vmul.f32 %v815, %v3675
      %v3949 = vmul.f32 %v820, %v3675
      %v3950 = vmul.f32 %v825, %v3675
      %v3951 = vmul.f32 %v830, %v3675
      %v3952 = vmul.f32 %v835, %v3675
      %v3953 = vmul.f32 %v840, %v3675
      %v3954 = vmul.f32 %v845, %v3675
      %v3955 = vmul.f32 %v850, %v3675
      %v3956 = vmul.f32 %v855, %v3675
      %v3957 = vmul.f32 %v860, %v3675
      %v3958 = vmul.f32 %v865, %v3675
      %v3959 = vmul.f32 %v870, %v3675
      %v3960 = vmul.f32 %v875, %v3675
      %v3961 = vmul.f32 %v880, %v3675
      %v3962 = vmul.f32 %v885, %v3675
      %v3963 = vmul.f32 %v890, %v3675
      %v3964 = vmul.f32 %v895, %v3675
      %v3965 = vmul.f32 %v900, %v3675
      %v3966 = vmul.f32 %v905, %v3675
      %v3967 = vmul.f32 %v910, %v3675
      %v3968 = vmul.f32 %v3546, %v3675
      %v3969 = vmul.f32 %v3551, %v3675
      %v3998 = vrot.slane %v3942, 1
      %v3999 = vrot.slane %v3943, 1
      %v4000 = vsel %vm1221, %v3998, %v3999
      %v4001 = vrot.slane %v3944, 1
      %v4002 = vrot.slane %v3945, 1
      %v4003 = vsel %vm1221, %v4001, %v4002
      %v4004 = vrot.slane %v3946, 1
      %v4005 = vrot.slane %v3947, 1
      %v4006 = vsel %vm1221, %v4004, %v4005
      %v4007 = vrot.slane %v3948, 1
      %v4008 = vrot.slane %v3949, 1
      %v4009 = vsel %vm1221, %v4007, %v4008
      %v4010 = vrot.slane %v3950, 1
      %v4011 = vrot.slane %v3951, 1
      %v4012 = vsel %vm1221, %v4010, %v4011
      %v4013 = vrot.slane %v3952, 1
      %v4014 = vrot.slane %v3953, 1
      %v4015 = vsel %vm1221, %v4013, %v4014
      %v4016 = vrot.slane %v3954, 1
      %v4017 = vrot.slane %v3955, 1
      %v4018 = vsel %vm1221, %v4016, %v4017
      %v4019 = vrot.slane %v3956, 1
      %v4020 = vrot.slane %v3957, 1
      %v4021 = vsel %vm1221, %v4019, %v4020
      %v4022 = vrot.slane %v3958, 1
      %v4023 = vrot.slane %v3959, 1
      %v4024 = vsel %vm1221, %v4022, %v4023
      %v4025 = vrot.slane %v3960, 1
      %v4026 = vrot.slane %v3961, 1
      %v4027 = vsel %vm1221, %v4025, %v4026
      %v4028 = vrot.slane %v3962, 1
      %v4029 = vrot.slane %v3963, 1
      %v4030 = vsel %vm1221, %v4028, %v4029
      %v4031 = vrot.slane %v3964, 1
      %v4032 = vrot.slane %v3965, 1
      %v4033 = vsel %vm1221, %v4031, %v4032
      %v4034 = vrot.slane %v3966, 1
      %v4035 = vrot.slane %v3967, 1
      %v4036 = vsel %vm1221, %v4034, %v4035
      %v4037 = vrot.slane %v3968, 1
      %v4038 = vrot.slane %v3969, 1
      %v4039 = vsel %vm1221, %v4037, %v4038
      %v4068 = vadd.f32 %v3647, %v4000
      %v4069 = vadd.f32 %v3648, %v3999
      %v4070 = vadd.f32 %v3649, %v4003
      %v4071 = vadd.f32 %v3650, %v4002
      %v4072 = vadd.f32 %v3651, %v4006
      %v4073 = vadd.f32 %v3652, %v4005
      %v4074 = vadd.f32 %v3653, %v4009
      %v4075 = vadd.f32 %v3654, %v4008
      %v4076 = vadd.f32 %v3655, %v4012
      %v4077 = vadd.f32 %v3656, %v4011
      %v4078 = vadd.f32 %v3657, %v4015
      %v4079 = vadd.f32 %v3658, %v4014
      %v4080 = vadd.f32 %v3659, %v4018
      %v4081 = vadd.f32 %v3660, %v4017
      %v4082 = vadd.f32 %v3661, %v4021
      %v4083 = vadd.f32 %v3662, %v4020
      %v4084 = vadd.f32 %v3663, %v4024
      %v4085 = vadd.f32 %v3664, %v4023
      %v4086 = vadd.f32 %v3665, %v4027
      %v4087 = vadd.f32 %v3666, %v4026
      %v4088 = vadd.f32 %v3667, %v4030
      %v4089 = vadd.f32 %v3668, %v4029
      %v4090 = vadd.f32 %v3669, %v4033
      %v4091 = vadd.f32 %v3670, %v4032
      %v4092 = vadd.f32 %v3671, %v4036
      %v4093 = vadd.f32 %v3672, %v4035
      %v4094 = vadd.f32 %v3673, %v4039
      %v4095 = vadd.f32 %v3674, %v4038
      %v4096 = vperm.slane %v433, 0
      %v4097 = vmul.f32 %v448, %v4096
      %v4098 = vmul.f32 %v453, %v4096
      %v4099 = vmul.f32 %v458, %v4096
      %v4100 = vmul.f32 %v463, %v4096
      %v4101 = vmul.f32 %v468, %v4096
      %v4102 = vmul.f32 %v473, %v4096
      %v4103 = vmul.f32 %v478, %v4096
      %v4104 = vmul.f32 %v483, %v4096
      %v4105 = vmul.f32 %v488, %v4096
      %v4106 = vmul.f32 %v493, %v4096
      %v4107 = vmul.f32 %v498, %v4096
      %v4108 = vmul.f32 %v503, %v4096
      %v4109 = vmul.f32 %v508, %v4096
      %v4110 = vmul.f32 %v513, %v4096
      %v4111 = vmul.f32 %v518, %v4096
      %v4112 = vmul.f32 %v523, %v4096
      %v4113 = vmul.f32 %v528, %v4096
      %v4114 = vmul.f32 %v533, %v4096
      %v4115 = vmul.f32 %v538, %v4096
      %v4116 = vmul.f32 %v543, %v4096
      %v4117 = vmul.f32 %v548, %v4096
      %v4118 = vmul.f32 %v553, %v4096
      %v4119 = vmul.f32 %v558, %v4096
      %v4120 = vmul.f32 %v563, %v4096
      %v4121 = vmul.f32 %v568, %v4096
      %v4122 = vmul.f32 %v573, %v4096
      %v4123 = vmul.f32 %v2263, %v4096
      %v4124 = vmul.f32 %v2268, %v4096
      %v4153 = vrot.slane %v4097, 1
      %v4154 = vrot.slane %v4098, 1
      %v4155 = vsel %vm1221, %v4153, %v4154
      %v4156 = vrot.slane %v4099, 1
      %v4157 = vrot.slane %v4100, 1
      %v4158 = vsel %vm1221, %v4156, %v4157
      %v4159 = vrot.slane %v4101, 1
      %v4160 = vrot.slane %v4102, 1
      %v4161 = vsel %vm1221, %v4159, %v4160
      %v4162 = vrot.slane %v4103, 1
      %v4163 = vrot.slane %v4104, 1
      %v4164 = vsel %vm1221, %v4162, %v4163
      %v4165 = vrot.slane %v4105, 1
      %v4166 = vrot.slane %v4106, 1
      %v4167 = vsel %vm1221, %v4165, %v4166
      %v4168 = vrot.slane %v4107, 1
      %v4169 = vrot.slane %v4108, 1
      %v4170 = vsel %vm1221, %v4168, %v4169
      %v4171 = vrot.slane %v4109, 1
      %v4172 = vrot.slane %v4110, 1
      %v4173 = vsel %vm1221, %v4171, %v4172
      %v4174 = vrot.slane %v4111, 1
      %v4175 = vrot.slane %v4112, 1
      %v4176 = vsel %vm1221, %v4174, %v4175
      %v4177 = vrot.slane %v4113, 1
      %v4178 = vrot.slane %v4114, 1
      %v4179 = vsel %vm1221, %v4177, %v4178
      %v4180 = vrot.slane %v4115, 1
      %v4181 = vrot.slane %v4116, 1
      %v4182 = vsel %vm1221, %v4180, %v4181
      %v4183 = vrot.slane %v4117, 1
      %v4184 = vrot.slane %v4118, 1
      %v4185 = vsel %vm1221, %v4183, %v4184
      %v4186 = vrot.slane %v4119, 1
      %v4187 = vrot.slane %v4120, 1
      %v4188 = vsel %vm1221, %v4186, %v4187
      %v4189 = vrot.slane %v4121, 1
      %v4190 = vrot.slane %v4122, 1
      %v4191 = vsel %vm1221, %v4189, %v4190
      %v4192 = vrot.slane %v4123, 1
      %v4193 = vrot.slane %v4124, 1
      %v4194 = vsel %vm1221, %v4192, %v4193
      %v4223 = vadd.f32 %v3704, %v4155
      %v4224 = vadd.f32 %v3705, %v4154
      %v4225 = vadd.f32 %v3706, %v4158
      %v4226 = vadd.f32 %v3707, %v4157
      %v4227 = vadd.f32 %v3708, %v4161
      %v4228 = vadd.f32 %v3709, %v4160
      %v4229 = vadd.f32 %v3710, %v4164
      %v4230 = vadd.f32 %v3711, %v4163
      %v4231 = vadd.f32 %v3712, %v4167
      %v4232 = vadd.f32 %v3713, %v4166
      %v4233 = vadd.f32 %v3714, %v4170
      %v4234 = vadd.f32 %v3715, %v4169
      %v4235 = vadd.f32 %v3716, %v4173
      %v4236 = vadd.f32 %v3717, %v4172
      %v4237 = vadd.f32 %v3718, %v4176
      %v4238 = vadd.f32 %v3719, %v4175
      %v4239 = vadd.f32 %v3720, %v4179
      %v4240 = vadd.f32 %v3721, %v4178
      %v4241 = vadd.f32 %v3722, %v4182
      %v4242 = vadd.f32 %v3723, %v4181
      %v4243 = vadd.f32 %v3724, %v4185
      %v4244 = vadd.f32 %v3725, %v4184
      %v4245 = vadd.f32 %v3726, %v4188
      %v4246 = vadd.f32 %v3727, %v4187
      %v4247 = vadd.f32 %v3728, %v4191
      %v4248 = vadd.f32 %v3729, %v4190
      %v4249 = vadd.f32 %v3730, %v4194
      %v4250 = vadd.f32 %v3731, %v4193
      %v4251 = vmul.f32 %v617, %v4096
      %v4252 = vmul.f32 %v622, %v4096
      %v4253 = vmul.f32 %v627, %v4096
      %v4254 = vmul.f32 %v632, %v4096
      %v4255 = vmul.f32 %v637, %v4096
      %v4256 = vmul.f32 %v642, %v4096
      %v4257 = vmul.f32 %v647, %v4096
      %v4258 = vmul.f32 %v652, %v4096
      %v4259 = vmul.f32 %v657, %v4096
      %v4260 = vmul.f32 %v662, %v4096
      %v4261 = vmul.f32 %v667, %v4096
      %v4262 = vmul.f32 %v672, %v4096
      %v4263 = vmul.f32 %v677, %v4096
      %v4264 = vmul.f32 %v682, %v4096
      %v4265 = vmul.f32 %v687, %v4096
      %v4266 = vmul.f32 %v692, %v4096
      %v4267 = vmul.f32 %v697, %v4096
      %v4268 = vmul.f32 %v702, %v4096
      %v4269 = vmul.f32 %v707, %v4096
      %v4270 = vmul.f32 %v712, %v4096
      %v4271 = vmul.f32 %v717, %v4096
      %v4272 = vmul.f32 %v722, %v4096
      %v4273 = vmul.f32 %v727, %v4096
      %v4274 = vmul.f32 %v732, %v4096
      %v4275 = vmul.f32 %v737, %v4096
      %v4276 = vmul.f32 %v742, %v4096
      %v4277 = vmul.f32 %v2329, %v4096
      %v4278 = vmul.f32 %v2334, %v4096
      %v4307 = vrot.slane %v4251, 1
      %v4308 = vrot.slane %v4252, 1
      %v4309 = vsel %vm1221, %v4307, %v4308
      %v4310 = vrot.slane %v4253, 1
      %v4311 = vrot.slane %v4254, 1
      %v4312 = vsel %vm1221, %v4310, %v4311
      %v4313 = vrot.slane %v4255, 1
      %v4314 = vrot.slane %v4256, 1
      %v4315 = vsel %vm1221, %v4313, %v4314
      %v4316 = vrot.slane %v4257, 1
      %v4317 = vrot.slane %v4258, 1
      %v4318 = vsel %vm1221, %v4316, %v4317
      %v4319 = vrot.slane %v4259, 1
      %v4320 = vrot.slane %v4260, 1
      %v4321 = vsel %vm1221, %v4319, %v4320
      %v4322 = vrot.slane %v4261, 1
      %v4323 = vrot.slane %v4262, 1
      %v4324 = vsel %vm1221, %v4322, %v4323
      %v4325 = vrot.slane %v4263, 1
      %v4326 = vrot.slane %v4264, 1
      %v4327 = vsel %vm1221, %v4325, %v4326
      %v4328 = vrot.slane %v4265, 1
      %v4329 = vrot.slane %v4266, 1
      %v4330 = vsel %vm1221, %v4328, %v4329
      %v4331 = vrot.slane %v4267, 1
      %v4332 = vrot.slane %v4268, 1
      %v4333 = vsel %vm1221, %v4331, %v4332
      %v4334 = vrot.slane %v4269, 1
      %v4335 = vrot.slane %v4270, 1
      %v4336 = vsel %vm1221, %v4334, %v4335
      %v4337 = vrot.slane %v4271, 1
      %v4338 = vrot.slane %v4272, 1
      %v4339 = vsel %vm1221, %v4337, %v4338
      %v4340 = vrot.slane %v4273, 1
      %v4341 = vrot.slane %v4274, 1
      %v4342 = vsel %vm1221, %v4340, %v4341
      %v4343 = vrot.slane %v4275, 1
      %v4344 = vrot.slane %v4276, 1
      %v4345 = vsel %vm1221, %v4343, %v4344
      %v4346 = vrot.slane %v4277, 1
      %v4347 = vrot.slane %v4278, 1
      %v4348 = vsel %vm1221, %v4346, %v4347
      %v4377 = vadd.f32 %v3858, %v4309
      %v4378 = vadd.f32 %v3859, %v4308
      %v4379 = vadd.f32 %v3860, %v4312
      %v4380 = vadd.f32 %v3861, %v4311
      %v4381 = vadd.f32 %v3862, %v4315
      %v4382 = vadd.f32 %v3863, %v4314
      %v4383 = vadd.f32 %v3864, %v4318
      %v4384 = vadd.f32 %v3865, %v4317
      %v4385 = vadd.f32 %v3866, %v4321
      %v4386 = vadd.f32 %v3867, %v4320
      %v4387 = vadd.f32 %v3868, %v4324
      %v4388 = vadd.f32 %v3869, %v4323
      %v4389 = vadd.f32 %v3870, %v4327
      %v4390 = vadd.f32 %v3871, %v4326
      %v4391 = vadd.f32 %v3872, %v4330
      %v4392 = vadd.f32 %v3873, %v4329
      %v4393 = vadd.f32 %v3874, %v4333
      %v4394 = vadd.f32 %v3875, %v4332
      %v4395 = vadd.f32 %v3876, %v4336
      %v4396 = vadd.f32 %v3877, %v4335
      %v4397 = vadd.f32 %v3878, %v4339
      %v4398 = vadd.f32 %v3879, %v4338
      %v4399 = vadd.f32 %v3880, %v4342
      %v4400 = vadd.f32 %v3881, %v4341
      %v4401 = vadd.f32 %v3882, %v4345
      %v4402 = vadd.f32 %v3883, %v4344
      %v4403 = vadd.f32 %v3884, %v4348
      %v4404 = vadd.f32 %v3885, %v4347
      %v4405 = vmul.f32 %v785, %v4096
      %v4406 = vmul.f32 %v790, %v4096
      %v4407 = vmul.f32 %v795, %v4096
      %v4408 = vmul.f32 %v800, %v4096
      %v4409 = vmul.f32 %v805, %v4096
      %v4410 = vmul.f32 %v810, %v4096
      %v4411 = vmul.f32 %v815, %v4096
      %v4412 = vmul.f32 %v820, %v4096
      %v4413 = vmul.f32 %v825, %v4096
      %v4414 = vmul.f32 %v830, %v4096
      %v4415 = vmul.f32 %v835, %v4096
      %v4416 = vmul.f32 %v840, %v4096
      %v4417 = vmul.f32 %v845, %v4096
      %v4418 = vmul.f32 %v850, %v4096
      %v4419 = vmul.f32 %v855, %v4096
      %v4420 = vmul.f32 %v860, %v4096
      %v4421 = vmul.f32 %v865, %v4096
      %v4422 = vmul.f32 %v870, %v4096
      %v4423 = vmul.f32 %v875, %v4096
      %v4424 = vmul.f32 %v880, %v4096
      %v4425 = vmul.f32 %v885, %v4096
      %v4426 = vmul.f32 %v890, %v4096
      %v4427 = vmul.f32 %v895, %v4096
      %v4428 = vmul.f32 %v900, %v4096
      %v4429 = vmul.f32 %v905, %v4096
      %v4430 = vmul.f32 %v910, %v4096
      %v4431 = vmul.f32 %v3546, %v4096
      %v4432 = vmul.f32 %v3551, %v4096
      %v4461 = vrot.slane %v4405, 1
      %v4462 = vrot.slane %v4406, 1
      %v4463 = vsel %vm1221, %v4461, %v4462
      %v4464 = vrot.slane %v4407, 1
      %v4465 = vrot.slane %v4408, 1
      %v4466 = vsel %vm1221, %v4464, %v4465
      %v4467 = vrot.slane %v4409, 1
      %v4468 = vrot.slane %v4410, 1
      %v4469 = vsel %vm1221, %v4467, %v4468
      %v4470 = vrot.slane %v4411, 1
      %v4471 = vrot.slane %v4412, 1
      %v4472 = vsel %vm1221, %v4470, %v4471
      %v4473 = vrot.slane %v4413, 1
      %v4474 = vrot.slane %v4414, 1
      %v4475 = vsel %vm1221, %v4473, %v4474
      %v4476 = vrot.slane %v4415, 1
      %v4477 = vrot.slane %v4416, 1
      %v4478 = vsel %vm1221, %v4476, %v4477
      %v4479 = vrot.slane %v4417, 1
      %v4480 = vrot.slane %v4418, 1
      %v4481 = vsel %vm1221, %v4479, %v4480
      %v4482 = vrot.slane %v4419, 1
      %v4483 = vrot.slane %v4420, 1
      %v4484 = vsel %vm1221, %v4482, %v4483
      %v4485 = vrot.slane %v4421, 1
      %v4486 = vrot.slane %v4422, 1
      %v4487 = vsel %vm1221, %v4485, %v4486
      %v4488 = vrot.slane %v4423, 1
      %v4489 = vrot.slane %v4424, 1
      %v4490 = vsel %vm1221, %v4488, %v4489
      %v4491 = vrot.slane %v4425, 1
      %v4492 = vrot.slane %v4426, 1
      %v4493 = vsel %vm1221, %v4491, %v4492
      %v4494 = vrot.slane %v4427, 1
      %v4495 = vrot.slane %v4428, 1
      %v4496 = vsel %vm1221, %v4494, %v4495
      %v4497 = vrot.slane %v4429, 1
      %v4498 = vrot.slane %v4430, 1
      %v4499 = vsel %vm1221, %v4497, %v4498
      %v4500 = vrot.slane %v4431, 1
      %v4501 = vrot.slane %v4432, 1
      %v4502 = vsel %vm1221, %v4500, %v4501
      %v4531 = vadd.f32 %v3914, %v4463
      %v4532 = vadd.f32 %v3915, %v4462
      %v4533 = vadd.f32 %v3916, %v4466
      %v4534 = vadd.f32 %v3917, %v4465
      %v4535 = vadd.f32 %v3918, %v4469
      %v4536 = vadd.f32 %v3919, %v4468
      %v4537 = vadd.f32 %v3920, %v4472
      %v4538 = vadd.f32 %v3921, %v4471
      %v4539 = vadd.f32 %v3922, %v4475
      %v4540 = vadd.f32 %v3923, %v4474
      %v4541 = vadd.f32 %v3924, %v4478
      %v4542 = vadd.f32 %v3925, %v4477
      %v4543 = vadd.f32 %v3926, %v4481
      %v4544 = vadd.f32 %v3927, %v4480
      %v4545 = vadd.f32 %v3928, %v4484
      %v4546 = vadd.f32 %v3929, %v4483
      %v4547 = vadd.f32 %v3930, %v4487
      %v4548 = vadd.f32 %v3931, %v4486
      %v4549 = vadd.f32 %v3932, %v4490
      %v4550 = vadd.f32 %v3933, %v4489
      %v4551 = vadd.f32 %v3934, %v4493
      %v4552 = vadd.f32 %v3935, %v4492
      %v4553 = vadd.f32 %v3936, %v4496
      %v4554 = vadd.f32 %v3937, %v4495
      %v4555 = vadd.f32 %v3938, %v4499
      %v4556 = vadd.f32 %v3939, %v4498
      %v4557 = vadd.f32 %v3940, %v4502
      %v4558 = vadd.f32 %v3941, %v4501
      %v4559 = vmul.f32 %v953, %v4096
      %v4560 = vmul.f32 %v958, %v4096
      %v4561 = vmul.f32 %v963, %v4096
      %v4562 = vmul.f32 %v968, %v4096
      %v4563 = vmul.f32 %v973, %v4096
      %v4564 = vmul.f32 %v978, %v4096
      %v4565 = vmul.f32 %v983, %v4096
      %v4566 = vmul.f32 %v988, %v4096
      %v4567 = vmul.f32 %v993, %v4096
      %v4568 = vmul.f32 %v998, %v4096
      %v4569 = vmul.f32 %v1003, %v4096
      %v4570 = vmul.f32 %v1008, %v4096
      %v4571 = vmul.f32 %v1013, %v4096
      %v4572 = vmul.f32 %v1018, %v4096
      %v4573 = vmul.f32 %v1023, %v4096
      %v4574 = vmul.f32 %v1028, %v4096
      %v4575 = vmul.f32 %v1033, %v4096
      %v4576 = vmul.f32 %v1038, %v4096
      %v4577 = vmul.f32 %v1043, %v4096
      %v4578 = vmul.f32 %v1048, %v4096
      %v4579 = vmul.f32 %v1053, %v4096
      %v4580 = vmul.f32 %v1058, %v4096
      %v4581 = vmul.f32 %v1063, %v4096
      %v4582 = vmul.f32 %v1068, %v4096
      %v4583 = vmul.f32 %v1073, %v4096
      %v4584 = vmul.f32 %v1078, %v4096
      %v4585 = vmul.f32 %v3612, %v4096
      %v4586 = vmul.f32 %v3617, %v4096
      %v4615 = vrot.slane %v4559, 1
      %v4616 = vrot.slane %v4560, 1
      %v4617 = vsel %vm1221, %v4615, %v4616
      %v4618 = vrot.slane %v4561, 1
      %v4619 = vrot.slane %v4562, 1
      %v4620 = vsel %vm1221, %v4618, %v4619
      %v4621 = vrot.slane %v4563, 1
      %v4622 = vrot.slane %v4564, 1
      %v4623 = vsel %vm1221, %v4621, %v4622
      %v4624 = vrot.slane %v4565, 1
      %v4625 = vrot.slane %v4566, 1
      %v4626 = vsel %vm1221, %v4624, %v4625
      %v4627 = vrot.slane %v4567, 1
      %v4628 = vrot.slane %v4568, 1
      %v4629 = vsel %vm1221, %v4627, %v4628
      %v4630 = vrot.slane %v4569, 1
      %v4631 = vrot.slane %v4570, 1
      %v4632 = vsel %vm1221, %v4630, %v4631
      %v4633 = vrot.slane %v4571, 1
      %v4634 = vrot.slane %v4572, 1
      %v4635 = vsel %vm1221, %v4633, %v4634
      %v4636 = vrot.slane %v4573, 1
      %v4637 = vrot.slane %v4574, 1
      %v4638 = vsel %vm1221, %v4636, %v4637
      %v4639 = vrot.slane %v4575, 1
      %v4640 = vrot.slane %v4576, 1
      %v4641 = vsel %vm1221, %v4639, %v4640
      %v4642 = vrot.slane %v4577, 1
      %v4643 = vrot.slane %v4578, 1
      %v4644 = vsel %vm1221, %v4642, %v4643
      %v4645 = vrot.slane %v4579, 1
      %v4646 = vrot.slane %v4580, 1
      %v4647 = vsel %vm1221, %v4645, %v4646
      %v4648 = vrot.slane %v4581, 1
      %v4649 = vrot.slane %v4582, 1
      %v4650 = vsel %vm1221, %v4648, %v4649
      %v4651 = vrot.slane %v4583, 1
      %v4652 = vrot.slane %v4584, 1
      %v4653 = vsel %vm1221, %v4651, %v4652
      %v4654 = vrot.slane %v4585, 1
      %v4655 = vrot.slane %v4586, 1
      %v4656 = vsel %vm1221, %v4654, %v4655
      %v4685 = vadd.f32 %v4068, %v4617
      %v4686 = vadd.f32 %v4069, %v4616
      %v4687 = vadd.f32 %v4070, %v4620
      %v4688 = vadd.f32 %v4071, %v4619
      %v4689 = vadd.f32 %v4072, %v4623
      %v4690 = vadd.f32 %v4073, %v4622
      %v4691 = vadd.f32 %v4074, %v4626
      %v4692 = vadd.f32 %v4075, %v4625
      %v4693 = vadd.f32 %v4076, %v4629
      %v4694 = vadd.f32 %v4077, %v4628
      %v4695 = vadd.f32 %v4078, %v4632
      %v4696 = vadd.f32 %v4079, %v4631
      %v4697 = vadd.f32 %v4080, %v4635
      %v4698 = vadd.f32 %v4081, %v4634
      %v4699 = vadd.f32 %v4082, %v4638
      %v4700 = vadd.f32 %v4083, %v4637
      %v4701 = vadd.f32 %v4084, %v4641
      %v4702 = vadd.f32 %v4085, %v4640
      %v4703 = vadd.f32 %v4086, %v4644
      %v4704 = vadd.f32 %v4087, %v4643
      %v4705 = vadd.f32 %v4088, %v4647
      %v4706 = vadd.f32 %v4089, %v4646
      %v4707 = vadd.f32 %v4090, %v4650
      %v4708 = vadd.f32 %v4091, %v4649
      %v4709 = vadd.f32 %v4092, %v4653
      %v4710 = vadd.f32 %v4093, %v4652
      %v4711 = vadd.f32 %v4094, %v4656
      %v4712 = vadd.f32 %v4095, %v4655
      %v4713 = vmax.f32 %v4223, %v4377
      %v4714 = vmax.f32 %v4224, %v4378
      %v4715 = vmax.f32 %v4225, %v4379
      %v4716 = vmax.f32 %v4226, %v4380
      %v4717 = vmax.f32 %v4227, %v4381
      %v4718 = vmax.f32 %v4228, %v4382
      %v4719 = vmax.f32 %v4229, %v4383
      %v4720 = vmax.f32 %v4230, %v4384
      %v4721 = vmax.f32 %v4231, %v4385
      %v4722 = vmax.f32 %v4232, %v4386
      %v4723 = vmax.f32 %v4233, %v4387
      %v4724 = vmax.f32 %v4234, %v4388
      %v4725 = vmax.f32 %v4235, %v4389
      %v4726 = vmax.f32 %v4236, %v4390
      %v4727 = vmax.f32 %v4237, %v4391
      %v4728 = vmax.f32 %v4238, %v4392
      %v4729 = vmax.f32 %v4239, %v4393
      %v4730 = vmax.f32 %v4240, %v4394
      %v4731 = vmax.f32 %v4241, %v4395
      %v4732 = vmax.f32 %v4242, %v4396
      %v4733 = vmax.f32 %v4243, %v4397
      %v4734 = vmax.f32 %v4244, %v4398
      %v4735 = vmax.f32 %v4245, %v4399
      %v4736 = vmax.f32 %v4246, %v4400
      %v4737 = vmax.f32 %v4247, %v4401
      %v4738 = vmax.f32 %v4248, %v4402
      %v4739 = vmax.f32 %v4249, %v4403
      %v4740 = vmax.f32 %v4250, %v4404
      %v4741 = vmax.f32 %v4531, %v4685
      %v4742 = vmax.f32 %v4532, %v4686
      %v4743 = vmax.f32 %v4533, %v4687
      %v4744 = vmax.f32 %v4534, %v4688
      %v4745 = vmax.f32 %v4535, %v4689
      %v4746 = vmax.f32 %v4536, %v4690
      %v4747 = vmax.f32 %v4537, %v4691
      %v4748 = vmax.f32 %v4538, %v4692
      %v4749 = vmax.f32 %v4539, %v4693
      %v4750 = vmax.f32 %v4540, %v4694
      %v4751 = vmax.f32 %v4541, %v4695
      %v4752 = vmax.f32 %v4542, %v4696
      %v4753 = vmax.f32 %v4543, %v4697
      %v4754 = vmax.f32 %v4544, %v4698
      %v4755 = vmax.f32 %v4545, %v4699
      %v4756 = vmax.f32 %v4546, %v4700
      %v4757 = vmax.f32 %v4547, %v4701
      %v4758 = vmax.f32 %v4548, %v4702
      %v4759 = vmax.f32 %v4549, %v4703
      %v4760 = vmax.f32 %v4550, %v4704
      %v4761 = vmax.f32 %v4551, %v4705
      %v4762 = vmax.f32 %v4552, %v4706
      %v4763 = vmax.f32 %v4553, %v4707
      %v4764 = vmax.f32 %v4554, %v4708
      %v4765 = vmax.f32 %v4555, %v4709
      %v4766 = vmax.f32 %v4556, %v4710
      %v4767 = vmax.f32 %v4557, %v4711
      %v4768 = vmax.f32 %v4558, %v4712
      %v4769 = vmax.f32 %v4713, %v4741
      %v4770 = vmax.f32 %v4714, %v4742
      %v4771 = vmax.f32 %v4715, %v4743
      %v4772 = vmax.f32 %v4716, %v4744
      %v4773 = vmax.f32 %v4717, %v4745
      %v4774 = vmax.f32 %v4718, %v4746
      %v4775 = vmax.f32 %v4719, %v4747
      %v4776 = vmax.f32 %v4720, %v4748
      %v4777 = vmax.f32 %v4721, %v4749
      %v4778 = vmax.f32 %v4722, %v4750
      %v4779 = vmax.f32 %v4723, %v4751
      %v4780 = vmax.f32 %v4724, %v4752
      %v4781 = vmax.f32 %v4725, %v4753
      %v4782 = vmax.f32 %v4726, %v4754
      %v4783 = vmax.f32 %v4727, %v4755
      %v4784 = vmax.f32 %v4728, %v4756
      %v4785 = vmax.f32 %v4729, %v4757
      %v4786 = vmax.f32 %v4730, %v4758
      %v4787 = vmax.f32 %v4731, %v4759
      %v4788 = vmax.f32 %v4732, %v4760
      %v4789 = vmax.f32 %v4733, %v4761
      %v4790 = vmax.f32 %v4734, %v4762
      %v4791 = vmax.f32 %v4735, %v4763
      %v4792 = vmax.f32 %v4736, %v4764
      %v4793 = vmax.f32 %v4737, %v4765
      %v4794 = vmax.f32 %v4738, %v4766
      %v4795 = vmax.f32 %v4739, %v4767
      %v4796 = vmax.f32 %v4740, %v4768
      %v4798 = vperm.slane %v434, 0
      %v4800 = vadd.f32 %v4769, %v4798
      %v4801 = vadd.f32 %v4770, %v4798
      %v4802 = vadd.f32 %v4771, %v4798
      %v4803 = vadd.f32 %v4772, %v4798
      %v4804 = vadd.f32 %v4773, %v4798
      %v4805 = vadd.f32 %v4774, %v4798
      %v4806 = vadd.f32 %v4775, %v4798
      %v4807 = vadd.f32 %v4776, %v4798
      %v4808 = vadd.f32 %v4777, %v4798
      %v4809 = vadd.f32 %v4778, %v4798
      %v4810 = vadd.f32 %v4779, %v4798
      %v4811 = vadd.f32 %v4780, %v4798
      %v4812 = vadd.f32 %v4781, %v4798
      %v4813 = vadd.f32 %v4782, %v4798
      %v4814 = vadd.f32 %v4783, %v4798
      %v4815 = vadd.f32 %v4784, %v4798
      %v4816 = vadd.f32 %v4785, %v4798
      %v4817 = vadd.f32 %v4786, %v4798
      %v4818 = vadd.f32 %v4787, %v4798
      %v4819 = vadd.f32 %v4788, %v4798
      %v4820 = vadd.f32 %v4789, %v4798
      %v4821 = vadd.f32 %v4790, %v4798
      %v4822 = vadd.f32 %v4791, %v4798
      %v4823 = vadd.f32 %v4792, %v4798
      %v4824 = vadd.f32 %v4793, %v4798
      %v4825 = vadd.f32 %v4794, %v4798
      %v4826 = vadd.f32 %v4795, %v4798
      %v4827 = vadd.f32 %v4796, %v4798
      %v4828 = vmax.f32 %v4800, 0.0
      %v4829 = vmax.f32 %v4801, 0.0
      %v4830 = vmax.f32 %v4802, 0.0
      %v4831 = vmax.f32 %v4803, 0.0
      %v4832 = vmax.f32 %v4804, 0.0
      %v4833 = vmax.f32 %v4805, 0.0
      %v4834 = vmax.f32 %v4806, 0.0
      %v4835 = vmax.f32 %v4807, 0.0
      %v4836 = vmax.f32 %v4808, 0.0
      %v4837 = vmax.f32 %v4809, 0.0
      %v4838 = vmax.f32 %v4810, 0.0
      %v4839 = vmax.f32 %v4811, 0.0
      %v4840 = vmax.f32 %v4812, 0.0
      %v4841 = vmax.f32 %v4813, 0.0
      %v4842 = vmax.f32 %v4814, 0.0
      %v4843 = vmax.f32 %v4815, 0.0
      %v4844 = vmax.f32 %v4816, 0.0
      %v4845 = vmax.f32 %v4817, 0.0
      %v4846 = vmax.f32 %v4818, 0.0
      %v4847 = vmax.f32 %v4819, 0.0
      %v4848 = vmax.f32 %v4820, 0.0
      %v4849 = vmax.f32 %v4821, 0.0
      %v4850 = vmax.f32 %v4822, 0.0
      %v4851 = vmax.f32 %v4823, 0.0
      %v4852 = vmax.f32 %v4824, 0.0
      %v4853 = vmax.f32 %v4825, 0.0
      %v4854 = vmax.f32 %v4826, 0.0
      %v4855 = vmax.f32 %v4827, 0.0
      %v4856 = vpack.c.bf16 %v4828, %v4828
      %v4857 = vpack.c.bf16 %v4829, %v4829
      %v4858 = vpack.c.bf16 %v4830, %v4830
      %v4859 = vpack.c.bf16 %v4831, %v4831
      %v4860 = vpack.c.bf16 %v4832, %v4832
      %v4861 = vpack.c.bf16 %v4833, %v4833
      %v4862 = vpack.c.bf16 %v4834, %v4834
      %v4863 = vpack.c.bf16 %v4835, %v4835
      %v4864 = vpack.c.bf16 %v4836, %v4836
      %v4865 = vpack.c.bf16 %v4837, %v4837
      %v4866 = vpack.c.bf16 %v4838, %v4838
      %v4867 = vpack.c.bf16 %v4839, %v4839
      %v4868 = vpack.c.bf16 %v4840, %v4840
      %v4869 = vpack.c.bf16 %v4841, %v4841
      %v4870 = vpack.c.bf16 %v4842, %v4842
      %v4871 = vpack.c.bf16 %v4843, %v4843
      %v4872 = vpack.c.bf16 %v4844, %v4844
      %v4873 = vpack.c.bf16 %v4845, %v4845
      %v4874 = vpack.c.bf16 %v4846, %v4846
      %v4875 = vpack.c.bf16 %v4847, %v4847
      %v4876 = vpack.c.bf16 %v4848, %v4848
      %v4877 = vpack.c.bf16 %v4849, %v4849
      %v4878 = vpack.c.bf16 %v4850, %v4850
      %v4879 = vpack.c.bf16 %v4851, %v4851
      %v4880 = vpack.c.bf16 %v4852, %v4852
      %v4881 = vpack.c.bf16 %v4853, %v4853
      %v4882 = vpack.c.bf16 %v4854, %v4854
      %v4883 = vpack.c.bf16 %v4855, %v4855
      %vm4884 = vcmask 125952
      %4885 = vst.msk [vmem:[%s311] sm:$0xf] %vm4884, %v4856
      %vm4886 = vcmask 124928
      %4887 = vst.msk [vmem:[%s311 + $0x4] sm:$0x7] %vm4886, %v4857
      %4888 = vst.msk [vmem:[%s311 + $0x8] sm:$0xf] %vm4884, %v4858
      %4889 = vst.msk [vmem:[%s311 + $0xc] sm:$0x7] %vm4886, %v4859
      %4890 = vst.msk [vmem:[%s311 + $0x10] sm:$0xf] %vm4884, %v4860
      %4891 = vst.msk [vmem:[%s311 + $0x14] sm:$0x7] %vm4886, %v4861
      %4892 = vst.msk [vmem:[%s311 + $0x18] sm:$0xf] %vm4884, %v4862
      %4893 = vst.msk [vmem:[%s311 + $0x1c] sm:$0x7] %vm4886, %v4863
      %4894 = vst.msk [vmem:[%s311 + $0x20] sm:$0xf] %vm4884, %v4864
      %4895 = vst.msk [vmem:[%s311 + $0x24] sm:$0x7] %vm4886, %v4865
      %4896 = vst.msk [vmem:[%s311 + $0x28] sm:$0xf] %vm4884, %v4866
      %4897 = vst.msk [vmem:[%s311 + $0x2c] sm:$0x7] %vm4886, %v4867
      %4898 = vst.msk [vmem:[%s311 + $0x30] sm:$0xf] %vm4884, %v4868
      %4899 = vst.msk [vmem:[%s311 + $0x34] sm:$0x7] %vm4886, %v4869
      %4900 = vst.msk [vmem:[%s311 + $0x38] sm:$0xf] %vm4884, %v4870
      %4901 = vst.msk [vmem:[%s311 + $0x3c] sm:$0x7] %vm4886, %v4871
      %4902 = vst.msk [vmem:[%s311 + $0x40] sm:$0xf] %vm4884, %v4872
      %4903 = vst.msk [vmem:[%s311 + $0x44] sm:$0x7] %vm4886, %v4873
      %4904 = vst.msk [vmem:[%s311 + $0x48] sm:$0xf] %vm4884, %v4874
      %4905 = vst.msk [vmem:[%s311 + $0x4c] sm:$0x7] %vm4886, %v4875
      %4906 = vst.msk [vmem:[%s311 + $0x50] sm:$0xf] %vm4884, %v4876
      %4907 = vst.msk [vmem:[%s311 + $0x54] sm:$0x7] %vm4886, %v4877
      %4908 = vst.msk [vmem:[%s311 + $0x58] sm:$0xf] %vm4884, %v4878
      %4909 = vst.msk [vmem:[%s311 + $0x5c] sm:$0x7] %vm4886, %v4879
      %4910 = vst.msk [vmem:[%s311 + $0x60] sm:$0xf] %vm4884, %v4880
      %4911 = vst.msk [vmem:[%s311 + $0x64] sm:$0x7] %vm4886, %v4881
      %4912 = vst.msk [vmem:[%s311 + $0x68] sm:$0xf] %vm4884, %v4882
      %4913 = vst.msk [vmem:[%s311 + $0x6c] sm:$0x7] %vm4886, %v4883
      %p4914 = scmp.lt.s32.totalorder %s17, 1
      %s4915 = scalar_select %p4914, %s17, 1
      %s4916 = smul.addr %s4915, 28
      %s4917 = smul.addr %s4916, 4
      %s4918 = scalar_lea.vmem %s6, %s4917
      // Predicated region
      $region45: #{cnn_forward.2} parent=43 // pred_check
        %p4919 = pneg %p181
      $region46: #{cnn_forward.2} parent=43 // pred_check_branch
        %4921 = sbr.rel (%p4919) target = $region48
      $region47: #{cnn_forward.2} parent=43 // pred_region
        _
      $region48: #{cnn_forward.2} parent=43 // pred_fallthru
        _
    $region44: #{cnn_forward.2} parent=5 // pred_fallthru
      _
    %p4922 = scmp.le.s32.totalorder 2, %s12
    // Predicated region
    $region49: #{cnn_forward.2} parent=5 // pred_check
      %p4923 = pneg %p4922
    $region50: #{cnn_forward.2} parent=5 // pred_check_branch
      %4925 = sbr.rel (%p4923) target = $region52
    $region51: #{cnn_forward.2} parent=5 // pred_region
      %s4926 = ssub.s32 %s12, 2
      // Predicated region
      $region53: #{cnn_forward.2} parent=51 // pred_check
        %p4927 = pneg %p187
      $region54: #{cnn_forward.2} parent=51 // pred_check_branch
        %4929 = sbr.rel (%p4927) target = $region56
      $region55: #{cnn_forward.2} parent=51 // pred_region
        %p4930 = scmp.lt.s32.totalorder %s18, 1
        %s4931 = scalar_select %p4930, %s18, 1
        %s4932 = smul.addr %s4931, 28
        %s4933 = smul.addr %s4932, 4
        %s4934 = scalar_lea.vmem %s6, %s4933
      $region56: #{cnn_forward.2} parent=51 // pred_fallthru
        _
    $region52: #{cnn_forward.2} parent=5 // pred_fallthru
      _
  $region6: #{cnn_forward.2} parent=0 // loop_footer
    %s16 = sadd.s32 1, %s12
  $region7: #{cnn_forward.2} parent=0 // loop_footer_branch
    %11 = sbr.rel target = $region3
  $region8: #{cnn_forward.2} parent=0 // loop_exit
    _

// kernel: cnn_forward.3
$region0: #{cnn_forward.3}
  #allocation0 [shape = 'u32[]', space=smem, size = 0x4, offset = 0x4, fixed_abs, tag = 'smem constant byte address 0x4 - core index']
  #allocation1 [shape = 'u32[72,128]{1,0:T(1,128)}', space=vmem, size = 0x9000, scoped, tag = 'internal scratch']
  %s0 = inlined_call_operand.vmem [shape: bf16[2,8,8,16], index: 0, kind: input, shape index: {}]
  %s1 = inlined_call_operand.vmem [shape: bf16[2,8,8,16], index: 1, kind: input, shape index: {}]
  %s2 = inlined_call_operand.vmem [shape: bf16[2,8,8,16], index: 2, kind: input, shape index: {}]
  %s3 = inlined_call_operand.vmem [shape: bf16[2,8,8,16], index: 3, kind: input, shape index: {}]
  %s4 = inlined_call_operand.vmem [shape: bf16[144,32], index: 4, kind: input, shape index: {}]
  %s5 = inlined_call_operand.vmem [shape: f32[1,32], index: 5, kind: input, shape index: {}]
  %s6 = inlined_call_operand.vmem [shape: bf16[1568,10], index: 6, kind: input, shape index: {}]
  %s7 = inlined_call_operand.vmem [shape: f32[1,10], index: 7, kind: input, shape index: {}]
  %s8 = inlined_call_operand.hbm [shape: f32[2,1,10], index: 8, kind: output, shape index: {}]
  %s9 = sld [smem:[#allocation0]]
  $region65: #{cnn_forward.3} parent=0
    _
  %s11 = ssub.s32 1, %s9
  %s12 = scalar_select 0, %s11, %s9
  $region1: #{cnn_forward.3} parent=0
    #allocation2 [shape = 'u8[1024]{0}', space=vmem, size = 0x400, scoped, tag = 'output window, operand 0']
    #allocation3 [shape = 's32[2]{0}', space=sflag, size = 0x8, scoped, tag = 'scoped memory for cnn_forward.3']
    %13 = vsyncpa [#allocation3], 0
    %s14 = scalar_lea.sflag [#allocation3], 1
    %15 = vsyncpa %s14, 0
    loop: start=0, step=1, limit=4
    $region2: #{cnn_forward.3} parent=1 // loop_pre_header
      _
    $region3: #{cnn_forward.3} parent=1 // loop_header
      %s17 = sphi 0, %s21
      %p18 = scmp.ge.s32.totalorder %s17, 4
      %s27 = sphi 0, %s29
      %s30 = sphi 0, %s27
      %s31 = sphi 0, %s30
      %s47 = sphi 0, %s31
      %s53 = sphi 0, %s55
      %s56 = sphi 0, %s53
      %s57 = sphi 0, %s56
      %s73 = sphi 0, %s57
      %s79 = sphi 0, %s81
      %s82 = sphi 0, %s79
      %s83 = sphi 0, %s82
      %s99 = sphi 0, %s83
      %s105 = sphi 0, %s107
      %s108 = sphi 0, %s105
      %s109 = sphi 0, %s108
      %s125 = sphi 0, %s109
      %s129 = sphi 0, %s129
      %s131 = sphi 0, %s129
      %s132 = sphi 0, %s131
      %s146 = sphi 0, %s132
      %s150 = sphi 0, %s150
      %s152 = sphi 0, %s150
      %s153 = sphi 0, %s152
      %s167 = sphi 0, %s153
      %s171 = sphi 0, %s171
      %s173 = sphi 0, %s171
      %s174 = sphi 0, %s173
      %s188 = sphi 0, %s174
      %s192 = sphi 0, %s192
      %s194 = sphi 0, %s192
      %s195 = sphi 0, %s194
      %s209 = sphi 0, %s195
      %s215 = sphi 0, %s217
      %s218 = sphi 0, %s215
      %s219 = sphi 0, %s218
      %s235 = sphi 0, %s219
    $region4: #{cnn_forward.3} parent=1 // loop_header_branch
      %20 = sbr.rel (%p18) target = $region8
    $region5: #{cnn_forward.3} parent=1 // loop_body
      %s22 = ssub.s32 %s17, 1
      %s23 = ssub.s32 %s17, 2
      %s24 = sadd.s32 %s17, 1
      %s25 = ssub.s32 %s17, %s24
      %p26 = scmp.eq.s32.totalorder %s25, 0
      %s28 = sadd.s32 %s27, 1
      %s29 = scalar_select %p26, %s27, %s28
      %p32 = pneg %p26
      %p33 = scmp.eq.s32.totalorder %s17, 1
      %p34 = por %p32, %p33
      %p35 = scmp.ne.s32.totalorder %s27, %s30
      %p36 = scmp.eq.s32.totalorder %s17, 0
      %p37 = por %p35, %p36
      %p38 = scmp.ne.s32.totalorder %s27, %s30
      %p39 = scmp.eq.s32.totalorder %s22, 1
      %p40 = por %p38, %p39
      %p41 = scmp.ne.s32.totalorder %s30, %s31
      %p42 = scmp.eq.s32.totalorder %s22, 0
      %p43 = por %p41, %p42
      %p44 = scmp.ne.s32.totalorder %s30, %s31
      %p45 = scmp.eq.s32.totalorder %s23, 1
      %p46 = por %p44, %p45
      %p48 = scmp.ne.s32.totalorder %s31, %s47
      %p49 = scmp.eq.s32.totalorder %s23, 0
      %p50 = por %p48, %p49
      %s51 = ssub.s32 %s17, %s24
      %p52 = scmp.eq.s32.totalorder %s51, 0
      %s54 = sadd.s32 %s53, 1
      %s55 = scalar_select %p52, %s53, %s54
      %p58 = pneg %p52
      %p59 = scmp.eq.s32.totalorder %s17, 1
      %p60 = por %p58, %p59
      %p61 = scmp.ne.s32.totalorder %s53, %s56
      %p62 = scmp.eq.s32.totalorder %s17, 0
      %p63 = por %p61, %p62
      %p64 = scmp.ne.s32.totalorder %s53, %s56
      %p65 = scmp.eq.s32.totalorder %s22, 1
      %p66 = por %p64, %p65
      %p67 = scmp.ne.s32.totalorder %s56, %s57
      %p68 = scmp.eq.s32.totalorder %s22, 0
      %p69 = por %p67, %p68
      %p70 = scmp.ne.s32.totalorder %s56, %s57
      %p71 = scmp.eq.s32.totalorder %s23, 1
      %p72 = por %p70, %p71
      %p74 = scmp.ne.s32.totalorder %s57, %s73
      %p75 = scmp.eq.s32.totalorder %s23, 0
      %p76 = por %p74, %p75
      %s77 = ssub.s32 %s17, %s24
      %p78 = scmp.eq.s32.totalorder %s77, 0
      %s80 = sadd.s32 %s79, 1
      %s81 = scalar_select %p78, %s79, %s80
      %p84 = pneg %p78
      %p85 = scmp.eq.s32.totalorder %s17, 1
      %p86 = por %p84, %p85
      %p87 = scmp.ne.s32.totalorder %s79, %s82
      %p88 = scmp.eq.s32.totalorder %s17, 0
      %p89 = por %p87, %p88
      %p90 = scmp.ne.s32.totalorder %s79, %s82
      %p91 = scmp.eq.s32.totalorder %s22, 1
      %p92 = por %p90, %p91
      %p93 = scmp.ne.s32.totalorder %s82, %s83
      %p94 = scmp.eq.s32.totalorder %s22, 0
      %p95 = por %p93, %p94
      %p96 = scmp.ne.s32.totalorder %s82, %s83
      %p97 = scmp.eq.s32.totalorder %s23, 1
      %p98 = por %p96, %p97
      %p100 = scmp.ne.s32.totalorder %s83, %s99
      %p101 = scmp.eq.s32.totalorder %s23, 0
      %p102 = por %p100, %p101
      %s103 = ssub.s32 %s17, %s24
      %p104 = scmp.eq.s32.totalorder %s103, 0
      %s106 = sadd.s32 %s105, 1
      %s107 = scalar_select %p104, %s105, %s106
      %p110 = pneg %p104
      %p111 = scmp.eq.s32.totalorder %s17, 1
      %p112 = por %p110, %p111
      %p113 = scmp.ne.s32.totalorder %s105, %s108
      %p114 = scmp.eq.s32.totalorder %s17, 0
      %p115 = por %p113, %p114
      %p116 = scmp.ne.s32.totalorder %s105, %s108
      %p117 = scmp.eq.s32.totalorder %s22, 1
      %p118 = por %p116, %p117
      %p119 = scmp.ne.s32.totalorder %s108, %s109
      %p120 = scmp.eq.s32.totalorder %s22, 0
      %p121 = por %p119, %p120
      %p122 = scmp.ne.s32.totalorder %s108, %s109
      %p123 = scmp.eq.s32.totalorder %s23, 1
      %p124 = por %p122, %p123
      %p126 = scmp.ne.s32.totalorder %s109, %s125
      %p127 = scmp.eq.s32.totalorder %s23, 0
      %p128 = por %p126, %p127
      %s130 = sadd.s32 %s129, 1
      %p133 = scmp.eq.s32.totalorder %s17, 1
      %p134 = scmp.ne.s32.totalorder %s129, %s131
      %p135 = scmp.eq.s32.totalorder %s17, 0
      %p136 = por %p134, %p135
      %p137 = scmp.ne.s32.totalorder %s129, %s131
      %p138 = scmp.eq.s32.totalorder %s22, 1
      %p139 = por %p137, %p138
      %p140 = scmp.ne.s32.totalorder %s131, %s132
      %p141 = scmp.eq.s32.totalorder %s22, 0
      %p142 = por %p140, %p141
      %p143 = scmp.ne.s32.totalorder %s131, %s132
      %p144 = scmp.eq.s32.totalorder %s23, 1
      %p145 = por %p143, %p144
      %p147 = scmp.ne.s32.totalorder %s132, %s146
      %p148 = scmp.eq.s32.totalorder %s23, 0
      %p149 = por %p147, %p148
      %s151 = sadd.s32 %s150, 1
      %p154 = scmp.eq.s32.totalorder %s17, 1
      %p155 = scmp.ne.s32.totalorder %s150, %s152
      %p156 = scmp.eq.s32.totalorder %s17, 0
      %p157 = por %p155, %p156
      %p158 = scmp.ne.s32.totalorder %s150, %s152
      %p159 = scmp.eq.s32.totalorder %s22, 1
      %p160 = por %p158, %p159
      %p161 = scmp.ne.s32.totalorder %s152, %s153
      %p162 = scmp.eq.s32.totalorder %s22, 0
      %p163 = por %p161, %p162
      %p164 = scmp.ne.s32.totalorder %s152, %s153
      %p165 = scmp.eq.s32.totalorder %s23, 1
      %p166 = por %p164, %p165
      %p168 = scmp.ne.s32.totalorder %s153, %s167
      %p169 = scmp.eq.s32.totalorder %s23, 0
      %p170 = por %p168, %p169
      %s172 = sadd.s32 %s171, 1
      %p175 = scmp.eq.s32.totalorder %s17, 1
      %p176 = scmp.ne.s32.totalorder %s171, %s173
      %p177 = scmp.eq.s32.totalorder %s17, 0
      %p178 = por %p176, %p177
      %p179 = scmp.ne.s32.totalorder %s171, %s173
      %p180 = scmp.eq.s32.totalorder %s22, 1
      %p181 = por %p179, %p180
      %p182 = scmp.ne.s32.totalorder %s173, %s174
      %p183 = scmp.eq.s32.totalorder %s22, 0
      %p184 = por %p182, %p183
      %p185 = scmp.ne.s32.totalorder %s173, %s174
      %p186 = scmp.eq.s32.totalorder %s23, 1
      %p187 = por %p185, %p186
      %p189 = scmp.ne.s32.totalorder %s174, %s188
      %p190 = scmp.eq.s32.totalorder %s23, 0
      %p191 = por %p189, %p190
      %s193 = sadd.s32 %s192, 1
      %p196 = scmp.eq.s32.totalorder %s17, 1
      %p197 = scmp.ne.s32.totalorder %s192, %s194
      %p198 = scmp.eq.s32.totalorder %s17, 0
      %p199 = por %p197, %p198
      %p200 = scmp.ne.s32.totalorder %s192, %s194
      %p201 = scmp.eq.s32.totalorder %s22, 1
      %p202 = por %p200, %p201
      %p203 = scmp.ne.s32.totalorder %s194, %s195
      %p204 = scmp.eq.s32.totalorder %s22, 0
      %p205 = por %p203, %p204
      %p206 = scmp.ne.s32.totalorder %s194, %s195
      %p207 = scmp.eq.s32.totalorder %s23, 1
      %p208 = por %p206, %p207
      %p210 = scmp.ne.s32.totalorder %s195, %s209
      %p211 = scmp.eq.s32.totalorder %s23, 0
      %p212 = por %p210, %p211
      %s213 = ssub.s32 %s17, %s24
      %p214 = scmp.eq.s32.totalorder %s213, 0
      %s216 = sadd.s32 %s215, 1
      %s217 = scalar_select %p214, %s215, %s216
      %p220 = pneg %p214
      %p221 = scmp.eq.s32.totalorder %s17, 1
      %p222 = por %p220, %p221
      %p223 = scmp.ne.s32.totalorder %s215, %s218
      %p224 = scmp.eq.s32.totalorder %s17, 0
      %p225 = por %p223, %p224
      %p226 = scmp.ne.s32.totalorder %s215, %s218
      %p227 = scmp.eq.s32.totalorder %s22, 1
      %p228 = por %p226, %p227
      %p229 = scmp.ne.s32.totalorder %s218, %s219
      %p230 = scmp.eq.s32.totalorder %s22, 0
      %p231 = por %p229, %p230
      %p232 = scmp.ne.s32.totalorder %s218, %s219
      %p233 = scmp.eq.s32.totalorder %s23, 1
      %p234 = por %p232, %p233
      %p236 = scmp.ne.s32.totalorder %s219, %s235
      %p237 = scmp.eq.s32.totalorder %s23, 0
      %p238 = por %p236, %p237
      %p239 = scmp.le.s32.totalorder 1, %s17
      %p240 = scmp.lt.s32.totalorder %s17, 3
      %p241 = pnand %p239, %p240
      %p242 = pneg %p241
      // Predicated region
      $region9: #{cnn_forward.3} parent=5 // pred_check
        _
      $region10: #{cnn_forward.3} parent=5 // pred_check_branch
        %244 = sbr.rel (%p241) target = $region12
      $region11: #{cnn_forward.3} parent=5 // pred_region
        %s245 = ssub.s32 %s17, 1
        // Predicated region
        $region13: #{cnn_forward.3} parent=11 // pred_check
          %p246 = pneg %p142
        $region14: #{cnn_forward.3} parent=11 // pred_check_branch
          %248 = sbr.rel (%p246) target = $region16
        $region15: #{cnn_forward.3} parent=11 // pred_region
          _
        $region16: #{cnn_forward.3} parent=11 // pred_fallthru
          _
        // Predicated region
        $region17: #{cnn_forward.3} parent=11 // pred_check
          %p249 = pneg %p163
        $region18: #{cnn_forward.3} parent=11 // pred_check_branch
          %251 = sbr.rel (%p249) target = $region20
        $region19: #{cnn_forward.3} parent=11 // pred_region
          _
        $region20: #{cnn_forward.3} parent=11 // pred_fallthru
          _
        // Predicated region
        $region21: #{cnn_forward.3} parent=11 // pred_check
          %p252 = pneg %p184
        $region22: #{cnn_forward.3} parent=11 // pred_check_branch
          %254 = sbr.rel (%p252) target = $region24
        $region23: #{cnn_forward.3} parent=11 // pred_region
          _
        $region24: #{cnn_forward.3} parent=11 // pred_fallthru
          _
        // Predicated region
        $region25: #{cnn_forward.3} parent=11 // pred_check
          %p255 = pneg %p205
        $region26: #{cnn_forward.3} parent=11 // pred_check_branch
          %257 = sbr.rel (%p255) target = $region28
        $region27: #{cnn_forward.3} parent=11 // pred_region
          _
        $region28: #{cnn_forward.3} parent=11 // pred_fallthru
          _
      $region12: #{cnn_forward.3} parent=5 // pred_fallthru
        _
      %p258 = scmp.lt.s32.totalorder %s17, 2
      // Predicated region
      $region29: #{cnn_forward.3} parent=5 // pred_check
        %p259 = pneg %p258
      $region30: #{cnn_forward.3} parent=5 // pred_check_branch
        %261 = sbr.rel (%p259) target = $region32
      $region31: #{cnn_forward.3} parent=5 // pred_region
        // Predicated region
        $region33: #{cnn_forward.3} parent=31 // pred_check
          %p262 = pneg %p37
        $region34: #{cnn_forward.3} parent=31 // pred_check_branch
          %264 = sbr.rel (%p262) target = $region36
        $region35: #{cnn_forward.3} parent=31 // pred_region
          %p265 = scmp.lt.s32.totalorder %s17, 1
          %s266 = scalar_select %p265, %s17, 1
          %s267 = smul.addr %s266, 8
          %s268 = smul.addr %s267, 4
          %s269 = scalar_lea.vmem %s0, %s268
        $region36: #{cnn_forward.3} parent=31 // pred_fallthru
          _
        // Predicated region
        $region37: #{cnn_forward.3} parent=31 // pred_check
          %p270 = pneg %p63
        $region38: #{cnn_forward.3} parent=31 // pred_check_branch
          %272 = sbr.rel (%p270) target = $region40
        $region39: #{cnn_forward.3} parent=31 // pred_region
          %p273 = scmp.lt.s32.totalorder %s17, 1
          %s274 = scalar_select %p273, %s17, 1
          %s275 = smul.addr %s274, 8
          %s276 = smul.addr %s275, 4
          %s277 = scalar_lea.vmem %s1, %s276
        $region40: #{cnn_forward.3} parent=31 // pred_fallthru
          _
        // Predicated region
        $region41: #{cnn_forward.3} parent=31 // pred_check
          %p278 = pneg %p89
        $region42: #{cnn_forward.3} parent=31 // pred_check_branch
          %280 = sbr.rel (%p278) target = $region44
        $region43: #{cnn_forward.3} parent=31 // pred_region
          %p281 = scmp.lt.s32.totalorder %s17, 1
          %s282 = scalar_select %p281, %s17, 1
          %s283 = smul.addr %s282, 8
          %s284 = smul.addr %s283, 4
          %s285 = scalar_lea.vmem %s2, %s284
        $region44: #{cnn_forward.3} parent=31 // pred_fallthru
          _
        // Predicated region
        $region45: #{cnn_forward.3} parent=31 // pred_check
          %p286 = pneg %p115
        $region46: #{cnn_forward.3} parent=31 // pred_check_branch
          %288 = sbr.rel (%p286) target = $region48
        $region47: #{cnn_forward.3} parent=31 // pred_region
          %p289 = scmp.lt.s32.totalorder %s17, 1
          %s290 = scalar_select %p289, %s17, 1
          %s291 = smul.addr %s290, 8
          %s292 = smul.addr %s291, 4
          %s293 = scalar_lea.vmem %s3, %s292
        $region48: #{cnn_forward.3} parent=31 // pred_fallthru
          _
      $region32: #{cnn_forward.3} parent=5 // pred_fallthru
        _
      %p294 = scmp.le.s32.totalorder 1, %s17
      %p295 = scmp.lt.s32.totalorder %s17, 3
      %p296 = pnand %p294, %p295
      %p297 = pneg %p296
      // Predicated region
      $region49: #{cnn_forward.3} parent=5 // pred_check
        _
      $region50: #{cnn_forward.3} parent=5 // pred_check_branch
        %299 = sbr.rel (%p296) target = $region52
      $region51: #{cnn_forward.3} parent=5 // pred_region
        %s300 = ssub.s32 %s17, 1
        %p301 = scmp.lt.s32.totalorder %s22, 1
        %s302 = scalar_select %p301, %s22, 1
        %s303 = smul.addr %s302, 8
        %s304 = smul.addr %s303, 4
        %s305 = scalar_lea.vmem %s0, %s304
        %p306 = pneg %p43
        %p307 = pneg %p40
        %p308 = scmp.lt.s32.totalorder %s22, 1
        %s309 = scalar_select %p308, %s22, 1
        %s310 = smul.addr %s309, 8
        %s311 = smul.addr %s310, 4
        %s312 = scalar_lea.vmem %s1, %s311
        %p313 = pneg %p69
        %p314 = pneg %p66
        %p315 = scmp.lt.s32.totalorder %s22, 1
        %s316 = scalar_select %p315, %s22, 1
        %s317 = smul.addr %s316, 8
        %s318 = smul.addr %s317, 4
        %s319 = scalar_lea.vmem %s2, %s318
        %p320 = pneg %p95
        %p321 = pneg %p92
        %p322 = scmp.lt.s32.totalorder %s22, 1
        %s323 = scalar_select %p322, %s22, 1
        %s324 = smul.addr %s323, 8
        %s325 = smul.addr %s324, 4
        %s326 = scalar_lea.vmem %s3, %s325
        %p327 = pneg %p121
        %p328 = pneg %p118
        %p329 = pneg %p142
        %p330 = pneg %p139
        %p331 = pneg %p163
        %p332 = pneg %p160
        %p333 = pneg %p184
        %p334 = pneg %p181
        %p335 = pneg %p205
        %p336 = pneg %p202
        %p337 = pneg %p231
        %p338 = pneg %p228
        %s339 = sand.u32 %s218, 1
        %s340 = scalar_lea.sflag [#allocation3], %s339
        %s341 = sand.u32 %s218, 1
        %s342 = scalar_lea.vmem [#allocation2], %s341
        %p343 = scmp.lt.s32.totalorder %s22, 1
        %s344 = scalar_select %p343, %s22, 1
        %s345 = smul.addr %s344, 8
        %s346 = smul.addr %s345, 4
        %s347 = scalar_lea.vmem %s0, %s346
        %p348 = scmp.lt.s32.totalorder %s22, 1
        %s349 = scalar_select %p348, %s22, 1
        %s350 = smul.addr %s349, 8
        %s351 = smul.addr %s350, 4
        %s352 = scalar_lea.vmem %s1, %s351
        %p353 = scmp.lt.s32.totalorder %s22, 1
        %s354 = scalar_select %p353, %s22, 1
        %s355 = smul.addr %s354, 8
        %s356 = smul.addr %s355, 4
        %s357 = scalar_lea.vmem %s2, %s356
        %p358 = scmp.lt.s32.totalorder %s22, 1
        %s359 = scalar_select %p358, %s22, 1
        %s360 = smul.addr %s359, 8
        %s361 = smul.addr %s360, 4
        %s362 = scalar_lea.vmem %s3, %s361
        %v364 = vld [vmem:[%s347] sm:$0xf]
        %v365 = vld [vmem:[%s347 + $0x4] sm:$0xf]
        %v366 = vld [vmem:[%s347 + $0x8] sm:$0xf]
        %v367 = vld [vmem:[%s347 + $0xc] sm:$0xf]
        %v368 = vld [vmem:[%s347 + $0x10] sm:$0xf]
        %v369 = vld [vmem:[%s347 + $0x14] sm:$0xf]
        %v370 = vld [vmem:[%s347 + $0x18] sm:$0xf]
        %v371 = vld [vmem:[%s347 + $0x1c] sm:$0xf]
        %v372 = vld [vmem:[%s352] sm:$0xf]
        %v373 = vld [vmem:[%s352 + $0x4] sm:$0xf]
        %v374 = vld [vmem:[%s352 + $0x8] sm:$0xf]
        %v375 = vld [vmem:[%s352 + $0xc] sm:$0xf]
        %v376 = vld [vmem:[%s352 + $0x10] sm:$0xf]
        %v377 = vld [vmem:[%s352 + $0x14] sm:$0xf]
        %v378 = vld [vmem:[%s352 + $0x18] sm:$0xf]
        %v379 = vld [vmem:[%s352 + $0x1c] sm:$0xf]
        %v380 = vld [vmem:[%s357] sm:$0xf]
        %v381 = vld [vmem:[%s357 + $0x4] sm:$0xf]
        %v382 = vld [vmem:[%s357 + $0x8] sm:$0xf]
        %v383 = vld [vmem:[%s357 + $0xc] sm:$0xf]
        %v384 = vld [vmem:[%s357 + $0x10] sm:$0xf]
        %v385 = vld [vmem:[%s357 + $0x14] sm:$0xf]
        %v386 = vld [vmem:[%s357 + $0x18] sm:$0xf]
        %v387 = vld [vmem:[%s357 + $0x1c] sm:$0xf]
        %v388 = vld [vmem:[%s362] sm:$0xf]
        %v389 = vld [vmem:[%s362 + $0x4] sm:$0xf]
        %v390 = vld [vmem:[%s362 + $0x8] sm:$0xf]
        %v391 = vld [vmem:[%s362 + $0xc] sm:$0xf]
        %v392 = vld [vmem:[%s362 + $0x10] sm:$0xf]
        %v393 = vld [vmem:[%s362 + $0x14] sm:$0xf]
        %v394 = vld [vmem:[%s362 + $0x18] sm:$0xf]
        %v395 = vld [vmem:[%s362 + $0x1c] sm:$0xf]
        %v396 = vld [vmem:[%s4] sm:$0xf]
        %v397 = vld [vmem:[%s4 + $0x4] sm:$0xf]
        %v398 = vld [vmem:[%s4 + $0x8] sm:$0xf]
        %v399 = vld [vmem:[%s4 + $0xc] sm:$0xf]
        %v400 = vld [vmem:[%s4 + $0x10] sm:$0xf]
        %v401 = vld [vmem:[%s4 + $0x14] sm:$0xf]
        %v402 = vld [vmem:[%s4 + $0x18] sm:$0xf]
        %v403 = vld [vmem:[%s4 + $0x1c] sm:$0xf]
        %v404 = vld [vmem:[%s4 + $0x20] sm:$0xf]
        %v405 = vld [vmem:[%s4 + $0x24] sm:$0xf]
        %v406 = vld [vmem:[%s4 + $0x28] sm:$0xf]
        %v407 = vld [vmem:[%s4 + $0x2c] sm:$0xf]
        %v408 = vld [vmem:[%s4 + $0x30] sm:$0xf]
        %v409 = vld [vmem:[%s4 + $0x34] sm:$0xf]
        %v410 = vld [vmem:[%s4 + $0x38] sm:$0xf]
        %v411 = vld [vmem:[%s4 + $0x3c] sm:$0xf]
        %v412 = vld [vmem:[%s4 + $0x40] sm:$0xf]
        %v413 = vld [vmem:[%s4 + $0x44] sm:$0xf]
        %v414 = vld [vmem:[%s5] sm:$0x1]
        %v415 = vld [vmem:[%s6] sm:$0xf]
        %v416 = vld [vmem:[%s6 + $0x4] sm:$0xf]
        %v417 = vld [vmem:[%s6 + $0x8] sm:$0xf]
        %v418 = vld [vmem:[%s6 + $0xc] sm:$0xf]
        %v419 = vld [vmem:[%s6 + $0x10] sm:$0xf]
        %v420 = vld [vmem:[%s6 + $0x14] sm:$0xf]
        %v421 = vld [vmem:[%s6 + $0x18] sm:$0xf]
        %v422 = vld [vmem:[%s6 + $0x1c] sm:$0xf]
        %v423 = vld [vmem:[%s6 + $0x20] sm:$0xf]
        %v424 = vld [vmem:[%s6 + $0x24] sm:$0xf]
        %v425 = vld [vmem:[%s6 + $0x28] sm:$0xf]
        %v426 = vld [vmem:[%s6 + $0x2c] sm:$0xf]
        %v427 = vld [vmem:[%s6 + $0x30] sm:$0xf]
        %v428 = vld [vmem:[%s6 + $0x34] sm:$0xf]
        %v429 = vld [vmem:[%s6 + $0x38] sm:$0xf]
        %v430 = vld [vmem:[%s6 + $0x3c] sm:$0xf]
        %v431 = vld [vmem:[%s6 + $0x40] sm:$0xf]
        %v432 = vld [vmem:[%s6 + $0x44] sm:$0xf]
        %v433 = vld [vmem:[%s6 + $0x48] sm:$0xf]
        %v434 = vld [vmem:[%s6 + $0x4c] sm:$0xf]
        %v435 = vld [vmem:[%s6 + $0x50] sm:$0xf]
        %v436 = vld [vmem:[%s6 + $0x54] sm:$0xf]
        %v437 = vld [vmem:[%s6 + $0x58] sm:$0xf]
        %v438 = vld [vmem:[%s6 + $0x5c] sm:$0xf]
        %v439 = vld [vmem:[%s6 + $0x60] sm:$0xf]
        %v440 = vld [vmem:[%s6 + $0x64] sm:$0xf]
        %v441 = vld [vmem:[%s6 + $0x68] sm:$0xf]
        %v442 = vld [vmem:[%s6 + $0x6c] sm:$0xf]
        %v443 = vld [vmem:[%s6 + $0x70] sm:$0xf]
        %v444 = vld [vmem:[%s6 + $0x74] sm:$0xf]
        %v445 = vld [vmem:[%s6 + $0x78] sm:$0xf]
        %v446 = vld [vmem:[%s6 + $0x7c] sm:$0xf]
        %v447 = vld [vmem:[%s6 + $0x80] sm:$0xf]
        %v448 = vld [vmem:[%s6 + $0x84] sm:$0xf]
        %v449 = vld [vmem:[%s6 + $0x88] sm:$0xf]
        %v450 = vld [vmem:[%s6 + $0x8c] sm:$0xf]
        %v451 = vld [vmem:[%s6 + $0x90] sm:$0xf]
        %v452 = vld [vmem:[%s6 + $0x94] sm:$0xf]
        %v453 = vld [vmem:[%s6 + $0x98] sm:$0xf]
        %v454 = vld [vmem:[%s6 + $0x9c] sm:$0xf]
        %v455 = vld [vmem:[%s6 + $0xa0] sm:$0xf]
        %v456 = vld [vmem:[%s6 + $0xa4] sm:$0xf]
        %v457 = vld [vmem:[%s6 + $0xa8] sm:$0xf]
        %v458 = vld [vmem:[%s6 + $0xac] sm:$0xf]
        %v459 = vld [vmem:[%s6 + $0xb0] sm:$0xf]
        %v460 = vld [vmem:[%s6 + $0xb4] sm:$0xf]
        %v461 = vld [vmem:[%s6 + $0xb8] sm:$0xf]
        %v462 = vld [vmem:[%s6 + $0xbc] sm:$0xf]
        %v463 = vld [vmem:[%s6 + $0xc0] sm:$0xf]
        %v464 = vld [vmem:[%s6 + $0xc4] sm:$0xf]
        %v465 = vld [vmem:[%s6 + $0xc8] sm:$0xf]
        %v466 = vld [vmem:[%s6 + $0xcc] sm:$0xf]
        %v467 = vld [vmem:[%s6 + $0xd0] sm:$0xf]
        %v468 = vld [vmem:[%s6 + $0xd4] sm:$0xf]
        %v469 = vld [vmem:[%s6 + $0xd8] sm:$0xf]
        %v470 = vld [vmem:[%s6 + $0xdc] sm:$0xf]
        %v471 = vld [vmem:[%s6 + $0xe0] sm:$0xf]
        %v472 = vld [vmem:[%s6 + $0xe4] sm:$0xf]
        %v473 = vld [vmem:[%s6 + $0xe8] sm:$0xf]
        %v474 = vld [vmem:[%s6 + $0xec] sm:$0xf]
        %v475 = vld [vmem:[%s6 + $0xf0] sm:$0xf]
        %v476 = vld [vmem:[%s6 + $0xf4] sm:$0xf]
        %v477 = vld [vmem:[%s6 + $0xf8] sm:$0xf]
        %v478 = vld [vmem:[%s6 + $0xfc] sm:$0xf]
        %v479 = vld [vmem:[%s6 + $0x100] sm:$0xf]
        %v480 = vld [vmem:[%s6 + $0x104] sm:$0xf]
        %v481 = vld [vmem:[%s6 + $0x108] sm:$0xf]
        %v482 = vld [vmem:[%s6 + $0x10c] sm:$0xf]
        %v483 = vld [vmem:[%s6 + $0x110] sm:$0xf]
        %v484 = vld [vmem:[%s6 + $0x114] sm:$0xf]
        %v485 = vld [vmem:[%s6 + $0x118] sm:$0xf]
        %v486 = vld [vmem:[%s6 + $0x11c] sm:$0xf]
        %v487 = vld [vmem:[%s6 + $0x120] sm:$0xf]
        %v488 = vld [vmem:[%s6 + $0x124] sm:$0xf]
        %v489 = vld [vmem:[%s6 + $0x128] sm:$0xf]
        %v490 = vld [vmem:[%s6 + $0x12c] sm:$0xf]
        %v491 = vld [vmem:[%s6 + $0x130] sm:$0xf]
        %v492 = vld [vmem:[%s6 + $0x134] sm:$0xf]
        %v493 = vld [vmem:[%s6 + $0x138] sm:$0xf]
        %v494 = vld [vmem:[%s6 + $0x13c] sm:$0xf]
        %v495 = vld [vmem:[%s6 + $0x140] sm:$0xf]
        %v496 = vld [vmem:[%s6 + $0x144] sm:$0xf]
        %v497 = vld [vmem:[%s6 + $0x148] sm:$0xf]
        %v498 = vld [vmem:[%s6 + $0x14c] sm:$0xf]
        %v499 = vld [vmem:[%s6 + $0x150] sm:$0xf]
        %v500 = vld [vmem:[%s6 + $0x154] sm:$0xf]
        %v501 = vld [vmem:[%s6 + $0x158] sm:$0xf]
        %v502 = vld [vmem:[%s6 + $0x15c] sm:$0xf]
        %v503 = vld [vmem:[%s6 + $0x160] sm:$0xf]
        %v504 = vld [vmem:[%s6 + $0x164] sm:$0xf]
        %v505 = vld [vmem:[%s6 + $0x168] sm:$0xf]
        %v506 = vld [vmem:[%s6 + $0x16c] sm:$0xf]
        %v507 = vld [vmem:[%s6 + $0x170] sm:$0xf]
        %v508 = vld [vmem:[%s6 + $0x174] sm:$0xf]
        %v509 = vld [vmem:[%s6 + $0x178] sm:$0xf]
        %v510 = vld [vmem:[%s6 + $0x17c] sm:$0xf]
        %v511 = vld [vmem:[%s6 + $0x180] sm:$0xf]
        %v512 = vld [vmem:[%s6 + $0x184] sm:$0xf]
        %v513 = vld [vmem:[%s6 + $0x188] sm:$0xf]
        %v514 = vld [vmem:[%s6 + $0x18c] sm:$0xf]
        %v515 = vld [vmem:[%s6 + $0x190] sm:$0xf]
        %v516 = vld [vmem:[%s6 + $0x194] sm:$0xf]
        %v517 = vld [vmem:[%s6 + $0x198] sm:$0xf]
        %v518 = vld [vmem:[%s6 + $0x19c] sm:$0xf]
        %v519 = vld [vmem:[%s6 + $0x1a0] sm:$0xf]
        %v520 = vld [vmem:[%s6 + $0x1a4] sm:$0xf]
        %v521 = vld [vmem:[%s6 + $0x1a8] sm:$0xf]
        %v522 = vld [vmem:[%s6 + $0x1ac] sm:$0xf]
        %v523 = vld [vmem:[%s6 + $0x1b0] sm:$0xf]
        %v524 = vld [vmem:[%s6 + $0x1b4] sm:$0xf]
        %v525 = vld [vmem:[%s6 + $0x1b8] sm:$0xf]
        %v526 = vld [vmem:[%s6 + $0x1bc] sm:$0xf]
        %v527 = vld [vmem:[%s6 + $0x1c0] sm:$0xf]
        %v528 = vld [vmem:[%s6 + $0x1c4] sm:$0xf]
        %v529 = vld [vmem:[%s6 + $0x1c8] sm:$0xf]
        %v530 = vld [vmem:[%s6 + $0x1cc] sm:$0xf]
        %v531 = vld [vmem:[%s6 + $0x1d0] sm:$0xf]
        %v532 = vld [vmem:[%s6 + $0x1d4] sm:$0xf]
        %v533 = vld [vmem:[%s6 + $0x1d8] sm:$0xf]
        %v534 = vld [vmem:[%s6 + $0x1dc] sm:$0xf]
        %v535 = vld [vmem:[%s6 + $0x1e0] sm:$0xf]
        %v536 = vld [vmem:[%s6 + $0x1e4] sm:$0xf]
        %v537 = vld [vmem:[%s6 + $0x1e8] sm:$0xf]
        %v538 = vld [vmem:[%s6 + $0x1ec] sm:$0xf]
        %v539 = vld [vmem:[%s6 + $0x1f0] sm:$0xf]
        %v540 = vld [vmem:[%s6 + $0x1f4] sm:$0xf]
        %v541 = vld [vmem:[%s6 + $0x1f8] sm:$0xf]
        %v542 = vld [vmem:[%s6 + $0x1fc] sm:$0xf]
        %v543 = vld [vmem:[%s6 + $0x200] sm:$0xf]
        %v544 = vld [vmem:[%s6 + $0x204] sm:$0xf]
        %v545 = vld [vmem:[%s6 + $0x208] sm:$0xf]
        %v546 = vld [vmem:[%s6 + $0x20c] sm:$0xf]
        %v547 = vld [vmem:[%s6 + $0x210] sm:$0xf]
        %v548 = vld [vmem:[%s6 + $0x214] sm:$0xf]
        %v549 = vld [vmem:[%s6 + $0x218] sm:$0xf]
        %v550 = vld [vmem:[%s6 + $0x21c] sm:$0xf]
        %v551 = vld [vmem:[%s6 + $0x220] sm:$0xf]
        %v552 = vld [vmem:[%s6 + $0x224] sm:$0xf]
        %v553 = vld [vmem:[%s6 + $0x228] sm:$0xf]
        %v554 = vld [vmem:[%s6 + $0x22c] sm:$0xf]
        %v555 = vld [vmem:[%s6 + $0x230] sm:$0xf]
        %v556 = vld [vmem:[%s6 + $0x234] sm:$0xf]
        %v557 = vld [vmem:[%s6 + $0x238] sm:$0xf]
        %v558 = vld [vmem:[%s6 + $0x23c] sm:$0xf]
        %v559 = vld [vmem:[%s6 + $0x240] sm:$0xf]
        %v560 = vld [vmem:[%s6 + $0x244] sm:$0xf]
        %v561 = vld [vmem:[%s6 + $0x248] sm:$0xf]
        %v562 = vld [vmem:[%s6 + $0x24c] sm:$0xf]
        %v563 = vld [vmem:[%s6 + $0x250] sm:$0xf]
        %v564 = vld [vmem:[%s6 + $0x254] sm:$0xf]
        %v565 = vld [vmem:[%s6 + $0x258] sm:$0xf]
        %v566 = vld [vmem:[%s6 + $0x25c] sm:$0xf]
        %v567 = vld [vmem:[%s6 + $0x260] sm:$0xf]
        %v568 = vld [vmem:[%s6 + $0x264] sm:$0xf]
        %v569 = vld [vmem:[%s6 + $0x268] sm:$0xf]
        %v570 = vld [vmem:[%s6 + $0x26c] sm:$0xf]
        %v571 = vld [vmem:[%s6 + $0x270] sm:$0xf]
        %v572 = vld [vmem:[%s6 + $0x274] sm:$0xf]
        %v573 = vld [vmem:[%s6 + $0x278] sm:$0xf]
        %v574 = vld [vmem:[%s6 + $0x27c] sm:$0xf]
        %v575 = vld [vmem:[%s6 + $0x280] sm:$0xf]
        %v576 = vld [vmem:[%s6 + $0x284] sm:$0xf]
        %v577 = vld [vmem:[%s6 + $0x288] sm:$0xf]
        %v578 = vld [vmem:[%s6 + $0x28c] sm:$0xf]
        %v579 = vld [vmem:[%s6 + $0x290] sm:$0xf]
        %v580 = vld [vmem:[%s6 + $0x294] sm:$0xf]
        %v581 = vld [vmem:[%s6 + $0x298] sm:$0xf]
        %v582 = vld [vmem:[%s6 + $0x29c] sm:$0xf]
        %v583 = vld [vmem:[%s6 + $0x2a0] sm:$0xf]
        %v584 = vld [vmem:[%s6 + $0x2a4] sm:$0xf]
        %v585 = vld [vmem:[%s6 + $0x2a8] sm:$0xf]
        %v586 = vld [vmem:[%s6 + $0x2ac] sm:$0xf]
        %v587 = vld [vmem:[%s6 + $0x2b0] sm:$0xf]
        %v588 = vld [vmem:[%s6 + $0x2b4] sm:$0xf]
        %v589 = vld [vmem:[%s6 + $0x2b8] sm:$0xf]
        %v590 = vld [vmem:[%s6 + $0x2bc] sm:$0xf]
        %v591 = vld [vmem:[%s6 + $0x2c0] sm:$0xf]
        %v592 = vld [vmem:[%s6 + $0x2c4] sm:$0xf]
        %v593 = vld [vmem:[%s6 + $0x2c8] sm:$0xf]
        %v594 = vld [vmem:[%s6 + $0x2cc] sm:$0xf]
        %v595 = vld [vmem:[%s6 + $0x2d0] sm:$0xf]
        %v596 = vld [vmem:[%s6 + $0x2d4] sm:$0xf]
        %v597 = vld [vmem:[%s6 + $0x2d8] sm:$0xf]
        %v598 = vld [vmem:[%s6 + $0x2dc] sm:$0xf]
        %v599 = vld [vmem:[%s6 + $0x2e0] sm:$0xf]
        %v600 = vld [vmem:[%s6 + $0x2e4] sm:$0xf]
        %v601 = vld [vmem:[%s6 + $0x2e8] sm:$0xf]
        %v602 = vld [vmem:[%s6 + $0x2ec] sm:$0xf]
        %v603 = vld [vmem:[%s6 + $0x2f0] sm:$0xf]
        %v604 = vld [vmem:[%s6 + $0x2f4] sm:$0xf]
        %v605 = vld [vmem:[%s6 + $0x2f8] sm:$0xf]
        %v606 = vld [vmem:[%s6 + $0x2fc] sm:$0xf]
        %v607 = vld [vmem:[%s6 + $0x300] sm:$0xf]
        %v608 = vld [vmem:[%s6 + $0x304] sm:$0xf]
        %v609 = vld [vmem:[%s6 + $0x308] sm:$0xf]
        %v610 = vld [vmem:[%s6 + $0x30c] sm:$0xf]
        %v611 = vld [vmem:[%s7] sm:$0x1]
        %v619 = vunpack.c.l.b16 %v372
        %v620 = vunpack.c.l.b16 %v373
        %v621 = vunpack.c.l.b16 %v374
        %v622 = vunpack.c.l.b16 %v375
        %v623 = vunpack.c.l.b16 %v376
        %v624 = vunpack.c.l.b16 %v377
        %v625 = vunpack.c.l.b16 %v378
        %v626 = vpack.c.b16 %v619, %v619
        %v627 = vpack.c.b16 %v620, %v620
        %v628 = vpack.c.b16 %v621, %v621
        %v629 = vpack.c.b16 %v622, %v622
        %v630 = vpack.c.b16 %v623, %v623
        %v631 = vpack.c.b16 %v624, %v624
        %v632 = vpack.c.b16 %v625, %v625
        %633 = vrot.lane.b32.xlu0 %v626, 16
        %v634 = vpop.permute.xlu0 %633
        %635 = vrot.lane.b32.xlu0 %v627, 16
        %v636 = vpop.permute.xlu0 %635
        %637 = vrot.lane.b32.xlu0 %v628, 16
        %v638 = vpop.permute.xlu0 %637
        %639 = vrot.lane.b32.xlu0 %v629, 16
        %v640 = vpop.permute.xlu0 %639
        %641 = vrot.lane.b32.xlu0 %v630, 16
        %v642 = vpop.permute.xlu0 %641
        %643 = vrot.lane.b32.xlu0 %v631, 16
        %v644 = vpop.permute.xlu0 %643
        %645 = vrot.lane.b32.xlu0 %v632, 16
        %v646 = vpop.permute.xlu0 %645
        %v654 = vunpack.c.l.b16 %v364
        %v655 = vunpack.c.l.b16 %v365
        %v656 = vunpack.c.l.b16 %v366
        %v657 = vunpack.c.l.b16 %v367
        %v658 = vunpack.c.l.b16 %v368
        %v659 = vunpack.c.l.b16 %v369
        %v660 = vunpack.c.l.b16 %v370
        %v661 = vpack.c.b16 %v654, %v654
        %v662 = vpack.c.b16 %v655, %v655
        %v663 = vpack.c.b16 %v656, %v656
        %v664 = vpack.c.b16 %v657, %v657
        %v665 = vpack.c.b16 %v658, %v658
        %v666 = vpack.c.b16 %v659, %v659
        %v667 = vpack.c.b16 %v660, %v660
        %v669 = vshrl.u32 %v661, 16
        %v671 = vshll.u32 %v661, 16
        %v673 = vrot.slane %v671, 1
        %v674 = vor.u32 %v669, %v673
        %v676 = vshrl.u32 %v662, 16
        %v678 = vshll.u32 %v662, 16
        %v680 = vrot.slane %v678, 1
        %v681 = vor.u32 %v676, %v680
        %v683 = vshrl.u32 %v663, 16
        %v685 = vshll.u32 %v663, 16
        %v687 = vrot.slane %v685, 1
        %v688 = vor.u32 %v683, %v687
        %v690 = vshrl.u32 %v664, 16
        %v692 = vshll.u32 %v664, 16
        %v694 = vrot.slane %v692, 1
        %v695 = vor.u32 %v690, %v694
        %v697 = vshrl.u32 %v665, 16
        %v699 = vshll.u32 %v665, 16
        %v701 = vrot.slane %v699, 1
        %v702 = vor.u32 %v697, %v701
        %v704 = vshrl.u32 %v666, 16
        %v706 = vshll.u32 %v666, 16
        %v708 = vrot.slane %v706, 1
        %v709 = vor.u32 %v704, %v708
        %v711 = vshrl.u32 %v667, 16
        %v713 = vshll.u32 %v667, 16
        %v715 = vrot.slane %v713, 1
        %v716 = vor.u32 %v711, %v715
        %717 = vrot.lane.b32.xlu0 %v674, 32
        %v718 = vpop.permute.xlu0 %717
        %719 = vrot.lane.b32.xlu0 %v681, 32
        %v720 = vpop.permute.xlu0 %719
        %721 = vrot.lane.b32.xlu0 %v688, 32
        %v722 = vpop.permute.xlu0 %721
        %723 = vrot.lane.b32.xlu0 %v695, 32
        %v724 = vpop.permute.xlu0 %723
        %725 = vrot.lane.b32.xlu0 %v702, 32
        %v726 = vpop.permute.xlu0 %725
        %727 = vrot.lane.b32.xlu0 %v709, 32
        %v728 = vpop.permute.xlu0 %727
        %729 = vrot.lane.b32.xlu0 %v716, 32
        %v730 = vpop.permute.xlu0 %729
        %v738 = vunpack.c.l.b16 %v380
        %v739 = vunpack.c.l.b16 %v381
        %v740 = vunpack.c.l.b16 %v382
        %v741 = vunpack.c.l.b16 %v383
        %v742 = vunpack.c.l.b16 %v384
        %v743 = vunpack.c.l.b16 %v385
        %v744 = vunpack.c.l.b16 %v386
        %v745 = vpack.c.b16 %v738, %v738
        %v746 = vpack.c.b16 %v739, %v739
        %v747 = vpack.c.b16 %v740, %v740
        %v748 = vpack.c.b16 %v741, %v741
        %v749 = vpack.c.b16 %v742, %v742
        %v750 = vpack.c.b16 %v743, %v743
        %v751 = vpack.c.b16 %v744, %v744
        %752 = vrot.lane.b32.xlu0 %v745, 48
        %v753 = vpop.permute.xlu0 %752
        %754 = vrot.lane.b32.xlu0 %v746, 48
        %v755 = vpop.permute.xlu0 %754
        %756 = vrot.lane.b32.xlu0 %v747, 48
        %v757 = vpop.permute.xlu0 %756
        %758 = vrot.lane.b32.xlu0 %v748, 48
        %v759 = vpop.permute.xlu0 %758
        %760 = vrot.lane.b32.xlu0 %v749, 48
        %v761 = vpop.permute.xlu0 %760
        %762 = vrot.lane.b32.xlu0 %v750, 48
        %v763 = vpop.permute.xlu0 %762
        %764 = vrot.lane.b32.xlu0 %v751, 48
        %v765 = vpop.permute.xlu0 %764
        %v773 = vunpack.c.l.b16 %v388
        %v774 = vunpack.c.l.b16 %v389
        %v775 = vunpack.c.l.b16 %v390
        %v776 = vunpack.c.l.b16 %v391
        %v777 = vunpack.c.l.b16 %v392
        %v778 = vunpack.c.l.b16 %v393
        %v779 = vunpack.c.l.b16 %v394
        %v780 = vpack.c.b16 %v773, %v773
        %v781 = vpack.c.b16 %v774, %v774
        %v782 = vpack.c.b16 %v775, %v775
        %v783 = vpack.c.b16 %v776, %v776
        %v784 = vpack.c.b16 %v777, %v777
        %v785 = vpack.c.b16 %v778, %v778
        %v786 = vpack.c.b16 %v779, %v779
        %787 = vrot.lane.b32.xlu0 %v780, 64
        %v788 = vpop.permute.xlu0 %787
        %789 = vrot.lane.b32.xlu0 %v781, 64
        %v790 = vpop.permute.xlu0 %789
        %791 = vrot.lane.b32.xlu0 %v782, 64
        %v792 = vpop.permute.xlu0 %791
        %793 = vrot.lane.b32.xlu0 %v783, 64
        %v794 = vpop.permute.xlu0 %793
        %795 = vrot.lane.b32.xlu0 %v784, 64
        %v796 = vpop.permute.xlu0 %795
        %797 = vrot.lane.b32.xlu0 %v785, 64
        %v798 = vpop.permute.xlu0 %797
        %799 = vrot.lane.b32.xlu0 %v786, 64
        %v800 = vpop.permute.xlu0 %799
        %v802 = vshrl.u32 %v745, 16
        %v804 = vshll.u32 %v745, 16
        %v806 = vrot.slane %v804, 1
        %v807 = vor.u32 %v802, %v806
        %v809 = vshrl.u32 %v746, 16
        %v811 = vshll.u32 %v746, 16
        %v813 = vrot.slane %v811, 1
        %v814 = vor.u32 %v809, %v813
        %v816 = vshrl.u32 %v747, 16
        %v818 = vshll.u32 %v747, 16
        %v820 = vrot.slane %v818, 1
        %v821 = vor.u32 %v816, %v820
        %v823 = vshrl.u32 %v748, 16
        %v825 = vshll.u32 %v748, 16
        %v827 = vrot.slane %v825, 1
        %v828 = vor.u32 %v823, %v827
        %v830 = vshrl.u32 %v749, 16
        %v832 = vshll.u32 %v749, 16
        %v834 = vrot.slane %v832, 1
        %v835 = vor.u32 %v830, %v834
        %v837 = vshrl.u32 %v750, 16
        %v839 = vshll.u32 %v750, 16
        %v841 = vrot.slane %v839, 1
        %v842 = vor.u32 %v837, %v841
        %v844 = vshrl.u32 %v751, 16
        %v846 = vshll.u32 %v751, 16
        %v848 = vrot.slane %v846, 1
        %v849 = vor.u32 %v844, %v848
        %850 = vrot.lane.b32.xlu0 %v807, 80
        %v851 = vpop.permute.xlu0 %850
        %852 = vrot.lane.b32.xlu0 %v814, 80
        %v853 = vpop.permute.xlu0 %852
        %854 = vrot.lane.b32.xlu0 %v821, 80
        %v855 = vpop.permute.xlu0 %854
        %856 = vrot.lane.b32.xlu0 %v828, 80
        %v857 = vpop.permute.xlu0 %856
        %858 = vrot.lane.b32.xlu0 %v835, 80
        %v859 = vpop.permute.xlu0 %858
        %860 = vrot.lane.b32.xlu0 %v842, 80
        %v861 = vpop.permute.xlu0 %860
        %862 = vrot.lane.b32.xlu0 %v849, 80
        %v863 = vpop.permute.xlu0 %862
        %v865 = vunpack.c.l.b16 %v371
        %v866 = vpack.c.b16 %v865, %v865
        %867 = vrot.lane.b32.xlu0 %v662, 96
        %v868 = vpop.permute.xlu0 %867
        %869 = vrot.lane.b32.xlu0 %v663, 96
        %v870 = vpop.permute.xlu0 %869
        %871 = vrot.lane.b32.xlu0 %v664, 96
        %v872 = vpop.permute.xlu0 %871
        %873 = vrot.lane.b32.xlu0 %v665, 96
        %v874 = vpop.permute.xlu0 %873
        %875 = vrot.lane.b32.xlu0 %v666, 96
        %v876 = vpop.permute.xlu0 %875
        %877 = vrot.lane.b32.xlu0 %v667, 96
        %v878 = vpop.permute.xlu0 %877
        %879 = vrot.lane.b32.xlu0 %v866, 96
        %v880 = vpop.permute.xlu0 %879
        %v882 = vunpack.c.l.b16 %v379
        %v883 = vpack.c.b16 %v882, %v882
        %884 = vrot.lane.b32.xlu0 %v627, 112
        %v885 = vpop.permute.xlu0 %884
        %886 = vrot.lane.b32.xlu0 %v628, 112
        %v887 = vpop.permute.xlu0 %886
        %888 = vrot.lane.b32.xlu0 %v629, 112
        %v889 = vpop.permute.xlu0 %888
        %890 = vrot.lane.b32.xlu0 %v630, 112
        %v891 = vpop.permute.xlu0 %890
        %892 = vrot.lane.b32.xlu0 %v631, 112
        %v893 = vpop.permute.xlu0 %892
        %894 = vrot.lane.b32.xlu0 %v632, 112
        %v895 = vpop.permute.xlu0 %894
        %896 = vrot.lane.b32.xlu0 %v883, 112
        %v897 = vpop.permute.xlu0 %896
        %v899 = vshrl.u32 %v866, 16
        %v901 = vshll.u32 %v866, 16
        %v903 = vrot.slane %v901, 1
        %v904 = vor.u32 %v899, %v903
        %vm905 = vcmask 130048
        %v908 = vsel %vm905, %v364, %v634
        %v911 = vsel %vm905, %v365, %v636
        %v914 = vsel %vm905, %v366, %v638
        %v917 = vsel %vm905, %v367, %v640
        %v920 = vsel %vm905, %v368, %v642
        %v923 = vsel %vm905, %v369, %v644
        %v926 = vsel %vm905, %v370, %v646
        %vm927 = vcmask 261120
        %v929 = vsel %vm927, %v908, %v718
        %v931 = vsel %vm927, %v911, %v720
        %v933 = vsel %vm927, %v914, %v722
        %v935 = vsel %vm927, %v917, %v724
        %v937 = vsel %vm927, %v920, %v726
        %v939 = vsel %vm927, %v923, %v728
        %v941 = vsel %vm927, %v926, %v730
        %vm942 = vcmask 392192
        %v944 = vsel %vm942, %v929, %v753
        %v946 = vsel %vm942, %v931, %v755
        %v948 = vsel %vm942, %v933, %v757
        %v950 = vsel %vm942, %v935, %v759
        %v952 = vsel %vm942, %v937, %v761
        %v954 = vsel %vm942, %v939, %v763
        %v956 = vsel %vm942, %v941, %v765
        %vm957 = vcmask 523264
        %v959 = vsel %vm957, %v944, %v788
        %v961 = vsel %vm957, %v946, %v790
        %v963 = vsel %vm957, %v948, %v792
        %v965 = vsel %vm957, %v950, %v794
        %v967 = vsel %vm957, %v952, %v796
        %v969 = vsel %vm957, %v954, %v798
        %v971 = vsel %vm957, %v956, %v800
        %vm972 = vcmask 654336
        %v974 = vsel %vm972, %v959, %v851
        %v976 = vsel %vm972, %v961, %v853
        %v978 = vsel %vm972, %v963, %v855
        %v980 = vsel %vm972, %v965, %v857
        %v982 = vsel %vm972, %v967, %v859
        %v984 = vsel %vm972, %v969, %v861
        %v986 = vsel %vm972, %v971, %v863
        %vm987 = vcmask 785408
        %v989 = vsel %vm987, %v974, %v868
        %v991 = vsel %vm987, %v976, %v870
        %v993 = vsel %vm987, %v978, %v872
        %v995 = vsel %vm987, %v980, %v874
        %v997 = vsel %vm987, %v982, %v876
        %v999 = vsel %vm987, %v984, %v878
        %v1001 = vsel %vm987, %v986, %v880
        %vm1002 = vcmask 916480
        %v1004 = vsel %vm1002, %v989, %v885
        %v1006 = vsel %vm1002, %v991, %v887
        %v1008 = vsel %vm1002, %v993, %v889
        %v1010 = vsel %vm1002, %v995, %v891
        %v1012 = vsel %vm1002, %v997, %v893
        %v1014 = vsel %vm1002, %v999, %v895
        %v1016 = vsel %vm1002, %v1001, %v897
        %v1017 = vrot.slane %v681, 7
        %v1018 = vrot.slane %v688, 7
        %v1019 = vrot.slane %v695, 7
        %v1020 = vrot.slane %v702, 7
        %v1021 = vrot.slane %v709, 7
        %v1022 = vrot.slane %v716, 7
        %v1023 = vrot.slane %v904, 7
        %vm1024 = vcmask 1040384
        %v1026 = vsel %vm1024, %v1004, %v1017
        %vm1028 = vcmask 1041409
        %v1029 = vsel %vm1028, %v1004, %v1017
        %v1031 = vrot.slane %v1029, 1
        %vm1032 = vcmask 1042434
        %v1033 = vsel %vm1032, %v1004, %v1017
        %v1035 = vrot.slane %v1033, 2
        %vm1036 = vcmask 1043459
        %v1037 = vsel %vm1036, %v1004, %v1017
        %v1039 = vrot.slane %v1037, 3
        %v1041 = vsel %vm1024, %v1006, %v1018
        %v1043 = vsel %vm1028, %v1006, %v1018
        %v1045 = vrot.slane %v1043, 1
        %v1046 = vsel %vm1032, %v1006, %v1018
        %v1048 = vrot.slane %v1046, 2
        %v1049 = vsel %vm1036, %v1006, %v1018
        %v1051 = vrot.slane %v1049, 3
        %v1053 = vsel %vm1024, %v1008, %v1019
        %v1055 = vsel %vm1028, %v1008, %v1019
        %v1057 = vrot.slane %v1055, 1
        %v1058 = vsel %vm1032, %v1008, %v1019
        %v1060 = vrot.slane %v1058, 2
        %v1061 = vsel %vm1036, %v1008, %v1019
        %v1063 = vrot.slane %v1061, 3
        %v1065 = vsel %vm1024, %v1010, %v1020
        %v1067 = vsel %vm1028, %v1010, %v1020
        %v1069 = vrot.slane %v1067, 1
        %v1070 = vsel %vm1032, %v1010, %v1020
        %v1072 = vrot.slane %v1070, 2
        %v1073 = vsel %vm1036, %v1010, %v1020
        %v1075 = vrot.slane %v1073, 3
        %v1077 = vsel %vm1024, %v1012, %v1021
        %v1079 = vsel %vm1028, %v1012, %v1021
        %v1081 = vrot.slane %v1079, 1
        %v1082 = vsel %vm1032, %v1012, %v1021
        %v1084 = vrot.slane %v1082, 2
        %v1085 = vsel %vm1036, %v1012, %v1021
        %v1087 = vrot.slane %v1085, 3
        %v1089 = vsel %vm1024, %v1014, %v1022
        %v1091 = vsel %vm1028, %v1014, %v1022
        %v1093 = vrot.slane %v1091, 1
        %v1094 = vsel %vm1032, %v1014, %v1022
        %v1096 = vrot.slane %v1094, 2
        %v1097 = vsel %vm1036, %v1014, %v1022
        %v1099 = vrot.slane %v1097, 3
        %v1101 = vsel %vm1024, %v1016, %v1023
        %v1103 = vsel %vm1028, %v1016, %v1023
        %v1105 = vrot.slane %v1103, 1
        %v1106 = vsel %vm1032, %v1016, %v1023
        %v1108 = vrot.slane %v1106, 2
        %v1109 = vsel %vm1036, %v1016, %v1023
        %v1111 = vrot.slane %v1109, 3
        %v1112 = vunpack.i.l.s16 %v1026
        %v1113 = vunpack.i.h.s16 %v1026
        %v1114 = vunpack.i.l.s16 %v1031
        %v1115 = vunpack.i.h.s16 %v1031
        %v1116 = vunpack.i.l.s16 %v1035
        %v1117 = vunpack.i.h.s16 %v1035
        %v1118 = vunpack.i.l.s16 %v1039
        %v1119 = vunpack.i.l.s16 %v1041
        %v1120 = vunpack.i.h.s16 %v1041
        %v1121 = vunpack.i.l.s16 %v1045
        %v1122 = vunpack.i.h.s16 %v1045
        %v1123 = vunpack.i.l.s16 %v1048
        %v1124 = vunpack.i.h.s16 %v1048
        %v1125 = vunpack.i.l.s16 %v1051
        %v1126 = vunpack.i.l.s16 %v1053
        %v1127 = vunpack.i.h.s16 %v1053
        %v1128 = vunpack.i.l.s16 %v1057
        %v1129 = vunpack.i.h.s16 %v1057
        %v1130 = vunpack.i.l.s16 %v1060
        %v1131 = vunpack.i.h.s16 %v1060
        %v1132 = vunpack.i.l.s16 %v1063
        %v1133 = vunpack.i.l.s16 %v1065
        %v1134 = vunpack.i.h.s16 %v1065
        %v1135 = vunpack.i.l.s16 %v1069
        %v1136 = vunpack.i.h.s16 %v1069
        %v1137 = vunpack.i.l.s16 %v1072
        %v1138 = vunpack.i.h.s16 %v1072
        %v1139 = vunpack.i.l.s16 %v1075
        %v1140 = vunpack.i.l.s16 %v1077
        %v1141 = vunpack.i.h.s16 %v1077
        %v1142 = vunpack.i.l.s16 %v1081
        %v1143 = vunpack.i.h.s16 %v1081
        %v1144 = vunpack.i.l.s16 %v1084
        %v1145 = vunpack.i.h.s16 %v1084
        %v1146 = vunpack.i.l.s16 %v1087
        %v1147 = vunpack.i.l.s16 %v1089
        %v1148 = vunpack.i.h.s16 %v1089
        %v1149 = vunpack.i.l.s16 %v1093
        %v1150 = vunpack.i.h.s16 %v1093
        %v1151 = vunpack.i.l.s16 %v1096
        %v1152 = vunpack.i.h.s16 %v1096
        %v1153 = vunpack.i.l.s16 %v1099
        %v1154 = vunpack.i.l.s16 %v1101
        %v1155 = vunpack.i.h.s16 %v1101
        %v1156 = vunpack.i.l.s16 %v1105
        %v1157 = vunpack.i.h.s16 %v1105
        %v1158 = vunpack.i.l.s16 %v1108
        %v1159 = vunpack.i.h.s16 %v1108
        %v1160 = vunpack.i.l.s16 %v1111
        %1161 = vrot.lane.b32.xlu0 %v674, 16
        %v1162 = vpop.permute.xlu0 %1161
        %1163 = vrot.lane.b32.xlu0 %v681, 16
        %v1164 = vpop.permute.xlu0 %1163
        %1165 = vrot.lane.b32.xlu0 %v688, 16
        %v1166 = vpop.permute.xlu0 %1165
        %1167 = vrot.lane.b32.xlu0 %v695, 16
        %v1168 = vpop.permute.xlu0 %1167
        %1169 = vrot.lane.b32.xlu0 %v702, 16
        %v1170 = vpop.permute.xlu0 %1169
        %1171 = vrot.lane.b32.xlu0 %v709, 16
        %v1172 = vpop.permute.xlu0 %1171
        %1173 = vrot.lane.b32.xlu0 %v716, 16
        %v1174 = vpop.permute.xlu0 %1173
        %v1176 = vshrl.u32 %v626, 16
        %v1178 = vshll.u32 %v626, 16
        %v1180 = vrot.slane %v1178, 1
        %v1181 = vor.u32 %v1176, %v1180
        %v1183 = vshrl.u32 %v627, 16
        %v1185 = vshll.u32 %v627, 16
        %v1187 = vrot.slane %v1185, 1
        %v1188 = vor.u32 %v1183, %v1187
        %v1190 = vshrl.u32 %v628, 16
        %v1192 = vshll.u32 %v628, 16
        %v1194 = vrot.slane %v1192, 1
        %v1195 = vor.u32 %v1190, %v1194
        %v1197 = vshrl.u32 %v629, 16
        %v1199 = vshll.u32 %v629, 16
        %v1201 = vrot.slane %v1199, 1
        %v1202 = vor.u32 %v1197, %v1201
        %v1204 = vshrl.u32 %v630, 16
        %v1206 = vshll.u32 %v630, 16
        %v1208 = vrot.slane %v1206, 1
        %v1209 = vor.u32 %v1204, %v1208
        %v1211 = vshrl.u32 %v631, 16
        %v1213 = vshll.u32 %v631, 16
        %v1215 = vrot.slane %v1213, 1
        %v1216 = vor.u32 %v1211, %v1215
        %v1218 = vshrl.u32 %v632, 16
        %v1220 = vshll.u32 %v632, 16
        %v1222 = vrot.slane %v1220, 1
        %v1223 = vor.u32 %v1218, %v1222
        %1224 = vrot.lane.b32.xlu0 %v1181, 32
        %v1225 = vpop.permute.xlu0 %1224
        %1226 = vrot.lane.b32.xlu0 %v1188, 32
        %v1227 = vpop.permute.xlu0 %1226
        %1228 = vrot.lane.b32.xlu0 %v1195, 32
        %v1229 = vpop.permute.xlu0 %1228
        %1230 = vrot.lane.b32.xlu0 %v1202, 32
        %v1231 = vpop.permute.xlu0 %1230
        %1232 = vrot.lane.b32.xlu0 %v1209, 32
        %v1233 = vpop.permute.xlu0 %1232
        %1234 = vrot.lane.b32.xlu0 %v1216, 32
        %v1235 = vpop.permute.xlu0 %1234
        %1236 = vrot.lane.b32.xlu0 %v1223, 32
        %v1237 = vpop.permute.xlu0 %1236
        %1238 = vrot.lane.b32.xlu0 %v780, 48
        %v1239 = vpop.permute.xlu0 %1238
        %1240 = vrot.lane.b32.xlu0 %v781, 48
        %v1241 = vpop.permute.xlu0 %1240
        %1242 = vrot.lane.b32.xlu0 %v782, 48
        %v1243 = vpop.permute.xlu0 %1242
        %1244 = vrot.lane.b32.xlu0 %v783, 48
        %v1245 = vpop.permute.xlu0 %1244
        %1246 = vrot.lane.b32.xlu0 %v784, 48
        %v1247 = vpop.permute.xlu0 %1246
        %1248 = vrot.lane.b32.xlu0 %v785, 48
        %v1249 = vpop.permute.xlu0 %1248
        %1250 = vrot.lane.b32.xlu0 %v786, 48
        %v1251 = vpop.permute.xlu0 %1250
        %1252 = vrot.lane.b32.xlu0 %v807, 64
        %v1253 = vpop.permute.xlu0 %1252
        %1254 = vrot.lane.b32.xlu0 %v814, 64
        %v1255 = vpop.permute.xlu0 %1254
        %1256 = vrot.lane.b32.xlu0 %v821, 64
        %v1257 = vpop.permute.xlu0 %1256
        %1258 = vrot.lane.b32.xlu0 %v828, 64
        %v1259 = vpop.permute.xlu0 %1258
        %1260 = vrot.lane.b32.xlu0 %v835, 64
        %v1261 = vpop.permute.xlu0 %1260
        %1262 = vrot.lane.b32.xlu0 %v842, 64
        %v1263 = vpop.permute.xlu0 %1262
        %1264 = vrot.lane.b32.xlu0 %v849, 64
        %v1265 = vpop.permute.xlu0 %1264
        %v1267 = vshrl.u32 %v780, 16
        %v1269 = vshll.u32 %v780, 16
        %v1271 = vrot.slane %v1269, 1
        %v1272 = vor.u32 %v1267, %v1271
        %v1274 = vshrl.u32 %v781, 16
        %v1276 = vshll.u32 %v781, 16
        %v1278 = vrot.slane %v1276, 1
        %v1279 = vor.u32 %v1274, %v1278
        %v1281 = vshrl.u32 %v782, 16
        %v1283 = vshll.u32 %v782, 16
        %v1285 = vrot.slane %v1283, 1
        %v1286 = vor.u32 %v1281, %v1285
        %v1288 = vshrl.u32 %v783, 16
        %v1290 = vshll.u32 %v783, 16
        %v1292 = vrot.slane %v1290, 1
        %v1293 = vor.u32 %v1288, %v1292
        %v1295 = vshrl.u32 %v784, 16
        %v1297 = vshll.u32 %v784, 16
        %v1299 = vrot.slane %v1297, 1
        %v1300 = vor.u32 %v1295, %v1299
        %v1302 = vshrl.u32 %v785, 16
        %v1304 = vshll.u32 %v785, 16
        %v1306 = vrot.slane %v1304, 1
        %v1307 = vor.u32 %v1302, %v1306
        %v1309 = vshrl.u32 %v786, 16
        %v1311 = vshll.u32 %v786, 16
        %v1313 = vrot.slane %v1311, 1
        %v1314 = vor.u32 %v1309, %v1313
        %1315 = vrot.lane.b32.xlu0 %v1272, 80
        %v1316 = vpop.permute.xlu0 %1315
        %1317 = vrot.lane.b32.xlu0 %v1279, 80
        %v1318 = vpop.permute.xlu0 %1317
        %1319 = vrot.lane.b32.xlu0 %v1286, 80
        %v1320 = vpop.permute.xlu0 %1319
        %1321 = vrot.lane.b32.xlu0 %v1293, 80
        %v1322 = vpop.permute.xlu0 %1321
        %1323 = vrot.lane.b32.xlu0 %v1300, 80
        %v1324 = vpop.permute.xlu0 %1323
        %1325 = vrot.lane.b32.xlu0 %v1307, 80
        %v1326 = vpop.permute.xlu0 %1325
        %1327 = vrot.lane.b32.xlu0 %v1314, 80
        %v1328 = vpop.permute.xlu0 %1327
        %1329 = vrot.lane.b32.xlu0 %v627, 96
        %v1330 = vpop.permute.xlu0 %1329
        %1331 = vrot.lane.b32.xlu0 %v628, 96
        %v1332 = vpop.permute.xlu0 %1331
        %1333 = vrot.lane.b32.xlu0 %v629, 96
        %v1334 = vpop.permute.xlu0 %1333
        %1335 = vrot.lane.b32.xlu0 %v630, 96
        %v1336 = vpop.permute.xlu0 %1335
        %1337 = vrot.lane.b32.xlu0 %v631, 96
        %v1338 = vpop.permute.xlu0 %1337
        %1339 = vrot.lane.b32.xlu0 %v632, 96
        %v1340 = vpop.permute.xlu0 %1339
        %1341 = vrot.lane.b32.xlu0 %v883, 96
        %v1342 = vpop.permute.xlu0 %1341
        %1343 = vrot.lane.b32.xlu0 %v681, 112
        %v1344 = vpop.permute.xlu0 %1343
        %1345 = vrot.lane.b32.xlu0 %v688, 112
        %v1346 = vpop.permute.xlu0 %1345
        %1347 = vrot.lane.b32.xlu0 %v695, 112
        %v1348 = vpop.permute.xlu0 %1347
        %1349 = vrot.lane.b32.xlu0 %v702, 112
        %v1350 = vpop.permute.xlu0 %1349
        %1351 = vrot.lane.b32.xlu0 %v709, 112
        %v1352 = vpop.permute.xlu0 %1351
        %1353 = vrot.lane.b32.xlu0 %v716, 112
        %v1354 = vpop.permute.xlu0 %1353
        %1355 = vrot.lane.b32.xlu0 %v904, 112
        %v1356 = vpop.permute.xlu0 %1355
        %v1358 = vshrl.u32 %v883, 16
        %v1360 = vshll.u32 %v883, 16
        %v1362 = vrot.slane %v1360, 1
        %v1363 = vor.u32 %v1358, %v1362
        %v1366 = vsel %vm905, %v372, %v1162
        %v1369 = vsel %vm905, %v373, %v1164
        %v1372 = vsel %vm905, %v374, %v1166
        %v1375 = vsel %vm905, %v375, %v1168
        %v1378 = vsel %vm905, %v376, %v1170
        %v1381 = vsel %vm905, %v377, %v1172
        %v1384 = vsel %vm905, %v378, %v1174
        %v1386 = vsel %vm927, %v1366, %v1225
        %v1388 = vsel %vm927, %v1369, %v1227
        %v1390 = vsel %vm927, %v1372, %v1229
        %v1392 = vsel %vm927, %v1375, %v1231
        %v1394 = vsel %vm927, %v1378, %v1233
        %v1396 = vsel %vm927, %v1381, %v1235
        %v1398 = vsel %vm927, %v1384, %v1237
        %v1400 = vsel %vm942, %v1386, %v1239
        %v1402 = vsel %vm942, %v1388, %v1241
        %v1404 = vsel %vm942, %v1390, %v1243
        %v1406 = vsel %vm942, %v1392, %v1245
        %v1408 = vsel %vm942, %v1394, %v1247
        %v1410 = vsel %vm942, %v1396, %v1249
        %v1412 = vsel %vm942, %v1398, %v1251
        %v1414 = vsel %vm957, %v1400, %v1253
        %v1416 = vsel %vm957, %v1402, %v1255
        %v1418 = vsel %vm957, %v1404, %v1257
        %v1420 = vsel %vm957, %v1406, %v1259
        %v1422 = vsel %vm957, %v1408, %v1261
        %v1424 = vsel %vm957, %v1410, %v1263
        %v1426 = vsel %vm957, %v1412, %v1265
        %v1428 = vsel %vm972, %v1414, %v1316
        %v1430 = vsel %vm972, %v1416, %v1318
        %v1432 = vsel %vm972, %v1418, %v1320
        %v1434 = vsel %vm972, %v1420, %v1322
        %v1436 = vsel %vm972, %v1422, %v1324
        %v1438 = vsel %vm972, %v1424, %v1326
        %v1440 = vsel %vm972, %v1426, %v1328
        %v1442 = vsel %vm987, %v1428, %v1330
        %v1444 = vsel %vm987, %v1430, %v1332
        %v1446 = vsel %vm987, %v1432, %v1334
        %v1448 = vsel %vm987, %v1434, %v1336
        %v1450 = vsel %vm987, %v1436, %v1338
        %v1452 = vsel %vm987, %v1438, %v1340
        %v1454 = vsel %vm987, %v1440, %v1342
        %v1456 = vsel %vm1002, %v1442, %v1344
        %v1458 = vsel %vm1002, %v1444, %v1346
        %v1460 = vsel %vm1002, %v1446, %v1348
        %v1462 = vsel %vm1002, %v1448, %v1350
        %v1464 = vsel %vm1002, %v1450, %v1352
        %v1466 = vsel %vm1002, %v1452, %v1354
        %v1468 = vsel %vm1002, %v1454, %v1356
        %v1469 = vrot.slane %v1188, 7
        %v1470 = vrot.slane %v1195, 7
        %v1471 = vrot.slane %v1202, 7
        %v1472 = vrot.slane %v1209, 7
        %v1473 = vrot.slane %v1216, 7
        %v1474 = vrot.slane %v1223, 7
        %v1475 = vrot.slane %v1363, 7
        %v1477 = vsel %vm1024, %v1456, %v1469
        %v1479 = vsel %vm1028, %v1456, %v1469
        %v1481 = vrot.slane %v1479, 1
        %v1482 = vsel %vm1032, %v1456, %v1469
        %v1484 = vrot.slane %v1482, 2
        %v1485 = vsel %vm1036, %v1456, %v1469
        %v1487 = vrot.slane %v1485, 3
        %v1489 = vsel %vm1024, %v1458, %v1470
        %v1491 = vsel %vm1028, %v1458, %v1470
        %v1493 = vrot.slane %v1491, 1
        %v1494 = vsel %vm1032, %v1458, %v1470
        %v1496 = vrot.slane %v1494, 2
        %v1497 = vsel %vm1036, %v1458, %v1470
        %v1499 = vrot.slane %v1497, 3
        %v1501 = vsel %vm1024, %v1460, %v1471
        %v1503 = vsel %vm1028, %v1460, %v1471
        %v1505 = vrot.slane %v1503, 1
        %v1506 = vsel %vm1032, %v1460, %v1471
        %v1508 = vrot.slane %v1506, 2
        %v1509 = vsel %vm1036, %v1460, %v1471
        %v1511 = vrot.slane %v1509, 3
        %v1513 = vsel %vm1024, %v1462, %v1472
        %v1515 = vsel %vm1028, %v1462, %v1472
        %v1517 = vrot.slane %v1515, 1
        %v1518 = vsel %vm1032, %v1462, %v1472
        %v1520 = vrot.slane %v1518, 2
        %v1521 = vsel %vm1036, %v1462, %v1472
        %v1523 = vrot.slane %v1521, 3
        %v1525 = vsel %vm1024, %v1464, %v1473
        %v1527 = vsel %vm1028, %v1464, %v1473
        %v1529 = vrot.slane %v1527, 1
        %v1530 = vsel %vm1032, %v1464, %v1473
        %v1532 = vrot.slane %v1530, 2
        %v1533 = vsel %vm1036, %v1464, %v1473
        %v1535 = vrot.slane %v1533, 3
        %v1537 = vsel %vm1024, %v1466, %v1474
        %v1539 = vsel %vm1028, %v1466, %v1474
        %v1541 = vrot.slane %v1539, 1
        %v1542 = vsel %vm1032, %v1466, %v1474
        %v1544 = vrot.slane %v1542, 2
        %v1545 = vsel %vm1036, %v1466, %v1474
        %v1547 = vrot.slane %v1545, 3
        %v1549 = vsel %vm1024, %v1468, %v1475
        %v1551 = vsel %vm1028, %v1468, %v1475
        %v1553 = vrot.slane %v1551, 1
        %v1554 = vsel %vm1032, %v1468, %v1475
        %v1556 = vrot.slane %v1554, 2
        %v1557 = vsel %vm1036, %v1468, %v1475
        %v1559 = vrot.slane %v1557, 3
        %v1560 = vunpack.i.l.s16 %v1477
        %v1561 = vunpack.i.h.s16 %v1477
        %v1562 = vunpack.i.l.s16 %v1481
        %v1563 = vunpack.i.h.s16 %v1481
        %v1564 = vunpack.i.l.s16 %v1484
        %v1565 = vunpack.i.h.s16 %v1484
        %v1566 = vunpack.i.l.s16 %v1487
        %v1567 = vunpack.i.l.s16 %v1489
        %v1568 = vunpack.i.h.s16 %v1489
        %v1569 = vunpack.i.l.s16 %v1493
        %v1570 = vunpack.i.h.s16 %v1493
        %v1571 = vunpack.i.l.s16 %v1496
        %v1572 = vunpack.i.h.s16 %v1496
        %v1573 = vunpack.i.l.s16 %v1499
        %v1574 = vunpack.i.l.s16 %v1501
        %v1575 = vunpack.i.h.s16 %v1501
        %v1576 = vunpack.i.l.s16 %v1505
        %v1577 = vunpack.i.h.s16 %v1505
        %v1578 = vunpack.i.l.s16 %v1508
        %v1579 = vunpack.i.h.s16 %v1508
        %v1580 = vunpack.i.l.s16 %v1511
        %v1581 = vunpack.i.l.s16 %v1513
        %v1582 = vunpack.i.h.s16 %v1513
        %v1583 = vunpack.i.l.s16 %v1517
        %v1584 = vunpack.i.h.s16 %v1517
        %v1585 = vunpack.i.l.s16 %v1520
        %v1586 = vunpack.i.h.s16 %v1520
        %v1587 = vunpack.i.l.s16 %v1523
        %v1588 = vunpack.i.l.s16 %v1525
        %v1589 = vunpack.i.h.s16 %v1525
        %v1590 = vunpack.i.l.s16 %v1529
        %v1591 = vunpack.i.h.s16 %v1529
        %v1592 = vunpack.i.l.s16 %v1532
        %v1593 = vunpack.i.h.s16 %v1532
        %v1594 = vunpack.i.l.s16 %v1535
        %v1595 = vunpack.i.l.s16 %v1537
        %v1596 = vunpack.i.h.s16 %v1537
        %v1597 = vunpack.i.l.s16 %v1541
        %v1598 = vunpack.i.h.s16 %v1541
        %v1599 = vunpack.i.l.s16 %v1544
        %v1600 = vunpack.i.h.s16 %v1544
        %v1601 = vunpack.i.l.s16 %v1547
        %v1602 = vunpack.i.l.s16 %v1549
        %v1603 = vunpack.i.h.s16 %v1549
        %v1604 = vunpack.i.l.s16 %v1553
        %v1605 = vunpack.i.h.s16 %v1553
        %v1606 = vunpack.i.l.s16 %v1556
        %v1607 = vunpack.i.h.s16 %v1556
        %v1608 = vunpack.i.l.s16 %v1559
        %1609 = vrot.lane.b32.xlu0 %v780, 16
        %v1610 = vpop.permute.xlu0 %1609
        %1611 = vrot.lane.b32.xlu0 %v781, 16
        %v1612 = vpop.permute.xlu0 %1611
        %1613 = vrot.lane.b32.xlu0 %v782, 16
        %v1614 = vpop.permute.xlu0 %1613
        %1615 = vrot.lane.b32.xlu0 %v783, 16
        %v1616 = vpop.permute.xlu0 %1615
        %1617 = vrot.lane.b32.xlu0 %v784, 16
        %v1618 = vpop.permute.xlu0 %1617
        %1619 = vrot.lane.b32.xlu0 %v785, 16
        %v1620 = vpop.permute.xlu0 %1619
        %1621 = vrot.lane.b32.xlu0 %v786, 16
        %v1622 = vpop.permute.xlu0 %1621
        %1623 = vrot.lane.b32.xlu0 %v807, 32
        %v1624 = vpop.permute.xlu0 %1623
        %1625 = vrot.lane.b32.xlu0 %v814, 32
        %v1626 = vpop.permute.xlu0 %1625
        %1627 = vrot.lane.b32.xlu0 %v821, 32
        %v1628 = vpop.permute.xlu0 %1627
        %1629 = vrot.lane.b32.xlu0 %v828, 32
        %v1630 = vpop.permute.xlu0 %1629
        %1631 = vrot.lane.b32.xlu0 %v835, 32
        %v1632 = vpop.permute.xlu0 %1631
        %1633 = vrot.lane.b32.xlu0 %v842, 32
        %v1634 = vpop.permute.xlu0 %1633
        %1635 = vrot.lane.b32.xlu0 %v849, 32
        %v1636 = vpop.permute.xlu0 %1635
        %1637 = vrot.lane.b32.xlu0 %v662, 48
        %v1638 = vpop.permute.xlu0 %1637
        %1639 = vrot.lane.b32.xlu0 %v663, 48
        %v1640 = vpop.permute.xlu0 %1639
        %1641 = vrot.lane.b32.xlu0 %v664, 48
        %v1642 = vpop.permute.xlu0 %1641
        %1643 = vrot.lane.b32.xlu0 %v665, 48
        %v1644 = vpop.permute.xlu0 %1643
        %1645 = vrot.lane.b32.xlu0 %v666, 48
        %v1646 = vpop.permute.xlu0 %1645
        %1647 = vrot.lane.b32.xlu0 %v667, 48
        %v1648 = vpop.permute.xlu0 %1647
        %1649 = vrot.lane.b32.xlu0 %v866, 48
        %v1650 = vpop.permute.xlu0 %1649
        %1651 = vrot.lane.b32.xlu0 %v627, 64
        %v1652 = vpop.permute.xlu0 %1651
        %1653 = vrot.lane.b32.xlu0 %v628, 64
        %v1654 = vpop.permute.xlu0 %1653
        %1655 = vrot.lane.b32.xlu0 %v629, 64
        %v1656 = vpop.permute.xlu0 %1655
        %1657 = vrot.lane.b32.xlu0 %v630, 64
        %v1658 = vpop.permute.xlu0 %1657
        %1659 = vrot.lane.b32.xlu0 %v631, 64
        %v1660 = vpop.permute.xlu0 %1659
        %1661 = vrot.lane.b32.xlu0 %v632, 64
        %v1662 = vpop.permute.xlu0 %1661
        %1663 = vrot.lane.b32.xlu0 %v883, 64
        %v1664 = vpop.permute.xlu0 %1663
        %1665 = vrot.lane.b32.xlu0 %v681, 80
        %v1666 = vpop.permute.xlu0 %1665
        %1667 = vrot.lane.b32.xlu0 %v688, 80
        %v1668 = vpop.permute.xlu0 %1667
        %1669 = vrot.lane.b32.xlu0 %v695, 80
        %v1670 = vpop.permute.xlu0 %1669
        %1671 = vrot.lane.b32.xlu0 %v702, 80
        %v1672 = vpop.permute.xlu0 %1671
        %1673 = vrot.lane.b32.xlu0 %v709, 80
        %v1674 = vpop.permute.xlu0 %1673
        %1675 = vrot.lane.b32.xlu0 %v716, 80
        %v1676 = vpop.permute.xlu0 %1675
        %1677 = vrot.lane.b32.xlu0 %v904, 80
        %v1678 = vpop.permute.xlu0 %1677
        %v1680 = vunpack.c.l.b16 %v387
        %v1681 = vpack.c.b16 %v1680, %v1680
        %1682 = vrot.lane.b32.xlu0 %v746, 96
        %v1683 = vpop.permute.xlu0 %1682
        %1684 = vrot.lane.b32.xlu0 %v747, 96
        %v1685 = vpop.permute.xlu0 %1684
        %1686 = vrot.lane.b32.xlu0 %v748, 96
        %v1687 = vpop.permute.xlu0 %1686
        %1688 = vrot.lane.b32.xlu0 %v749, 96
        %v1689 = vpop.permute.xlu0 %1688
        %1690 = vrot.lane.b32.xlu0 %v750, 96
        %v1691 = vpop.permute.xlu0 %1690
        %1692 = vrot.lane.b32.xlu0 %v751, 96
        %v1693 = vpop.permute.xlu0 %1692
        %1694 = vrot.lane.b32.xlu0 %v1681, 96
        %v1695 = vpop.permute.xlu0 %1694
        %v1697 = vunpack.c.l.b16 %v395
        %v1698 = vpack.c.b16 %v1697, %v1697
        %1699 = vrot.lane.b32.xlu0 %v781, 112
        %v1700 = vpop.permute.xlu0 %1699
        %1701 = vrot.lane.b32.xlu0 %v782, 112
        %v1702 = vpop.permute.xlu0 %1701
        %1703 = vrot.lane.b32.xlu0 %v783, 112
        %v1704 = vpop.permute.xlu0 %1703
        %1705 = vrot.lane.b32.xlu0 %v784, 112
        %v1706 = vpop.permute.xlu0 %1705
        %1707 = vrot.lane.b32.xlu0 %v785, 112
        %v1708 = vpop.permute.xlu0 %1707
        %1709 = vrot.lane.b32.xlu0 %v786, 112
        %v1710 = vpop.permute.xlu0 %1709
        %1711 = vrot.lane.b32.xlu0 %v1698, 112
        %v1712 = vpop.permute.xlu0 %1711
        %v1714 = vshrl.u32 %v1681, 16
        %v1716 = vshll.u32 %v1681, 16
        %v1718 = vrot.slane %v1716, 1
        %v1719 = vor.u32 %v1714, %v1718
        %v1722 = vsel %vm905, %v380, %v1610
        %v1725 = vsel %vm905, %v381, %v1612
        %v1728 = vsel %vm905, %v382, %v1614
        %v1731 = vsel %vm905, %v383, %v1616
        %v1734 = vsel %vm905, %v384, %v1618
        %v1737 = vsel %vm905, %v385, %v1620
        %v1740 = vsel %vm905, %v386, %v1622
        %v1742 = vsel %vm927, %v1722, %v1624
        %v1744 = vsel %vm927, %v1725, %v1626
        %v1746 = vsel %vm927, %v1728, %v1628
        %v1748 = vsel %vm927, %v1731, %v1630
        %v1750 = vsel %vm927, %v1734, %v1632
        %v1752 = vsel %vm927, %v1737, %v1634
        %v1754 = vsel %vm927, %v1740, %v1636
        %v1756 = vsel %vm942, %v1742, %v1638
        %v1758 = vsel %vm942, %v1744, %v1640
        %v1760 = vsel %vm942, %v1746, %v1642
        %v1762 = vsel %vm942, %v1748, %v1644
        %v1764 = vsel %vm942, %v1750, %v1646
        %v1766 = vsel %vm942, %v1752, %v1648
        %v1768 = vsel %vm942, %v1754, %v1650
        %v1770 = vsel %vm957, %v1756, %v1652
        %v1772 = vsel %vm957, %v1758, %v1654
        %v1774 = vsel %vm957, %v1760, %v1656
        %v1776 = vsel %vm957, %v1762, %v1658
        %v1778 = vsel %vm957, %v1764, %v1660
        %v1780 = vsel %vm957, %v1766, %v1662
        %v1782 = vsel %vm957, %v1768, %v1664
        %v1784 = vsel %vm972, %v1770, %v1666
        %v1786 = vsel %vm972, %v1772, %v1668
        %v1788 = vsel %vm972, %v1774, %v1670
        %v1790 = vsel %vm972, %v1776, %v1672
        %v1792 = vsel %vm972, %v1778, %v1674
        %v1794 = vsel %vm972, %v1780, %v1676
        %v1796 = vsel %vm972, %v1782, %v1678
        %v1798 = vsel %vm987, %v1784, %v1683
        %v1800 = vsel %vm987, %v1786, %v1685
        %v1802 = vsel %vm987, %v1788, %v1687
        %v1804 = vsel %vm987, %v1790, %v1689
        %v1806 = vsel %vm987, %v1792, %v1691
        %v1808 = vsel %vm987, %v1794, %v1693
        %v1810 = vsel %vm987, %v1796, %v1695
        %v1812 = vsel %vm1002, %v1798, %v1700
        %v1814 = vsel %vm1002, %v1800, %v1702
        %v1816 = vsel %vm1002, %v1802, %v1704
        %v1818 = vsel %vm1002, %v1804, %v1706
        %v1820 = vsel %vm1002, %v1806, %v1708
        %v1822 = vsel %vm1002, %v1808, %v1710
        %v1824 = vsel %vm1002, %v1810, %v1712
        %v1825 = vrot.slane %v814, 7
        %v1826 = vrot.slane %v821, 7
        %v1827 = vrot.slane %v828, 7
        %v1828 = vrot.slane %v835, 7
        %v1829 = vrot.slane %v842, 7
        %v1830 = vrot.slane %v849, 7
        %v1831 = vrot.slane %v1719, 7
        %v1833 = vsel %vm1024, %v1812, %v1825
        %v1835 = vsel %vm1028, %v1812, %v1825
        %v1837 = vrot.slane %v1835, 1
        %v1838 = vsel %vm1032, %v1812, %v1825
        %v1840 = vrot.slane %v1838, 2
        %v1841 = vsel %vm1036, %v1812, %v1825
        %v1843 = vrot.slane %v1841, 3
        %v1845 = vsel %vm1024, %v1814, %v1826
        %v1847 = vsel %vm1028, %v1814, %v1826
        %v1849 = vrot.slane %v1847, 1
        %v1850 = vsel %vm1032, %v1814, %v1826
        %v1852 = vrot.slane %v1850, 2
        %v1853 = vsel %vm1036, %v1814, %v1826
        %v1855 = vrot.slane %v1853, 3
        %v1857 = vsel %vm1024, %v1816, %v1827
        %v1859 = vsel %vm1028, %v1816, %v1827
        %v1861 = vrot.slane %v1859, 1
        %v1862 = vsel %vm1032, %v1816, %v1827
        %v1864 = vrot.slane %v1862, 2
        %v1865 = vsel %vm1036, %v1816, %v1827
        %v1867 = vrot.slane %v1865, 3
        %v1869 = vsel %vm1024, %v1818, %v1828
        %v1871 = vsel %vm1028, %v1818, %v1828
        %v1873 = vrot.slane %v1871, 1
        %v1874 = vsel %vm1032, %v1818, %v1828
        %v1876 = vrot.slane %v1874, 2
        %v1877 = vsel %vm1036, %v1818, %v1828
        %v1879 = vrot.slane %v1877, 3
        %v1881 = vsel %vm1024, %v1820, %v1829
        %v1883 = vsel %vm1028, %v1820, %v1829
        %v1885 = vrot.slane %v1883, 1
        %v1886 = vsel %vm1032, %v1820, %v1829
        %v1888 = vrot.slane %v1886, 2
        %v1889 = vsel %vm1036, %v1820, %v1829
        %v1891 = vrot.slane %v1889, 3
        %v1893 = vsel %vm1024, %v1822, %v1830
        %v1895 = vsel %vm1028, %v1822, %v1830
        %v1897 = vrot.slane %v1895, 1
        %v1898 = vsel %vm1032, %v1822, %v1830
        %v1900 = vrot.slane %v1898, 2
        %v1901 = vsel %vm1036, %v1822, %v1830
        %v1903 = vrot.slane %v1901, 3
        %v1905 = vsel %vm1024, %v1824, %v1831
        %v1907 = vsel %vm1028, %v1824, %v1831
        %v1909 = vrot.slane %v1907, 1
        %v1910 = vsel %vm1032, %v1824, %v1831
        %v1912 = vrot.slane %v1910, 2
        %v1913 = vsel %vm1036, %v1824, %v1831
        %v1915 = vrot.slane %v1913, 3
        %v1916 = vunpack.i.l.s16 %v1833
        %v1917 = vunpack.i.h.s16 %v1833
        %v1918 = vunpack.i.l.s16 %v1837
        %v1919 = vunpack.i.h.s16 %v1837
        %v1920 = vunpack.i.l.s16 %v1840
        %v1921 = vunpack.i.h.s16 %v1840
        %v1922 = vunpack.i.l.s16 %v1843
        %v1923 = vunpack.i.l.s16 %v1845
        %v1924 = vunpack.i.h.s16 %v1845
        %v1925 = vunpack.i.l.s16 %v1849
        %v1926 = vunpack.i.h.s16 %v1849
        %v1927 = vunpack.i.l.s16 %v1852
        %v1928 = vunpack.i.h.s16 %v1852
        %v1929 = vunpack.i.l.s16 %v1855
        %v1930 = vunpack.i.l.s16 %v1857
        %v1931 = vunpack.i.h.s16 %v1857
        %v1932 = vunpack.i.l.s16 %v1861
        %v1933 = vunpack.i.h.s16 %v1861
        %v1934 = vunpack.i.l.s16 %v1864
        %v1935 = vunpack.i.h.s16 %v1864
        %v1936 = vunpack.i.l.s16 %v1867
        %v1937 = vunpack.i.l.s16 %v1869
        %v1938 = vunpack.i.h.s16 %v1869
        %v1939 = vunpack.i.l.s16 %v1873
        %v1940 = vunpack.i.h.s16 %v1873
        %v1941 = vunpack.i.l.s16 %v1876
        %v1942 = vunpack.i.h.s16 %v1876
        %v1943 = vunpack.i.l.s16 %v1879
        %v1944 = vunpack.i.l.s16 %v1881
        %v1945 = vunpack.i.h.s16 %v1881
        %v1946 = vunpack.i.l.s16 %v1885
        %v1947 = vunpack.i.h.s16 %v1885
        %v1948 = vunpack.i.l.s16 %v1888
        %v1949 = vunpack.i.h.s16 %v1888
        %v1950 = vunpack.i.l.s16 %v1891
        %v1951 = vunpack.i.l.s16 %v1893
        %v1952 = vunpack.i.h.s16 %v1893
        %v1953 = vunpack.i.l.s16 %v1897
        %v1954 = vunpack.i.h.s16 %v1897
        %v1955 = vunpack.i.l.s16 %v1900
        %v1956 = vunpack.i.h.s16 %v1900
        %v1957 = vunpack.i.l.s16 %v1903
        %v1958 = vunpack.i.l.s16 %v1905
        %v1959 = vunpack.i.h.s16 %v1905
        %v1960 = vunpack.i.l.s16 %v1909
        %v1961 = vunpack.i.h.s16 %v1909
        %v1962 = vunpack.i.l.s16 %v1912
        %v1963 = vunpack.i.h.s16 %v1912
        %v1964 = vunpack.i.l.s16 %v1915
        %1965 = vrot.lane.b32.xlu0 %v807, 16
        %v1966 = vpop.permute.xlu0 %1965
        %1967 = vrot.lane.b32.xlu0 %v814, 16
        %v1968 = vpop.permute.xlu0 %1967
        %1969 = vrot.lane.b32.xlu0 %v821, 16
        %v1970 = vpop.permute.xlu0 %1969
        %1971 = vrot.lane.b32.xlu0 %v828, 16
        %v1972 = vpop.permute.xlu0 %1971
        %1973 = vrot.lane.b32.xlu0 %v835, 16
        %v1974 = vpop.permute.xlu0 %1973
        %1975 = vrot.lane.b32.xlu0 %v842, 16
        %v1976 = vpop.permute.xlu0 %1975
        %1977 = vrot.lane.b32.xlu0 %v849, 16
        %v1978 = vpop.permute.xlu0 %1977
        %1979 = vrot.lane.b32.xlu0 %v1272, 32
        %v1980 = vpop.permute.xlu0 %1979
        %1981 = vrot.lane.b32.xlu0 %v1279, 32
        %v1982 = vpop.permute.xlu0 %1981
        %1983 = vrot.lane.b32.xlu0 %v1286, 32
        %v1984 = vpop.permute.xlu0 %1983
        %1985 = vrot.lane.b32.xlu0 %v1293, 32
        %v1986 = vpop.permute.xlu0 %1985
        %1987 = vrot.lane.b32.xlu0 %v1300, 32
        %v1988 = vpop.permute.xlu0 %1987
        %1989 = vrot.lane.b32.xlu0 %v1307, 32
        %v1990 = vpop.permute.xlu0 %1989
        %1991 = vrot.lane.b32.xlu0 %v1314, 32
        %v1992 = vpop.permute.xlu0 %1991
        %1993 = vrot.lane.b32.xlu0 %v627, 48
        %v1994 = vpop.permute.xlu0 %1993
        %1995 = vrot.lane.b32.xlu0 %v628, 48
        %v1996 = vpop.permute.xlu0 %1995
        %1997 = vrot.lane.b32.xlu0 %v629, 48
        %v1998 = vpop.permute.xlu0 %1997
        %1999 = vrot.lane.b32.xlu0 %v630, 48
        %v2000 = vpop.permute.xlu0 %1999
        %2001 = vrot.lane.b32.xlu0 %v631, 48
        %v2002 = vpop.permute.xlu0 %2001
        %2003 = vrot.lane.b32.xlu0 %v632, 48
        %v2004 = vpop.permute.xlu0 %2003
        %2005 = vrot.lane.b32.xlu0 %v883, 48
        %v2006 = vpop.permute.xlu0 %2005
        %2007 = vrot.lane.b32.xlu0 %v681, 64
        %v2008 = vpop.permute.xlu0 %2007
        %2009 = vrot.lane.b32.xlu0 %v688, 64
        %v2010 = vpop.permute.xlu0 %2009
        %2011 = vrot.lane.b32.xlu0 %v695, 64
        %v2012 = vpop.permute.xlu0 %2011
        %2013 = vrot.lane.b32.xlu0 %v702, 64
        %v2014 = vpop.permute.xlu0 %2013
        %2015 = vrot.lane.b32.xlu0 %v709, 64
        %v2016 = vpop.permute.xlu0 %2015
        %2017 = vrot.lane.b32.xlu0 %v716, 64
        %v2018 = vpop.permute.xlu0 %2017
        %2019 = vrot.lane.b32.xlu0 %v904, 64
        %v2020 = vpop.permute.xlu0 %2019
        %2021 = vrot.lane.b32.xlu0 %v1188, 80
        %v2022 = vpop.permute.xlu0 %2021
        %2023 = vrot.lane.b32.xlu0 %v1195, 80
        %v2024 = vpop.permute.xlu0 %2023
        %2025 = vrot.lane.b32.xlu0 %v1202, 80
        %v2026 = vpop.permute.xlu0 %2025
        %2027 = vrot.lane.b32.xlu0 %v1209, 80
        %v2028 = vpop.permute.xlu0 %2027
        %2029 = vrot.lane.b32.xlu0 %v1216, 80
        %v2030 = vpop.permute.xlu0 %2029
        %2031 = vrot.lane.b32.xlu0 %v1223, 80
        %v2032 = vpop.permute.xlu0 %2031
        %2033 = vrot.lane.b32.xlu0 %v1363, 80
        %v2034 = vpop.permute.xlu0 %2033
        %2035 = vrot.lane.b32.xlu0 %v781, 96
        %v2036 = vpop.permute.xlu0 %2035
        %2037 = vrot.lane.b32.xlu0 %v782, 96
        %v2038 = vpop.permute.xlu0 %2037
        %2039 = vrot.lane.b32.xlu0 %v783, 96
        %v2040 = vpop.permute.xlu0 %2039
        %2041 = vrot.lane.b32.xlu0 %v784, 96
        %v2042 = vpop.permute.xlu0 %2041
        %2043 = vrot.lane.b32.xlu0 %v785, 96
        %v2044 = vpop.permute.xlu0 %2043
        %2045 = vrot.lane.b32.xlu0 %v786, 96
        %v2046 = vpop.permute.xlu0 %2045
        %2047 = vrot.lane.b32.xlu0 %v1698, 96
        %v2048 = vpop.permute.xlu0 %2047
        %2049 = vrot.lane.b32.xlu0 %v814, 112
        %v2050 = vpop.permute.xlu0 %2049
        %2051 = vrot.lane.b32.xlu0 %v821, 112
        %v2052 = vpop.permute.xlu0 %2051
        %2053 = vrot.lane.b32.xlu0 %v828, 112
        %v2054 = vpop.permute.xlu0 %2053
        %2055 = vrot.lane.b32.xlu0 %v835, 112
        %v2056 = vpop.permute.xlu0 %2055
        %2057 = vrot.lane.b32.xlu0 %v842, 112
        %v2058 = vpop.permute.xlu0 %2057
        %2059 = vrot.lane.b32.xlu0 %v849, 112
        %v2060 = vpop.permute.xlu0 %2059
        %2061 = vrot.lane.b32.xlu0 %v1719, 112
        %v2062 = vpop.permute.xlu0 %2061
        %v2064 = vshrl.u32 %v1698, 16
        %v2066 = vshll.u32 %v1698, 16
        %v2068 = vrot.slane %v2066, 1
        %v2069 = vor.u32 %v2064, %v2068
        %v2072 = vsel %vm905, %v388, %v1966
        %v2075 = vsel %vm905, %v389, %v1968
        %v2078 = vsel %vm905, %v390, %v1970
        %v2081 = vsel %vm905, %v391, %v1972
        %v2084 = vsel %vm905, %v392, %v1974
        %v2087 = vsel %vm905, %v393, %v1976
        %v2090 = vsel %vm905, %v394, %v1978
        %v2092 = vsel %vm927, %v2072, %v1980
        %v2094 = vsel %vm927, %v2075, %v1982
        %v2096 = vsel %vm927, %v2078, %v1984
        %v2098 = vsel %vm927, %v2081, %v1986
        %v2100 = vsel %vm927, %v2084, %v1988
        %v2102 = vsel %vm927, %v2087, %v1990
        %v2104 = vsel %vm927, %v2090, %v1992
        %v2106 = vsel %vm942, %v2092, %v1994
        %v2108 = vsel %vm942, %v2094, %v1996
        %v2110 = vsel %vm942, %v2096, %v1998
        %v2112 = vsel %vm942, %v2098, %v2000
        %v2114 = vsel %vm942, %v2100, %v2002
        %v2116 = vsel %vm942, %v2102, %v2004
        %v2118 = vsel %vm942, %v2104, %v2006
        %v2120 = vsel %vm957, %v2106, %v2008
        %v2122 = vsel %vm957, %v2108, %v2010
        %v2124 = vsel %vm957, %v2110, %v2012
        %v2126 = vsel %vm957, %v2112, %v2014
        %v2128 = vsel %vm957, %v2114, %v2016
        %v2130 = vsel %vm957, %v2116, %v2018
        %v2132 = vsel %vm957, %v2118, %v2020
        %v2134 = vsel %vm972, %v2120, %v2022
        %v2136 = vsel %vm972, %v2122, %v2024
        %v2138 = vsel %vm972, %v2124, %v2026
        %v2140 = vsel %vm972, %v2126, %v2028
        %v2142 = vsel %vm972, %v2128, %v2030
        %v2144 = vsel %vm972, %v2130, %v2032
        %v2146 = vsel %vm972, %v2132, %v2034
        %v2148 = vsel %vm987, %v2134, %v2036
        %v2150 = vsel %vm987, %v2136, %v2038
        %v2152 = vsel %vm987, %v2138, %v2040
        %v2154 = vsel %vm987, %v2140, %v2042
        %v2156 = vsel %vm987, %v2142, %v2044
        %v2158 = vsel %vm987, %v2144, %v2046
        %v2160 = vsel %vm987, %v2146, %v2048
        %v2162 = vsel %vm1002, %v2148, %v2050
        %v2164 = vsel %vm1002, %v2150, %v2052
        %v2166 = vsel %vm1002, %v2152, %v2054
        %v2168 = vsel %vm1002, %v2154, %v2056
        %v2170 = vsel %vm1002, %v2156, %v2058
        %v2172 = vsel %vm1002, %v2158, %v2060
        %v2174 = vsel %vm1002, %v2160, %v2062
        %v2175 = vrot.slane %v1279, 7
        %v2176 = vrot.slane %v1286, 7
        %v2177 = vrot.slane %v1293, 7
        %v2178 = vrot.slane %v1300, 7
        %v2179 = vrot.slane %v1307, 7
        %v2180 = vrot.slane %v1314, 7
        %v2181 = vrot.slane %v2069, 7
        %v2183 = vsel %vm1024, %v2162, %v2175
        %v2185 = vsel %vm1028, %v2162, %v2175
        %v2187 = vrot.slane %v2185, 1
        %v2188 = vsel %vm1032, %v2162, %v2175
        %v2190 = vrot.slane %v2188, 2
        %v2191 = vsel %vm1036, %v2162, %v2175
        %v2193 = vrot.slane %v2191, 3
        %v2195 = vsel %vm1024, %v2164, %v2176
        %v2197 = vsel %vm1028, %v2164, %v2176
        %v2199 = vrot.slane %v2197, 1
        %v2200 = vsel %vm1032, %v2164, %v2176
        %v2202 = vrot.slane %v2200, 2
        %v2203 = vsel %vm1036, %v2164, %v2176
        %v2205 = vrot.slane %v2203, 3
        %v2207 = vsel %vm1024, %v2166, %v2177
        %v2209 = vsel %vm1028, %v2166, %v2177
        %v2211 = vrot.slane %v2209, 1
        %v2212 = vsel %vm1032, %v2166, %v2177
        %v2214 = vrot.slane %v2212, 2
        %v2215 = vsel %vm1036, %v2166, %v2177
        %v2217 = vrot.slane %v2215, 3
        %v2219 = vsel %vm1024, %v2168, %v2178
        %v2221 = vsel %vm1028, %v2168, %v2178
        %v2223 = vrot.slane %v2221, 1
        %v2224 = vsel %vm1032, %v2168, %v2178
        %v2226 = vrot.slane %v2224, 2
        %v2227 = vsel %vm1036, %v2168, %v2178
        %v2229 = vrot.slane %v2227, 3
        %v2231 = vsel %vm1024, %v2170, %v2179
        %v2233 = vsel %vm1028, %v2170, %v2179
        %v2235 = vrot.slane %v2233, 1
        %v2236 = vsel %vm1032, %v2170, %v2179
        %v2238 = vrot.slane %v2236, 2
        %v2239 = vsel %vm1036, %v2170, %v2179
        %v2241 = vrot.slane %v2239, 3
        %v2243 = vsel %vm1024, %v2172, %v2180
        %v2245 = vsel %vm1028, %v2172, %v2180
        %v2247 = vrot.slane %v2245, 1
        %v2248 = vsel %vm1032, %v2172, %v2180
        %v2250 = vrot.slane %v2248, 2
        %v2251 = vsel %vm1036, %v2172, %v2180
        %v2253 = vrot.slane %v2251, 3
        %v2255 = vsel %vm1024, %v2174, %v2181
        %v2257 = vsel %vm1028, %v2174, %v2181
        %v2259 = vrot.slane %v2257, 1
        %v2260 = vsel %vm1032, %v2174, %v2181
        %v2262 = vrot.slane %v2260, 2
        %v2263 = vsel %vm1036, %v2174, %v2181
        %v2265 = vrot.slane %v2263, 3
        %v2266 = vunpack.i.l.s16 %v2183
        %v2267 = vunpack.i.h.s16 %v2183
        %v2268 = vunpack.i.l.s16 %v2187
        %v2269 = vunpack.i.h.s16 %v2187
        %v2270 = vunpack.i.l.s16 %v2190
        %v2271 = vunpack.i.h.s16 %v2190
        %v2272 = vunpack.i.l.s16 %v2193
        %v2273 = vunpack.i.l.s16 %v2195
        %v2274 = vunpack.i.h.s16 %v2195
        %v2275 = vunpack.i.l.s16 %v2199
        %v2276 = vunpack.i.h.s16 %v2199
        %v2277 = vunpack.i.l.s16 %v2202
        %v2278 = vunpack.i.h.s16 %v2202
        %v2279 = vunpack.i.l.s16 %v2205
        %v2280 = vunpack.i.l.s16 %v2207
        %v2281 = vunpack.i.h.s16 %v2207
        %v2282 = vunpack.i.l.s16 %v2211
        %v2283 = vunpack.i.h.s16 %v2211
        %v2284 = vunpack.i.l.s16 %v2214
        %v2285 = vunpack.i.h.s16 %v2214
        %v2286 = vunpack.i.l.s16 %v2217
        %v2287 = vunpack.i.l.s16 %v2219
        %v2288 = vunpack.i.h.s16 %v2219
        %v2289 = vunpack.i.l.s16 %v2223
        %v2290 = vunpack.i.h.s16 %v2223
        %v2291 = vunpack.i.l.s16 %v2226
        %v2292 = vunpack.i.h.s16 %v2226
        %v2293 = vunpack.i.l.s16 %v2229
        %v2294 = vunpack.i.l.s16 %v2231
        %v2295 = vunpack.i.h.s16 %v2231
        %v2296 = vunpack.i.l.s16 %v2235
        %v2297 = vunpack.i.h.s16 %v2235
        %v2298 = vunpack.i.l.s16 %v2238
        %v2299 = vunpack.i.h.s16 %v2238
        %v2300 = vunpack.i.l.s16 %v2241
        %v2301 = vunpack.i.l.s16 %v2243
        %v2302 = vunpack.i.h.s16 %v2243
        %v2303 = vunpack.i.l.s16 %v2247
        %v2304 = vunpack.i.h.s16 %v2247
        %v2305 = vunpack.i.l.s16 %v2250
        %v2306 = vunpack.i.h.s16 %v2250
        %v2307 = vunpack.i.l.s16 %v2253
        %v2308 = vunpack.i.l.s16 %v2255
        %v2309 = vunpack.i.h.s16 %v2255
        %v2310 = vunpack.i.l.s16 %v2259
        %v2311 = vunpack.i.h.s16 %v2259
        %v2312 = vunpack.i.l.s16 %v2262
        %v2313 = vunpack.i.h.s16 %v2262
        %v2314 = vunpack.i.l.s16 %v2265
        %v2315 = vpack.i.b16 %v1113, %v1112
        %v2316 = vpack.i.b16 %v1115, %v1114
        %v2317 = vpack.i.b16 %v1117, %v1116
        %v2318 = vpack.i.b16 %v1119, %v1118
        %v2319 = vpack.i.b16 %v1121, %v1120
        %v2320 = vpack.i.b16 %v1123, %v1122
        %v2321 = vpack.i.b16 %v1125, %v1124
        %v2322 = vpack.i.b16 %v1127, %v1126
        %v2323 = vpack.i.b16 %v1129, %v1128
        %v2324 = vpack.i.b16 %v1131, %v1130
        %v2325 = vpack.i.b16 %v1133, %v1132
        %v2326 = vpack.i.b16 %v1135, %v1134
        %v2327 = vpack.i.b16 %v1137, %v1136
        %v2328 = vpack.i.b16 %v1139, %v1138
        %v2329 = vpack.i.b16 %v1141, %v1140
        %v2330 = vpack.i.b16 %v1143, %v1142
        %v2331 = vpack.i.b16 %v1145, %v1144
        %v2332 = vpack.i.b16 %v1147, %v1146
        %v2333 = vpack.i.b16 %v1149, %v1148
        %v2334 = vpack.i.b16 %v1151, %v1150
        %v2335 = vpack.i.b16 %v1153, %v1152
        %v2336 = vpack.i.b16 %v1155, %v1154
        %v2337 = vpack.i.b16 %v1157, %v1156
        %v2338 = vpack.i.b16 %v1159, %v1158
        %2341 = vst [vmem:[#allocation1] ss:$9 sm:$0xff] %v2315
        %s2343 = scalar_lea.vmem [#allocation1], 1
        %2344 = vst [vmem:[%s2343] ss:$9 sm:$0xff] %v2316
        %s2346 = scalar_lea.vmem [#allocation1], 2
        %2347 = vst [vmem:[%s2346] ss:$9 sm:$0xff] %v2317
        %s2349 = scalar_lea.vmem [#allocation1], 3
        %2350 = vst [vmem:[%s2349] ss:$9 sm:$0xff] %v2318
        %s2352 = scalar_lea.vmem [#allocation1], 4
        %2353 = vst [vmem:[%s2352] ss:$9 sm:$0xff] %v2319
        %s2355 = scalar_lea.vmem [#allocation1], 5
        %2356 = vst [vmem:[%s2355] ss:$9 sm:$0xff] %v2320
        %s2358 = scalar_lea.vmem [#allocation1], 6
        %2359 = vst [vmem:[%s2358] ss:$9 sm:$0xff] %v2321
        %s2361 = scalar_lea.vmem [#allocation1], 7
        %2362 = vst [vmem:[%s2361] ss:$9 sm:$0xff] %v2322
        %v2363 = vld [vmem:[#allocation1] sm:$0xff]
        %v2364 = vld [vmem:[#allocation1 + $0x9] sm:$0xff]
        %2366 = vst [vmem:[#allocation1] ss:$9 sm:$0xff] %v2323
        %2368 = vst [vmem:[%s2343] ss:$9 sm:$0xff] %v2324
        %2370 = vst [vmem:[%s2346] ss:$9 sm:$0xff] %v2325
        %2372 = vst [vmem:[%s2349] ss:$9 sm:$0xff] %v2326
        %2374 = vst [vmem:[%s2352] ss:$9 sm:$0xff] %v2327
        %2376 = vst [vmem:[%s2355] ss:$9 sm:$0xff] %v2328
        %2378 = vst [vmem:[%s2358] ss:$9 sm:$0xff] %v2329
        %2380 = vst [vmem:[%s2361] ss:$9 sm:$0xff] %v2330
        %v2381 = vld [vmem:[#allocation1] sm:$0xff]
        %v2382 = vld [vmem:[#allocation1 + $0x9] sm:$0xff]
        %2384 = vst [vmem:[#allocation1] ss:$9 sm:$0xff] %v2331
        %2386 = vst [vmem:[%s2343] ss:$9 sm:$0xff] %v2332
        %2388 = vst [vmem:[%s2346] ss:$9 sm:$0xff] %v2333
        %2390 = vst [vmem:[%s2349] ss:$9 sm:$0xff] %v2334
        %2392 = vst [vmem:[%s2352] ss:$9 sm:$0xff] %v2335
        %2394 = vst [vmem:[%s2355] ss:$9 sm:$0xff] %v2336
        %2396 = vst [vmem:[%s2358] ss:$9 sm:$0xff] %v2337
        %2398 = vst [vmem:[%s2361] ss:$9 sm:$0xff] %v2338
        %v2399 = vld [vmem:[#allocation1] sm:$0xff]
        %v2400 = vld [vmem:[#allocation1 + $0x9] sm:$0xff]
        %2402 = vst [vmem:[#allocation1] ss:$9 sm:$0xff] %v1160
        %v2403 = vld [vmem:[#allocation1] sm:$0xff]
        %v2404 = vld [vmem:[#allocation1 + $0x9] sm:$0xff]
        %v2410 = vpack.i.b16 %v1560, %v1560
        %v2411 = vpack.i.b16 %v1562, %v1561
        %v2412 = vpack.i.b16 %v1564, %v1563
        %v2413 = vpack.i.b16 %v1566, %v1565
        %v2414 = vpack.i.b16 %v1568, %v1567
        %v2415 = vpack.i.b16 %v1570, %v1569
        %v2416 = vpack.i.b16 %v1572, %v1571
        %v2417 = vpack.i.b16 %v1574, %v1573
        %v2418 = vpack.i.b16 %v1576, %v1575
        %v2419 = vpack.i.b16 %v1578, %v1577
        %v2420 = vpack.i.b16 %v1580, %v1579
        %v2421 = vpack.i.b16 %v1582, %v1581
        %v2422 = vpack.i.b16 %v1584, %v1583
        %v2423 = vpack.i.b16 %v1586, %v1585
        %v2424 = vpack.i.b16 %v1588, %v1587
        %v2425 = vpack.i.b16 %v1590, %v1589
        %v2426 = vpack.i.b16 %v1592, %v1591
        %v2427 = vpack.i.b16 %v1594, %v1593
        %v2428 = vpack.i.b16 %v1596, %v1595
        %v2429 = vpack.i.b16 %v1598, %v1597
        %v2430 = vpack.i.b16 %v1600, %v1599
        %v2431 = vpack.i.b16 %v1602, %v1601
        %v2432 = vpack.i.b16 %v1604, %v1603
        %v2433 = vpack.i.b16 %v1606, %v1605
        %v2434 = vpack.i.b16 %v1608, %v1607
        %2436 = vst [vmem:[#allocation1] ss:$9 sm:$0xff] %v2410
        %s2438 = scalar_lea.vmem [#allocation1], 1
        %2439 = vst [vmem:[%s2438] ss:$9 sm:$0xff] %v2411
        %s2441 = scalar_lea.vmem [#allocation1], 2
        %2442 = vst [vmem:[%s2441] ss:$9 sm:$0xff] %v2412
        %s2444 = scalar_lea.vmem [#allocation1], 3
        %2445 = vst [vmem:[%s2444] ss:$9 sm:$0xff] %v2413
        %s2447 = scalar_lea.vmem [#allocation1], 4
        %2448 = vst [vmem:[%s2447] ss:$9 sm:$0xff] %v2414
        %s2450 = scalar_lea.vmem [#allocation1], 5
        %2451 = vst [vmem:[%s2450] ss:$9 sm:$0xff] %v2415
        %s2453 = scalar_lea.vmem [#allocation1], 6
        %2454 = vst [vmem:[%s2453] ss:$9 sm:$0xff] %v2416
        %s2456 = scalar_lea.vmem [#allocation1], 7
        %2457 = vst [vmem:[%s2456] ss:$9 sm:$0xff] %v2417
        %v2458 = vld [vmem:[#allocation1] sm:$0xff]
        %v2459 = vld [vmem:[#allocation1 + $0x9] sm:$0xff]
        %2461 = vst [vmem:[#allocation1] ss:$9 sm:$0xff] %v2418
        %2463 = vst [vmem:[%s2438] ss:$9 sm:$0xff] %v2419
        %2465 = vst [vmem:[%s2441] ss:$9 sm:$0xff] %v2420
        %2467 = vst [vmem:[%s2444] ss:$9 sm:$0xff] %v2421
        %2469 = vst [vmem:[%s2447] ss:$9 sm:$0xff] %v2422
        %2471 = vst [vmem:[%s2450] ss:$9 sm:$0xff] %v2423
        %2473 = vst [vmem:[%s2453] ss:$9 sm:$0xff] %v2424
        %2475 = vst [vmem:[%s2456] ss:$9 sm:$0xff] %v2425
        %v2476 = vld [vmem:[#allocation1] sm:$0xff]
        %v2477 = vld [vmem:[#allocation1 + $0x9] sm:$0xff]
        %2479 = vst [vmem:[#allocation1] ss:$9 sm:$0xff] %v2426
        %2481 = vst [vmem:[%s2438] ss:$9 sm:$0xff] %v2427
        %2483 = vst [vmem:[%s2441] ss:$9 sm:$0xff] %v2428
        %2485 = vst [vmem:[%s2444] ss:$9 sm:$0xff] %v2429
        %2487 = vst [vmem:[%s2447] ss:$9 sm:$0xff] %v2430
        %2489 = vst [vmem:[%s2450] ss:$9 sm:$0xff] %v2431
        %2491 = vst [vmem:[%s2453] ss:$9 sm:$0xff] %v2432
        %2493 = vst [vmem:[%s2456] ss:$9 sm:$0xff] %v2433
        %v2494 = vld [vmem:[#allocation1] sm:$0xff]
        %v2495 = vld [vmem:[#allocation1 + $0x9] sm:$0xff]
        %2497 = vst [vmem:[#allocation1] ss:$9 sm:$0xff] %v2434
        %v2498 = vld [vmem:[#allocation1] sm:$0xff]
        %v2499 = vld [vmem:[#allocation1 + $0x9] sm:$0xff]
        %v2504 = vpack.i.b16 %v1917, %v1916
        %v2505 = vpack.i.b16 %v1919, %v1918
        %v2506 = vpack.i.b16 %v1921, %v1920
        %v2507 = vpack.i.b16 %v1923, %v1922
        %v2508 = vpack.i.b16 %v1925, %v1924
        %v2509 = vpack.i.b16 %v1927, %v1926
        %v2510 = vpack.i.b16 %v1929, %v1928
        %v2511 = vpack.i.b16 %v1931, %v1930
        %v2512 = vpack.i.b16 %v1933, %v1932
        %v2513 = vpack.i.b16 %v1935, %v1934
        %v2514 = vpack.i.b16 %v1937, %v1936
        %v2515 = vpack.i.b16 %v1939, %v1938
        %v2516 = vpack.i.b16 %v1941, %v1940
        %v2517 = vpack.i.b16 %v1943, %v1942
        %v2518 = vpack.i.b16 %v1945, %v1944
        %v2519 = vpack.i.b16 %v1947, %v1946
        %v2520 = vpack.i.b16 %v1949, %v1948
        %v2521 = vpack.i.b16 %v1951, %v1950
        %v2522 = vpack.i.b16 %v1953, %v1952
        %v2523 = vpack.i.b16 %v1955, %v1954
        %v2524 = vpack.i.b16 %v1957, %v1956
        %v2525 = vpack.i.b16 %v1959, %v1958
        %v2526 = vpack.i.b16 %v1961, %v1960
        %v2527 = vpack.i.b16 %v1963, %v1962
        %s2530 = scalar_lea.vmem [#allocation1], 1
        %2531 = vst [vmem:[%s2530] ss:$9 sm:$0xff] %v2504
        %s2533 = scalar_lea.vmem [#allocation1], 2
        %2534 = vst [vmem:[%s2533] ss:$9 sm:$0xff] %v2505
        %s2536 = scalar_lea.vmem [#allocation1], 3
        %2537 = vst [vmem:[%s2536] ss:$9 sm:$0xff] %v2506
        %s2539 = scalar_lea.vmem [#allocation1], 4
        %2540 = vst [vmem:[%s2539] ss:$9 sm:$0xff] %v2507
        %s2542 = scalar_lea.vmem [#allocation1], 5
        %2543 = vst [vmem:[%s2542] ss:$9 sm:$0xff] %v2508
        %s2545 = scalar_lea.vmem [#allocation1], 6
        %2546 = vst [vmem:[%s2545] ss:$9 sm:$0xff] %v2509
        %s2548 = scalar_lea.vmem [#allocation1], 7
        %2549 = vst [vmem:[%s2548] ss:$9 sm:$0xff] %v2510
        %v2550 = vld [vmem:[#allocation1] sm:$0xff]
        %v2551 = vld [vmem:[#allocation1 + $0x9] sm:$0xff]
        %2553 = vst [vmem:[#allocation1] ss:$9 sm:$0xff] %v2511
        %2555 = vst [vmem:[%s2530] ss:$9 sm:$0xff] %v2512
        %2557 = vst [vmem:[%s2533] ss:$9 sm:$0xff] %v2513
        %2559 = vst [vmem:[%s2536] ss:$9 sm:$0xff] %v2514
        %2561 = vst [vmem:[%s2539] ss:$9 sm:$0xff] %v2515
        %2563 = vst [vmem:[%s2542] ss:$9 sm:$0xff] %v2516
        %2565 = vst [vmem:[%s2545] ss:$9 sm:$0xff] %v2517
        %2567 = vst [vmem:[%s2548] ss:$9 sm:$0xff] %v2518
        %v2568 = vld [vmem:[#allocation1] sm:$0xff]
        %v2569 = vld [vmem:[#allocation1 + $0x9] sm:$0xff]
        %2571 = vst [vmem:[#allocation1] ss:$9 sm:$0xff] %v2519
        %2573 = vst [vmem:[%s2530] ss:$9 sm:$0xff] %v2520
        %2575 = vst [vmem:[%s2533] ss:$9 sm:$0xff] %v2521
        %2577 = vst [vmem:[%s2536] ss:$9 sm:$0xff] %v2522
        %2579 = vst [vmem:[%s2539] ss:$9 sm:$0xff] %v2523
        %2581 = vst [vmem:[%s2542] ss:$9 sm:$0xff] %v2524
        %2583 = vst [vmem:[%s2545] ss:$9 sm:$0xff] %v2525
        %2585 = vst [vmem:[%s2548] ss:$9 sm:$0xff] %v2526
        %v2586 = vld [vmem:[#allocation1] sm:$0xff]
        %v2587 = vld [vmem:[#allocation1 + $0x9] sm:$0xff]
        %2589 = vst [vmem:[#allocation1] ss:$9 sm:$0xff] %v2527
        %2591 = vst [vmem:[%s2530] ss:$9 sm:$0xff] %v1964
        %v2592 = vld [vmem:[#allocation1] sm:$0xff]
        %v2593 = vld [vmem:[#allocation1 + $0x9] sm:$0xff]
        %v2598 = vpack.i.b16 %v2266, %v2266
        %v2599 = vpack.i.b16 %v2268, %v2267
        %v2600 = vpack.i.b16 %v2270, %v2269
        %v2601 = vpack.i.b16 %v2272, %v2271
        %v2602 = vpack.i.b16 %v2274, %v2273
        %v2603 = vpack.i.b16 %v2276, %v2275
        %v2604 = vpack.i.b16 %v2278, %v2277
        %v2605 = vpack.i.b16 %v2280, %v2279
        %v2606 = vpack.i.b16 %v2282, %v2281
        %v2607 = vpack.i.b16 %v2284, %v2283
        %v2608 = vpack.i.b16 %v2286, %v2285
        %v2609 = vpack.i.b16 %v2288, %v2287
        %v2610 = vpack.i.b16 %v2290, %v2289
        %v2611 = vpack.i.b16 %v2292, %v2291
        %v2612 = vpack.i.b16 %v2294, %v2293
        %v2613 = vpack.i.b16 %v2296, %v2295
        %v2614 = vpack.i.b16 %v2298, %v2297
        %v2615 = vpack.i.b16 %v2300, %v2299
        %v2616 = vpack.i.b16 %v2302, %v2301
        %v2617 = vpack.i.b16 %v2304, %v2303
        %v2618 = vpack.i.b16 %v2306, %v2305
        %v2619 = vpack.i.b16 %v2308, %v2307
        %v2620 = vpack.i.b16 %v2310, %v2309
        %v2621 = vpack.i.b16 %v2312, %v2311
        %v2622 = vpack.i.b16 %v2314, %v2313
        %s2624 = scalar_lea.vmem [#allocation1], 1
        %2625 = vst [vmem:[%s2624] ss:$9 sm:$0xff] %v2598
        %s2627 = scalar_lea.vmem [#allocation1], 2
        %2628 = vst [vmem:[%s2627] ss:$9 sm:$0xff] %v2599
        %s2630 = scalar_lea.vmem [#allocation1], 3
        %2631 = vst [vmem:[%s2630] ss:$9 sm:$0xff] %v2600
        %s2633 = scalar_lea.vmem [#allocation1], 4
        %2634 = vst [vmem:[%s2633] ss:$9 sm:$0xff] %v2601
        %s2636 = scalar_lea.vmem [#allocation1], 5
        %2637 = vst [vmem:[%s2636] ss:$9 sm:$0xff] %v2602
        %s2639 = scalar_lea.vmem [#allocation1], 6
        %2640 = vst [vmem:[%s2639] ss:$9 sm:$0xff] %v2603
        %s2642 = scalar_lea.vmem [#allocation1], 7
        %2643 = vst [vmem:[%s2642] ss:$9 sm:$0xff] %v2604
        %v2644 = vld [vmem:[#allocation1] sm:$0xff]
        %v2645 = vld [vmem:[#allocation1 + $0x9] sm:$0xff]
        %2647 = vst [vmem:[#allocation1] ss:$9 sm:$0xff] %v2605
        %2649 = vst [vmem:[%s2624] ss:$9 sm:$0xff] %v2606
        %2651 = vst [vmem:[%s2627] ss:$9 sm:$0xff] %v2607
        %2653 = vst [vmem:[%s2630] ss:$9 sm:$0xff] %v2608
        %2655 = vst [vmem:[%s2633] ss:$9 sm:$0xff] %v2609
        %2657 = vst [vmem:[%s2636] ss:$9 sm:$0xff] %v2610
        %2659 = vst [vmem:[%s2639] ss:$9 sm:$0xff] %v2611
        %2661 = vst [vmem:[%s2642] ss:$9 sm:$0xff] %v2612
        %v2662 = vld [vmem:[#allocation1] sm:$0xff]
        %v2663 = vld [vmem:[#allocation1 + $0x9] sm:$0xff]
        %2665 = vst [vmem:[#allocation1] ss:$9 sm:$0xff] %v2613
        %2667 = vst [vmem:[%s2624] ss:$9 sm:$0xff] %v2614
        %2669 = vst [vmem:[%s2627] ss:$9 sm:$0xff] %v2615
        %2671 = vst [vmem:[%s2630] ss:$9 sm:$0xff] %v2616
        %2673 = vst [vmem:[%s2633] ss:$9 sm:$0xff] %v2617
        %2675 = vst [vmem:[%s2636] ss:$9 sm:$0xff] %v2618
        %2677 = vst [vmem:[%s2639] ss:$9 sm:$0xff] %v2619
        %2679 = vst [vmem:[%s2642] ss:$9 sm:$0xff] %v2620
        %v2680 = vld [vmem:[#allocation1] sm:$0xff]
        %v2681 = vld [vmem:[#allocation1 + $0x9] sm:$0xff]
        %2683 = vst [vmem:[#allocation1] ss:$9 sm:$0xff] %v2621
        %2685 = vst [vmem:[%s2624] ss:$9 sm:$0xff] %v2622
        %v2686 = vld [vmem:[#allocation1] sm:$0xff]
        %v2687 = vld [vmem:[#allocation1 + $0x9] sm:$0xff]
        %vm2693 = vcmask 1040384
        %vm2694 = vsmask.f32 256
        %vm2695 = vmand %vm2693, %vm2694
        %v2696 = vsel %vm2695, %v2403, %v2458
        %v2697 = vsel %vm2695, %v2404, %v2459
        %v2698 = vsel %vm1024, %v2498, %v2550
        %v2700 = vsel %vm1024, %v2499, %v2551
        %vm2701 = vcmask 1041408
        %vm2702 = vsmask.f32 1280
        %vm2703 = vmand %vm2701, %vm2702
        %v2704 = vsel %vm2703, %v2592, %v2644
        %v2705 = vsel %vm2703, %v2593, %v2645
        %v2724 = vunpack.c.l.b16 %v396
        %v2725 = vunpack.c.l.b16 %v397
        %v2726 = vunpack.c.l.b16 %v398
        %v2727 = vunpack.c.l.b16 %v399
        %v2728 = vunpack.c.l.b16 %v400
        %v2729 = vunpack.c.l.b16 %v401
        %v2730 = vunpack.c.l.b16 %v402
        %v2731 = vunpack.c.l.b16 %v403
        %v2732 = vunpack.c.l.b16 %v404
        %v2733 = vunpack.c.l.b16 %v405
        %v2734 = vunpack.c.l.b16 %v406
        %v2735 = vunpack.c.l.b16 %v407
        %v2736 = vunpack.c.l.b16 %v408
        %v2737 = vunpack.c.l.b16 %v409
        %v2738 = vunpack.c.l.b16 %v410
        %v2739 = vunpack.c.l.b16 %v411
        %v2740 = vunpack.c.l.b16 %v412
        %v2741 = vunpack.c.l.b16 %v413
        %v2742 = vpack.c.b16 %v2725, %v2724
        %v2743 = vpack.c.b16 %v2727, %v2726
        %v2744 = vpack.c.b16 %v2729, %v2728
        %v2745 = vpack.c.b16 %v2731, %v2730
        %v2746 = vpack.c.b16 %v2733, %v2732
        %v2747 = vpack.c.b16 %v2735, %v2734
        %v2748 = vpack.c.b16 %v2737, %v2736
        %v2749 = vpack.c.b16 %v2739, %v2738
        %v2750 = vpack.c.b16 %v2741, %v2740
        %v2760 = vsel %vm905, %v2364, 0
        %v2762 = vsel %vm905, %v2382, 0
        %v2764 = vsel %vm905, %v2400, 0
        %v2767 = vsel %vm905, %v2697, 0
        %v2769 = vsel %vm905, %v2477, 0
        %v2771 = vsel %vm905, %v2495, 0
        %v2773 = vsel %vm905, %v2700, 0
        %v2775 = vsel %vm905, %v2569, 0
        %v2777 = vsel %vm905, %v2587, 0
        %v2780 = vsel %vm905, %v2705, 0
        %v2782 = vsel %vm905, %v2663, 0
        %v2784 = vsel %vm905, %v2681, 0
        %v2786 = vsel %vm905, %v2687, 0
        %2788 = vmatpush.bf16.msra.mxu0 %v2749
        %2789 = vmatpush.bf16.msra.mxu0 %v2748
        %2790 = vmatpush.bf16.msra.mxu0 %v2747
        %2791 = vmatpush.bf16.msra.mxu0 %v2746
        %2792 = vmatpush.bf16.msra.mxu0 %v2745
        %2793 = vmatpush.bf16.msra.mxu0 %v2744
        %2794 = vmatpush.bf16.msra.mxu0 %v2743
        %2795 = vmatpush.bf16.msra.mxu0 %v2742
        %2796 = vmatmul.bf16.gmra.mxu0 %v2363
        %v2797 = vpop.f32.mrf.mxu0
        %v2798 = vadd.f32 0.0, %v2797
        %v2799 = vpop.f32.mrf.mxu0
        %v2800 = vadd.f32 0.0, %v2799
        %2801 = vmatmul.bf16.gmra.mxu0 %v2381
        %v2802 = vpop.f32.mrf.mxu0
        %v2803 = vadd.f32 0.0, %v2802
        %v2804 = vpop.f32.mrf.mxu0
        %v2805 = vadd.f32 0.0, %v2804
        %2806 = vmatmul.bf16.gmra.mxu0 %v2399
        %v2807 = vpop.f32.mrf.mxu0
        %v2808 = vadd.f32 0.0, %v2807
        %v2809 = vpop.f32.mrf.mxu0
        %v2810 = vadd.f32 0.0, %v2809
        %2811 = vmatmul.bf16.gmra.mxu0 %v2696
        %v2812 = vpop.f32.mrf.mxu0
        %v2813 = vadd.f32 0.0, %v2812
        %v2814 = vpop.f32.mrf.mxu0
        %v2815 = vadd.f32 0.0, %v2814
        %2816 = vmatmul.bf16.gmra.mxu0 %v2476
        %v2817 = vpop.f32.mrf.mxu0
        %v2818 = vadd.f32 0.0, %v2817
        %v2819 = vpop.f32.mrf.mxu0
        %v2820 = vadd.f32 0.0, %v2819
        %2821 = vmatmul.bf16.gmra.mxu0 %v2494
        %v2822 = vpop.f32.mrf.mxu0
        %v2823 = vadd.f32 0.0, %v2822
        %v2824 = vpop.f32.mrf.mxu0
        %v2825 = vadd.f32 0.0, %v2824
        %2826 = vmatmul.bf16.gmra.mxu0 %v2698
        %v2827 = vpop.f32.mrf.mxu0
        %v2828 = vadd.f32 0.0, %v2827
        %v2829 = vpop.f32.mrf.mxu0
        %v2830 = vadd.f32 0.0, %v2829
        %2831 = vmatmul.bf16.gmra.mxu0 %v2568
        %v2832 = vpop.f32.mrf.mxu0
        %v2833 = vadd.f32 0.0, %v2832
        %v2834 = vpop.f32.mrf.mxu0
        %v2835 = vadd.f32 0.0, %v2834
        %2836 = vmatmul.bf16.gmra.mxu0 %v2586
        %v2837 = vpop.f32.mrf.mxu0
        %v2838 = vadd.f32 0.0, %v2837
        %v2839 = vpop.f32.mrf.mxu0
        %v2840 = vadd.f32 0.0, %v2839
        %2841 = vmatmul.bf16.gmra.mxu0 %v2704
        %v2842 = vpop.f32.mrf.mxu0
        %v2843 = vadd.f32 0.0, %v2842
        %v2844 = vpop.f32.mrf.mxu0
        %v2845 = vadd.f32 0.0, %v2844
        %2846 = vmatmul.bf16.gmra.mxu0 %v2662
        %v2847 = vpop.f32.mrf.mxu0
        %v2848 = vadd.f32 0.0, %v2847
        %v2849 = vpop.f32.mrf.mxu0
        %v2850 = vadd.f32 0.0, %v2849
        %2851 = vmatmul.bf16.gmra.mxu0 %v2680
        %v2852 = vpop.f32.mrf.mxu0
        %v2853 = vadd.f32 0.0, %v2852
        %v2854 = vpop.f32.mrf.mxu0
        %v2855 = vadd.f32 0.0, %v2854
        %2856 = vmatmul.bf16.gmra.mxu0 %v2686
        %v2857 = vpop.f32.mrf.mxu0
        %v2858 = vadd.f32 0.0, %v2857
        %v2859 = vpop.f32.mrf.mxu0
        %2860 = vdwg.mxu0
        %2861 = vmatpush.bf16.msra.mxu0 0
        %2862 = vmatpush.bf16.msra.mxu0 0
        %2863 = vmatpush.bf16.msra.mxu0 0
        %2864 = vmatpush.bf16.msra.mxu0 0
        %2865 = vmatpush.bf16.msra.mxu0 0
        %2866 = vmatpush.bf16.msra.mxu0 0
        %2867 = vmatpush.bf16.msra.mxu0 0
        %2868 = vmatpush.bf16.msra.mxu0 %v2750
        %2869 = vmatmul.bf16.gmra.mxu0 %v2760
        %v2870 = vpop.f32.mrf.mxu0
        %v2871 = vadd.f32 %v2798, %v2870
        %v2872 = vpop.f32.mrf.mxu0
        %v2873 = vadd.f32 %v2800, %v2872
        %2874 = vmatmul.bf16.gmra.mxu0 %v2762
        %v2875 = vpop.f32.mrf.mxu0
        %v2876 = vadd.f32 %v2803, %v2875
        %v2877 = vpop.f32.mrf.mxu0
        %v2878 = vadd.f32 %v2805, %v2877
        %2879 = vmatmul.bf16.gmra.mxu0 %v2764
        %v2880 = vpop.f32.mrf.mxu0
        %v2881 = vadd.f32 %v2808, %v2880
        %v2882 = vpop.f32.mrf.mxu0
        %v2883 = vadd.f32 %v2810, %v2882
        %2884 = vmatmul.bf16.gmra.mxu0 %v2767
        %v2885 = vpop.f32.mrf.mxu0
        %v2886 = vadd.f32 %v2813, %v2885
        %v2887 = vpop.f32.mrf.mxu0
        %v2888 = vadd.f32 %v2815, %v2887
        %2889 = vmatmul.bf16.gmra.mxu0 %v2769
        %v2890 = vpop.f32.mrf.mxu0
        %v2891 = vadd.f32 %v2818, %v2890
        %v2892 = vpop.f32.mrf.mxu0
        %v2893 = vadd.f32 %v2820, %v2892
        %2894 = vmatmul.bf16.gmra.mxu0 %v2771
        %v2895 = vpop.f32.mrf.mxu0
        %v2896 = vadd.f32 %v2823, %v2895
        %v2897 = vpop.f32.mrf.mxu0
        %v2898 = vadd.f32 %v2825, %v2897
        %2899 = vmatmul.bf16.gmra.mxu0 %v2773
        %v2900 = vpop.f32.mrf.mxu0
        %v2901 = vadd.f32 %v2828, %v2900
        %v2902 = vpop.f32.mrf.mxu0
        %v2903 = vadd.f32 %v2830, %v2902
        %2904 = vmatmul.bf16.gmra.mxu0 %v2775
        %v2905 = vpop.f32.mrf.mxu0
        %v2906 = vadd.f32 %v2833, %v2905
        %v2907 = vpop.f32.mrf.mxu0
        %v2908 = vadd.f32 %v2835, %v2907
        %2909 = vmatmul.bf16.gmra.mxu0 %v2777
        %v2910 = vpop.f32.mrf.mxu0
        %v2911 = vadd.f32 %v2838, %v2910
        %v2912 = vpop.f32.mrf.mxu0
        %v2913 = vadd.f32 %v2840, %v2912
        %2914 = vmatmul.bf16.gmra.mxu0 %v2780
        %v2915 = vpop.f32.mrf.mxu0
        %v2916 = vadd.f32 %v2843, %v2915
        %v2917 = vpop.f32.mrf.mxu0
        %v2918 = vadd.f32 %v2845, %v2917
        %2919 = vmatmul.bf16.gmra.mxu0 %v2782
        %v2920 = vpop.f32.mrf.mxu0
        %v2921 = vadd.f32 %v2848, %v2920
        %v2922 = vpop.f32.mrf.mxu0
        %v2923 = vadd.f32 %v2850, %v2922
        %2924 = vmatmul.bf16.gmra.mxu0 %v2784
        %v2925 = vpop.f32.mrf.mxu0
        %v2926 = vadd.f32 %v2853, %v2925
        %v2927 = vpop.f32.mrf.mxu0
        %v2928 = vadd.f32 %v2855, %v2927
        %2929 = vmatmul.bf16.gmra.mxu0 %v2786
        %v2930 = vpop.f32.mrf.mxu0
        %v2931 = vadd.f32 %v2858, %v2930
        %v2932 = vpop.f32.mrf.mxu0
        %2933 = vdwg.mxu0
        %vm2941 = vcmask 1046528
        %v2942 = vrot.slane %v2886, 1
        %v2943 = vrot.slane %v2888, 1
        %v2944 = vsel %vm2941, %v2942, %v2943
        %v2945 = vrot.slane %v2891, 1
        %v2946 = vsel %vm2941, %v2943, %v2945
        %v2947 = vrot.slane %v2893, 1
        %v2948 = vsel %vm2941, %v2945, %v2947
        %v2949 = vrot.slane %v2896, 1
        %v2950 = vsel %vm2941, %v2947, %v2949
        %v2951 = vrot.slane %v2898, 1
        %v2952 = vsel %vm2941, %v2949, %v2951
        %v2953 = vrot.slane %v2901, 1
        %v2954 = vsel %vm2941, %v2951, %v2953
        %v2962 = vmax.f32 %v2871, %v2944
        %v2963 = vmax.f32 %v2873, %v2946
        %v2964 = vmax.f32 %v2876, %v2948
        %v2965 = vmax.f32 %v2878, %v2950
        %v2966 = vmax.f32 %v2881, %v2952
        %v2967 = vmax.f32 %v2883, %v2954
        %v2968 = vmax.f32 %v2886, %v2953
        %v2976 = vrot.slane %v2916, 1
        %v2977 = vrot.slane %v2918, 1
        %v2978 = vsel %vm2941, %v2976, %v2977
        %v2979 = vrot.slane %v2921, 1
        %v2980 = vsel %vm2941, %v2977, %v2979
        %v2981 = vrot.slane %v2923, 1
        %v2982 = vsel %vm2941, %v2979, %v2981
        %v2983 = vrot.slane %v2926, 1
        %v2984 = vsel %vm2941, %v2981, %v2983
        %v2985 = vrot.slane %v2928, 1
        %v2986 = vsel %vm2941, %v2983, %v2985
        %v2987 = vrot.slane %v2931, 1
        %v2988 = vsel %vm2941, %v2985, %v2987
        %v2996 = vmax.f32 %v2901, %v2978
        %v2997 = vmax.f32 %v2903, %v2980
        %v2998 = vmax.f32 %v2906, %v2982
        %v2999 = vmax.f32 %v2908, %v2984
        %v3000 = vmax.f32 %v2911, %v2986
        %v3001 = vmax.f32 %v2913, %v2988
        %v3002 = vmax.f32 %v2916, %v2987
        %vm3010 = vcmask 1045504
        %v3011 = vrot.slane %v2996, 2
        %v3012 = vrot.slane %v2997, 2
        %v3013 = vsel %vm3010, %v3011, %v3012
        %v3014 = vrot.slane %v2998, 2
        %v3015 = vsel %vm3010, %v3012, %v3014
        %v3016 = vrot.slane %v2999, 2
        %v3017 = vsel %vm3010, %v3014, %v3016
        %v3018 = vrot.slane %v3000, 2
        %v3019 = vsel %vm3010, %v3016, %v3018
        %v3020 = vrot.slane %v3001, 2
        %v3021 = vsel %vm3010, %v3018, %v3020
        %v3022 = vrot.slane %v3002, 2
        %v3023 = vsel %vm3010, %v3020, %v3022
        %v3031 = vmax.f32 %v2962, %v3013
        %v3032 = vmax.f32 %v2963, %v3015
        %v3033 = vmax.f32 %v2964, %v3017
        %v3034 = vmax.f32 %v2965, %v3019
        %v3035 = vmax.f32 %v2966, %v3021
        %v3036 = vmax.f32 %v2967, %v3023
        %v3037 = vmax.f32 %v2968, %v3022
        %v3039 = vperm.slane %v414, 0
        %v3041 = vadd.f32 %v3031, %v3039
        %v3042 = vadd.f32 %v3032, %v3039
        %v3043 = vadd.f32 %v3033, %v3039
        %v3044 = vadd.f32 %v3034, %v3039
        %v3045 = vadd.f32 %v3035, %v3039
        %v3046 = vadd.f32 %v3036, %v3039
        %v3047 = vadd.f32 %v3037, %v3039
        %v3048 = vmax.f32 %v3041, 0.0
        %v3049 = vmax.f32 %v3042, 0.0
        %v3050 = vmax.f32 %v3043, 0.0
        %v3051 = vmax.f32 %v3044, 0.0
        %v3052 = vmax.f32 %v3045, 0.0
        %v3053 = vmax.f32 %v3046, 0.0
        %v3054 = vmax.f32 %v3047, 0.0
        %v3055 = vpack.c.bf16 %v3048, %v3048
        %v3056 = vpack.c.bf16 %v3049, %v3049
        %v3057 = vpack.c.bf16 %v3050, %v3050
        %v3058 = vpack.c.bf16 %v3051, %v3051
        %v3059 = vpack.c.bf16 %v3052, %v3052
        %v3060 = vpack.c.bf16 %v3053, %v3053
        %v3061 = vpack.c.bf16 %v3054, %v3054
        %v3063 = vunpack.c.l.b16 %v3055
        %v3064 = vpack.c.b16 %v3063, %v3063
        %v3066 = vshrl.u32 %v3064, 16
        %3068 = vrot.lane.b32.xlu0 %v3066, 32
        %v3069 = vpop.permute.xlu0 %3068
        %v3070 = vrot.slane %v3064, 1
        %3071 = vrot.lane.b32.xlu0 %v3070, 64
        %v3072 = vpop.permute.xlu0 %3071
        %v3073 = vrot.slane %v3066, 1
        %3074 = vrot.lane.b32.xlu0 %v3073, 96
        %v3075 = vpop.permute.xlu0 %3074
        %v3076 = vrot.slane %v3064, 2
        %v3077 = vrot.slane %v3066, 2
        %3078 = vrot.lane.b32.xlu0 %v3077, 32
        %v3079 = vpop.permute.xlu0 %3078
        %v3080 = vrot.slane %v3064, 3
        %3081 = vrot.lane.b32.xlu0 %v3080, 64
        %v3082 = vpop.permute.xlu0 %3081
        %v3083 = vrot.slane %v3066, 3
        %3084 = vrot.lane.b32.xlu0 %v3083, 96
        %v3085 = vpop.permute.xlu0 %3084
        %v3087 = vunpack.c.l.b16 %v3056
        %v3088 = vpack.c.b16 %v3087, %v3087
        %v3090 = vshrl.u32 %v3088, 16
        %3092 = vrot.lane.b32.xlu0 %v3090, 32
        %v3093 = vpop.permute.xlu0 %3092
        %v3094 = vrot.slane %v3088, 1
        %3095 = vrot.lane.b32.xlu0 %v3094, 64
        %v3096 = vpop.permute.xlu0 %3095
        %v3097 = vrot.slane %v3090, 1
        %3098 = vrot.lane.b32.xlu0 %v3097, 96
        %v3099 = vpop.permute.xlu0 %3098
        %v3100 = vrot.slane %v3088, 2
        %v3101 = vrot.slane %v3090, 2
        %3102 = vrot.lane.b32.xlu0 %v3101, 32
        %v3103 = vpop.permute.xlu0 %3102
        %v3104 = vrot.slane %v3088, 3
        %3105 = vrot.lane.b32.xlu0 %v3104, 64
        %v3106 = vpop.permute.xlu0 %3105
        %v3107 = vrot.slane %v3090, 3
        %3108 = vrot.lane.b32.xlu0 %v3107, 96
        %v3109 = vpop.permute.xlu0 %3108
        %v3112 = vsel %vm927, %v3055, %v3069
        %v3114 = vsel %vm957, %v3112, %v3072
        %v3116 = vsel %vm987, %v3114, %v3075
        %v3120 = vsel %vm927, %v3076, %v3079
        %v3122 = vsel %vm957, %v3120, %v3082
        %v3124 = vsel %vm987, %v3122, %v3085
        %v3128 = vsel %vm927, %v3056, %v3093
        %v3130 = vsel %vm957, %v3128, %v3096
        %v3132 = vsel %vm987, %v3130, %v3099
        %v3136 = vsel %vm927, %v3100, %v3103
        %v3138 = vsel %vm957, %v3136, %v3106
        %v3140 = vsel %vm987, %v3138, %v3109
        %v3143 = vunpack.c.l.b16 %v3057
        %v3144 = vpack.c.b16 %v3143, %v3143
        %v3146 = vshrl.u32 %v3144, 16
        %3148 = vrot.lane.b32.xlu0 %v3146, 32
        %v3149 = vpop.permute.xlu0 %3148
        %v3150 = vrot.slane %v3144, 1
        %3151 = vrot.lane.b32.xlu0 %v3150, 64
        %v3152 = vpop.permute.xlu0 %3151
        %v3153 = vrot.slane %v3146, 1
        %3154 = vrot.lane.b32.xlu0 %v3153, 96
        %v3155 = vpop.permute.xlu0 %3154
        %v3156 = vrot.slane %v3144, 2
        %v3157 = vrot.slane %v3146, 2
        %3158 = vrot.lane.b32.xlu0 %v3157, 32
        %v3159 = vpop.permute.xlu0 %3158
        %v3160 = vrot.slane %v3144, 3
        %3161 = vrot.lane.b32.xlu0 %v3160, 64
        %v3162 = vpop.permute.xlu0 %3161
        %v3163 = vrot.slane %v3146, 3
        %3164 = vrot.lane.b32.xlu0 %v3163, 96
        %v3165 = vpop.permute.xlu0 %3164
        %v3167 = vunpack.c.l.b16 %v3058
        %v3168 = vpack.c.b16 %v3167, %v3167
        %v3170 = vshrl.u32 %v3168, 16
        %3172 = vrot.lane.b32.xlu0 %v3170, 32
        %v3173 = vpop.permute.xlu0 %3172
        %v3174 = vrot.slane %v3168, 1
        %3175 = vrot.lane.b32.xlu0 %v3174, 64
        %v3176 = vpop.permute.xlu0 %3175
        %v3177 = vrot.slane %v3170, 1
        %3178 = vrot.lane.b32.xlu0 %v3177, 96
        %v3179 = vpop.permute.xlu0 %3178
        %v3180 = vrot.slane %v3168, 2
        %v3181 = vrot.slane %v3170, 2
        %3182 = vrot.lane.b32.xlu0 %v3181, 32
        %v3183 = vpop.permute.xlu0 %3182
        %v3184 = vrot.slane %v3168, 3
        %3185 = vrot.lane.b32.xlu0 %v3184, 64
        %v3186 = vpop.permute.xlu0 %3185
        %v3187 = vrot.slane %v3170, 3
        %3188 = vrot.lane.b32.xlu0 %v3187, 96
        %v3189 = vpop.permute.xlu0 %3188
        %v3192 = vsel %vm927, %v3057, %v3149
        %v3194 = vsel %vm957, %v3192, %v3152
        %v3196 = vsel %vm987, %v3194, %v3155
        %v3200 = vsel %vm927, %v3156, %v3159
        %v3202 = vsel %vm957, %v3200, %v3162
        %v3204 = vsel %vm987, %v3202, %v3165
        %v3208 = vsel %vm927, %v3058, %v3173
        %v3210 = vsel %vm957, %v3208, %v3176
        %v3212 = vsel %vm987, %v3210, %v3179
        %v3216 = vsel %vm927, %v3180, %v3183
        %v3218 = vsel %vm957, %v3216, %v3186
        %v3220 = vsel %vm987, %v3218, %v3189
        %v3223 = vunpack.c.l.b16 %v3059
        %v3224 = vpack.c.b16 %v3223, %v3223
        %v3226 = vshrl.u32 %v3224, 16
        %3228 = vrot.lane.b32.xlu0 %v3226, 32
        %v3229 = vpop.permute.xlu0 %3228
        %v3230 = vrot.slane %v3224, 1
        %3231 = vrot.lane.b32.xlu0 %v3230, 64
        %v3232 = vpop.permute.xlu0 %3231
        %v3233 = vrot.slane %v3226, 1
        %3234 = vrot.lane.b32.xlu0 %v3233, 96
        %v3235 = vpop.permute.xlu0 %3234
        %v3236 = vrot.slane %v3224, 2
        %v3237 = vrot.slane %v3226, 2
        %3238 = vrot.lane.b32.xlu0 %v3237, 32
        %v3239 = vpop.permute.xlu0 %3238
        %v3240 = vrot.slane %v3224, 3
        %3241 = vrot.lane.b32.xlu0 %v3240, 64
        %v3242 = vpop.permute.xlu0 %3241
        %v3243 = vrot.slane %v3226, 3
        %3244 = vrot.lane.b32.xlu0 %v3243, 96
        %v3245 = vpop.permute.xlu0 %3244
        %v3247 = vunpack.c.l.b16 %v3060
        %v3248 = vpack.c.b16 %v3247, %v3247
        %v3250 = vshrl.u32 %v3248, 16
        %3252 = vrot.lane.b32.xlu0 %v3250, 32
        %v3253 = vpop.permute.xlu0 %3252
        %v3254 = vrot.slane %v3248, 1
        %3255 = vrot.lane.b32.xlu0 %v3254, 64
        %v3256 = vpop.permute.xlu0 %3255
        %v3257 = vrot.slane %v3250, 1
        %3258 = vrot.lane.b32.xlu0 %v3257, 96
        %v3259 = vpop.permute.xlu0 %3258
        %v3260 = vrot.slane %v3248, 2
        %v3261 = vrot.slane %v3250, 2
        %3262 = vrot.lane.b32.xlu0 %v3261, 32
        %v3263 = vpop.permute.xlu0 %3262
        %v3264 = vrot.slane %v3248, 3
        %3265 = vrot.lane.b32.xlu0 %v3264, 64
        %v3266 = vpop.permute.xlu0 %3265
        %v3267 = vrot.slane %v3250, 3
        %3268 = vrot.lane.b32.xlu0 %v3267, 96
        %v3269 = vpop.permute.xlu0 %3268
        %v3272 = vsel %vm927, %v3059, %v3229
        %v3274 = vsel %vm957, %v3272, %v3232
        %v3276 = vsel %vm987, %v3274, %v3235
        %v3280 = vsel %vm927, %v3236, %v3239
        %v3282 = vsel %vm957, %v3280, %v3242
        %v3284 = vsel %vm987, %v3282, %v3245
        %v3288 = vsel %vm927, %v3060, %v3253
        %v3290 = vsel %vm957, %v3288, %v3256
        %v3292 = vsel %vm987, %v3290, %v3259
        %v3296 = vsel %vm927, %v3260, %v3263
        %v3298 = vsel %vm957, %v3296, %v3266
        %v3300 = vsel %vm987, %v3298, %v3269
        %v3498 = vunpack.c.l.b16 %v415
        %v3499 = vunpack.c.l.b16 %v416
        %v3500 = vunpack.c.l.b16 %v417
        %v3501 = vunpack.c.l.b16 %v418
        %v3502 = vunpack.c.l.b16 %v419
        %v3503 = vunpack.c.l.b16 %v420
        %v3504 = vunpack.c.l.b16 %v421
        %v3505 = vunpack.c.l.b16 %v422
        %v3506 = vunpack.c.l.b16 %v423
        %v3507 = vunpack.c.l.b16 %v424
        %v3508 = vunpack.c.l.b16 %v425
        %v3509 = vunpack.c.l.b16 %v426
        %v3510 = vunpack.c.l.b16 %v427
        %v3511 = vunpack.c.l.b16 %v428
        %v3512 = vunpack.c.l.b16 %v429
        %v3513 = vunpack.c.l.b16 %v430
        %v3514 = vunpack.c.l.b16 %v431
        %v3515 = vunpack.c.l.b16 %v432
        %v3516 = vunpack.c.l.b16 %v433
        %v3517 = vunpack.c.l.b16 %v434
        %v3518 = vunpack.c.l.b16 %v435
        %v3519 = vunpack.c.l.b16 %v436
        %v3520 = vunpack.c.l.b16 %v437
        %v3521 = vunpack.c.l.b16 %v438
        %v3522 = vunpack.c.l.b16 %v439
        %v3523 = vunpack.c.l.b16 %v440
        %v3524 = vunpack.c.l.b16 %v441
        %v3525 = vunpack.c.l.b16 %v442
        %v3526 = vunpack.c.l.b16 %v443
        %v3527 = vunpack.c.l.b16 %v444
        %v3528 = vunpack.c.l.b16 %v445
        %v3529 = vunpack.c.l.b16 %v446
        %v3530 = vunpack.c.l.b16 %v447
        %v3531 = vunpack.c.l.b16 %v448
        %v3532 = vunpack.c.l.b16 %v449
        %v3533 = vunpack.c.l.b16 %v450
        %v3534 = vunpack.c.l.b16 %v451
        %v3535 = vunpack.c.l.b16 %v452
        %v3536 = vunpack.c.l.b16 %v453
        %v3537 = vunpack.c.l.b16 %v454
        %v3538 = vunpack.c.l.b16 %v455
        %v3539 = vunpack.c.l.b16 %v456
        %v3540 = vunpack.c.l.b16 %v457
        %v3541 = vunpack.c.l.b16 %v458
        %v3542 = vunpack.c.l.b16 %v459
        %v3543 = vunpack.c.l.b16 %v460
        %v3544 = vunpack.c.l.b16 %v461
        %v3545 = vunpack.c.l.b16 %v462
        %v3546 = vunpack.c.l.b16 %v463
        %v3547 = vunpack.c.l.b16 %v464
        %v3548 = vunpack.c.l.b16 %v465
        %v3549 = vunpack.c.l.b16 %v466
        %v3550 = vunpack.c.l.b16 %v467
        %v3551 = vunpack.c.l.b16 %v468
        %v3552 = vunpack.c.l.b16 %v469
        %v3553 = vunpack.c.l.b16 %v470
        %v3554 = vunpack.c.l.b16 %v471
        %v3555 = vunpack.c.l.b16 %v472
        %v3556 = vunpack.c.l.b16 %v473
        %v3557 = vunpack.c.l.b16 %v474
        %v3558 = vunpack.c.l.b16 %v475
        %v3559 = vunpack.c.l.b16 %v476
        %v3560 = vunpack.c.l.b16 %v477
        %v3561 = vunpack.c.l.b16 %v478
        %v3562 = vunpack.c.l.b16 %v479
        %v3563 = vunpack.c.l.b16 %v480
        %v3564 = vunpack.c.l.b16 %v481
        %v3565 = vunpack.c.l.b16 %v482
        %v3566 = vunpack.c.l.b16 %v483
        %v3567 = vunpack.c.l.b16 %v484
        %v3568 = vunpack.c.l.b16 %v485
        %v3569 = vunpack.c.l.b16 %v486
        %v3570 = vunpack.c.l.b16 %v487
        %v3571 = vunpack.c.l.b16 %v488
        %v3572 = vunpack.c.l.b16 %v489
        %v3573 = vunpack.c.l.b16 %v490
        %v3574 = vunpack.c.l.b16 %v491
        %v3575 = vunpack.c.l.b16 %v492
        %v3576 = vunpack.c.l.b16 %v493
        %v3577 = vunpack.c.l.b16 %v494
        %v3578 = vunpack.c.l.b16 %v495
        %v3579 = vunpack.c.l.b16 %v496
        %v3580 = vunpack.c.l.b16 %v497
        %v3581 = vunpack.c.l.b16 %v498
        %v3582 = vunpack.c.l.b16 %v499
        %v3583 = vunpack.c.l.b16 %v500
        %v3584 = vunpack.c.l.b16 %v501
        %v3585 = vunpack.c.l.b16 %v502
        %v3586 = vunpack.c.l.b16 %v503
        %v3587 = vunpack.c.l.b16 %v504
        %v3588 = vunpack.c.l.b16 %v505
        %v3589 = vunpack.c.l.b16 %v506
        %v3590 = vunpack.c.l.b16 %v507
        %v3591 = vunpack.c.l.b16 %v508
        %v3592 = vunpack.c.l.b16 %v509
        %v3593 = vunpack.c.l.b16 %v510
        %v3594 = vunpack.c.l.b16 %v511
        %v3595 = vunpack.c.l.b16 %v512
        %v3596 = vunpack.c.l.b16 %v513
        %v3597 = vunpack.c.l.b16 %v514
        %v3598 = vunpack.c.l.b16 %v515
        %v3599 = vunpack.c.l.b16 %v516
        %v3600 = vunpack.c.l.b16 %v517
        %v3601 = vunpack.c.l.b16 %v518
        %v3602 = vunpack.c.l.b16 %v519
        %v3603 = vunpack.c.l.b16 %v520
        %v3604 = vunpack.c.l.b16 %v521
        %v3605 = vunpack.c.l.b16 %v522
        %v3606 = vunpack.c.l.b16 %v523
        %v3607 = vunpack.c.l.b16 %v524
        %v3608 = vunpack.c.l.b16 %v525
        %v3609 = vunpack.c.l.b16 %v526
        %v3610 = vunpack.c.l.b16 %v527
        %v3611 = vunpack.c.l.b16 %v528
        %v3612 = vunpack.c.l.b16 %v529
        %v3613 = vunpack.c.l.b16 %v530
        %v3614 = vunpack.c.l.b16 %v531
        %v3615 = vunpack.c.l.b16 %v532
        %v3616 = vunpack.c.l.b16 %v533
        %v3617 = vunpack.c.l.b16 %v534
        %v3618 = vunpack.c.l.b16 %v535
        %v3619 = vunpack.c.l.b16 %v536
        %v3620 = vunpack.c.l.b16 %v537
        %v3621 = vunpack.c.l.b16 %v538
        %v3622 = vunpack.c.l.b16 %v539
        %v3623 = vunpack.c.l.b16 %v540
        %v3624 = vunpack.c.l.b16 %v541
        %v3625 = vunpack.c.l.b16 %v542
        %v3626 = vunpack.c.l.b16 %v543
        %v3627 = vunpack.c.l.b16 %v544
        %v3628 = vunpack.c.l.b16 %v545
        %v3629 = vunpack.c.l.b16 %v546
        %v3630 = vunpack.c.l.b16 %v547
        %v3631 = vunpack.c.l.b16 %v548
        %v3632 = vunpack.c.l.b16 %v549
        %v3633 = vunpack.c.l.b16 %v550
        %v3634 = vunpack.c.l.b16 %v551
        %v3635 = vunpack.c.l.b16 %v552
        %v3636 = vunpack.c.l.b16 %v553
        %v3637 = vunpack.c.l.b16 %v554
        %v3638 = vunpack.c.l.b16 %v555
        %v3639 = vunpack.c.l.b16 %v556
        %v3640 = vunpack.c.l.b16 %v557
        %v3641 = vunpack.c.l.b16 %v558
        %v3642 = vunpack.c.l.b16 %v559
        %v3643 = vunpack.c.l.b16 %v560
        %v3644 = vunpack.c.l.b16 %v561
        %v3645 = vunpack.c.l.b16 %v562
        %v3646 = vunpack.c.l.b16 %v563
        %v3647 = vunpack.c.l.b16 %v564
        %v3648 = vunpack.c.l.b16 %v565
        %v3649 = vunpack.c.l.b16 %v566
        %v3650 = vunpack.c.l.b16 %v567
        %v3651 = vunpack.c.l.b16 %v568
        %v3652 = vunpack.c.l.b16 %v569
        %v3653 = vunpack.c.l.b16 %v570
        %v3654 = vunpack.c.l.b16 %v571
        %v3655 = vunpack.c.l.b16 %v572
        %v3656 = vunpack.c.l.b16 %v573
        %v3657 = vunpack.c.l.b16 %v574
        %v3658 = vunpack.c.l.b16 %v575
        %v3659 = vunpack.c.l.b16 %v576
        %v3660 = vunpack.c.l.b16 %v577
        %v3661 = vunpack.c.l.b16 %v578
        %v3662 = vunpack.c.l.b16 %v579
        %v3663 = vunpack.c.l.b16 %v580
        %v3664 = vunpack.c.l.b16 %v581
        %v3665 = vunpack.c.l.b16 %v582
        %v3666 = vunpack.c.l.b16 %v583
        %v3667 = vunpack.c.l.b16 %v584
        %v3668 = vunpack.c.l.b16 %v585
        %v3669 = vunpack.c.l.b16 %v586
        %v3670 = vunpack.c.l.b16 %v587
        %v3671 = vunpack.c.l.b16 %v588
        %v3672 = vunpack.c.l.b16 %v589
        %v3673 = vunpack.c.l.b16 %v590
        %v3674 = vunpack.c.l.b16 %v591
        %v3675 = vunpack.c.l.b16 %v592
        %v3676 = vunpack.c.l.b16 %v593
        %v3677 = vunpack.c.l.b16 %v594
        %v3678 = vunpack.c.l.b16 %v595
        %v3679 = vunpack.c.l.b16 %v596
        %v3680 = vunpack.c.l.b16 %v597
        %v3681 = vunpack.c.l.b16 %v598
        %v3682 = vunpack.c.l.b16 %v599
        %v3683 = vunpack.c.l.b16 %v600
        %v3684 = vunpack.c.l.b16 %v601
        %v3685 = vunpack.c.l.b16 %v602
        %v3686 = vunpack.c.l.b16 %v603
        %v3687 = vunpack.c.l.b16 %v604
        %v3688 = vunpack.c.l.b16 %v605
        %v3689 = vunpack.c.l.b16 %v606
        %v3690 = vunpack.c.l.b16 %v607
        %v3691 = vunpack.c.l.b16 %v608
        %v3692 = vunpack.c.l.b16 %v609
        %v3693 = vunpack.c.l.b16 %v610
        %v3694 = vpack.c.b16 %v3499, %v3498
        %v3695 = vpack.c.b16 %v3501, %v3500
        %v3696 = vpack.c.b16 %v3503, %v3502
        %v3697 = vpack.c.b16 %v3505, %v3504
        %v3698 = vpack.c.b16 %v3507, %v3506
        %v3699 = vpack.c.b16 %v3509, %v3508
        %v3700 = vpack.c.b16 %v3511, %v3510
        %v3701 = vpack.c.b16 %v3513, %v3512
        %v3702 = vpack.c.b16 %v3515, %v3514
        %v3703 = vpack.c.b16 %v3517, %v3516
        %v3704 = vpack.c.b16 %v3519, %v3518
        %v3705 = vpack.c.b16 %v3521, %v3520
        %v3706 = vpack.c.b16 %v3523, %v3522
        %v3707 = vpack.c.b16 %v3525, %v3524
        %v3708 = vpack.c.b16 %v3527, %v3526
        %v3709 = vpack.c.b16 %v3529, %v3528
        %v3710 = vpack.c.b16 %v3531, %v3530
        %v3711 = vpack.c.b16 %v3533, %v3532
        %v3712 = vpack.c.b16 %v3535, %v3534
        %v3713 = vpack.c.b16 %v3537, %v3536
        %v3714 = vpack.c.b16 %v3539, %v3538
        %v3715 = vpack.c.b16 %v3541, %v3540
        %v3716 = vpack.c.b16 %v3543, %v3542
        %v3717 = vpack.c.b16 %v3545, %v3544
        %v3718 = vpack.c.b16 %v3547, %v3546
        %v3719 = vpack.c.b16 %v3549, %v3548
        %v3720 = vpack.c.b16 %v3551, %v3550
        %v3721 = vpack.c.b16 %v3553, %v3552
        %v3722 = vpack.c.b16 %v3555, %v3554
        %v3723 = vpack.c.b16 %v3557, %v3556
        %v3724 = vpack.c.b16 %v3559, %v3558
        %v3725 = vpack.c.b16 %v3561, %v3560
        %v3726 = vpack.c.b16 %v3563, %v3562
        %v3727 = vpack.c.b16 %v3565, %v3564
        %v3728 = vpack.c.b16 %v3567, %v3566
        %v3729 = vpack.c.b16 %v3569, %v3568
        %v3730 = vpack.c.b16 %v3571, %v3570
        %v3731 = vpack.c.b16 %v3573, %v3572
        %v3732 = vpack.c.b16 %v3575, %v3574
        %v3733 = vpack.c.b16 %v3577, %v3576
        %v3734 = vpack.c.b16 %v3579, %v3578
        %v3735 = vpack.c.b16 %v3581, %v3580
        %v3736 = vpack.c.b16 %v3583, %v3582
        %v3737 = vpack.c.b16 %v3585, %v3584
        %v3738 = vpack.c.b16 %v3587, %v3586
        %v3739 = vpack.c.b16 %v3589, %v3588
        %v3740 = vpack.c.b16 %v3591, %v3590
        %v3741 = vpack.c.b16 %v3593, %v3592
        %v3742 = vpack.c.b16 %v3595, %v3594
        %v3743 = vpack.c.b16 %v3597, %v3596
        %v3744 = vpack.c.b16 %v3599, %v3598
        %v3745 = vpack.c.b16 %v3601, %v3600
        %v3746 = vpack.c.b16 %v3603, %v3602
        %v3747 = vpack.c.b16 %v3605, %v3604
        %v3748 = vpack.c.b16 %v3607, %v3606
        %v3749 = vpack.c.b16 %v3609, %v3608
        %v3750 = vpack.c.b16 %v3611, %v3610
        %v3751 = vpack.c.b16 %v3613, %v3612
        %v3752 = vpack.c.b16 %v3615, %v3614
        %v3753 = vpack.c.b16 %v3617, %v3616
        %v3754 = vpack.c.b16 %v3619, %v3618
        %v3755 = vpack.c.b16 %v3621, %v3620
        %v3756 = vpack.c.b16 %v3623, %v3622
        %v3757 = vpack.c.b16 %v3625, %v3624
        %v3758 = vpack.c.b16 %v3627, %v3626
        %v3759 = vpack.c.b16 %v3629, %v3628
        %v3760 = vpack.c.b16 %v3631, %v3630
        %v3761 = vpack.c.b16 %v3633, %v3632
        %v3762 = vpack.c.b16 %v3635, %v3634
        %v3763 = vpack.c.b16 %v3637, %v3636
        %v3764 = vpack.c.b16 %v3639, %v3638
        %v3765 = vpack.c.b16 %v3641, %v3640
        %v3766 = vpack.c.b16 %v3643, %v3642
        %v3767 = vpack.c.b16 %v3645, %v3644
        %v3768 = vpack.c.b16 %v3647, %v3646
        %v3769 = vpack.c.b16 %v3649, %v3648
        %v3770 = vpack.c.b16 %v3651, %v3650
        %v3771 = vpack.c.b16 %v3653, %v3652
        %v3772 = vpack.c.b16 %v3655, %v3654
        %v3773 = vpack.c.b16 %v3657, %v3656
        %v3774 = vpack.c.b16 %v3659, %v3658
        %v3775 = vpack.c.b16 %v3661, %v3660
        %v3776 = vpack.c.b16 %v3663, %v3662
        %v3777 = vpack.c.b16 %v3665, %v3664
        %v3778 = vpack.c.b16 %v3667, %v3666
        %v3779 = vpack.c.b16 %v3669, %v3668
        %v3780 = vpack.c.b16 %v3671, %v3670
        %v3781 = vpack.c.b16 %v3673, %v3672
        %v3782 = vpack.c.b16 %v3675, %v3674
        %v3783 = vpack.c.b16 %v3677, %v3676
        %v3784 = vpack.c.b16 %v3679, %v3678
        %v3785 = vpack.c.b16 %v3681, %v3680
        %v3786 = vpack.c.b16 %v3683, %v3682
        %v3787 = vpack.c.b16 %v3685, %v3684
        %v3788 = vpack.c.b16 %v3687, %v3686
        %v3789 = vpack.c.b16 %v3689, %v3688
        %v3790 = vpack.c.b16 %v3691, %v3690
        %v3791 = vpack.c.b16 %v3693, %v3692
        %v3891 = vsel %vm927, %v3061, 0
        %3893 = vmatpush.bf16.msra.mxu0 %v3701
        %3894 = vmatpush.bf16.msra.mxu0 %v3700
        %3895 = vmatpush.bf16.msra.mxu0 %v3699
        %3896 = vmatpush.bf16.msra.mxu0 %v3698
        %3897 = vmatpush.bf16.msra.mxu0 %v3697
        %3898 = vmatpush.bf16.msra.mxu0 %v3696
        %3899 = vmatpush.bf16.msra.mxu0 %v3695
        %3900 = vmatpush.bf16.msra.mxu0 %v3694
        %3901 = vmatmul.bf16.gmra.mxu0 %v3116
        %v3902 = vpop.f32.mrf.mxu0
        %v3903 = vadd.f32 %v611, %v3902
        %v3904 = vpop.f32.mrf.mxu0
        %3905 = vdwg.mxu0
        %3906 = vmatpush.bf16.msra.mxu0 %v3709
        %3907 = vmatpush.bf16.msra.mxu0 %v3708
        %3908 = vmatpush.bf16.msra.mxu0 %v3707
        %3909 = vmatpush.bf16.msra.mxu0 %v3706
        %3910 = vmatpush.bf16.msra.mxu0 %v3705
        %3911 = vmatpush.bf16.msra.mxu0 %v3704
        %3912 = vmatpush.bf16.msra.mxu0 %v3703
        %3913 = vmatpush.bf16.msra.mxu0 %v3702
        %3914 = vmatmul.bf16.gmra.mxu0 %v3124
        %v3915 = vpop.f32.mrf.mxu0
        %v3916 = vadd.f32 %v3903, %v3915
        %v3917 = vpop.f32.mrf.mxu0
        %3918 = vdwg.mxu0
        %3919 = vmatpush.bf16.msra.mxu0 %v3717
        %3920 = vmatpush.bf16.msra.mxu0 %v3716
        %3921 = vmatpush.bf16.msra.mxu0 %v3715
        %3922 = vmatpush.bf16.msra.mxu0 %v3714
        %3923 = vmatpush.bf16.msra.mxu0 %v3713
        %3924 = vmatpush.bf16.msra.mxu0 %v3712
        %3925 = vmatpush.bf16.msra.mxu0 %v3711
        %3926 = vmatpush.bf16.msra.mxu0 %v3710
        %3927 = vmatmul.bf16.gmra.mxu0 %v3132
        %v3928 = vpop.f32.mrf.mxu0
        %v3929 = vadd.f32 %v3916, %v3928
        %v3930 = vpop.f32.mrf.mxu0
        %3931 = vdwg.mxu0
        %3932 = vmatpush.bf16.msra.mxu0 %v3725
        %3933 = vmatpush.bf16.msra.mxu0 %v3724
        %3934 = vmatpush.bf16.msra.mxu0 %v3723
        %3935 = vmatpush.bf16.msra.mxu0 %v3722
        %3936 = vmatpush.bf16.msra.mxu0 %v3721
        %3937 = vmatpush.bf16.msra.mxu0 %v3720
        %3938 = vmatpush.bf16.msra.mxu0 %v3719
        %3939 = vmatpush.bf16.msra.mxu0 %v3718
        %3940 = vmatmul.bf16.gmra.mxu0 %v3140
        %v3941 = vpop.f32.mrf.mxu0
        %v3942 = vadd.f32 %v3929, %v3941
        %v3943 = vpop.f32.mrf.mxu0
        %3944 = vdwg.mxu0
        %3945 = vmatpush.bf16.msra.mxu0 %v3733
        %3946 = vmatpush.bf16.msra.mxu0 %v3732
        %3947 = vmatpush.bf16.msra.mxu0 %v3731
        %3948 = vmatpush.bf16.msra.mxu0 %v3730
        %3949 = vmatpush.bf16.msra.mxu0 %v3729
        %3950 = vmatpush.bf16.msra.mxu0 %v3728
        %3951 = vmatpush.bf16.msra.mxu0 %v3727
        %3952 = vmatpush.bf16.msra.mxu0 %v3726
        %3953 = vmatmul.bf16.gmra.mxu0 %v3196
        %v3954 = vpop.f32.mrf.mxu0
        %v3955 = vadd.f32 %v3942, %v3954
        %v3956 = vpop.f32.mrf.mxu0
        %3957 = vdwg.mxu0
        %3958 = vmatpush.bf16.msra.mxu0 %v3741
        %3959 = vmatpush.bf16.msra.mxu0 %v3740
        %3960 = vmatpush.bf16.msra.mxu0 %v3739
        %3961 = vmatpush.bf16.msra.mxu0 %v3738
        %3962 = vmatpush.bf16.msra.mxu0 %v3737
        %3963 = vmatpush.bf16.msra.mxu0 %v3736
        %3964 = vmatpush.bf16.msra.mxu0 %v3735
        %3965 = vmatpush.bf16.msra.mxu0 %v3734
        %3966 = vmatmul.bf16.gmra.mxu0 %v3204
        %v3967 = vpop.f32.mrf.mxu0
        %v3968 = vadd.f32 %v3955, %v3967
        %v3969 = vpop.f32.mrf.mxu0
        %3970 = vdwg.mxu0
        %3971 = vmatpush.bf16.msra.mxu0 %v3749
        %3972 = vmatpush.bf16.msra.mxu0 %v3748
        %3973 = vmatpush.bf16.msra.mxu0 %v3747
        %3974 = vmatpush.bf16.msra.mxu0 %v3746
        %3975 = vmatpush.bf16.msra.mxu0 %v3745
        %3976 = vmatpush.bf16.msra.mxu0 %v3744
        %3977 = vmatpush.bf16.msra.mxu0 %v3743
        %3978 = vmatpush.bf16.msra.mxu0 %v3742
        %3979 = vmatmul.bf16.gmra.mxu0 %v3212
        %v3980 = vpop.f32.mrf.mxu0
        %v3981 = vadd.f32 %v3968, %v3980
        %v3982 = vpop.f32.mrf.mxu0
        %3983 = vdwg.mxu0
        %3984 = vmatpush.bf16.msra.mxu0 %v3757
        %3985 = vmatpush.bf16.msra.mxu0 %v3756
        %3986 = vmatpush.bf16.msra.mxu0 %v3755
        %3987 = vmatpush.bf16.msra.mxu0 %v3754
        %3988 = vmatpush.bf16.msra.mxu0 %v3753
        %3989 = vmatpush.bf16.msra.mxu0 %v3752
        %3990 = vmatpush.bf16.msra.mxu0 %v3751
        %3991 = vmatpush.bf16.msra.mxu0 %v3750
        %3992 = vmatmul.bf16.gmra.mxu0 %v3220
        %v3993 = vpop.f32.mrf.mxu0
        %v3994 = vadd.f32 %v3981, %v3993
        %v3995 = vpop.f32.mrf.mxu0
        %3996 = vdwg.mxu0
        %3997 = vmatpush.bf16.msra.mxu0 %v3765
        %3998 = vmatpush.bf16.msra.mxu0 %v3764
        %3999 = vmatpush.bf16.msra.mxu0 %v3763
        %4000 = vmatpush.bf16.msra.mxu0 %v3762
        %4001 = vmatpush.bf16.msra.mxu0 %v3761
        %4002 = vmatpush.bf16.msra.mxu0 %v3760
        %4003 = vmatpush.bf16.msra.mxu0 %v3759
        %4004 = vmatpush.bf16.msra.mxu0 %v3758
        %4005 = vmatmul.bf16.gmra.mxu0 %v3276
        %v4006 = vpop.f32.mrf.mxu0
        %v4007 = vadd.f32 %v3994, %v4006
        %v4008 = vpop.f32.mrf.mxu0
        %4009 = vdwg.mxu0
        %4010 = vmatpush.bf16.msra.mxu0 %v3773
        %4011 = vmatpush.bf16.msra.mxu0 %v3772
        %4012 = vmatpush.bf16.msra.mxu0 %v3771
        %4013 = vmatpush.bf16.msra.mxu0 %v3770
        %4014 = vmatpush.bf16.msra.mxu0 %v3769
        %4015 = vmatpush.bf16.msra.mxu0 %v3768
        %4016 = vmatpush.bf16.msra.mxu0 %v3767
        %4017 = vmatpush.bf16.msra.mxu0 %v3766
        %4018 = vmatmul.bf16.gmra.mxu0 %v3284
        %v4019 = vpop.f32.mrf.mxu0
        %v4020 = vadd.f32 %v4007, %v4019
        %v4021 = vpop.f32.mrf.mxu0
        %4022 = vdwg.mxu0
        %4023 = vmatpush.bf16.msra.mxu0 %v3781
        %4024 = vmatpush.bf16.msra.mxu0 %v3780
        %4025 = vmatpush.bf16.msra.mxu0 %v3779
        %4026 = vmatpush.bf16.msra.mxu0 %v3778
        %4027 = vmatpush.bf16.msra.mxu0 %v3777
        %4028 = vmatpush.bf16.msra.mxu0 %v3776
        %4029 = vmatpush.bf16.msra.mxu0 %v3775
        %4030 = vmatpush.bf16.msra.mxu0 %v3774
        %4031 = vmatmul.bf16.gmra.mxu0 %v3292
        %v4032 = vpop.f32.mrf.mxu0
        %v4033 = vadd.f32 %v4020, %v4032
        %v4034 = vpop.f32.mrf.mxu0
        %4035 = vdwg.mxu0
        %4036 = vmatpush.bf16.msra.mxu0 %v3789
        %4037 = vmatpush.bf16.msra.mxu0 %v3788
        %4038 = vmatpush.bf16.msra.mxu0 %v3787
        %4039 = vmatpush.bf16.msra.mxu0 %v3786
        %4040 = vmatpush.bf16.msra.mxu0 %v3785
        %4041 = vmatpush.bf16.msra.mxu0 %v3784
        %4042 = vmatpush.bf16.msra.mxu0 %v3783
        %4043 = vmatpush.bf16.msra.mxu0 %v3782
        %4044 = vmatmul.bf16.gmra.mxu0 %v3300
        %v4045 = vpop.f32.mrf.mxu0
        %v4046 = vadd.f32 %v4033, %v4045
        %v4047 = vpop.f32.mrf.mxu0
        %4048 = vdwg.mxu0
        %4049 = vmatpush.bf16.msra.mxu0 0
        %4050 = vmatpush.bf16.msra.mxu0 0
        %4051 = vmatpush.bf16.msra.mxu0 0
        %4052 = vmatpush.bf16.msra.mxu0 0
        %4053 = vmatpush.bf16.msra.mxu0 0
        %4054 = vmatpush.bf16.msra.mxu0 0
        %4055 = vmatpush.bf16.msra.mxu0 %v3791
        %4056 = vmatpush.bf16.msra.mxu0 %v3790
        %4057 = vmatmul.bf16.gmra.mxu0 %v3891
        %v4058 = vpop.f32.mrf.mxu0
        %v4059 = vadd.f32 %v4046, %v4058
        %v4060 = vpop.f32.mrf.mxu0
        %4061 = vdwg.mxu0
        %vm4062 = vcmask 73728
        %4063 = vst.msk [vmem:[%s342] sm:$0x1] %vm4062, %v4059
        %s4064 = sand.u32 %s218, 1
        %s4065 = scalar_lea.sflag [#allocation3], %s4064
        %s4066 = sand.u32 %s218, 1
        %s4067 = scalar_lea.vmem [#allocation2], %s4066
        // Predicated region
        $region53: #{cnn_forward.3} parent=51 // pred_check
          %p4068 = pneg %p228
        $region54: #{cnn_forward.3} parent=51 // pred_check_branch
          %4070 = sbr.rel (%p4068) target = $region56
        $region55: #{cnn_forward.3} parent=51 // pred_region
          %4072 = vsyncadd %s4065, 0
          %s4073 = scalar_lea.hbm %s8, %s22
          %s4075 = sshll.u32 %s4067, 4
          %s4076 = int_to_ptr.vmem [resolvable:$true] %s4075
          %s4077 = sshll.u32 %s4073, 4
          %s4078 = int_to_ptr.hbm [resolvable:$true] %s4077
          %4080 = dma.vmem_to_hbm [thread:$0]  %s4076, 16, %s4078, %s4065
        $region56: #{cnn_forward.3} parent=51 // pred_fallthru
          _
      $region52: #{cnn_forward.3} parent=5 // pred_fallthru
        _
      %p4081 = scmp.le.s32.totalorder 2, %s17
      // Predicated region
      $region57: #{cnn_forward.3} parent=5 // pred_check
        %p4082 = pneg %p4081
      $region58: #{cnn_forward.3} parent=5 // pred_check_branch
        %4084 = sbr.rel (%p4082) target = $region60
      $region59: #{cnn_forward.3} parent=5 // pred_region
        %s4085 = ssub.s32 %s17, 2
        // Predicated region
        $region61: #{cnn_forward.3} parent=59 // pred_check
          %p4086 = pneg %p234
        $region62: #{cnn_forward.3} parent=59 // pred_check_branch
          %4088 = sbr.rel (%p4086) target = $region64
        $region63: #{cnn_forward.3} parent=59 // pred_region
          %s4089 = sand.u32 %s219, 1
          %s4090 = scalar_lea.sflag [#allocation3], %s4089
          %s4091 = sand.u32 %s219, 1
          %s4092 = scalar_lea.vmem [#allocation2], %s4091
          %4094 = dma.done %s4090, 16
        $region64: #{cnn_forward.3} parent=59 // pred_fallthru
          _
      $region60: #{cnn_forward.3} parent=5 // pred_fallthru
        _
    $region6: #{cnn_forward.3} parent=1 // loop_footer
      %s21 = sadd.s32 1, %s17
    $region7: #{cnn_forward.3} parent=1 // loop_footer_branch
      %16 = sbr.rel target = $region3
    $region8: #{cnn_forward.3} parent=1 // loop_exit
      _
    %4095 = vsyncpa [#allocation3], 1
    %s4096 = scalar_lea.sflag [#allocation3], 1
    %4097 = vsyncpa %s4096, 1

</llo_original>
